<compile_context>
chip_gen: v7x
topology: tpu7x:2x2x1
jax: 0.10.0
libtpu: 0.0.40
codegen_flags: <defaults>
</compile_context>

<pallas_src>
import functools
import math

import jax
import jax.numpy as jnp
from jax.experimental import pallas as pl
from jax.experimental.pallas import tpu as pltpu


# ---------------------- conv (im2col) Pallas matmul kernel ----------------------

def _conv_matmul_kernel(w_ref, cols_ref, b_ref, o_ref):
    # (Cout, K) @ (K, TM) -> (Cout, TM); bf16 operands, f32 accumulate,
    # bias + ReLU in f32 (lane-dense output block).
    acc = jnp.dot(w_ref[...], cols_ref[...], preferred_element_type=jnp.float32)
    o_ref[...] = jnp.maximum(acc + b_ref[...], 0.0)


def _pick_tile(m, cap=512):
    for t in (cap, 256, 128):
        if m >= t and m % t == 0:
            return t
    return m


def conv3x3_relu(x, w_mat, b_col, stride):
    """Conv2d(k=3, padding=1, stride) + ReLU on NCHW via im2col + Pallas matmul.

    Computed transposed so the large N*Ho*Wo axis sits on lanes and is tiled
    over a 'parallel' grid axis.
    """
    N, Cin, H, W = x.shape
    Cout = w_mat.shape[0]
    K = Cin * 9
    xb = x.astype(jnp.bfloat16)                       # bf16 MXU operand
    xp = jnp.pad(xb, ((0, 0), (0, 0), (1, 1), (1, 1)))
    Hout = (H + 2 - 3) // stride + 1
    Wout = (W + 2 - 3) // stride + 1
    patches = []
    for dy in range(3):
        for dx in range(3):
            patches.append(xp[:, :,
                              dy:dy + (Hout - 1) * stride + 1:stride,
                              dx:dx + (Wout - 1) * stride + 1:stride])
    patches = jnp.stack(patches, axis=2)              # (N, Cin, 9, Ho, Wo)
    cols_t = patches.transpose(1, 2, 0, 3, 4).reshape(K, N * Hout * Wout)
    M = N * Hout * Wout
    tm = _pick_tile(M)
    out_t = pl.pallas_call(
        _conv_matmul_kernel,
        out_shape=jax.ShapeDtypeStruct((Cout, M), jnp.float32),
        grid=(M // tm,),
        in_specs=[
            pl.BlockSpec((Cout, K), lambda i: (0, 0)),
            pl.BlockSpec((K, tm), lambda i: (0, i)),
            pl.BlockSpec((Cout, 1), lambda i: (0, 0)),
        ],
        out_specs=pl.BlockSpec((Cout, tm), lambda i: (0, i)),
        compiler_params=pltpu.CompilerParams(dimension_semantics=("parallel",)),
    )(w_mat, cols_t, b_col)
    # (Cout, N*Ho*Wo) -> (N, Cout, Ho, Wo)
    return out_t.reshape(Cout, N, Hout, Wout).transpose(1, 0, 2, 3)


# ----------------- fused fc1/fc2 + transformer encoder + sor kernel -----------------

def _fused_head_kernel(h_ref, pos_ref,
                       fc1_w, fc1_b, fc2_w, fc2_b,
                       wq, bq, wk, bk, wv, bv, wo, bo,
                       l1w, l1b, l2w, l2b,
                       ln1g, ln1b, ln2g, ln2b,
                       sorw, sorb, o_ref,
                       *, nhead, num_layers, head_dim, eps):
    f32 = jnp.float32

    def _ln(y, g, b):
        mu = jnp.mean(y, axis=-1, keepdims=True)
        var = jnp.mean(jnp.square(y - mu), axis=-1, keepdims=True)
        return (y - mu) * jax.lax.rsqrt(var + eps) * g + b

    # fc1 + relu
    x = jnp.dot(h_ref[...], fc1_w[...], preferred_element_type=f32) + fc1_b[...]
    x = jnp.maximum(x, 0.0)
    # fc2 (widened to d_model cols, trailing cols zero) + relu; adding the
    # zero-padded pos reproduces concat([relu(fc2(x)), pos], -1) exactly.
    obj = jnp.maximum(
        jnp.dot(x, fc2_w[...], preferred_element_type=f32) + fc2_b[...], 0.0)
    src = obj + pos_ref[...]                           # (S, E)

    scale = 1.0 / math.sqrt(head_dim)
    for l in range(num_layers):
        # --- multi-head self-attention (per-head, pre-split weights) ---
        attn = bo[l]                                   # (1, E) -> broadcasts
        for h in range(nhead):
            q = jnp.dot(src, wq[l, h], preferred_element_type=f32) + bq[l, h]
            k = jnp.dot(src, wk[l, h], preferred_element_type=f32) + bk[l, h]
            v = jnp.dot(src, wv[l, h], preferred_element_type=f32) + bv[l, h]
            s = jax.lax.dot_general(q, k, (((1,), (1,)), ((), ())),
                                    preferred_element_type=f32) * scale
            m = jnp.max(s, axis=-1, keepdims=True)
            p = jnp.exp(s - m)
            p = p * pl.reciprocal(jnp.sum(p, axis=-1, keepdims=True), approx=True)
            o_h = jnp.dot(p, v, preferred_element_type=f32)          # (S, dh)
            attn = attn + jnp.dot(o_h, wo[l, h], preferred_element_type=f32)
        # post-norm TransformerEncoderLayer (relu activation, no dropout)
        src = _ln(src + attn, ln1g[l], ln1b[l])
        ff = jnp.maximum(
            jnp.dot(src, l1w[l], preferred_element_type=f32) + l1b[l], 0.0)
        ff = jnp.dot(ff, l2w[l], preferred_element_type=f32) + l2b[l]
        src = _ln(src + ff, ln2g[l], ln2b[l])

    o_ref[...] = (jnp.dot(src, sorw[...], preferred_element_type=f32)
                  + sorb[...]).astype(o_ref.dtype)


# ------------------------------ JAX glue ops -------------------------------

def maxpool2x2(m):
    # nn.MaxPool2d(kernel_size=2, stride=2) on NCHW (tiny mask pooling, glue)
    N, C, H, W = m.shape
    return m.reshape(N, C, H // 2, 2, W // 2, 2).max(axis=(3, 5))


# ------------------------------ Full forward --------------------------------

def sor_forward(params, x, mask, boxes, img_w, img_h, *, static):
    # mask_pool = self.pooling(mask); x = cat((x, mask_pool), 1)
    mask_pool = maxpool2x2(mask)
    h = jnp.concatenate([x, mask_pool], axis=1)
    # conv_relus (last layer stride 2)
    for w_mat, b_col, stride in zip(params['conv_w'], params['conv_b'],
                                    static['strides']):
        h = conv3x3_relu(h, w_mat, b_col, stride)
    # flatten
    h = h.reshape(h.shape[0], -1)

    # pos from boxes (exactly as the PyTorch code, including the `+` in row 3)
    pos = jnp.stack([
        0.5 * (boxes[:, 0] + boxes[:, 2]) / img_w,
        0.5 * (boxes[:, 1] + boxes[:, 3]) / img_h,
        (boxes[:, 2] - boxes[:, 0]) / img_w,
        (boxes[:, 3] + boxes[:, 1]) / img_h,
    ], axis=1)
    pos_pad = jnp.pad(pos, ((0, 0), (static['obj_base'], 0)))   # (S, d_model)

    # fc1 + fc2 + concat + transformer encoder (eval-mode single group, batch=1)
    # + final sor linear, all fused in one Pallas kernel (everything in VMEM).
    t = params['trans']
    S = h.shape[0]
    num_ranks = params['sor_w'].shape[1]
    kernel = functools.partial(
        _fused_head_kernel, nhead=static['nhead'],
        num_layers=static['num_layers'], head_dim=static['head_dim'], eps=1e-5)
    return pl.pallas_call(
        kernel,
        out_shape=jax.ShapeDtypeStruct((S, num_ranks), jnp.float32),
    )(h, pos_pad,
      params['fc1_w'], params['fc1_b'], params['fc2_w'], params['fc2_b'],
      t['wq'], t['bq'], t['wk'], t['bk'], t['wv'], t['bv'], t['wo'], t['bo'],
      t['l1w'], t['l1b'], t['l2w'], t['l2b'],
      t['ln1g'], t['ln1b'], t['ln2g'], t['ln2b'],
      params['sor_w'], params['sor_b'])


# ----------------------------- Parameter init --------------------------------

def _normal(key, shape, std):
    return std * jax.random.normal(key, shape, dtype=jnp.float32)


def init_params(key, *, in_channels, width, conv_dim, num_conv, dense_dim,
                obj_dim_base, num_ranks, d_model, nhead, num_layers):
    ks = iter(jax.random.split(key, 128))
    resolution = width // 2
    input_channels = in_channels + 1
    head_dim = d_model // nhead
    assert obj_dim_base + 4 == d_model, "TRANSFORMER.D_MODEL must equal OBJ_DIM + 4"

    params = {}

    # convs: store bf16 (Cout, Cin*9) matrices + f32 (Cout, 1) bias (hoisted casts)
    conv_w, conv_b, strides = [], [], []
    cin = input_channels
    for k in range(num_conv):
        stride = 2 if (k + 1) == num_conv else 1
        w = _normal(next(ks), (conv_dim, cin, 3, 3), math.sqrt(2.0 / (cin * 9)))
        conv_w.append(w.reshape(conv_dim, cin * 9).astype(jnp.bfloat16))
        conv_b.append(jnp.zeros((conv_dim, 1), jnp.float32))
        strides.append(stride)
        cin = conv_dim
    params['conv_w'] = conv_w
    params['conv_b'] = conv_b

    fc1_in = conv_dim * resolution ** 2
    params['fc1_w'] = _normal(next(ks), (fc1_in, dense_dim), math.sqrt(2.0 / fc1_in))
    params['fc1_b'] = jnp.zeros((1, dense_dim), jnp.float32)

    # fc2 widened to d_model columns; trailing (d_model - obj_dim_base) columns
    # are zero so relu(fc2(x)) + pad(pos) == concat([relu(fc2(x)), pos], -1).
    fc2_w = _normal(next(ks), (dense_dim, obj_dim_base), math.sqrt(2.0 / dense_dim))
    params['fc2_w'] = jnp.concatenate(
        [fc2_w, jnp.zeros((dense_dim, d_model - obj_dim_base), jnp.float32)], axis=1)
    params['fc2_b'] = jnp.zeros((1, d_model), jnp.float32)

    std_a = math.sqrt(1.0 / d_model)
    std_f1 = math.sqrt(2.0 / d_model)
    std_f2 = math.sqrt(2.0 / (4 * d_model))

    def per_head(shape, std):
        return jnp.stack([
            jnp.stack([_normal(next(ks), shape, std) for _ in range(nhead)])
            for _ in range(num_layers)])

    def per_layer(shape, std):
        return jnp.stack([_normal(next(ks), shape, std) for _ in range(num_layers)])

    trans = {
        # pre-split per-head projections (equivalent to slicing in_proj/out_proj)
        'wq': per_head((d_model, head_dim), std_a),
        'wk': per_head((d_model, head_dim), std_a),
        'wv': per_head((d_model, head_dim), std_a),
        'bq': jnp.zeros((num_layers, nhead, 1, head_dim), jnp.float32),
        'bk': jnp.zeros((num_layers, nhead, 1, head_dim), jnp.float32),
        'bv': jnp.zeros((num_layers, nhead, 1, head_dim), jnp.float32),
        'wo': per_head((head_dim, d_model), std_a),
        'bo': jnp.zeros((num_layers, 1, d_model), jnp.float32),
        # feed-forward
        'l1w': per_layer((d_model, 4 * d_model), std_f1),
        'l1b': jnp.zeros((num_layers, 1, 4 * d_model), jnp.float32),
        'l2w': per_layer((4 * d_model, d_model), std_f2),
        'l2b': jnp.zeros((num_layers, 1, d_model), jnp.float32),
        # layer norms
        'ln1g': jnp.ones((num_layers, 1, d_model), jnp.float32),
        'ln1b': jnp.zeros((num_layers, 1, d_model), jnp.float32),
        'ln2g': jnp.ones((num_layers, 1, d_model), jnp.float32),
        'ln2b': jnp.zeros((num_layers, 1, d_model), jnp.float32),
    }
    params['trans'] = trans

    params['sor_w'] = _normal(next(ks), (d_model, num_ranks), 0.01)
    params['sor_b'] = jnp.zeros((1, num_ranks), jnp.float32)

    static = dict(strides=tuple(strides), nhead=nhead, num_layers=num_layers,
                  head_dim=head_dim, obj_base=obj_dim_base)
    return params, static


# ---------------------------------- main -------------------------------------

if __name__ == "__main__":
    # Synthetic config (cfg.MODEL.SOR.*)
    NUM_RANKS = 8
    CONV_DIM = 16
    NUM_CONV = 2
    DENSE_DIM = 64
    OBJ_DIM = 28          # obj_dim = OBJ_DIM + 4 = 32
    D_MODEL = 32
    N_HEAD = 4
    LAYERS = 2
    IMG_H, IMG_W = 64.0, 64.0

    # input_shape: channels=4, width=height=16  -> resolution = 8
    C_IN, WIDTH = 4, 16
    N_PROPOSALS = 8       # eval mode: one group containing all proposals

    key = jax.random.PRNGKey(0)
    k_params, k_x, k_mask, k_box = jax.random.split(key, 4)

    params, static = init_params(
        k_params, in_channels=C_IN, width=WIDTH, conv_dim=CONV_DIM,
        num_conv=NUM_CONV, dense_dim=DENSE_DIM, obj_dim_base=OBJ_DIM,
        num_ranks=NUM_RANKS, d_model=D_MODEL, nhead=N_HEAD, num_layers=LAYERS)

    x = jax.random.normal(k_x, (N_PROPOSALS, C_IN, WIDTH, WIDTH), dtype=jnp.float32)
    mask = (jax.random.uniform(k_mask, (N_PROPOSALS, 1, 2 * WIDTH, 2 * WIDTH),
                               dtype=jnp.float32) > 0.5).astype(jnp.float32)
    # pred_boxes (x1, y1, x2, y2) inside a 64x64 image
    b0 = jax.random.uniform(k_box, (N_PROPOSALS, 2), minval=0.0, maxval=IMG_W / 2)
    wh = jax.random.uniform(jax.random.fold_in(k_box, 1), (N_PROPOSALS, 2),
                            minval=4.0, maxval=IMG_W / 2)
    boxes = jnp.concatenate([b0, b0 + wh], axis=1).astype(jnp.float32)

    forward = jax.jit(functools.partial(sor_forward, static=static))
    out = forward(params, x, mask, boxes, IMG_W, IMG_H)
    out = jax.block_until_ready(out)

    assert out.shape == (N_PROPOSALS, NUM_RANKS), out.shape
    assert bool(jnp.all(jnp.isfinite(out)))
    print("KERNEL_OK")
</pallas_src>

<mosaic_0001>
module attributes {stable_mosaic.version = 11 : i64} {
  func.func @_conv_matmul_kernel(%arg0: i32, %arg1: memref<16x45xbf16, #tpu.memory_space<vmem>>, %arg2: memref<45x512xbf16, #tpu.memory_space<vmem>>, %arg3: memref<16x1xf32, #tpu.memory_space<vmem>>, %arg4: memref<16x512xf32, #tpu.memory_space<vmem>>) attributes {dimension_semantics = [#tpu.dimension_semantics<parallel>], iteration_bounds = array<i64: 4>, scalar_prefetch = 0 : i64, scratch_operands = 0 : i64, tpu.core_type = #tpu.core_type<tc>, window_params = [{pipeline_mode = #tpu.pipeline_mode<synchronous>, transform_indices = @transform_0, window_bounds = array<i64: 16, 45>}, {transform_indices = @transform_1, window_bounds = array<i64: 45, 512>}, {pipeline_mode = #tpu.pipeline_mode<synchronous>, transform_indices = @transform_2, window_bounds = array<i64: 16, 1>}, {transform_indices = @transform_3, window_bounds = array<i64: 16, 512>}]} {
    %c0 = arith.constant 0 : index
    %c0_0 = arith.constant 0 : index
    %0 = vector.load %arg1[%c0, %c0_0] : memref<16x45xbf16, #tpu.memory_space<vmem>>, vector<16x45xbf16>
    %c0_1 = arith.constant 0 : index
    %c0_2 = arith.constant 0 : index
    %1 = vector.load %arg2[%c0_1, %c0_2] : memref<45x512xbf16, #tpu.memory_space<vmem>>, vector<45x512xbf16>
    %cst = arith.constant dense<0.000000e+00> : vector<16x512xf32>
    %2 = tpu.matmul %0, %1, %cst {dimension_numbers = #tpu.dot_dimension_numbers<[1], [0], [0], [1], [0, 0, 1, 1], [], []>} : vector<16x45xbf16>, vector<45x512xbf16>, vector<16x512xf32> -> vector<16x512xf32>
    %c0_3 = arith.constant 0 : index
    %c0_4 = arith.constant 0 : index
    %3 = vector.load %arg3[%c0_3, %c0_4] : memref<16x1xf32, #tpu.memory_space<vmem>>, vector<16x1xf32>
    %4 = vector.broadcast %3 : vector<16x1xf32> to vector<16x512xf32>
    %5 = arith.addf %2, %4 : vector<16x512xf32>
    %cst_5 = arith.constant 0.000000e+00 : f32
    %6 = vector.broadcast %cst_5 : f32 to vector<16x512xf32>
    %7 = arith.maximumf %5, %6 : vector<16x512xf32>
    %c0_6 = arith.constant 0 : index
    %c0_7 = arith.constant 0 : index
    %8 = vector.load %arg4[%c0_6, %c0_7] : memref<16x512xf32, #tpu.memory_space<vmem>>, vector<16x512xf32>
    tpu.vector_store %arg4[%c0_6, %c0_7], %7 {strides = array<i32>} : memref<16x512xf32, #tpu.memory_space<vmem>>, vector<16x512xf32>,
    return
  }
  func.func @transform_0(%arg0: i32) -> (i32, i32) {
    %c0_i32 = arith.constant 0 : i32
    %c0_i32_0 = arith.constant 0 : i32
    %c0_i32_1 = arith.constant 0 : i32
    return %c0_i32, %c0_i32_0 : i32, i32
  }
  func.func @transform_1(%arg0: i32) -> (i32, i32) {
    %c0_i32 = arith.constant 0 : i32
    %c0_i32_0 = arith.constant 0 : i32
    return %c0_i32, %arg0 : i32, i32
  }
  func.func @transform_2(%arg0: i32) -> (i32, i32) {
    %c0_i32 = arith.constant 0 : i32
    %c0_i32_0 = arith.constant 0 : i32
    %c0_i32_1 = arith.constant 0 : i32
    return %c0_i32, %c0_i32_0 : i32, i32
  }
  func.func @transform_3(%arg0: i32) -> (i32, i32) {
    %c0_i32 = arith.constant 0 : i32
    %c0_i32_0 = arith.constant 0 : i32
    return %c0_i32, %arg0 : i32, i32
  }
}

module attributes {stable_mosaic.version = 11 : i64} {
  func.func @_conv_matmul_kernel(%arg0: i32, %arg1: memref<16x144xbf16, #tpu.memory_space<vmem>>, %arg2: memref<144x512xbf16, #tpu.memory_space<vmem>>, %arg3: memref<16x1xf32, #tpu.memory_space<vmem>>, %arg4: memref<16x512xf32, #tpu.memory_space<vmem>>) attributes {dimension_semantics = [#tpu.dimension_semantics<parallel>], iteration_bounds = array<i64: 1>, scalar_prefetch = 0 : i64, scratch_operands = 0 : i64, tpu.core_type = #tpu.core_type<tc>, window_params = [{pipeline_mode = #tpu.pipeline_mode<synchronous>, transform_indices = @transform_0, window_bounds = array<i64: 16, 144>}, {transform_indices = @transform_1, window_bounds = array<i64: 144, 512>}, {pipeline_mode = #tpu.pipeline_mode<synchronous>, transform_indices = @transform_2, window_bounds = array<i64: 16, 1>}, {transform_indices = @transform_3, window_bounds = array<i64: 16, 512>}]} {
    %c0 = arith.constant 0 : index
    %c0_0 = arith.constant 0 : index
    %0 = vector.load %arg1[%c0, %c0_0] : memref<16x144xbf16, #tpu.memory_space<vmem>>, vector<16x144xbf16>
    %c0_1 = arith.constant 0 : index
    %c0_2 = arith.constant 0 : index
    %1 = vector.load %arg2[%c0_1, %c0_2] : memref<144x512xbf16, #tpu.memory_space<vmem>>, vector<144x512xbf16>
    %cst = arith.constant dense<0.000000e+00> : vector<16x512xf32>
    %2 = tpu.matmul %0, %1, %cst {dimension_numbers = #tpu.dot_dimension_numbers<[1], [0], [0], [1], [0, 0, 1, 1], [], []>} : vector<16x144xbf16>, vector<144x512xbf16>, vector<16x512xf32> -> vector<16x512xf32>
    %c0_3 = arith.constant 0 : index
    %c0_4 = arith.constant 0 : index
    %3 = vector.load %arg3[%c0_3, %c0_4] : memref<16x1xf32, #tpu.memory_space<vmem>>, vector<16x1xf32>
    %4 = vector.broadcast %3 : vector<16x1xf32> to vector<16x512xf32>
    %5 = arith.addf %2, %4 : vector<16x512xf32>
    %cst_5 = arith.constant 0.000000e+00 : f32
    %6 = vector.broadcast %cst_5 : f32 to vector<16x512xf32>
    %7 = arith.maximumf %5, %6 : vector<16x512xf32>
    %c0_6 = arith.constant 0 : index
    %c0_7 = arith.constant 0 : index
    %8 = vector.load %arg4[%c0_6, %c0_7] : memref<16x512xf32, #tpu.memory_space<vmem>>, vector<16x512xf32>
    tpu.vector_store %arg4[%c0_6, %c0_7], %7 {strides = array<i32>} : memref<16x512xf32, #tpu.memory_space<vmem>>, vector<16x512xf32>,
    return
  }
  func.func @transform_0(%arg0: i32) -> (i32, i32) {
    %c0_i32 = arith.constant 0 : i32
    %c0_i32_0 = arith.constant 0 : i32
    %c0_i32_1 = arith.constant 0 : i32
    return %c0_i32, %c0_i32_0 : i32, i32
  }
  func.func @transform_1(%arg0: i32) -> (i32, i32) {
    %c0_i32 = arith.constant 0 : i32
    %c0_i32_0 = arith.constant 0 : i32
    return %c0_i32, %arg0 : i32, i32
  }
  func.func @transform_2(%arg0: i32) -> (i32, i32) {
    %c0_i32 = arith.constant 0 : i32
    %c0_i32_0 = arith.constant 0 : i32
    %c0_i32_1 = arith.constant 0 : i32
    return %c0_i32, %c0_i32_0 : i32, i32
  }
  func.func @transform_3(%arg0: i32) -> (i32, i32) {
    %c0_i32 = arith.constant 0 : i32
    %c0_i32_0 = arith.constant 0 : i32
    return %c0_i32, %arg0 : i32, i32
  }
}

module attributes {stable_mosaic.version = 11 : i64} {
  func.func @_fused_head_kernel(%arg0: memref<8x1024xf32, #tpu.memory_space<vmem>>, %arg1: memref<8x32xf32, #tpu.memory_space<vmem>>, %arg2: memref<1024x64xf32, #tpu.memory_space<vmem>>, %arg3: memref<1x64xf32, #tpu.memory_space<vmem>>, %arg4: memref<64x32xf32, #tpu.memory_space<vmem>>, %arg5: memref<1x32xf32, #tpu.memory_space<vmem>>, %arg6: memref<2x4x32x8xf32, #tpu.memory_space<vmem>>, %arg7: memref<2x4x1x8xf32, #tpu.memory_space<vmem>>, %arg8: memref<2x4x32x8xf32, #tpu.memory_space<vmem>>, %arg9: memref<2x4x1x8xf32, #tpu.memory_space<vmem>>, %arg10: memref<2x4x32x8xf32, #tpu.memory_space<vmem>>, %arg11: memref<2x4x1x8xf32, #tpu.memory_space<vmem>>, %arg12: memref<2x4x8x32xf32, #tpu.memory_space<vmem>>, %arg13: memref<2x1x32xf32, #tpu.memory_space<vmem>>, %arg14: memref<2x32x128xf32, #tpu.memory_space<vmem>>, %arg15: memref<2x1x128xf32, #tpu.memory_space<vmem>>, %arg16: memref<2x128x32xf32, #tpu.memory_space<vmem>>, %arg17: memref<2x1x32xf32, #tpu.memory_space<vmem>>, %arg18: memref<2x1x32xf32, #tpu.memory_space<vmem>>, %arg19: memref<2x1x32xf32, #tpu.memory_space<vmem>>, %arg20: memref<2x1x32xf32, #tpu.memory_space<vmem>>, %arg21: memref<2x1x32xf32, #tpu.memory_space<vmem>>, %arg22: memref<32x8xf32, #tpu.memory_space<vmem>>, %arg23: memref<1x8xf32, #tpu.memory_space<vmem>>, %arg24: memref<8x8xf32, #tpu.memory_space<vmem>>) attributes {dimension_semantics = [], scalar_prefetch = 0 : i64, scratch_operands = 0 : i64, tpu.core_type = #tpu.core_type<tc>} {
    %c0 = arith.constant 0 : index
    %c0_0 = arith.constant 0 : index
    %0 = vector.load %arg0[%c0, %c0_0] : memref<8x1024xf32, #tpu.memory_space<vmem>>, vector<8x1024xf32>
    %c0_1 = arith.constant 0 : index
    %c0_2 = arith.constant 0 : index
    %1 = vector.load %arg2[%c0_1, %c0_2] : memref<1024x64xf32, #tpu.memory_space<vmem>>, vector<1024x64xf32>
    %cst = arith.constant dense<0.000000e+00> : vector<8x64xf32>
    %2 = tpu.matmul %0, %1, %cst {dimension_numbers = #tpu.dot_dimension_numbers<[1], [0], [0], [1], [0, 0, 1, 1], [], []>} : vector<8x1024xf32>, vector<1024x64xf32>, vector<8x64xf32> -> vector<8x64xf32>
    %c0_3 = arith.constant 0 : index
    %c0_4 = arith.constant 0 : index
    %3 = vector.load %arg3[%c0_3, %c0_4] : memref<1x64xf32, #tpu.memory_space<vmem>>, vector<1x64xf32>
    %4 = vector.broadcast %3 : vector<1x64xf32> to vector<8x64xf32>
    %5 = arith.addf %2, %4 : vector<8x64xf32>
    %cst_5 = arith.constant 0.000000e+00 : f32
    %6 = vector.broadcast %cst_5 : f32 to vector<8x64xf32>
    %7 = arith.maximumf %5, %6 : vector<8x64xf32>
    %c0_6 = arith.constant 0 : index
    %c0_7 = arith.constant 0 : index
    %8 = vector.load %arg4[%c0_6, %c0_7] : memref<64x32xf32, #tpu.memory_space<vmem>>, vector<64x32xf32>
    %cst_8 = arith.constant dense<0.000000e+00> : vector<8x32xf32>
    %9 = tpu.matmul %7, %8, %cst_8 {dimension_numbers = #tpu.dot_dimension_numbers<[1], [0], [0], [1], [0, 0, 1, 1], [], []>} : vector<8x64xf32>, vector<64x32xf32>, vector<8x32xf32> -> vector<8x32xf32>
    %c0_9 = arith.constant 0 : index
    %c0_10 = arith.constant 0 : index
    %10 = vector.load %arg5[%c0_9, %c0_10] : memref<1x32xf32, #tpu.memory_space<vmem>>, vector<1x32xf32>
    %11 = vector.broadcast %10 : vector<1x32xf32> to vector<8x32xf32>
    %12 = arith.addf %9, %11 : vector<8x32xf32>
    %cst_11 = arith.constant 0.000000e+00 : f32
    %13 = vector.broadcast %cst_11 : f32 to vector<8x32xf32>
    %14 = arith.maximumf %12, %13 : vector<8x32xf32>
    %c0_12 = arith.constant 0 : index
    %c0_13 = arith.constant 0 : index
    %15 = vector.load %arg1[%c0_12, %c0_13] : memref<8x32xf32, #tpu.memory_space<vmem>>, vector<8x32xf32>
    %16 = arith.addf %14, %15 : vector<8x32xf32>
    %c0_14 = arith.constant 0 : index
    %c0_15 = arith.constant 0 : index
    %c0_16 = arith.constant 0 : index
    %17 = vector.load %arg13[%c0_14, %c0_15, %c0_16] : memref<2x1x32xf32, #tpu.memory_space<vmem>>, vector<1x1x32xf32>
    %18 = vector.shape_cast %17 : vector<1x1x32xf32> to vector<1x32xf32>
    %c0_17 = arith.constant 0 : index
    %c0_18 = arith.constant 0 : index
    %c0_19 = arith.constant 0 : index
    %c0_20 = arith.constant 0 : index
    %19 = vector.load %arg6[%c0_17, %c0_18, %c0_19, %c0_20] : memref<2x4x32x8xf32, #tpu.memory_space<vmem>>, vector<1x1x32x8xf32>
    %20 = vector.shape_cast %19 : vector<1x1x32x8xf32> to vector<32x8xf32>
    %cst_21 = arith.constant dense<0.000000e+00> : vector<8x8xf32>
    %21 = tpu.matmul %16, %20, %cst_21 {dimension_numbers = #tpu.dot_dimension_numbers<[1], [0], [0], [1], [0, 0, 1, 1], [], []>} : vector<8x32xf32>, vector<32x8xf32>, vector<8x8xf32> -> vector<8x8xf32>
    %c0_22 = arith.constant 0 : index
    %c0_23 = arith.constant 0 : index
    %c0_24 = arith.constant 0 : index
    %c0_25 = arith.constant 0 : index
    %22 = vector.load %arg7[%c0_22, %c0_23, %c0_24, %c0_25] : memref<2x4x1x8xf32, #tpu.memory_space<vmem>>, vector<1x1x1x8xf32>
    %23 = vector.shape_cast %22 : vector<1x1x1x8xf32> to vector<1x8xf32>
    %24 = vector.broadcast %23 : vector<1x8xf32> to vector<8x8xf32>
    %25 = arith.addf %21, %24 : vector<8x8xf32>
    %c0_26 = arith.constant 0 : index
    %c0_27 = arith.constant 0 : index
    %c0_28 = arith.constant 0 : index
    %c0_29 = arith.constant 0 : index
    %26 = vector.load %arg8[%c0_26, %c0_27, %c0_28, %c0_29] : memref<2x4x32x8xf32, #tpu.memory_space<vmem>>, vector<1x1x32x8xf32>
    %27 = vector.shape_cast %26 : vector<1x1x32x8xf32> to vector<32x8xf32>
    %cst_30 = arith.constant dense<0.000000e+00> : vector<8x8xf32>
    %28 = tpu.matmul %16, %27, %cst_30 {dimension_numbers = #tpu.dot_dimension_numbers<[1], [0], [0], [1], [0, 0, 1, 1], [], []>} : vector<8x32xf32>, vector<32x8xf32>, vector<8x8xf32> -> vector<8x8xf32>
    %c0_31 = arith.constant 0 : index
    %c0_32 = arith.constant 0 : index
    %c0_33 = arith.constant 0 : index
    %c0_34 = arith.constant 0 : index
    %29 = vector.load %arg9[%c0_31, %c0_32, %c0_33, %c0_34] : memref<2x4x1x8xf32, #tpu.memory_space<vmem>>, vector<1x1x1x8xf32>
    %30 = vector.shape_cast %29 : vector<1x1x1x8xf32> to vector<1x8xf32>
    %31 = vector.broadcast %30 : vector<1x8xf32> to vector<8x8xf32>
    %32 = arith.addf %28, %31 : vector<8x8xf32>
    %c0_35 = arith.constant 0 : index
    %c0_36 = arith.constant 0 : index
    %c0_37 = arith.constant 0 : index
    %c0_38 = arith.constant 0 : index
    %33 = vector.load %arg10[%c0_35, %c0_36, %c0_37, %c0_38] : memref<2x4x32x8xf32, #tpu.memory_space<vmem>>, vector<1x1x32x8xf32>
    %34 = vector.shape_cast %33 : vector<1x1x32x8xf32> to vector<32x8xf32>
    %cst_39 = arith.constant dense<0.000000e+00> : vector<8x8xf32>
    %35 = tpu.matmul %16, %34, %cst_39 {dimension_numbers = #tpu.dot_dimension_numbers<[1], [0], [0], [1], [0, 0, 1, 1], [], []>} : vector<8x32xf32>, vector<32x8xf32>, vector<8x8xf32> -> vector<8x8xf32>
    %c0_40 = arith.constant 0 : index
    %c0_41 = arith.constant 0 : index
    %c0_42 = arith.constant 0 : index
    %c0_43 = arith.constant 0 : index
    %36 = vector.load %arg11[%c0_40, %c0_41, %c0_42, %c0_43] : memref<2x4x1x8xf32, #tpu.memory_space<vmem>>, vector<1x1x1x8xf32>
    %37 = vector.shape_cast %36 : vector<1x1x1x8xf32> to vector<1x8xf32>
    %38 = vector.broadcast %37 : vector<1x8xf32> to vector<8x8xf32>
    %39 = arith.addf %35, %38 : vector<8x8xf32>
    %cst_44 = arith.constant dense<0.000000e+00> : vector<8x8xf32>
    %40 = tpu.matmul %25, %32, %cst_44 {dimension_numbers = #tpu.dot_dimension_numbers<[1], [1], [0], [0], [0, 0, 1, 0], [], []>} : vector<8x8xf32>, vector<8x8xf32>, vector<8x8xf32> -> vector<8x8xf32>
    %cst_45 = arith.constant 0.353553385 : f32
    %41 = vector.broadcast %cst_45 : f32 to vector<8x8xf32>
    %42 = arith.mulf %40, %41 : vector<8x8xf32>
    %cst_46 = arith.constant dense<0xFF800000> : vector<8xf32>
    %43 = vector.multi_reduction <maximumf>, %42, %cst_46 [1] : vector<8x8xf32> to vector<8xf32>
    %44 = vector.shape_cast %43 : vector<8xf32> to vector<8x1xf32>
    %45 = vector.broadcast %44 : vector<8x1xf32> to vector<8x8xf32>
    %46 = arith.subf %42, %45 : vector<8x8xf32>
    %47 = math.exp %46 : vector<8x8xf32>
    %cst_47 = arith.constant dense<0.000000e+00> : vector<8xf32>
    %48 = vector.multi_reduction <add>, %47, %cst_47 [1] : vector<8x8xf32> to vector<8xf32>
    %49 = vector.shape_cast %48 : vector<8xf32> to vector<8x1xf32>
    %50 = tpu.reciprocal %49 {approx = true} : vector<8x1xf32> -> vector<8x1xf32>
    %51 = vector.broadcast %50 : vector<8x1xf32> to vector<8x8xf32>
    %52 = arith.mulf %47, %51 : vector<8x8xf32>
    %cst_48 = arith.constant dense<0.000000e+00> : vector<8x8xf32>
    %53 = tpu.matmul %52, %39, %cst_48 {dimension_numbers = #tpu.dot_dimension_numbers<[1], [0], [0], [1], [0, 0, 1, 1], [], []>} : vector<8x8xf32>, vector<8x8xf32>, vector<8x8xf32> -> vector<8x8xf32>
    %c0_49 = arith.constant 0 : index
    %c0_50 = arith.constant 0 : index
    %c0_51 = arith.constant 0 : index
    %c0_52 = arith.constant 0 : index
    %54 = vector.load %arg12[%c0_49, %c0_50, %c0_51, %c0_52] : memref<2x4x8x32xf32, #tpu.memory_space<vmem>>, vector<1x1x8x32xf32>
    %55 = vector.shape_cast %54 : vector<1x1x8x32xf32> to vector<8x32xf32>
    %cst_53 = arith.constant dense<0.000000e+00> : vector<8x32xf32>
    %56 = tpu.matmul %53, %55, %cst_53 {dimension_numbers = #tpu.dot_dimension_numbers<[1], [0], [0], [1], [0, 0, 1, 1], [], []>} : vector<8x8xf32>, vector<8x32xf32>, vector<8x32xf32> -> vector<8x32xf32>
    %57 = vector.broadcast %18 : vector<1x32xf32> to vector<8x32xf32>
    %58 = arith.addf %57, %56 : vector<8x32xf32>
    %c0_54 = arith.constant 0 : index
    %c1 = arith.constant 1 : index
    %c0_55 = arith.constant 0 : index
    %c0_56 = arith.constant 0 : index
    %59 = vector.load %arg6[%c0_54, %c1, %c0_55, %c0_56] : memref<2x4x32x8xf32, #tpu.memory_space<vmem>>, vector<1x1x32x8xf32>
    %60 = vector.shape_cast %59 : vector<1x1x32x8xf32> to vector<32x8xf32>
    %cst_57 = arith.constant dense<0.000000e+00> : vector<8x8xf32>
    %61 = tpu.matmul %16, %60, %cst_57 {dimension_numbers = #tpu.dot_dimension_numbers<[1], [0], [0], [1], [0, 0, 1, 1], [], []>} : vector<8x32xf32>, vector<32x8xf32>, vector<8x8xf32> -> vector<8x8xf32>
    %c0_58 = arith.constant 0 : index
    %c1_59 = arith.constant 1 : index
    %c0_60 = arith.constant 0 : index
    %c0_61 = arith.constant 0 : index
    %62 = vector.load %arg7[%c0_58, %c1_59, %c0_60, %c0_61] : memref<2x4x1x8xf32, #tpu.memory_space<vmem>>, vector<1x1x1x8xf32>
    %63 = vector.shape_cast %62 : vector<1x1x1x8xf32> to vector<1x8xf32>
    %64 = vector.broadcast %63 : vector<1x8xf32> to vector<8x8xf32>
    %65 = arith.addf %61, %64 : vector<8x8xf32>
    %c0_62 = arith.constant 0 : index
    %c1_63 = arith.constant 1 : index
    %c0_64 = arith.constant 0 : index
    %c0_65 = arith.constant 0 : index
    %66 = vector.load %arg8[%c0_62, %c1_63, %c0_64, %c0_65] : memref<2x4x32x8xf32, #tpu.memory_space<vmem>>, vector<1x1x32x8xf32>
    %67 = vector.shape_cast %66 : vector<1x1x32x8xf32> to vector<32x8xf32>
    %cst_66 = arith.constant dense<0.000000e+00> : vector<8x8xf32>
    %68 = tpu.matmul %16, %67, %cst_66 {dimension_numbers = #tpu.dot_dimension_numbers<[1], [0], [0], [1], [0, 0, 1, 1], [], []>} : vector<8x32xf32>, vector<32x8xf32>, vector<8x8xf32> -> vector<8x8xf32>
    %c0_67 = arith.constant 0 : index
    %c1_68 = arith.constant 1 : index
    %c0_69 = arith.constant 0 : index
    %c0_70 = arith.constant 0 : index
    %69 = vector.load %arg9[%c0_67, %c1_68, %c0_69, %c0_70] : memref<2x4x1x8xf32, #tpu.memory_space<vmem>>, vector<1x1x1x8xf32>
    %70 = vector.shape_cast %69 : vector<1x1x1x8xf32> to vector<1x8xf32>
    %71 = vector.broadcast %70 : vector<1x8xf32> to vector<8x8xf32>
    %72 = arith.addf %68, %71 : vector<8x8xf32>
    %c0_71 = arith.constant 0 : index
    %c1_72 = arith.constant 1 : index
    %c0_73 = arith.constant 0 : index
    %c0_74 = arith.constant 0 : index
    %73 = vector.load %arg10[%c0_71, %c1_72, %c0_73, %c0_74] : memref<2x4x32x8xf32, #tpu.memory_space<vmem>>, vector<1x1x32x8xf32>
    %74 = vector.shape_cast %73 : vector<1x1x32x8xf32> to vector<32x8xf32>
    %cst_75 = arith.constant dense<0.000000e+00> : vector<8x8xf32>
    %75 = tpu.matmul %16, %74, %cst_75 {dimension_numbers = #tpu.dot_dimension_numbers<[1], [0], [0], [1], [0, 0, 1, 1], [], []>} : vector<8x32xf32>, vector<32x8xf32>, vector<8x8xf32> -> vector<8x8xf32>
    %c0_76 = arith.constant 0 : index
    %c1_77 = arith.constant 1 : index
    %c0_78 = arith.constant 0 : index
    %c0_79 = arith.constant 0 : index
    %76 = vector.load %arg11[%c0_76, %c1_77, %c0_78, %c0_79] : memref<2x4x1x8xf32, #tpu.memory_space<vmem>>, vector<1x1x1x8xf32>
    %77 = vector.shape_cast %76 : vector<1x1x1x8xf32> to vector<1x8xf32>
    %78 = vector.broadcast %77 : vector<1x8xf32> to vector<8x8xf32>
    %79 = arith.addf %75, %78 : vector<8x8xf32>
    %cst_80 = arith.constant dense<0.000000e+00> : vector<8x8xf32>
    %80 = tpu.matmul %65, %72, %cst_80 {dimension_numbers = #tpu.dot_dimension_numbers<[1], [1], [0], [0], [0, 0, 1, 0], [], []>} : vector<8x8xf32>, vector<8x8xf32>, vector<8x8xf32> -> vector<8x8xf32>
    %cst_81 = arith.constant 0.353553385 : f32
    %81 = vector.broadcast %cst_81 : f32 to vector<8x8xf32>
    %82 = arith.mulf %80, %81 : vector<8x8xf32>
    %cst_82 = arith.constant dense<0xFF800000> : vector<8xf32>
    %83 = vector.multi_reduction <maximumf>, %82, %cst_82 [1] : vector<8x8xf32> to vector<8xf32>
    %84 = vector.shape_cast %83 : vector<8xf32> to vector<8x1xf32>
    %85 = vector.broadcast %84 : vector<8x1xf32> to vector<8x8xf32>
    %86 = arith.subf %82, %85 : vector<8x8xf32>
    %87 = math.exp %86 : vector<8x8xf32>
    %cst_83 = arith.constant dense<0.000000e+00> : vector<8xf32>
    %88 = vector.multi_reduction <add>, %87, %cst_83 [1] : vector<8x8xf32> to vector<8xf32>
    %89 = vector.shape_cast %88 : vector<8xf32> to vector<8x1xf32>
    %90 = tpu.reciprocal %89 {approx = true} : vector<8x1xf32> -> vector<8x1xf32>
    %91 = vector.broadcast %90 : vector<8x1xf32> to vector<8x8xf32>
    %92 = arith.mulf %87, %91 : vector<8x8xf32>
    %cst_84 = arith.constant dense<0.000000e+00> : vector<8x8xf32>
    %93 = tpu.matmul %92, %79, %cst_84 {dimension_numbers = #tpu.dot_dimension_numbers<[1], [0], [0], [1], [0, 0, 1, 1], [], []>} : vector<8x8xf32>, vector<8x8xf32>, vector<8x8xf32> -> vector<8x8xf32>
    %c0_85 = arith.constant 0 : index
    %c1_86 = arith.constant 1 : index
    %c0_87 = arith.constant 0 : index
    %c0_88 = arith.constant 0 : index
    %94 = vector.load %arg12[%c0_85, %c1_86, %c0_87, %c0_88] : memref<2x4x8x32xf32, #tpu.memory_space<vmem>>, vector<1x1x8x32xf32>
    %95 = vector.shape_cast %94 : vector<1x1x8x32xf32> to vector<8x32xf32>
    %cst_89 = arith.constant dense<0.000000e+00> : vector<8x32xf32>
    %96 = tpu.matmul %93, %95, %cst_89 {dimension_numbers = #tpu.dot_dimension_numbers<[1], [0], [0], [1], [0, 0, 1, 1], [], []>} : vector<8x8xf32>, vector<8x32xf32>, vector<8x32xf32> -> vector<8x32xf32>
    %97 = arith.addf %58, %96 : vector<8x32xf32>
    %c0_90 = arith.constant 0 : index
    %c2 = arith.constant 2 : index
    %c0_91 = arith.constant 0 : index
    %c0_92 = arith.constant 0 : index
    %98 = vector.load %arg6[%c0_90, %c2, %c0_91, %c0_92] : memref<2x4x32x8xf32, #tpu.memory_space<vmem>>, vector<1x1x32x8xf32>
    %99 = vector.shape_cast %98 : vector<1x1x32x8xf32> to vector<32x8xf32>
    %cst_93 = arith.constant dense<0.000000e+00> : vector<8x8xf32>
    %100 = tpu.matmul %16, %99, %cst_93 {dimension_numbers = #tpu.dot_dimension_numbers<[1], [0], [0], [1], [0, 0, 1, 1], [], []>} : vector<8x32xf32>, vector<32x8xf32>, vector<8x8xf32> -> vector<8x8xf32>
    %c0_94 = arith.constant 0 : index
    %c2_95 = arith.constant 2 : index
    %c0_96 = arith.constant 0 : index
    %c0_97 = arith.constant 0 : index
    %101 = vector.load %arg7[%c0_94, %c2_95, %c0_96, %c0_97] : memref<2x4x1x8xf32, #tpu.memory_space<vmem>>, vector<1x1x1x8xf32>
    %102 = vector.shape_cast %101 : vector<1x1x1x8xf32> to vector<1x8xf32>
    %103 = vector.broadcast %102 : vector<1x8xf32> to vector<8x8xf32>
    %104 = arith.addf %100, %103 : vector<8x8xf32>
    %c0_98 = arith.constant 0 : index
    %c2_99 = arith.constant 2 : index
    %c0_100 = arith.constant 0 : index
    %c0_101 = arith.constant 0 : index
    %105 = vector.load %arg8[%c0_98, %c2_99, %c0_100, %c0_101] : memref<2x4x32x8xf32, #tpu.memory_space<vmem>>, vector<1x1x32x8xf32>
    %106 = vector.shape_cast %105 : vector<1x1x32x8xf32> to vector<32x8xf32>
    %cst_102 = arith.constant dense<0.000000e+00> : vector<8x8xf32>
    %107 = tpu.matmul %16, %106, %cst_102 {dimension_numbers = #tpu.dot_dimension_numbers<[1], [0], [0], [1], [0, 0, 1, 1], [], []>} : vector<8x32xf32>, vector<32x8xf32>, vector<8x8xf32> -> vector<8x8xf32>
    %c0_103 = arith.constant 0 : index
    %c2_104 = arith.constant 2 : index
    %c0_105 = arith.constant 0 : index
    %c0_106 = arith.constant 0 : index
    %108 = vector.load %arg9[%c0_103, %c2_104, %c0_105, %c0_106] : memref<2x4x1x8xf32, #tpu.memory_space<vmem>>, vector<1x1x1x8xf32>
    %109 = vector.shape_cast %108 : vector<1x1x1x8xf32> to vector<1x8xf32>
    %110 = vector.broadcast %109 : vector<1x8xf32> to vector<8x8xf32>
    %111 = arith.addf %107, %110 : vector<8x8xf32>
    %c0_107 = arith.constant 0 : index
    %c2_108 = arith.constant 2 : index
    %c0_109 = arith.constant 0 : index
    %c0_110 = arith.constant 0 : index
    %112 = vector.load %arg10[%c0_107, %c2_108, %c0_109, %c0_110] : memref<2x4x32x8xf32, #tpu.memory_space<vmem>>, vector<1x1x32x8xf32>
    %113 = vector.shape_cast %112 : vector<1x1x32x8xf32> to vector<32x8xf32>
    %cst_111 = arith.constant dense<0.000000e+00> : vector<8x8xf32>
    %114 = tpu.matmul %16, %113, %cst_111 {dimension_numbers = #tpu.dot_dimension_numbers<[1], [0], [0], [1], [0, 0, 1, 1], [], []>} : vector<8x32xf32>, vector<32x8xf32>, vector<8x8xf32> -> vector<8x8xf32>
    %c0_112 = arith.constant 0 : index
    %c2_113 = arith.constant 2 : index
    %c0_114 = arith.constant 0 : index
    %c0_115 = arith.constant 0 : index
    %115 = vector.load %arg11[%c0_112, %c2_113, %c0_114, %c0_115] : memref<2x4x1x8xf32, #tpu.memory_space<vmem>>, vector<1x1x1x8xf32>
    %116 = vector.shape_cast %115 : vector<1x1x1x8xf32> to vector<1x8xf32>
    %117 = vector.broadcast %116 : vector<1x8xf32> to vector<8x8xf32>
    %118 = arith.addf %114, %117 : vector<8x8xf32>
    %cst_116 = arith.constant dense<0.000000e+00> : vector<8x8xf32>
    %119 = tpu.matmul %104, %111, %cst_116 {dimension_numbers = #tpu.dot_dimension_numbers<[1], [1], [0], [0], [0, 0, 1, 0], [], []>} : vector<8x8xf32>, vector<8x8xf32>, vector<8x8xf32> -> vector<8x8xf32>
    %cst_117 = arith.constant 0.353553385 : f32
    %120 = vector.broadcast %cst_117 : f32 to vector<8x8xf32>
    %121 = arith.mulf %119, %120 : vector<8x8xf32>
    %cst_118 = arith.constant dense<0xFF800000> : vector<8xf32>
    %122 = vector.multi_reduction <maximumf>, %121, %cst_118 [1] : vector<8x8xf32> to vector<8xf32>
    %123 = vector.shape_cast %122 : vector<8xf32> to vector<8x1xf32>
    %124 = vector.broadcast %123 : vector<8x1xf32> to vector<8x8xf32>
    %125 = arith.subf %121, %124 : vector<8x8xf32>
    %126 = math.exp %125 : vector<8x8xf32>
    %cst_119 = arith.constant dense<0.000000e+00> : vector<8xf32>
    %127 = vector.multi_reduction <add>, %126, %cst_119 [1] : vector<8x8xf32> to vector<8xf32>
    %128 = vector.shape_cast %127 : vector<8xf32> to vector<8x1xf32>
    %129 = tpu.reciprocal %128 {approx = true} : vector<8x1xf32> -> vector<8x1xf32>
    %130 = vector.broadcast %129 : vector<8x1xf32> to vector<8x8xf32>
    %131 = arith.mulf %126, %130 : vector<8x8xf32>
    %cst_120 = arith.constant dense<0.000000e+00> : vector<8x8xf32>
    %132 = tpu.matmul %131, %118, %cst_120 {dimension_numbers = #tpu.dot_dimension_numbers<[1], [0], [0], [1], [0, 0, 1, 1], [], []>} : vector<8x8xf32>, vector<8x8xf32>, vector<8x8xf32> -> vector<8x8xf32>
    %c0_121 = arith.constant 0 : index
    %c2_122 = arith.constant 2 : index
    %c0_123 = arith.constant 0 : index
    %c0_124 = arith.constant 0 : index
    %133 = vector.load %arg12[%c0_121, %c2_122, %c0_123, %c0_124] : memref<2x4x8x32xf32, #tpu.memory_space<vmem>>, vector<1x1x8x32xf32>
    %134 = vector.shape_cast %133 : vector<1x1x8x32xf32> to vector<8x32xf32>
    %cst_125 = arith.constant dense<0.000000e+00> : vector<8x32xf32>
    %135 = tpu.matmul %132, %134, %cst_125 {dimension_numbers = #tpu.dot_dimension_numbers<[1], [0], [0], [1], [0, 0, 1, 1], [], []>} : vector<8x8xf32>, vector<8x32xf32>, vector<8x32xf32> -> vector<8x32xf32>
    %136 = arith.addf %97, %135 : vector<8x32xf32>
    %c0_126 = arith.constant 0 : index
    %c3 = arith.constant 3 : index
    %c0_127 = arith.constant 0 : index
    %c0_128 = arith.constant 0 : index
    %137 = vector.load %arg6[%c0_126, %c3, %c0_127, %c0_128] : memref<2x4x32x8xf32, #tpu.memory_space<vmem>>, vector<1x1x32x8xf32>
    %138 = vector.shape_cast %137 : vector<1x1x32x8xf32> to vector<32x8xf32>
    %cst_129 = arith.constant dense<0.000000e+00> : vector<8x8xf32>
    %139 = tpu.matmul %16, %138, %cst_129 {dimension_numbers = #tpu.dot_dimension_numbers<[1], [0], [0], [1], [0, 0, 1, 1], [], []>} : vector<8x32xf32>, vector<32x8xf32>, vector<8x8xf32> -> vector<8x8xf32>
    %c0_130 = arith.constant 0 : index
    %c3_131 = arith.constant 3 : index
    %c0_132 = arith.constant 0 : index
    %c0_133 = arith.constant 0 : index
    %140 = vector.load %arg7[%c0_130, %c3_131, %c0_132, %c0_133] : memref<2x4x1x8xf32, #tpu.memory_space<vmem>>, vector<1x1x1x8xf32>
    %141 = vector.shape_cast %140 : vector<1x1x1x8xf32> to vector<1x8xf32>
    %142 = vector.broadcast %141 : vector<1x8xf32> to vector<8x8xf32>
    %143 = arith.addf %139, %142 : vector<8x8xf32>
    %c0_134 = arith.constant 0 : index
    %c3_135 = arith.constant 3 : index
    %c0_136 = arith.constant 0 : index
    %c0_137 = arith.constant 0 : index
    %144 = vector.load %arg8[%c0_134, %c3_135, %c0_136, %c0_137] : memref<2x4x32x8xf32, #tpu.memory_space<vmem>>, vector<1x1x32x8xf32>
    %145 = vector.shape_cast %144 : vector<1x1x32x8xf32> to vector<32x8xf32>
    %cst_138 = arith.constant dense<0.000000e+00> : vector<8x8xf32>
    %146 = tpu.matmul %16, %145, %cst_138 {dimension_numbers = #tpu.dot_dimension_numbers<[1], [0], [0], [1], [0, 0, 1, 1], [], []>} : vector<8x32xf32>, vector<32x8xf32>, vector<8x8xf32> -> vector<8x8xf32>
    %c0_139 = arith.constant 0 : index
    %c3_140 = arith.constant 3 : index
    %c0_141 = arith.constant 0 : index
    %c0_142 = arith.constant 0 : index
    %147 = vector.load %arg9[%c0_139, %c3_140, %c0_141, %c0_142] : memref<2x4x1x8xf32, #tpu.memory_space<vmem>>, vector<1x1x1x8xf32>
    %148 = vector.shape_cast %147 : vector<1x1x1x8xf32> to vector<1x8xf32>
    %149 = vector.broadcast %148 : vector<1x8xf32> to vector<8x8xf32>
    %150 = arith.addf %146, %149 : vector<8x8xf32>
    %c0_143 = arith.constant 0 : index
    %c3_144 = arith.constant 3 : index
    %c0_145 = arith.constant 0 : index
    %c0_146 = arith.constant 0 : index
    %151 = vector.load %arg10[%c0_143, %c3_144, %c0_145, %c0_146] : memref<2x4x32x8xf32, #tpu.memory_space<vmem>>, vector<1x1x32x8xf32>
    %152 = vector.shape_cast %151 : vector<1x1x32x8xf32> to vector<32x8xf32>
    %cst_147 = arith.constant dense<0.000000e+00> : vector<8x8xf32>
    %153 = tpu.matmul %16, %152, %cst_147 {dimension_numbers = #tpu.dot_dimension_numbers<[1], [0], [0], [1], [0, 0, 1, 1], [], []>} : vector<8x32xf32>, vector<32x8xf32>, vector<8x8xf32> -> vector<8x8xf32>
    %c0_148 = arith.constant 0 : index
    %c3_149 = arith.constant 3 : index
    %c0_150 = arith.constant 0 : index
    %c0_151 = arith.constant 0 : index
    %154 = vector.load %arg11[%c0_148, %c3_149, %c0_150, %c0_151] : memref<2x4x1x8xf32, #tpu.memory_space<vmem>>, vector<1x1x1x8xf32>
    %155 = vector.shape_cast %154 : vector<1x1x1x8xf32> to vector<1x8xf32>
    %156 = vector.broadcast %155 : vector<1x8xf32> to vector<8x8xf32>
    %157 = arith.addf %153, %156 : vector<8x8xf32>
    %cst_152 = arith.constant dense<0.000000e+00> : vector<8x8xf32>
    %158 = tpu.matmul %143, %150, %cst_152 {dimension_numbers = #tpu.dot_dimension_numbers<[1], [1], [0], [0], [0, 0, 1, 0], [], []>} : vector<8x8xf32>, vector<8x8xf32>, vector<8x8xf32> -> vector<8x8xf32>
    %cst_153 = arith.constant 0.353553385 : f32
    %159 = vector.broadcast %cst_153 : f32 to vector<8x8xf32>
    %160 = arith.mulf %158, %159 : vector<8x8xf32>
    %cst_154 = arith.constant dense<0xFF800000> : vector<8xf32>
    %161 = vector.multi_reduction <maximumf>, %160, %cst_154 [1] : vector<8x8xf32> to vector<8xf32>
    %162 = vector.shape_cast %161 : vector<8xf32> to vector<8x1xf32>
    %163 = vector.broadcast %162 : vector<8x1xf32> to vector<8x8xf32>
    %164 = arith.subf %160, %163 : vector<8x8xf32>
    %165 = math.exp %164 : vector<8x8xf32>
    %cst_155 = arith.constant dense<0.000000e+00> : vector<8xf32>
    %166 = vector.multi_reduction <add>, %165, %cst_155 [1] : vector<8x8xf32> to vector<8xf32>
    %167 = vector.shape_cast %166 : vector<8xf32> to vector<8x1xf32>
    %168 = tpu.reciprocal %167 {approx = true} : vector<8x1xf32> -> vector<8x1xf32>
    %169 = vector.broadcast %168 : vector<8x1xf32> to vector<8x8xf32>
    %170 = arith.mulf %165, %169 : vector<8x8xf32>
    %cst_156 = arith.constant dense<0.000000e+00> : vector<8x8xf32>
    %171 = tpu.matmul %170, %157, %cst_156 {dimension_numbers = #tpu.dot_dimension_numbers<[1], [0], [0], [1], [0, 0, 1, 1], [], []>} : vector<8x8xf32>, vector<8x8xf32>, vector<8x8xf32> -> vector<8x8xf32>
    %c0_157 = arith.constant 0 : index
    %c3_158 = arith.constant 3 : index
    %c0_159 = arith.constant 0 : index
    %c0_160 = arith.constant 0 : index
    %172 = vector.load %arg12[%c0_157, %c3_158, %c0_159, %c0_160] : memref<2x4x8x32xf32, #tpu.memory_space<vmem>>, vector<1x1x8x32xf32>
    %173 = vector.shape_cast %172 : vector<1x1x8x32xf32> to vector<8x32xf32>
    %cst_161 = arith.constant dense<0.000000e+00> : vector<8x32xf32>
    %174 = tpu.matmul %171, %173, %cst_161 {dimension_numbers = #tpu.dot_dimension_numbers<[1], [0], [0], [1], [0, 0, 1, 1], [], []>} : vector<8x8xf32>, vector<8x32xf32>, vector<8x32xf32> -> vector<8x32xf32>
    %175 = arith.addf %136, %174 : vector<8x32xf32>
    %176 = arith.addf %16, %175 : vector<8x32xf32>
    %c0_162 = arith.constant 0 : index
    %c0_163 = arith.constant 0 : index
    %c0_164 = arith.constant 0 : index
    %177 = vector.load %arg18[%c0_162, %c0_163, %c0_164] : memref<2x1x32xf32, #tpu.memory_space<vmem>>, vector<1x1x32xf32>
    %178 = vector.shape_cast %177 : vector<1x1x32xf32> to vector<1x32xf32>
    %c0_165 = arith.constant 0 : index
    %c0_166 = arith.constant 0 : index
    %c0_167 = arith.constant 0 : index
    %179 = vector.load %arg19[%c0_165, %c0_166, %c0_167] : memref<2x1x32xf32, #tpu.memory_space<vmem>>, vector<1x1x32xf32>
    %180 = vector.shape_cast %179 : vector<1x1x32xf32> to vector<1x32xf32>
    %cst_168 = arith.constant dense<0.000000e+00> : vector<8xf32>
    %181 = vector.multi_reduction <add>, %176, %cst_168 [1] : vector<8x32xf32> to vector<8xf32>
    %182 = vector.shape_cast %181 : vector<8xf32> to vector<8x1xf32>
    %cst_169 = arith.constant 3.200000e+01 : f32
    %183 = vector.broadcast %cst_169 : f32 to vector<8x1xf32>
    %184 = arith.divf %182, %183 : vector<8x1xf32>
    %185 = vector.broadcast %184 : vector<8x1xf32> to vector<8x32xf32>
    %186 = arith.subf %176, %185 : vector<8x32xf32>
    %187 = arith.mulf %186, %186 : vector<8x32xf32>
    %cst_170 = arith.constant dense<0.000000e+00> : vector<8xf32>
    %188 = vector.multi_reduction <add>, %187, %cst_170 [1] : vector<8x32xf32> to vector<8xf32>
    %189 = vector.shape_cast %188 : vector<8xf32> to vector<8x1xf32>
    %cst_171 = arith.constant 3.200000e+01 : f32
    %190 = vector.broadcast %cst_171 : f32 to vector<8x1xf32>
    %191 = arith.divf %189, %190 : vector<8x1xf32>
    %192 = vector.broadcast %184 : vector<8x1xf32> to vector<8x32xf32>
    %193 = arith.subf %176, %192 : vector<8x32xf32>
    %cst_172 = arith.constant 9.99999974E-6 : f32
    %194 = vector.broadcast %cst_172 : f32 to vector<8x1xf32>
    %195 = arith.addf %191, %194 : vector<8x1xf32>
    %196 = math.rsqrt %195 : vector<8x1xf32>
    %197 = vector.broadcast %196 : vector<8x1xf32> to vector<8x32xf32>
    %198 = arith.mulf %193, %197 : vector<8x32xf32>
    %199 = vector.broadcast %178 : vector<1x32xf32> to vector<8x32xf32>
    %200 = arith.mulf %198, %199 : vector<8x32xf32>
    %201 = vector.broadcast %180 : vector<1x32xf32> to vector<8x32xf32>
    %202 = arith.addf %200, %201 : vector<8x32xf32>
    %c0_173 = arith.constant 0 : index
    %c0_174 = arith.constant 0 : index
    %c0_175 = arith.constant 0 : index
    %203 = vector.load %arg14[%c0_173, %c0_174, %c0_175] : memref<2x32x128xf32, #tpu.memory_space<vmem>>, vector<1x32x128xf32>
    %204 = vector.shape_cast %203 : vector<1x32x128xf32> to vector<32x128xf32>
    %cst_176 = arith.constant dense<0.000000e+00> : vector<8x128xf32>
    %205 = tpu.matmul %202, %204, %cst_176 {dimension_numbers = #tpu.dot_dimension_numbers<[1], [0], [0], [1], [0, 0, 1, 1], [], []>} : vector<8x32xf32>, vector<32x128xf32>, vector<8x128xf32> -> vector<8x128xf32>
    %c0_177 = arith.constant 0 : index
    %c0_178 = arith.constant 0 : index
    %c0_179 = arith.constant 0 : index
    %206 = vector.load %arg15[%c0_177, %c0_178, %c0_179] : memref<2x1x128xf32, #tpu.memory_space<vmem>>, vector<1x1x128xf32>
    %207 = vector.shape_cast %206 : vector<1x1x128xf32> to vector<1x128xf32>
    %208 = vector.broadcast %207 : vector<1x128xf32> to vector<8x128xf32>
    %209 = arith.addf %205, %208 : vector<8x128xf32>
    %cst_180 = arith.constant 0.000000e+00 : f32
    %210 = vector.broadcast %cst_180 : f32 to vector<8x128xf32>
    %211 = arith.maximumf %209, %210 : vector<8x128xf32>
    %c0_181 = arith.constant 0 : index
    %c0_182 = arith.constant 0 : index
    %c0_183 = arith.constant 0 : index
    %212 = vector.load %arg16[%c0_181, %c0_182, %c0_183] : memref<2x128x32xf32, #tpu.memory_space<vmem>>, vector<1x128x32xf32>
    %213 = vector.shape_cast %212 : vector<1x128x32xf32> to vector<128x32xf32>
    %cst_184 = arith.constant dense<0.000000e+00> : vector<8x32xf32>
    %214 = tpu.matmul %211, %213, %cst_184 {dimension_numbers = #tpu.dot_dimension_numbers<[1], [0], [0], [1], [0, 0, 1, 1], [], []>} : vector<8x128xf32>, vector<128x32xf32>, vector<8x32xf32> -> vector<8x32xf32>
    %c0_185 = arith.constant 0 : index
    %c0_186 = arith.constant 0 : index
    %c0_187 = arith.constant 0 : index
    %215 = vector.load %arg17[%c0_185, %c0_186, %c0_187] : memref<2x1x32xf32, #tpu.memory_space<vmem>>, vector<1x1x32xf32>
    %216 = vector.shape_cast %215 : vector<1x1x32xf32> to vector<1x32xf32>
    %217 = vector.broadcast %216 : vector<1x32xf32> to vector<8x32xf32>
    %218 = arith.addf %214, %217 : vector<8x32xf32>
    %219 = arith.addf %202, %218 : vector<8x32xf32>
    %c0_188 = arith.constant 0 : index
    %c0_189 = arith.constant 0 : index
    %c0_190 = arith.constant 0 : index
    %220 = vector.load %arg20[%c0_188, %c0_189, %c0_190] : memref<2x1x32xf32, #tpu.memory_space<vmem>>, vector<1x1x32xf32>
    %221 = vector.shape_cast %220 : vector<1x1x32xf32> to vector<1x32xf32>
    %c0_191 = arith.constant 0 : index
    %c0_192 = arith.constant 0 : index
    %c0_193 = arith.constant 0 : index
    %222 = vector.load %arg21[%c0_191, %c0_192, %c0_193] : memref<2x1x32xf32, #tpu.memory_space<vmem>>, vector<1x1x32xf32>
    %223 = vector.shape_cast %222 : vector<1x1x32xf32> to vector<1x32xf32>
    %cst_194 = arith.constant dense<0.000000e+00> : vector<8xf32>
    %224 = vector.multi_reduction <add>, %219, %cst_194 [1] : vector<8x32xf32> to vector<8xf32>
    %225 = vector.shape_cast %224 : vector<8xf32> to vector<8x1xf32>
    %cst_195 = arith.constant 3.200000e+01 : f32
    %226 = vector.broadcast %cst_195 : f32 to vector<8x1xf32>
    %227 = arith.divf %225, %226 : vector<8x1xf32>
    %228 = vector.broadcast %227 : vector<8x1xf32> to vector<8x32xf32>
    %229 = arith.subf %219, %228 : vector<8x32xf32>
    %230 = arith.mulf %229, %229 : vector<8x32xf32>
    %cst_196 = arith.constant dense<0.000000e+00> : vector<8xf32>
    %231 = vector.multi_reduction <add>, %230, %cst_196 [1] : vector<8x32xf32> to vector<8xf32>
    %232 = vector.shape_cast %231 : vector<8xf32> to vector<8x1xf32>
    %cst_197 = arith.constant 3.200000e+01 : f32
    %233 = vector.broadcast %cst_197 : f32 to vector<8x1xf32>
    %234 = arith.divf %232, %233 : vector<8x1xf32>
    %235 = vector.broadcast %227 : vector<8x1xf32> to vector<8x32xf32>
    %236 = arith.subf %219, %235 : vector<8x32xf32>
    %cst_198 = arith.constant 9.99999974E-6 : f32
    %237 = vector.broadcast %cst_198 : f32 to vector<8x1xf32>
    %238 = arith.addf %234, %237 : vector<8x1xf32>
    %239 = math.rsqrt %238 : vector<8x1xf32>
    %240 = vector.broadcast %239 : vector<8x1xf32> to vector<8x32xf32>
    %241 = arith.mulf %236, %240 : vector<8x32xf32>
    %242 = vector.broadcast %221 : vector<1x32xf32> to vector<8x32xf32>
    %243 = arith.mulf %241, %242 : vector<8x32xf32>
    %244 = vector.broadcast %223 : vector<1x32xf32> to vector<8x32xf32>
    %245 = arith.addf %243, %244 : vector<8x32xf32>
    %c1_199 = arith.constant 1 : index
    %c0_200 = arith.constant 0 : index
    %c0_201 = arith.constant 0 : index
    %246 = vector.load %arg13[%c1_199, %c0_200, %c0_201] : memref<2x1x32xf32, #tpu.memory_space<vmem>>, vector<1x1x32xf32>
    %247 = vector.shape_cast %246 : vector<1x1x32xf32> to vector<1x32xf32>
    %c1_202 = arith.constant 1 : index
    %c0_203 = arith.constant 0 : index
    %c0_204 = arith.constant 0 : index
    %c0_205 = arith.constant 0 : index
    %248 = vector.load %arg6[%c1_202, %c0_203, %c0_204, %c0_205] : memref<2x4x32x8xf32, #tpu.memory_space<vmem>>, vector<1x1x32x8xf32>
    %249 = vector.shape_cast %248 : vector<1x1x32x8xf32> to vector<32x8xf32>
    %cst_206 = arith.constant dense<0.000000e+00> : vector<8x8xf32>
    %250 = tpu.matmul %245, %249, %cst_206 {dimension_numbers = #tpu.dot_dimension_numbers<[1], [0], [0], [1], [0, 0, 1, 1], [], []>} : vector<8x32xf32>, vector<32x8xf32>, vector<8x8xf32> -> vector<8x8xf32>
    %c1_207 = arith.constant 1 : index
    %c0_208 = arith.constant 0 : index
    %c0_209 = arith.constant 0 : index
    %c0_210 = arith.constant 0 : index
    %251 = vector.load %arg7[%c1_207, %c0_208, %c0_209, %c0_210] : memref<2x4x1x8xf32, #tpu.memory_space<vmem>>, vector<1x1x1x8xf32>
    %252 = vector.shape_cast %251 : vector<1x1x1x8xf32> to vector<1x8xf32>
    %253 = vector.broadcast %252 : vector<1x8xf32> to vector<8x8xf32>
    %254 = arith.addf %250, %253 : vector<8x8xf32>
    %c1_211 = arith.constant 1 : index
    %c0_212 = arith.constant 0 : index
    %c0_213 = arith.constant 0 : index
    %c0_214 = arith.constant 0 : index
    %255 = vector.load %arg8[%c1_211, %c0_212, %c0_213, %c0_214] : memref<2x4x32x8xf32, #tpu.memory_space<vmem>>, vector<1x1x32x8xf32>
    %256 = vector.shape_cast %255 : vector<1x1x32x8xf32> to vector<32x8xf32>
    %cst_215 = arith.constant dense<0.000000e+00> : vector<8x8xf32>
    %257 = tpu.matmul %245, %256, %cst_215 {dimension_numbers = #tpu.dot_dimension_numbers<[1], [0], [0], [1], [0, 0, 1, 1], [], []>} : vector<8x32xf32>, vector<32x8xf32>, vector<8x8xf32> -> vector<8x8xf32>
    %c1_216 = arith.constant 1 : index
    %c0_217 = arith.constant 0 : index
    %c0_218 = arith.constant 0 : index
    %c0_219 = arith.constant 0 : index
    %258 = vector.load %arg9[%c1_216, %c0_217, %c0_218, %c0_219] : memref<2x4x1x8xf32, #tpu.memory_space<vmem>>, vector<1x1x1x8xf32>
    %259 = vector.shape_cast %258 : vector<1x1x1x8xf32> to vector<1x8xf32>
    %260 = vector.broadcast %259 : vector<1x8xf32> to vector<8x8xf32>
    %261 = arith.addf %257, %260 : vector<8x8xf32>
    %c1_220 = arith.constant 1 : index
    %c0_221 = arith.constant 0 : index
    %c0_222 = arith.constant 0 : index
    %c0_223 = arith.constant 0 : index
    %262 = vector.load %arg10[%c1_220, %c0_221, %c0_222, %c0_223] : memref<2x4x32x8xf32, #tpu.memory_space<vmem>>, vector<1x1x32x8xf32>
    %263 = vector.shape_cast %262 : vector<1x1x32x8xf32> to vector<32x8xf32>
    %cst_224 = arith.constant dense<0.000000e+00> : vector<8x8xf32>
    %264 = tpu.matmul %245, %263, %cst_224 {dimension_numbers = #tpu.dot_dimension_numbers<[1], [0], [0], [1], [0, 0, 1, 1], [], []>} : vector<8x32xf32>, vector<32x8xf32>, vector<8x8xf32> -> vector<8x8xf32>
    %c1_225 = arith.constant 1 : index
    %c0_226 = arith.constant 0 : index
    %c0_227 = arith.constant 0 : index
    %c0_228 = arith.constant 0 : index
    %265 = vector.load %arg11[%c1_225, %c0_226, %c0_227, %c0_228] : memref<2x4x1x8xf32, #tpu.memory_space<vmem>>, vector<1x1x1x8xf32>
    %266 = vector.shape_cast %265 : vector<1x1x1x8xf32> to vector<1x8xf32>
    %267 = vector.broadcast %266 : vector<1x8xf32> to vector<8x8xf32>
    %268 = arith.addf %264, %267 : vector<8x8xf32>
    %cst_229 = arith.constant dense<0.000000e+00> : vector<8x8xf32>
    %269 = tpu.matmul %254, %261, %cst_229 {dimension_numbers = #tpu.dot_dimension_numbers<[1], [1], [0], [0], [0, 0, 1, 0], [], []>} : vector<8x8xf32>, vector<8x8xf32>, vector<8x8xf32> -> vector<8x8xf32>
    %cst_230 = arith.constant 0.353553385 : f32
    %270 = vector.broadcast %cst_230 : f32 to vector<8x8xf32>
    %271 = arith.mulf %269, %270 : vector<8x8xf32>
    %cst_231 = arith.constant dense<0xFF800000> : vector<8xf32>
    %272 = vector.multi_reduction <maximumf>, %271, %cst_231 [1] : vector<8x8xf32> to vector<8xf32>
    %273 = vector.shape_cast %272 : vector<8xf32> to vector<8x1xf32>
    %274 = vector.broadcast %273 : vector<8x1xf32> to vector<8x8xf32>
    %275 = arith.subf %271, %274 : vector<8x8xf32>
    %276 = math.exp %275 : vector<8x8xf32>
    %cst_232 = arith.constant dense<0.000000e+00> : vector<8xf32>
    %277 = vector.multi_reduction <add>, %276, %cst_232 [1] : vector<8x8xf32> to vector<8xf32>
    %278 = vector.shape_cast %277 : vector<8xf32> to vector<8x1xf32>
    %279 = tpu.reciprocal %278 {approx = true} : vector<8x1xf32> -> vector<8x1xf32>
    %280 = vector.broadcast %279 : vector<8x1xf32> to vector<8x8xf32>
    %281 = arith.mulf %276, %280 : vector<8x8xf32>
    %cst_233 = arith.constant dense<0.000000e+00> : vector<8x8xf32>
    %282 = tpu.matmul %281, %268, %cst_233 {dimension_numbers = #tpu.dot_dimension_numbers<[1], [0], [0], [1], [0, 0, 1, 1], [], []>} : vector<8x8xf32>, vector<8x8xf32>, vector<8x8xf32> -> vector<8x8xf32>
    %c1_234 = arith.constant 1 : index
    %c0_235 = arith.constant 0 : index
    %c0_236 = arith.constant 0 : index
    %c0_237 = arith.constant 0 : index
    %283 = vector.load %arg12[%c1_234, %c0_235, %c0_236, %c0_237] : memref<2x4x8x32xf32, #tpu.memory_space<vmem>>, vector<1x1x8x32xf32>
    %284 = vector.shape_cast %283 : vector<1x1x8x32xf32> to vector<8x32xf32>
    %cst_238 = arith.constant dense<0.000000e+00> : vector<8x32xf32>
    %285 = tpu.matmul %282, %284, %cst_238 {dimension_numbers = #tpu.dot_dimension_numbers<[1], [0], [0], [1], [0, 0, 1, 1], [], []>} : vector<8x8xf32>, vector<8x32xf32>, vector<8x32xf32> -> vector<8x32xf32>
    %286 = vector.broadcast %247 : vector<1x32xf32> to vector<8x32xf32>
    %287 = arith.addf %286, %285 : vector<8x32xf32>
    %c1_239 = arith.constant 1 : index
    %c1_240 = arith.constant 1 : index
    %c0_241 = arith.constant 0 : index
    %c0_242 = arith.constant 0 : index
    %288 = vector.load %arg6[%c1_239, %c1_240, %c0_241, %c0_242] : memref<2x4x32x8xf32, #tpu.memory_space<vmem>>, vector<1x1x32x8xf32>
    %289 = vector.shape_cast %288 : vector<1x1x32x8xf32> to vector<32x8xf32>
    %cst_243 = arith.constant dense<0.000000e+00> : vector<8x8xf32>
    %290 = tpu.matmul %245, %289, %cst_243 {dimension_numbers = #tpu.dot_dimension_numbers<[1], [0], [0], [1], [0, 0, 1, 1], [], []>} : vector<8x32xf32>, vector<32x8xf32>, vector<8x8xf32> -> vector<8x8xf32>
    %c1_244 = arith.constant 1 : index
    %c1_245 = arith.constant 1 : index
    %c0_246 = arith.constant 0 : index
    %c0_247 = arith.constant 0 : index
    %291 = vector.load %arg7[%c1_244, %c1_245, %c0_246, %c0_247] : memref<2x4x1x8xf32, #tpu.memory_space<vmem>>, vector<1x1x1x8xf32>
    %292 = vector.shape_cast %291 : vector<1x1x1x8xf32> to vector<1x8xf32>
    %293 = vector.broadcast %292 : vector<1x8xf32> to vector<8x8xf32>
    %294 = arith.addf %290, %293 : vector<8x8xf32>
    %c1_248 = arith.constant 1 : index
    %c1_249 = arith.constant 1 : index
    %c0_250 = arith.constant 0 : index
    %c0_251 = arith.constant 0 : index
    %295 = vector.load %arg8[%c1_248, %c1_249, %c0_250, %c0_251] : memref<2x4x32x8xf32, #tpu.memory_space<vmem>>, vector<1x1x32x8xf32>
    %296 = vector.shape_cast %295 : vector<1x1x32x8xf32> to vector<32x8xf32>
    %cst_252 = arith.constant dense<0.000000e+00> : vector<8x8xf32>
    %297 = tpu.matmul %245, %296, %cst_252 {dimension_numbers = #tpu.dot_dimension_numbers<[1], [0], [0], [1], [0, 0, 1, 1], [], []>} : vector<8x32xf32>, vector<32x8xf32>, vector<8x8xf32> -> vector<8x8xf32>
    %c1_253 = arith.constant 1 : index
    %c1_254 = arith.constant 1 : index
    %c0_255 = arith.constant 0 : index
    %c0_256 = arith.constant 0 : index
    %298 = vector.load %arg9[%c1_253, %c1_254, %c0_255, %c0_256] : memref<2x4x1x8xf32, #tpu.memory_space<vmem>>, vector<1x1x1x8xf32>
    %299 = vector.shape_cast %298 : vector<1x1x1x8xf32> to vector<1x8xf32>
    %300 = vector.broadcast %299 : vector<1x8xf32> to vector<8x8xf32>
    %301 = arith.addf %297, %300 : vector<8x8xf32>
    %c1_257 = arith.constant 1 : index
    %c1_258 = arith.constant 1 : index
    %c0_259 = arith.constant 0 : index
    %c0_260 = arith.constant 0 : index
    %302 = vector.load %arg10[%c1_257, %c1_258, %c0_259, %c0_260] : memref<2x4x32x8xf32, #tpu.memory_space<vmem>>, vector<1x1x32x8xf32>
    %303 = vector.shape_cast %302 : vector<1x1x32x8xf32> to vector<32x8xf32>
    %cst_261 = arith.constant dense<0.000000e+00> : vector<8x8xf32>
    %304 = tpu.matmul %245, %303, %cst_261 {dimension_numbers = #tpu.dot_dimension_numbers<[1], [0], [0], [1], [0, 0, 1, 1], [], []>} : vector<8x32xf32>, vector<32x8xf32>, vector<8x8xf32> -> vector<8x8xf32>
    %c1_262 = arith.constant 1 : index
    %c1_263 = arith.constant 1 : index
    %c0_264 = arith.constant 0 : index
    %c0_265 = arith.constant 0 : index
    %305 = vector.load %arg11[%c1_262, %c1_263, %c0_264, %c0_265] : memref<2x4x1x8xf32, #tpu.memory_space<vmem>>, vector<1x1x1x8xf32>
    %306 = vector.shape_cast %305 : vector<1x1x1x8xf32> to vector<1x8xf32>
    %307 = vector.broadcast %306 : vector<1x8xf32> to vector<8x8xf32>
    %308 = arith.addf %304, %307 : vector<8x8xf32>
    %cst_266 = arith.constant dense<0.000000e+00> : vector<8x8xf32>
    %309 = tpu.matmul %294, %301, %cst_266 {dimension_numbers = #tpu.dot_dimension_numbers<[1], [1], [0], [0], [0, 0, 1, 0], [], []>} : vector<8x8xf32>, vector<8x8xf32>, vector<8x8xf32> -> vector<8x8xf32>
    %cst_267 = arith.constant 0.353553385 : f32
    %310 = vector.broadcast %cst_267 : f32 to vector<8x8xf32>
    %311 = arith.mulf %309, %310 : vector<8x8xf32>
    %cst_268 = arith.constant dense<0xFF800000> : vector<8xf32>
    %312 = vector.multi_reduction <maximumf>, %311, %cst_268 [1] : vector<8x8xf32> to vector<8xf32>
    %313 = vector.shape_cast %312 : vector<8xf32> to vector<8x1xf32>
    %314 = vector.broadcast %313 : vector<8x1xf32> to vector<8x8xf32>
    %315 = arith.subf %311, %314 : vector<8x8xf32>
    %316 = math.exp %315 : vector<8x8xf32>
    %cst_269 = arith.constant dense<0.000000e+00> : vector<8xf32>
    %317 = vector.multi_reduction <add>, %316, %cst_269 [1] : vector<8x8xf32> to vector<8xf32>
    %318 = vector.shape_cast %317 : vector<8xf32> to vector<8x1xf32>
    %319 = tpu.reciprocal %318 {approx = true} : vector<8x1xf32> -> vector<8x1xf32>
    %320 = vector.broadcast %319 : vector<8x1xf32> to vector<8x8xf32>
    %321 = arith.mulf %316, %320 : vector<8x8xf32>
    %cst_270 = arith.constant dense<0.000000e+00> : vector<8x8xf32>
    %322 = tpu.matmul %321, %308, %cst_270 {dimension_numbers = #tpu.dot_dimension_numbers<[1], [0], [0], [1], [0, 0, 1, 1], [], []>} : vector<8x8xf32>, vector<8x8xf32>, vector<8x8xf32> -> vector<8x8xf32>
    %c1_271 = arith.constant 1 : index
    %c1_272 = arith.constant 1 : index
    %c0_273 = arith.constant 0 : index
    %c0_274 = arith.constant 0 : index
    %323 = vector.load %arg12[%c1_271, %c1_272, %c0_273, %c0_274] : memref<2x4x8x32xf32, #tpu.memory_space<vmem>>, vector<1x1x8x32xf32>
    %324 = vector.shape_cast %323 : vector<1x1x8x32xf32> to vector<8x32xf32>
    %cst_275 = arith.constant dense<0.000000e+00> : vector<8x32xf32>
    %325 = tpu.matmul %322, %324, %cst_275 {dimension_numbers = #tpu.dot_dimension_numbers<[1], [0], [0], [1], [0, 0, 1, 1], [], []>} : vector<8x8xf32>, vector<8x32xf32>, vector<8x32xf32> -> vector<8x32xf32>
    %326 = arith.addf %287, %325 : vector<8x32xf32>
    %c1_276 = arith.constant 1 : index
    %c2_277 = arith.constant 2 : index
    %c0_278 = arith.constant 0 : index
    %c0_279 = arith.constant 0 : index
    %327 = vector.load %arg6[%c1_276, %c2_277, %c0_278, %c0_279] : memref<2x4x32x8xf32, #tpu.memory_space<vmem>>, vector<1x1x32x8xf32>
    %328 = vector.shape_cast %327 : vector<1x1x32x8xf32> to vector<32x8xf32>
    %cst_280 = arith.constant dense<0.000000e+00> : vector<8x8xf32>
    %329 = tpu.matmul %245, %328, %cst_280 {dimension_numbers = #tpu.dot_dimension_numbers<[1], [0], [0], [1], [0, 0, 1, 1], [], []>} : vector<8x32xf32>, vector<32x8xf32>, vector<8x8xf32> -> vector<8x8xf32>
    %c1_281 = arith.constant 1 : index
    %c2_282 = arith.constant 2 : index
    %c0_283 = arith.constant 0 : index
    %c0_284 = arith.constant 0 : index
    %330 = vector.load %arg7[%c1_281, %c2_282, %c0_283, %c0_284] : memref<2x4x1x8xf32, #tpu.memory_space<vmem>>, vector<1x1x1x8xf32>
    %331 = vector.shape_cast %330 : vector<1x1x1x8xf32> to vector<1x8xf32>
    %332 = vector.broadcast %331 : vector<1x8xf32> to vector<8x8xf32>
    %333 = arith.addf %329, %332 : vector<8x8xf32>
    %c1_285 = arith.constant 1 : index
    %c2_286 = arith.constant 2 : index
    %c0_287 = arith.constant 0 : index
    %c0_288 = arith.constant 0 : index
    %334 = vector.load %arg8[%c1_285, %c2_286, %c0_287, %c0_288] : memref<2x4x32x8xf32, #tpu.memory_space<vmem>>, vector<1x1x32x8xf32>
    %335 = vector.shape_cast %334 : vector<1x1x32x8xf32> to vector<32x8xf32>
    %cst_289 = arith.constant dense<0.000000e+00> : vector<8x8xf32>
    %336 = tpu.matmul %245, %335, %cst_289 {dimension_numbers = #tpu.dot_dimension_numbers<[1], [0], [0], [1], [0, 0, 1, 1], [], []>} : vector<8x32xf32>, vector<32x8xf32>, vector<8x8xf32> -> vector<8x8xf32>
    %c1_290 = arith.constant 1 : index
    %c2_291 = arith.constant 2 : index
    %c0_292 = arith.constant 0 : index
    %c0_293 = arith.constant 0 : index
    %337 = vector.load %arg9[%c1_290, %c2_291, %c0_292, %c0_293] : memref<2x4x1x8xf32, #tpu.memory_space<vmem>>, vector<1x1x1x8xf32>
    %338 = vector.shape_cast %337 : vector<1x1x1x8xf32> to vector<1x8xf32>
    %339 = vector.broadcast %338 : vector<1x8xf32> to vector<8x8xf32>
    %340 = arith.addf %336, %339 : vector<8x8xf32>
    %c1_294 = arith.constant 1 : index
    %c2_295 = arith.constant 2 : index
    %c0_296 = arith.constant 0 : index
    %c0_297 = arith.constant 0 : index
    %341 = vector.load %arg10[%c1_294, %c2_295, %c0_296, %c0_297] : memref<2x4x32x8xf32, #tpu.memory_space<vmem>>, vector<1x1x32x8xf32>
    %342 = vector.shape_cast %341 : vector<1x1x32x8xf32> to vector<32x8xf32>
    %cst_298 = arith.constant dense<0.000000e+00> : vector<8x8xf32>
    %343 = tpu.matmul %245, %342, %cst_298 {dimension_numbers = #tpu.dot_dimension_numbers<[1], [0], [0], [1], [0, 0, 1, 1], [], []>} : vector<8x32xf32>, vector<32x8xf32>, vector<8x8xf32> -> vector<8x8xf32>
    %c1_299 = arith.constant 1 : index
    %c2_300 = arith.constant 2 : index
    %c0_301 = arith.constant 0 : index
    %c0_302 = arith.constant 0 : index
    %344 = vector.load %arg11[%c1_299, %c2_300, %c0_301, %c0_302] : memref<2x4x1x8xf32, #tpu.memory_space<vmem>>, vector<1x1x1x8xf32>
    %345 = vector.shape_cast %344 : vector<1x1x1x8xf32> to vector<1x8xf32>
    %346 = vector.broadcast %345 : vector<1x8xf32> to vector<8x8xf32>
    %347 = arith.addf %343, %346 : vector<8x8xf32>
    %cst_303 = arith.constant dense<0.000000e+00> : vector<8x8xf32>
    %348 = tpu.matmul %333, %340, %cst_303 {dimension_numbers = #tpu.dot_dimension_numbers<[1], [1], [0], [0], [0, 0, 1, 0], [], []>} : vector<8x8xf32>, vector<8x8xf32>, vector<8x8xf32> -> vector<8x8xf32>
    %cst_304 = arith.constant 0.353553385 : f32
    %349 = vector.broadcast %cst_304 : f32 to vector<8x8xf32>
    %350 = arith.mulf %348, %349 : vector<8x8xf32>
    %cst_305 = arith.constant dense<0xFF800000> : vector<8xf32>
    %351 = vector.multi_reduction <maximumf>, %350, %cst_305 [1] : vector<8x8xf32> to vector<8xf32>
    %352 = vector.shape_cast %351 : vector<8xf32> to vector<8x1xf32>
    %353 = vector.broadcast %352 : vector<8x1xf32> to vector<8x8xf32>
    %354 = arith.subf %350, %353 : vector<8x8xf32>
    %355 = math.exp %354 : vector<8x8xf32>
    %cst_306 = arith.constant dense<0.000000e+00> : vector<8xf32>
    %356 = vector.multi_reduction <add>, %355, %cst_306 [1] : vector<8x8xf32> to vector<8xf32>
    %357 = vector.shape_cast %356 : vector<8xf32> to vector<8x1xf32>
    %358 = tpu.reciprocal %357 {approx = true} : vector<8x1xf32> -> vector<8x1xf32>
    %359 = vector.broadcast %358 : vector<8x1xf32> to vector<8x8xf32>
    %360 = arith.mulf %355, %359 : vector<8x8xf32>
    %cst_307 = arith.constant dense<0.000000e+00> : vector<8x8xf32>
    %361 = tpu.matmul %360, %347, %cst_307 {dimension_numbers = #tpu.dot_dimension_numbers<[1], [0], [0], [1], [0, 0, 1, 1], [], []>} : vector<8x8xf32>, vector<8x8xf32>, vector<8x8xf32> -> vector<8x8xf32>
    %c1_308 = arith.constant 1 : index
    %c2_309 = arith.constant 2 : index
    %c0_310 = arith.constant 0 : index
    %c0_311 = arith.constant 0 : index
    %362 = vector.load %arg12[%c1_308, %c2_309, %c0_310, %c0_311] : memref<2x4x8x32xf32, #tpu.memory_space<vmem>>, vector<1x1x8x32xf32>
    %363 = vector.shape_cast %362 : vector<1x1x8x32xf32> to vector<8x32xf32>
    %cst_312 = arith.constant dense<0.000000e+00> : vector<8x32xf32>
    %364 = tpu.matmul %361, %363, %cst_312 {dimension_numbers = #tpu.dot_dimension_numbers<[1], [0], [0], [1], [0, 0, 1, 1], [], []>} : vector<8x8xf32>, vector<8x32xf32>, vector<8x32xf32> -> vector<8x32xf32>
    %365 = arith.addf %326, %364 : vector<8x32xf32>
    %c1_313 = arith.constant 1 : index
    %c3_314 = arith.constant 3 : index
    %c0_315 = arith.constant 0 : index
    %c0_316 = arith.constant 0 : index
    %366 = vector.load %arg6[%c1_313, %c3_314, %c0_315, %c0_316] : memref<2x4x32x8xf32, #tpu.memory_space<vmem>>, vector<1x1x32x8xf32>
    %367 = vector.shape_cast %366 : vector<1x1x32x8xf32> to vector<32x8xf32>
    %cst_317 = arith.constant dense<0.000000e+00> : vector<8x8xf32>
    %368 = tpu.matmul %245, %367, %cst_317 {dimension_numbers = #tpu.dot_dimension_numbers<[1], [0], [0], [1], [0, 0, 1, 1], [], []>} : vector<8x32xf32>, vector<32x8xf32>, vector<8x8xf32> -> vector<8x8xf32>
    %c1_318 = arith.constant 1 : index
    %c3_319 = arith.constant 3 : index
    %c0_320 = arith.constant 0 : index
    %c0_321 = arith.constant 0 : index
    %369 = vector.load %arg7[%c1_318, %c3_319, %c0_320, %c0_321] : memref<2x4x1x8xf32, #tpu.memory_space<vmem>>, vector<1x1x1x8xf32>
    %370 = vector.shape_cast %369 : vector<1x1x1x8xf32> to vector<1x8xf32>
    %371 = vector.broadcast %370 : vector<1x8xf32> to vector<8x8xf32>
    %372 = arith.addf %368, %371 : vector<8x8xf32>
    %c1_322 = arith.constant 1 : index
    %c3_323 = arith.constant 3 : index
    %c0_324 = arith.constant 0 : index
    %c0_325 = arith.constant 0 : index
    %373 = vector.load %arg8[%c1_322, %c3_323, %c0_324, %c0_325] : memref<2x4x32x8xf32, #tpu.memory_space<vmem>>, vector<1x1x32x8xf32>
    %374 = vector.shape_cast %373 : vector<1x1x32x8xf32> to vector<32x8xf32>
    %cst_326 = arith.constant dense<0.000000e+00> : vector<8x8xf32>
    %375 = tpu.matmul %245, %374, %cst_326 {dimension_numbers = #tpu.dot_dimension_numbers<[1], [0], [0], [1], [0, 0, 1, 1], [], []>} : vector<8x32xf32>, vector<32x8xf32>, vector<8x8xf32> -> vector<8x8xf32>
    %c1_327 = arith.constant 1 : index
    %c3_328 = arith.constant 3 : index
    %c0_329 = arith.constant 0 : index
    %c0_330 = arith.constant 0 : index
    %376 = vector.load %arg9[%c1_327, %c3_328, %c0_329, %c0_330] : memref<2x4x1x8xf32, #tpu.memory_space<vmem>>, vector<1x1x1x8xf32>
    %377 = vector.shape_cast %376 : vector<1x1x1x8xf32> to vector<1x8xf32>
    %378 = vector.broadcast %377 : vector<1x8xf32> to vector<8x8xf32>
    %379 = arith.addf %375, %378 : vector<8x8xf32>
    %c1_331 = arith.constant 1 : index
    %c3_332 = arith.constant 3 : index
    %c0_333 = arith.constant 0 : index
    %c0_334 = arith.constant 0 : index
    %380 = vector.load %arg10[%c1_331, %c3_332, %c0_333, %c0_334] : memref<2x4x32x8xf32, #tpu.memory_space<vmem>>, vector<1x1x32x8xf32>
    %381 = vector.shape_cast %380 : vector<1x1x32x8xf32> to vector<32x8xf32>
    %cst_335 = arith.constant dense<0.000000e+00> : vector<8x8xf32>
    %382 = tpu.matmul %245, %381, %cst_335 {dimension_numbers = #tpu.dot_dimension_numbers<[1], [0], [0], [1], [0, 0, 1, 1], [], []>} : vector<8x32xf32>, vector<32x8xf32>, vector<8x8xf32> -> vector<8x8xf32>
    %c1_336 = arith.constant 1 : index
    %c3_337 = arith.constant 3 : index
    %c0_338 = arith.constant 0 : index
    %c0_339 = arith.constant 0 : index
    %383 = vector.load %arg11[%c1_336, %c3_337, %c0_338, %c0_339] : memref<2x4x1x8xf32, #tpu.memory_space<vmem>>, vector<1x1x1x8xf32>
    %384 = vector.shape_cast %383 : vector<1x1x1x8xf32> to vector<1x8xf32>
    %385 = vector.broadcast %384 : vector<1x8xf32> to vector<8x8xf32>
    %386 = arith.addf %382, %385 : vector<8x8xf32>
    %cst_340 = arith.constant dense<0.000000e+00> : vector<8x8xf32>
    %387 = tpu.matmul %372, %379, %cst_340 {dimension_numbers = #tpu.dot_dimension_numbers<[1], [1], [0], [0], [0, 0, 1, 0], [], []>} : vector<8x8xf32>, vector<8x8xf32>, vector<8x8xf32> -> vector<8x8xf32>
    %cst_341 = arith.constant 0.353553385 : f32
    %388 = vector.broadcast %cst_341 : f32 to vector<8x8xf32>
    %389 = arith.mulf %387, %388 : vector<8x8xf32>
    %cst_342 = arith.constant dense<0xFF800000> : vector<8xf32>
    %390 = vector.multi_reduction <maximumf>, %389, %cst_342 [1] : vector<8x8xf32> to vector<8xf32>
    %391 = vector.shape_cast %390 : vector<8xf32> to vector<8x1xf32>
    %392 = vector.broadcast %391 : vector<8x1xf32> to vector<8x8xf32>
    %393 = arith.subf %389, %392 : vector<8x8xf32>
    %394 = math.exp %393 : vector<8x8xf32>
    %cst_343 = arith.constant dense<0.000000e+00> : vector<8xf32>
    %395 = vector.multi_reduction <add>, %394, %cst_343 [1] : vector<8x8xf32> to vector<8xf32>
    %396 = vector.shape_cast %395 : vector<8xf32> to vector<8x1xf32>
    %397 = tpu.reciprocal %396 {approx = true} : vector<8x1xf32> -> vector<8x1xf32>
    %398 = vector.broadcast %397 : vector<8x1xf32> to vector<8x8xf32>
    %399 = arith.mulf %394, %398 : vector<8x8xf32>
    %cst_344 = arith.constant dense<0.000000e+00> : vector<8x8xf32>
    %400 = tpu.matmul %399, %386, %cst_344 {dimension_numbers = #tpu.dot_dimension_numbers<[1], [0], [0], [1], [0, 0, 1, 1], [], []>} : vector<8x8xf32>, vector<8x8xf32>, vector<8x8xf32> -> vector<8x8xf32>
    %c1_345 = arith.constant 1 : index
    %c3_346 = arith.constant 3 : index
    %c0_347 = arith.constant 0 : index
    %c0_348 = arith.constant 0 : index
    %401 = vector.load %arg12[%c1_345, %c3_346, %c0_347, %c0_348] : memref<2x4x8x32xf32, #tpu.memory_space<vmem>>, vector<1x1x8x32xf32>
    %402 = vector.shape_cast %401 : vector<1x1x8x32xf32> to vector<8x32xf32>
    %cst_349 = arith.constant dense<0.000000e+00> : vector<8x32xf32>
    %403 = tpu.matmul %400, %402, %cst_349 {dimension_numbers = #tpu.dot_dimension_numbers<[1], [0], [0], [1], [0, 0, 1, 1], [], []>} : vector<8x8xf32>, vector<8x32xf32>, vector<8x32xf32> -> vector<8x32xf32>
    %404 = arith.addf %365, %403 : vector<8x32xf32>
    %405 = arith.addf %245, %404 : vector<8x32xf32>
    %c1_350 = arith.constant 1 : index
    %c0_351 = arith.constant 0 : index
    %c0_352 = arith.constant 0 : index
    %406 = vector.load %arg18[%c1_350, %c0_351, %c0_352] : memref<2x1x32xf32, #tpu.memory_space<vmem>>, vector<1x1x32xf32>
    %407 = vector.shape_cast %406 : vector<1x1x32xf32> to vector<1x32xf32>
    %c1_353 = arith.constant 1 : index
    %c0_354 = arith.constant 0 : index
    %c0_355 = arith.constant 0 : index
    %408 = vector.load %arg19[%c1_353, %c0_354, %c0_355] : memref<2x1x32xf32, #tpu.memory_space<vmem>>, vector<1x1x32xf32>
    %409 = vector.shape_cast %408 : vector<1x1x32xf32> to vector<1x32xf32>
    %cst_356 = arith.constant dense<0.000000e+00> : vector<8xf32>
    %410 = vector.multi_reduction <add>, %405, %cst_356 [1] : vector<8x32xf32> to vector<8xf32>
    %411 = vector.shape_cast %410 : vector<8xf32> to vector<8x1xf32>
    %cst_357 = arith.constant 3.200000e+01 : f32
    %412 = vector.broadcast %cst_357 : f32 to vector<8x1xf32>
    %413 = arith.divf %411, %412 : vector<8x1xf32>
    %414 = vector.broadcast %413 : vector<8x1xf32> to vector<8x32xf32>
    %415 = arith.subf %405, %414 : vector<8x32xf32>
    %416 = arith.mulf %415, %415 : vector<8x32xf32>
    %cst_358 = arith.constant dense<0.000000e+00> : vector<8xf32>
    %417 = vector.multi_reduction <add>, %416, %cst_358 [1] : vector<8x32xf32> to vector<8xf32>
    %418 = vector.shape_cast %417 : vector<8xf32> to vector<8x1xf32>
    %cst_359 = arith.constant 3.200000e+01 : f32
    %419 = vector.broadcast %cst_359 : f32 to vector<8x1xf32>
    %420 = arith.divf %418, %419 : vector<8x1xf32>
    %421 = vector.broadcast %413 : vector<8x1xf32> to vector<8x32xf32>
    %422 = arith.subf %405, %421 : vector<8x32xf32>
    %cst_360 = arith.constant 9.99999974E-6 : f32
    %423 = vector.broadcast %cst_360 : f32 to vector<8x1xf32>
    %424 = arith.addf %420, %423 : vector<8x1xf32>
    %425 = math.rsqrt %424 : vector<8x1xf32>
    %426 = vector.broadcast %425 : vector<8x1xf32> to vector<8x32xf32>
    %427 = arith.mulf %422, %426 : vector<8x32xf32>
    %428 = vector.broadcast %407 : vector<1x32xf32> to vector<8x32xf32>
    %429 = arith.mulf %427, %428 : vector<8x32xf32>
    %430 = vector.broadcast %409 : vector<1x32xf32> to vector<8x32xf32>
    %431 = arith.addf %429, %430 : vector<8x32xf32>
    %c1_361 = arith.constant 1 : index
    %c0_362 = arith.constant 0 : index
    %c0_363 = arith.constant 0 : index
    %432 = vector.load %arg14[%c1_361, %c0_362, %c0_363] : memref<2x32x128xf32, #tpu.memory_space<vmem>>, vector<1x32x128xf32>
    %433 = vector.shape_cast %432 : vector<1x32x128xf32> to vector<32x128xf32>
    %cst_364 = arith.constant dense<0.000000e+00> : vector<8x128xf32>
    %434 = tpu.matmul %431, %433, %cst_364 {dimension_numbers = #tpu.dot_dimension_numbers<[1], [0], [0], [1], [0, 0, 1, 1], [], []>} : vector<8x32xf32>, vector<32x128xf32>, vector<8x128xf32> -> vector<8x128xf32>
    %c1_365 = arith.constant 1 : index
    %c0_366 = arith.constant 0 : index
    %c0_367 = arith.constant 0 : index
    %435 = vector.load %arg15[%c1_365, %c0_366, %c0_367] : memref<2x1x128xf32, #tpu.memory_space<vmem>>, vector<1x1x128xf32>
    %436 = vector.shape_cast %435 : vector<1x1x128xf32> to vector<1x128xf32>
    %437 = vector.broadcast %436 : vector<1x128xf32> to vector<8x128xf32>
    %438 = arith.addf %434, %437 : vector<8x128xf32>
    %cst_368 = arith.constant 0.000000e+00 : f32
    %439 = vector.broadcast %cst_368 : f32 to vector<8x128xf32>
    %440 = arith.maximumf %438, %439 : vector<8x128xf32>
    %c1_369 = arith.constant 1 : index
    %c0_370 = arith.constant 0 : index
    %c0_371 = arith.constant 0 : index
    %441 = vector.load %arg16[%c1_369, %c0_370, %c0_371] : memref<2x128x32xf32, #tpu.memory_space<vmem>>, vector<1x128x32xf32>
    %442 = vector.shape_cast %441 : vector<1x128x32xf32> to vector<128x32xf32>
    %cst_372 = arith.constant dense<0.000000e+00> : vector<8x32xf32>
    %443 = tpu.matmul %440, %442, %cst_372 {dimension_numbers = #tpu.dot_dimension_numbers<[1], [0], [0], [1], [0, 0, 1, 1], [], []>} : vector<8x128xf32>, vector<128x32xf32>, vector<8x32xf32> -> vector<8x32xf32>
    %c1_373 = arith.constant 1 : index
    %c0_374 = arith.constant 0 : index
    %c0_375 = arith.constant 0 : index
    %444 = vector.load %arg17[%c1_373, %c0_374, %c0_375] : memref<2x1x32xf32, #tpu.memory_space<vmem>>, vector<1x1x32xf32>
    %445 = vector.shape_cast %444 : vector<1x1x32xf32> to vector<1x32xf32>
    %446 = vector.broadcast %445 : vector<1x32xf32> to vector<8x32xf32>
    %447 = arith.addf %443, %446 : vector<8x32xf32>
    %448 = arith.addf %431, %447 : vector<8x32xf32>
    %c1_376 = arith.constant 1 : index
    %c0_377 = arith.constant 0 : index
    %c0_378 = arith.constant 0 : index
    %449 = vector.load %arg20[%c1_376, %c0_377, %c0_378] : memref<2x1x32xf32, #tpu.memory_space<vmem>>, vector<1x1x32xf32>
    %450 = vector.shape_cast %449 : vector<1x1x32xf32> to vector<1x32xf32>
    %c1_379 = arith.constant 1 : index
    %c0_380 = arith.constant 0 : index
    %c0_381 = arith.constant 0 : index
    %451 = vector.load %arg21[%c1_379, %c0_380, %c0_381] : memref<2x1x32xf32, #tpu.memory_space<vmem>>, vector<1x1x32xf32>
    %452 = vector.shape_cast %451 : vector<1x1x32xf32> to vector<1x32xf32>
    %cst_382 = arith.constant dense<0.000000e+00> : vector<8xf32>
    %453 = vector.multi_reduction <add>, %448, %cst_382 [1] : vector<8x32xf32> to vector<8xf32>
    %454 = vector.shape_cast %453 : vector<8xf32> to vector<8x1xf32>
    %cst_383 = arith.constant 3.200000e+01 : f32
    %455 = vector.broadcast %cst_383 : f32 to vector<8x1xf32>
    %456 = arith.divf %454, %455 : vector<8x1xf32>
    %457 = vector.broadcast %456 : vector<8x1xf32> to vector<8x32xf32>
    %458 = arith.subf %448, %457 : vector<8x32xf32>
    %459 = arith.mulf %458, %458 : vector<8x32xf32>
    %cst_384 = arith.constant dense<0.000000e+00> : vector<8xf32>
    %460 = vector.multi_reduction <add>, %459, %cst_384 [1] : vector<8x32xf32> to vector<8xf32>
    %461 = vector.shape_cast %460 : vector<8xf32> to vector<8x1xf32>
    %cst_385 = arith.constant 3.200000e+01 : f32
    %462 = vector.broadcast %cst_385 : f32 to vector<8x1xf32>
    %463 = arith.divf %461, %462 : vector<8x1xf32>
    %464 = vector.broadcast %456 : vector<8x1xf32> to vector<8x32xf32>
    %465 = arith.subf %448, %464 : vector<8x32xf32>
    %cst_386 = arith.constant 9.99999974E-6 : f32
    %466 = vector.broadcast %cst_386 : f32 to vector<8x1xf32>
    %467 = arith.addf %463, %466 : vector<8x1xf32>
    %468 = math.rsqrt %467 : vector<8x1xf32>
    %469 = vector.broadcast %468 : vector<8x1xf32> to vector<8x32xf32>
    %470 = arith.mulf %465, %469 : vector<8x32xf32>
    %471 = vector.broadcast %450 : vector<1x32xf32> to vector<8x32xf32>
    %472 = arith.mulf %470, %471 : vector<8x32xf32>
    %473 = vector.broadcast %452 : vector<1x32xf32> to vector<8x32xf32>
    %474 = arith.addf %472, %473 : vector<8x32xf32>
    %c0_387 = arith.constant 0 : index
    %c0_388 = arith.constant 0 : index
    %475 = vector.load %arg22[%c0_387, %c0_388] : memref<32x8xf32, #tpu.memory_space<vmem>>, vector<32x8xf32>
    %cst_389 = arith.constant dense<0.000000e+00> : vector<8x8xf32>
    %476 = tpu.matmul %474, %475, %cst_389 {dimension_numbers = #tpu.dot_dimension_numbers<[1], [0], [0], [1], [0, 0, 1, 1], [], []>} : vector<8x32xf32>, vector<32x8xf32>, vector<8x8xf32> -> vector<8x8xf32>
    %c0_390 = arith.constant 0 : index
    %c0_391 = arith.constant 0 : index
    %477 = vector.load %arg23[%c0_390, %c0_391] : memref<1x8xf32, #tpu.memory_space<vmem>>, vector<1x8xf32>
    %478 = vector.broadcast %477 : vector<1x8xf32> to vector<8x8xf32>
    %479 = arith.addf %476, %478 : vector<8x8xf32>
    %c0_392 = arith.constant 0 : index
    %c0_393 = arith.constant 0 : index
    %480 = vector.load %arg24[%c0_392, %c0_393] : memref<8x8xf32, #tpu.memory_space<vmem>>, vector<8x8xf32>
    tpu.vector_store %arg24[%c0_392, %c0_393], %479 {strides = array<i32>} : memref<8x8xf32, #tpu.memory_space<vmem>>, vector<8x8xf32>,
    return
  }
}

</mosaic_0001>

<llo_original>
// kernel: sor_forward.3
$region0: #{sor_forward.3}
  #allocation0 [shape = 'u32[]', space=smem, size = 0x4, offset = 0x4, fixed_abs, tag = 'smem constant byte address 0x4 - core index']
  #allocation1 [shape = 'u32[144,128]{1,0:T(1,128)}', space=vmem, size = 0x12000, scoped, tag = 'internal scratch']
  %s0 = inlined_call_operand.vmem [shape: bf16[16,45], index: 0, kind: input, shape index: {}]
  %s1 = inlined_call_operand.vmem [shape: bf16[45,2048], index: 1, kind: input, shape index: {}]
  %s2 = inlined_call_operand.vmem [shape: f32[16,1], index: 2, kind: input, shape index: {}]
  %s3 = inlined_call_operand.vmem [shape: f32[16,2048], index: 3, kind: output, shape index: {}]
  %s4 = sld [smem:[#allocation0]]
  $region87: #{sor_forward.3} parent=0
    _
  %s6 = ssub.s32 1, %s4
  %s7 = scalar_select 0, %s6, %s4
  $region1: #{sor_forward.3} parent=0
    #allocation2 [shape = 'u8[98304]{0}', space=vmem, size = 0x18000, scoped, tag = 'input window, operand 1']
    #allocation3 [shape = 'u8[65536]{0}', space=vmem, size = 0x10000, scoped, tag = 'output window, operand 0']
    loop: start=0, step=1, limit=6
    $region2: #{sor_forward.3} parent=1 // loop_pre_header
      _
    $region3: #{sor_forward.3} parent=1 // loop_header
      %s9 = sphi 0, %s13
      %p10 = scmp.ge.s32.totalorder %s9, 6
      %s17 = sphi 0, %s17
      %s19 = sphi 0, %s17
      %s20 = sphi 0, %s19
      %s34 = sphi 0, %s20
      %s40 = sphi 0, %s42
      %s43 = sphi 0, %s40
      %s44 = sphi 0, %s43
      %s60 = sphi 0, %s44
      %s64 = sphi 0, %s64
      %s66 = sphi 0, %s64
      %s67 = sphi 0, %s66
      %s81 = sphi 0, %s67
      %s87 = sphi 0, %s89
      %s90 = sphi 0, %s87
      %s91 = sphi 0, %s90
      %s107 = sphi 0, %s91
    $region4: #{sor_forward.3} parent=1 // loop_header_branch
      %12 = sbr.rel (%p10) target = $region8
    $region5: #{sor_forward.3} parent=1 // loop_body
      %s14 = ssub.s32 %s9, 1
      %s15 = ssub.s32 %s9, 2
      %s16 = sadd.s32 %s9, 1
      %s18 = sadd.s32 %s17, 1
      %p21 = scmp.eq.s32.totalorder %s9, 3
      %p22 = scmp.ne.s32.totalorder %s17, %s19
      %p23 = scmp.eq.s32.totalorder %s9, 0
      %p24 = por %p22, %p23
      %p25 = scmp.ne.s32.totalorder %s17, %s19
      %p26 = scmp.eq.s32.totalorder %s14, 3
      %p27 = por %p25, %p26
      %p28 = scmp.ne.s32.totalorder %s19, %s20
      %p29 = scmp.eq.s32.totalorder %s14, 0
      %p30 = por %p28, %p29
      %p31 = scmp.ne.s32.totalorder %s19, %s20
      %p32 = scmp.eq.s32.totalorder %s15, 3
      %p33 = por %p31, %p32
      %p35 = scmp.ne.s32.totalorder %s20, %s34
      %p36 = scmp.eq.s32.totalorder %s15, 0
      %p37 = por %p35, %p36
      %s38 = ssub.s32 %s9, %s16
      %p39 = scmp.eq.s32.totalorder %s38, 0
      %s41 = sadd.s32 %s40, 1
      %s42 = scalar_select %p39, %s40, %s41
      %p45 = pneg %p39
      %p46 = scmp.eq.s32.totalorder %s9, 3
      %p47 = por %p45, %p46
      %p48 = scmp.ne.s32.totalorder %s40, %s43
      %p49 = scmp.eq.s32.totalorder %s9, 0
      %p50 = por %p48, %p49
      %p51 = scmp.ne.s32.totalorder %s40, %s43
      %p52 = scmp.eq.s32.totalorder %s14, 3
      %p53 = por %p51, %p52
      %p54 = scmp.ne.s32.totalorder %s43, %s44
      %p55 = scmp.eq.s32.totalorder %s14, 0
      %p56 = por %p54, %p55
      %p57 = scmp.ne.s32.totalorder %s43, %s44
      %p58 = scmp.eq.s32.totalorder %s15, 3
      %p59 = por %p57, %p58
      %p61 = scmp.ne.s32.totalorder %s44, %s60
      %p62 = scmp.eq.s32.totalorder %s15, 0
      %p63 = por %p61, %p62
      %s65 = sadd.s32 %s64, 1
      %p68 = scmp.eq.s32.totalorder %s9, 3
      %p69 = scmp.ne.s32.totalorder %s64, %s66
      %p70 = scmp.eq.s32.totalorder %s9, 0
      %p71 = por %p69, %p70
      %p72 = scmp.ne.s32.totalorder %s64, %s66
      %p73 = scmp.eq.s32.totalorder %s14, 3
      %p74 = por %p72, %p73
      %p75 = scmp.ne.s32.totalorder %s66, %s67
      %p76 = scmp.eq.s32.totalorder %s14, 0
      %p77 = por %p75, %p76
      %p78 = scmp.ne.s32.totalorder %s66, %s67
      %p79 = scmp.eq.s32.totalorder %s15, 3
      %p80 = por %p78, %p79
      %p82 = scmp.ne.s32.totalorder %s67, %s81
      %p83 = scmp.eq.s32.totalorder %s15, 0
      %p84 = por %p82, %p83
      %s85 = ssub.s32 %s9, %s16
      %p86 = scmp.eq.s32.totalorder %s85, 0
      %s88 = sadd.s32 %s87, 1
      %s89 = scalar_select %p86, %s87, %s88
      %p92 = pneg %p86
      %p93 = scmp.eq.s32.totalorder %s9, 3
      %p94 = por %p92, %p93
      %p95 = scmp.ne.s32.totalorder %s87, %s90
      %p96 = scmp.eq.s32.totalorder %s9, 0
      %p97 = por %p95, %p96
      %p98 = scmp.ne.s32.totalorder %s87, %s90
      %p99 = scmp.eq.s32.totalorder %s14, 3
      %p100 = por %p98, %p99
      %p101 = scmp.ne.s32.totalorder %s90, %s91
      %p102 = scmp.eq.s32.totalorder %s14, 0
      %p103 = por %p101, %p102
      %p104 = scmp.ne.s32.totalorder %s90, %s91
      %p105 = scmp.eq.s32.totalorder %s15, 3
      %p106 = por %p104, %p105
      %p108 = scmp.ne.s32.totalorder %s91, %s107
      %p109 = scmp.eq.s32.totalorder %s15, 0
      %p110 = por %p108, %p109
      %p111 = scmp.le.s32.totalorder 1, %s9
      %p112 = scmp.lt.s32.totalorder %s9, 5
      %p113 = pnand %p111, %p112
      %p114 = pneg %p113
      // Predicated region
      $region9: #{sor_forward.3} parent=5 // pred_check
        _
      $region10: #{sor_forward.3} parent=5 // pred_check_branch
        %116 = sbr.rel (%p113) target = $region12
      $region11: #{sor_forward.3} parent=5 // pred_region
        %s117 = ssub.s32 %s9, 1
        // Predicated region
        $region13: #{sor_forward.3} parent=11 // pred_check
          %p118 = pneg %p30
        $region14: #{sor_forward.3} parent=11 // pred_check_branch
          %120 = sbr.rel (%p118) target = $region16
        $region15: #{sor_forward.3} parent=11 // pred_region
          _
        $region16: #{sor_forward.3} parent=11 // pred_fallthru
          _
        // Predicated region
        $region17: #{sor_forward.3} parent=11 // pred_check
          %p121 = pneg %p77
        $region18: #{sor_forward.3} parent=11 // pred_check_branch
          %123 = sbr.rel (%p121) target = $region20
        $region19: #{sor_forward.3} parent=11 // pred_region
          _
        $region20: #{sor_forward.3} parent=11 // pred_fallthru
          _
      $region12: #{sor_forward.3} parent=5 // pred_fallthru
        _
      %p124 = scmp.lt.s32.totalorder %s9, 4
      // Predicated region
      $region21: #{sor_forward.3} parent=5 // pred_check
        %p125 = pneg %p124
      $region22: #{sor_forward.3} parent=5 // pred_check_branch
        %127 = sbr.rel (%p125) target = $region24
      $region23: #{sor_forward.3} parent=5 // pred_region
        // Predicated region
        $region25: #{sor_forward.3} parent=23 // pred_check
          %p128 = pneg %p50
        $region26: #{sor_forward.3} parent=23 // pred_check_branch
          %130 = sbr.rel (%p128) target = $region28
        $region27: #{sor_forward.3} parent=23 // pred_region
          %s131 = sand.u32 %s40, 1
          %s132 = sand.u32 %s40, 1
          %s133 = smul.addr %s132, 96
          %s134 = scalar_lea.vmem [#allocation2], %s133
          %s135 = smul.u32 4, %s9
          %s136 = smul.addr %s135, 4
          %s137 = scalar_lea.vmem %s1, %s136
          // Predicated region
          $region29: #{sor_forward.3} parent=27 // pred_check
            _
          $region30: #{sor_forward.3} parent=27 // pred_check_branch
            %139 = sbr.rel (0) target = $region32
          $region31: #{sor_forward.3} parent=27 // pred_region
            // Predicated region
            $region33: #{sor_forward.3} parent=31 // pred_check
              _
            $region34: #{sor_forward.3} parent=31 // pred_check_branch
              %141 = sbr.rel (0) target = $region36
            $region35: #{sor_forward.3} parent=31 // pred_region
              loop: start=0, step=1, limit=1
              $region37: #{sor_forward.3} parent=35 // loop_pre_header
                _
              $region38: #{sor_forward.3} parent=35 // loop_header
                %s143 = sphi 0, %s147
                %p144 = scmp.ge.s32.totalorder %s143, 1
                %s148 = sphi %s137, %s137
                %s149 = sphi %s134, %s134
              $region39: #{sor_forward.3} parent=35 // loop_header_branch
                %146 = sbr.rel (%p144) target = $region43
              $region40: #{sor_forward.3} parent=35 // loop_body
                %v150 = vld [vmem:[%s148] sm:$0xff]
                %151 = vst [vmem:[%s149] sm:$0xff] %v150
                %v152 = vld [vmem:[%s148 + $0x8] sm:$0xff]
                %153 = vst [vmem:[%s149 + $0x8] sm:$0xff] %v152
                %v154 = vld [vmem:[%s148 + $0x40] sm:$0xff]
                %155 = vst [vmem:[%s149 + $0x10] sm:$0xff] %v154
                %v156 = vld [vmem:[%s148 + $0x48] sm:$0xff]
                %157 = vst [vmem:[%s149 + $0x18] sm:$0xff] %v156
                %v158 = vld [vmem:[%s148 + $0x80] sm:$0xff]
                %159 = vst [vmem:[%s149 + $0x20] sm:$0xff] %v158
                %v160 = vld [vmem:[%s148 + $0x88] sm:$0xff]
                %161 = vst [vmem:[%s149 + $0x28] sm:$0xff] %v160
                %v162 = vld [vmem:[%s148 + $0xc0] sm:$0xff]
                %163 = vst [vmem:[%s149 + $0x30] sm:$0xff] %v162
                %v164 = vld [vmem:[%s148 + $0xc8] sm:$0xff]
                %165 = vst [vmem:[%s149 + $0x38] sm:$0xff] %v164
                %v166 = vld [vmem:[%s148 + $0x100] sm:$0xff]
                %167 = vst [vmem:[%s149 + $0x40] sm:$0xff] %v166
                %v168 = vld [vmem:[%s148 + $0x108] sm:$0xff]
                %169 = vst [vmem:[%s149 + $0x48] sm:$0xff] %v168
                %v170 = vld [vmem:[%s148 + $0x140] sm:$0xff]
                %171 = vst [vmem:[%s149 + $0x50] sm:$0xff] %v170
                %v172 = vld [vmem:[%s148 + $0x148] sm:$0xff]
                %173 = vst [vmem:[%s149 + $0x58] sm:$0xff] %v172
              $region41: #{sor_forward.3} parent=35 // loop_footer
                %s147 = sadd.s32 1, %s143
              $region42: #{sor_forward.3} parent=35 // loop_footer_branch
                %142 = sbr.rel target = $region38
              $region43: #{sor_forward.3} parent=35 // loop_exit
                _
            $region36: #{sor_forward.3} parent=31 // pred_fallthru
              _
            // Predicated region
            $region44: #{sor_forward.3} parent=31 // pred_check
              _
            $region45: #{sor_forward.3} parent=31 // pred_check_branch
              %175 = sbr.rel target = $region47
            $region46: #{sor_forward.3} parent=31 // pred_region
              _
            $region47: #{sor_forward.3} parent=31 // pred_fallthru
              _
          $region32: #{sor_forward.3} parent=27 // pred_fallthru
            _
          %176 = vnop
        $region28: #{sor_forward.3} parent=23 // pred_fallthru
          _
      $region24: #{sor_forward.3} parent=5 // pred_fallthru
        _
      %p177 = scmp.le.s32.totalorder 1, %s9
      %p178 = scmp.lt.s32.totalorder %s9, 5
      %p179 = pnand %p177, %p178
      %p180 = pneg %p179
      // Predicated region
      $region48: #{sor_forward.3} parent=5 // pred_check
        _
      $region49: #{sor_forward.3} parent=5 // pred_check_branch
        %182 = sbr.rel (%p179) target = $region51
      $region50: #{sor_forward.3} parent=5 // pred_region
        %s183 = ssub.s32 %s9, 1
        %s184 = sand.u32 %s43, 1
        %s185 = sand.u32 %s43, 1
        %s186 = smul.addr %s185, 96
        %s187 = scalar_lea.vmem [#allocation2], %s186
        // Predicated region
        $region52: #{sor_forward.3} parent=50 // pred_check
          %p188 = pneg %p56
        $region53: #{sor_forward.3} parent=50 // pred_check_branch
          %190 = sbr.rel (%p188) target = $region55
        $region54: #{sor_forward.3} parent=50 // pred_region
          _
        $region55: #{sor_forward.3} parent=50 // pred_fallthru
          _
        %p191 = pneg %p30
        %p192 = pneg %p27
        %s193 = sand.u32 %s43, 1
        %s194 = sand.u32 %s43, 1
        %s195 = smul.addr %s194, 96
        %s196 = scalar_lea.vmem [#allocation2], %s195
        %p197 = pneg %p56
        %p198 = pneg %p53
        %p199 = pneg %p77
        %p200 = pneg %p74
        %p201 = pneg %p103
        %p202 = pneg %p100
        %s203 = sand.u32 %s90, 1
        %s204 = sand.u32 %s90, 1
        %s205 = smul.addr %s204, 64
        %s206 = scalar_lea.vmem [#allocation3], %s205
        %s207 = smul.u32 4, %s14
        %s208 = smul.u32 4, %s14
        %v210 = vld [vmem:[%s0] sm:$0xf]
        %v211 = vld [vmem:[%s0 + $0x4] sm:$0xf]
        %v212 = vld [vmem:[%s187] sm:$0xff]
        %v213 = vld [vmem:[%s187 + $0x8] sm:$0xff]
        %v214 = vld [vmem:[%s187 + $0x10] sm:$0xff]
        %v215 = vld [vmem:[%s187 + $0x18] sm:$0xff]
        %v216 = vld [vmem:[%s187 + $0x20] sm:$0xff]
        %v217 = vld [vmem:[%s187 + $0x28] sm:$0xff]
        %v218 = vld [vmem:[%s187 + $0x30] sm:$0xff]
        %v219 = vld [vmem:[%s187 + $0x38] sm:$0xff]
        %v220 = vld [vmem:[%s187 + $0x40] sm:$0xff]
        %v221 = vld [vmem:[%s187 + $0x48] sm:$0xff]
        %v222 = vld [vmem:[%s187 + $0x50] sm:$0x77]
        %v223 = vld [vmem:[%s187 + $0x58] sm:$0x77]
        %v224 = vld [vmem:[%s2] sm:$0xff]
        %v225 = vld [vmem:[%s2 + $0x8] sm:$0xff]
        %227 = vset.pattern.permute.xlu0 0
        %228 = vperm.xlu0 %227, %v224
        %v229 = vpop.permute.xlu0 %228
        %232 = vset.pattern.permute.xlu0 0
        %233 = vperm.xlu0 %232, %v225
        %v234 = vpop.permute.xlu0 %233
        %v238 = vunpack.c.l.b16 %v210
        %v239 = vunpack.c.l.b16 %v211
        %v240 = vpack.c.b16 %v239, %v238
        %v253 = vunpack.c.l.b16 %v212
        %v254 = vunpack.c.h.b16 %v212
        %v255 = vunpack.c.l.b16 %v213
        %v256 = vunpack.c.h.b16 %v213
        %v257 = vunpack.c.l.b16 %v214
        %v258 = vunpack.c.h.b16 %v214
        %v259 = vunpack.c.l.b16 %v215
        %v260 = vunpack.c.h.b16 %v215
        %v261 = vunpack.c.l.b16 %v216
        %v262 = vunpack.c.h.b16 %v216
        %v263 = vunpack.c.l.b16 %v217
        %v264 = vunpack.c.h.b16 %v217
        %v265 = vunpack.c.l.b16 %v218
        %v266 = vunpack.c.h.b16 %v218
        %v267 = vunpack.c.l.b16 %v219
        %v268 = vunpack.c.h.b16 %v219
        %v269 = vunpack.c.l.b16 %v220
        %v270 = vunpack.c.h.b16 %v220
        %v271 = vunpack.c.l.b16 %v221
        %v272 = vunpack.c.h.b16 %v221
        %v273 = vunpack.c.l.b16 %v222
        %v274 = vunpack.c.h.b16 %v222
        %v275 = vunpack.c.l.b16 %v223
        %v276 = vunpack.c.h.b16 %v223
        %v277 = vpack.c.b16 %v257, %v253
        %v278 = vpack.c.b16 %v258, %v254
        %v279 = vpack.c.b16 %v259, %v255
        %v280 = vpack.c.b16 %v260, %v256
        %v281 = vpack.c.b16 %v265, %v261
        %v282 = vpack.c.b16 %v266, %v262
        %v283 = vpack.c.b16 %v267, %v263
        %v284 = vpack.c.b16 %v268, %v264
        %v285 = vpack.c.b16 %v273, %v269
        %v286 = vpack.c.b16 %v274, %v270
        %v287 = vpack.c.b16 %v275, %v271
        %v288 = vpack.c.b16 %v276, %v272
        %vm297 = vcmask 367616
        %v299 = vsel %vm297, %v240, 0
        %vm301 = vcmask 1045504
        %vm302 = vcmask 1046528
        %v303 = vsel %vm301, 4294967295, 65535
        %v304 = vsel %vm302, %v303, 0
        %v306 = vand.u32 %v285, %v304
        %v309 = vand.u32 %v286, %v304
        %v312 = vand.u32 %v287, %v304
        %v315 = vand.u32 %v288, %v304
        %317 = vmatprep.subr.bf16.mxu0 %v278
        %318 = vmatpush1.bf16.msra.mxu0 %v277
        %319 = vmatprep.subr.bf16.mxu0 %v282
        %320 = vmatpush1.bf16.msra.mxu0 %v281
        %321 = vmatprep.subr.bf16.mxu0 %v309
        %322 = vmatpush1.bf16.msra.mxu0 %v306
        %323 = vmatprep.subr.bf16.mxu0 0
        %324 = vmatpush1.bf16.msra.mxu0 0
        %325 = vmatprep.subr.bf16.mxu0 0
        %326 = vmatpush1.bf16.msra.mxu0 0
        %327 = vmatprep.subr.bf16.mxu0 0
        %328 = vmatpush1.bf16.msra.mxu0 0
        %329 = vmatprep.subr.bf16.mxu0 0
        %330 = vmatpush1.bf16.msra.mxu0 0
        %331 = vmatprep.subr.bf16.mxu0 0
        %332 = vmatpush1.bf16.msra.mxu0 0
        %333 = vmatprep.subr.bf16.mxu0 0
        %334 = vmatpush1.bf16.msra.mxu0 0
        %335 = vmatprep.subr.bf16.mxu0 0
        %336 = vmatpush1.bf16.msra.mxu0 0
        %337 = vmatprep.subr.bf16.mxu0 0
        %338 = vmatpush1.bf16.msra.mxu0 0
        %339 = vmatprep.subr.bf16.mxu0 0
        %340 = vmatpush1.bf16.msra.mxu0 0
        %341 = vmatprep.subr.bf16.mxu0 0
        %342 = vmatpush1.bf16.msra.mxu0 0
        %343 = vmatprep.subr.bf16.mxu0 0
        %344 = vmatpush1.bf16.msra.mxu0 0
        %345 = vmatprep.subr.bf16.mxu0 0
        %346 = vmatpush1.bf16.msra.mxu0 0
        %347 = vmatprep.subr.bf16.mxu0 0
        %348 = vmatpush1.bf16.msra.mxu0 0
        %349 = vmatprep.mubr.bf16.mxu0 0
        %350 = vmatmul.mubr.bf16.gmra.mrb[0].mxu0 %v299
        %v351 = vpop.f32.mrb[0].mxu0
        %v352 = vadd.f32 %v229, %v351
        %v353 = vpop.f32.mrb[0].mxu0
        %v354 = vadd.f32 %v229, %v353
        %v355 = vpop.f32.mrb[0].mxu0
        %v356 = vadd.f32 %v234, %v355
        %v357 = vpop.f32.mrb[0].mxu0
        %v358 = vadd.f32 %v234, %v357
        %359 = vdwg.mxu0
        %360 = vmatprep.subr.bf16.mxu0 %v280
        %361 = vmatpush1.bf16.msra.mxu0 %v279
        %362 = vmatprep.subr.bf16.mxu0 %v284
        %363 = vmatpush1.bf16.msra.mxu0 %v283
        %364 = vmatprep.subr.bf16.mxu0 %v315
        %365 = vmatpush1.bf16.msra.mxu0 %v312
        %366 = vmatprep.subr.bf16.mxu0 0
        %367 = vmatpush1.bf16.msra.mxu0 0
        %368 = vmatprep.subr.bf16.mxu0 0
        %369 = vmatpush1.bf16.msra.mxu0 0
        %370 = vmatprep.subr.bf16.mxu0 0
        %371 = vmatpush1.bf16.msra.mxu0 0
        %372 = vmatprep.subr.bf16.mxu0 0
        %373 = vmatpush1.bf16.msra.mxu0 0
        %374 = vmatprep.subr.bf16.mxu0 0
        %375 = vmatpush1.bf16.msra.mxu0 0
        %376 = vmatprep.subr.bf16.mxu0 0
        %377 = vmatpush1.bf16.msra.mxu0 0
        %378 = vmatprep.subr.bf16.mxu0 0
        %379 = vmatpush1.bf16.msra.mxu0 0
        %380 = vmatprep.subr.bf16.mxu0 0
        %381 = vmatpush1.bf16.msra.mxu0 0
        %382 = vmatprep.subr.bf16.mxu0 0
        %383 = vmatpush1.bf16.msra.mxu0 0
        %384 = vmatprep.subr.bf16.mxu0 0
        %385 = vmatpush1.bf16.msra.mxu0 0
        %386 = vmatprep.subr.bf16.mxu0 0
        %387 = vmatpush1.bf16.msra.mxu0 0
        %388 = vmatprep.subr.bf16.mxu0 0
        %389 = vmatpush1.bf16.msra.mxu0 0
        %390 = vmatprep.subr.bf16.mxu0 0
        %391 = vmatpush1.bf16.msra.mxu0 0
        %392 = vmatprep.mubr.bf16.mxu0 0
        %393 = vmatmul.mubr.bf16.gmra.mrb[0].mxu0 %v299
        %v394 = vpop.f32.mrb[0].mxu0
        %v395 = vadd.f32 %v229, %v394
        %v396 = vpop.f32.mrb[0].mxu0
        %v397 = vadd.f32 %v229, %v396
        %v398 = vpop.f32.mrb[0].mxu0
        %v399 = vadd.f32 %v234, %v398
        %v400 = vpop.f32.mrb[0].mxu0
        %v401 = vadd.f32 %v234, %v400
        %402 = vdwg.mxu0
        %v403 = vmax.f32 %v352, 0.0
        %v404 = vmax.f32 %v354, 0.0
        %v405 = vmax.f32 %v395, 0.0
        %v406 = vmax.f32 %v397, 0.0
        %v407 = vmax.f32 %v356, 0.0
        %v408 = vmax.f32 %v358, 0.0
        %v409 = vmax.f32 %v399, 0.0
        %v410 = vmax.f32 %v401, 0.0
        %411 = vst [vmem:[%s206] sm:$0xff] %v403
        %412 = vst [vmem:[%s206 + $0x8] sm:$0xff] %v404
        %413 = vst [vmem:[%s206 + $0x10] sm:$0xff] %v405
        %414 = vst [vmem:[%s206 + $0x18] sm:$0xff] %v406
        %415 = vst [vmem:[%s206 + $0x20] sm:$0xff] %v407
        %416 = vst [vmem:[%s206 + $0x28] sm:$0xff] %v408
        %417 = vst [vmem:[%s206 + $0x30] sm:$0xff] %v409
        %418 = vst [vmem:[%s206 + $0x38] sm:$0xff] %v410
        %s419 = sand.u32 %s90, 1
        %s420 = sand.u32 %s90, 1
        %s421 = smul.addr %s420, 64
        %s422 = scalar_lea.vmem [#allocation3], %s421
        // Predicated region
        $region56: #{sor_forward.3} parent=50 // pred_check
          %p423 = pneg %p100
        $region57: #{sor_forward.3} parent=50 // pred_check_branch
          %425 = sbr.rel (%p423) target = $region59
        $region58: #{sor_forward.3} parent=50 // pred_region
          %s426 = smul.u32 4, %s14
          %s427 = smul.addr %s426, 8
          %s428 = scalar_lea.vmem %s3, %s427
          // Predicated region
          $region60: #{sor_forward.3} parent=58 // pred_check
            _
          $region61: #{sor_forward.3} parent=58 // pred_check_branch
            %430 = sbr.rel (0) target = $region63
          $region62: #{sor_forward.3} parent=58 // pred_region
            // Predicated region
            $region64: #{sor_forward.3} parent=62 // pred_check
              _
            $region65: #{sor_forward.3} parent=62 // pred_check_branch
              %432 = sbr.rel (0) target = $region67
            $region66: #{sor_forward.3} parent=62 // pred_region
              loop: start=0, step=1, limit=1
              $region68: #{sor_forward.3} parent=66 // loop_pre_header
                _
              $region69: #{sor_forward.3} parent=66 // loop_header
                %s434 = sphi 0, %s438
                %p435 = scmp.ge.s32.totalorder %s434, 1
                %s439 = sphi %s422, %s422
                %s440 = sphi %s428, %s428
              $region70: #{sor_forward.3} parent=66 // loop_header_branch
                %437 = sbr.rel (%p435) target = $region74
              $region71: #{sor_forward.3} parent=66 // loop_body
                %v441 = vld [vmem:[%s439] sm:$0xff]
                %442 = vst [vmem:[%s440] sm:$0xff] %v441
                %v443 = vld [vmem:[%s439 + $0x8] sm:$0xff]
                %444 = vst [vmem:[%s440 + $0x8] sm:$0xff] %v443
                %v445 = vld [vmem:[%s439 + $0x10] sm:$0xff]
                %446 = vst [vmem:[%s440 + $0x10] sm:$0xff] %v445
                %v447 = vld [vmem:[%s439 + $0x18] sm:$0xff]
                %448 = vst [vmem:[%s440 + $0x18] sm:$0xff] %v447
                %v449 = vld [vmem:[%s439 + $0x20] sm:$0xff]
                %450 = vst [vmem:[%s440 + $0x80] sm:$0xff] %v449
                %v451 = vld [vmem:[%s439 + $0x28] sm:$0xff]
                %452 = vst [vmem:[%s440 + $0x88] sm:$0xff] %v451
                %v453 = vld [vmem:[%s439 + $0x30] sm:$0xff]
                %454 = vst [vmem:[%s440 + $0x90] sm:$0xff] %v453
                %v455 = vld [vmem:[%s439 + $0x38] sm:$0xff]
                %456 = vst [vmem:[%s440 + $0x98] sm:$0xff] %v455
              $region72: #{sor_forward.3} parent=66 // loop_footer
                %s438 = sadd.s32 1, %s434
              $region73: #{sor_forward.3} parent=66 // loop_footer_branch
                %433 = sbr.rel target = $region69
              $region74: #{sor_forward.3} parent=66 // loop_exit
                _
            $region67: #{sor_forward.3} parent=62 // pred_fallthru
              _
            // Predicated region
            $region75: #{sor_forward.3} parent=62 // pred_check
              _
            $region76: #{sor_forward.3} parent=62 // pred_check_branch
              %458 = sbr.rel target = $region78
            $region77: #{sor_forward.3} parent=62 // pred_region
              _
            $region78: #{sor_forward.3} parent=62 // pred_fallthru
              _
          $region63: #{sor_forward.3} parent=58 // pred_fallthru
            _
          %459 = vnop
        $region59: #{sor_forward.3} parent=50 // pred_fallthru
          _
      $region51: #{sor_forward.3} parent=5 // pred_fallthru
        _
      %p460 = scmp.le.s32.totalorder 2, %s9
      // Predicated region
      $region79: #{sor_forward.3} parent=5 // pred_check
        %p461 = pneg %p460
      $region80: #{sor_forward.3} parent=5 // pred_check_branch
        %463 = sbr.rel (%p461) target = $region82
      $region81: #{sor_forward.3} parent=5 // pred_region
        %s464 = ssub.s32 %s9, 2
        // Predicated region
        $region83: #{sor_forward.3} parent=81 // pred_check
          %p465 = pneg %p106
        $region84: #{sor_forward.3} parent=81 // pred_check_branch
          %467 = sbr.rel (%p465) target = $region86
        $region85: #{sor_forward.3} parent=81 // pred_region
          %s468 = sand.u32 %s91, 1
          %s469 = sand.u32 %s91, 1
          %s470 = smul.addr %s469, 64
          %s471 = scalar_lea.vmem [#allocation3], %s470
        $region86: #{sor_forward.3} parent=81 // pred_fallthru
          _
      $region82: #{sor_forward.3} parent=5 // pred_fallthru
        _
    $region6: #{sor_forward.3} parent=1 // loop_footer
      %s13 = sadd.s32 1, %s9
    $region7: #{sor_forward.3} parent=1 // loop_footer_branch
      %8 = sbr.rel target = $region3
    $region8: #{sor_forward.3} parent=1 // loop_exit
      _

// kernel: sor_forward.4
$region0: #{sor_forward.4}
  #allocation0 [shape = 'u32[]', space=smem, size = 0x4, offset = 0x4, fixed_abs, tag = 'smem constant byte address 0x4 - core index']
  #allocation1 [shape = 'u32[144,128]{1,0:T(1,128)}', space=vmem, size = 0x12000, scoped, tag = 'internal scratch']
  %s0 = inlined_call_operand.vmem [shape: bf16[16,144], index: 0, kind: input, shape index: {}]
  %s1 = inlined_call_operand.vmem [shape: bf16[144,512], index: 1, kind: input, shape index: {}]
  %s2 = inlined_call_operand.vmem [shape: f32[16,1], index: 2, kind: input, shape index: {}]
  %s3 = inlined_call_operand.vmem [shape: f32[16,512], index: 3, kind: output, shape index: {}]
  %s4 = sld [smem:[#allocation0]]
  $region22: #{sor_forward.4} parent=0
    _
  %s6 = ssub.s32 1, %s4
  %s7 = scalar_select 0, %s6, %s4
  // Predicated region
  $region2: #{sor_forward.4} parent=0 // pred_check
    _
  $region3: #{sor_forward.4} parent=0 // pred_check_branch
    %9 = sbr.rel (0) target = $region5
  $region4: #{sor_forward.4} parent=0 // pred_region
    _
  $region5: #{sor_forward.4} parent=0 // pred_fallthru
    _
  // Predicated region
  $region6: #{sor_forward.4} parent=0 // pred_check
    _
  $region7: #{sor_forward.4} parent=0 // pred_check_branch
    %11 = sbr.rel (0) target = $region9
  $region8: #{sor_forward.4} parent=0 // pred_region
    _
  $region9: #{sor_forward.4} parent=0 // pred_fallthru
    _
  // Predicated region
  $region10: #{sor_forward.4} parent=0 // pred_check
    _
  $region11: #{sor_forward.4} parent=0 // pred_check_branch
    %13 = sbr.rel (0) target = $region13
  $region12: #{sor_forward.4} parent=0 // pred_region
    _
  $region13: #{sor_forward.4} parent=0 // pred_fallthru
    _
  %v15 = vld [vmem:[%s0] sm:$0xff]
  %v16 = vld [vmem:[%s0 + $0x8] sm:$0xff]
  %v17 = vld [vmem:[%s1] sm:$0xff]
  %v18 = vld [vmem:[%s1 + $0x8] sm:$0xff]
  %v19 = vld [vmem:[%s1 + $0x10] sm:$0xff]
  %v20 = vld [vmem:[%s1 + $0x18] sm:$0xff]
  %v21 = vld [vmem:[%s1 + $0x20] sm:$0xff]
  %v22 = vld [vmem:[%s1 + $0x28] sm:$0xff]
  %v23 = vld [vmem:[%s1 + $0x30] sm:$0xff]
  %v24 = vld [vmem:[%s1 + $0x38] sm:$0xff]
  %v25 = vld [vmem:[%s1 + $0x40] sm:$0xff]
  %v26 = vld [vmem:[%s1 + $0x48] sm:$0xff]
  %v27 = vld [vmem:[%s1 + $0x50] sm:$0xff]
  %v28 = vld [vmem:[%s1 + $0x58] sm:$0xff]
  %v29 = vld [vmem:[%s1 + $0x60] sm:$0xff]
  %v30 = vld [vmem:[%s1 + $0x68] sm:$0xff]
  %v31 = vld [vmem:[%s1 + $0x70] sm:$0xff]
  %v32 = vld [vmem:[%s1 + $0x78] sm:$0xff]
  %v33 = vld [vmem:[%s1 + $0x80] sm:$0xff]
  %v34 = vld [vmem:[%s1 + $0x88] sm:$0xff]
  %v35 = vld [vmem:[%s1 + $0x90] sm:$0xff]
  %v36 = vld [vmem:[%s1 + $0x98] sm:$0xff]
  %v37 = vld [vmem:[%s1 + $0xa0] sm:$0xff]
  %v38 = vld [vmem:[%s1 + $0xa8] sm:$0xff]
  %v39 = vld [vmem:[%s1 + $0xb0] sm:$0xff]
  %v40 = vld [vmem:[%s1 + $0xb8] sm:$0xff]
  %v41 = vld [vmem:[%s1 + $0xc0] sm:$0xff]
  %v42 = vld [vmem:[%s1 + $0xc8] sm:$0xff]
  %v43 = vld [vmem:[%s1 + $0xd0] sm:$0xff]
  %v44 = vld [vmem:[%s1 + $0xd8] sm:$0xff]
  %v45 = vld [vmem:[%s1 + $0xe0] sm:$0xff]
  %v46 = vld [vmem:[%s1 + $0xe8] sm:$0xff]
  %v47 = vld [vmem:[%s1 + $0xf0] sm:$0xff]
  %v48 = vld [vmem:[%s1 + $0xf8] sm:$0xff]
  %v49 = vld [vmem:[%s1 + $0x100] sm:$0xff]
  %v50 = vld [vmem:[%s1 + $0x108] sm:$0xff]
  %v51 = vld [vmem:[%s1 + $0x110] sm:$0xff]
  %v52 = vld [vmem:[%s1 + $0x118] sm:$0xff]
  %v53 = vld [vmem:[%s2] sm:$0xff]
  %v54 = vld [vmem:[%s2 + $0x8] sm:$0xff]
  %56 = vset.pattern.permute.xlu0 0
  %57 = vperm.xlu0 %56, %v53
  %v58 = vpop.permute.xlu0 %57
  %61 = vset.pattern.permute.xlu0 0
  %62 = vperm.xlu0 %61, %v54
  %v63 = vpop.permute.xlu0 %62
  %v67 = vunpack.c.l.b16 %v15
  %v68 = vunpack.c.h.b16 %v15
  %v69 = vunpack.c.l.b16 %v16
  %v70 = vunpack.c.h.b16 %v16
  %v71 = vpack.c.b16 %v69, %v67
  %v72 = vpack.c.b16 %v70, %v68
  %v110 = vunpack.c.l.b16 %v17
  %v111 = vunpack.c.h.b16 %v17
  %v112 = vunpack.c.l.b16 %v18
  %v113 = vunpack.c.h.b16 %v18
  %v114 = vunpack.c.l.b16 %v19
  %v115 = vunpack.c.h.b16 %v19
  %v116 = vunpack.c.l.b16 %v20
  %v117 = vunpack.c.h.b16 %v20
  %v118 = vunpack.c.l.b16 %v21
  %v119 = vunpack.c.h.b16 %v21
  %v120 = vunpack.c.l.b16 %v22
  %v121 = vunpack.c.h.b16 %v22
  %v122 = vunpack.c.l.b16 %v23
  %v123 = vunpack.c.h.b16 %v23
  %v124 = vunpack.c.l.b16 %v24
  %v125 = vunpack.c.h.b16 %v24
  %v126 = vunpack.c.l.b16 %v25
  %v127 = vunpack.c.h.b16 %v25
  %v128 = vunpack.c.l.b16 %v26
  %v129 = vunpack.c.h.b16 %v26
  %v130 = vunpack.c.l.b16 %v27
  %v131 = vunpack.c.h.b16 %v27
  %v132 = vunpack.c.l.b16 %v28
  %v133 = vunpack.c.h.b16 %v28
  %v134 = vunpack.c.l.b16 %v29
  %v135 = vunpack.c.h.b16 %v29
  %v136 = vunpack.c.l.b16 %v30
  %v137 = vunpack.c.h.b16 %v30
  %v138 = vunpack.c.l.b16 %v31
  %v139 = vunpack.c.h.b16 %v31
  %v140 = vunpack.c.l.b16 %v32
  %v141 = vunpack.c.h.b16 %v32
  %v142 = vunpack.c.l.b16 %v33
  %v143 = vunpack.c.h.b16 %v33
  %v144 = vunpack.c.l.b16 %v34
  %v145 = vunpack.c.h.b16 %v34
  %v146 = vunpack.c.l.b16 %v35
  %v147 = vunpack.c.h.b16 %v35
  %v148 = vunpack.c.l.b16 %v36
  %v149 = vunpack.c.h.b16 %v36
  %v150 = vunpack.c.l.b16 %v37
  %v151 = vunpack.c.h.b16 %v37
  %v152 = vunpack.c.l.b16 %v38
  %v153 = vunpack.c.h.b16 %v38
  %v154 = vunpack.c.l.b16 %v39
  %v155 = vunpack.c.h.b16 %v39
  %v156 = vunpack.c.l.b16 %v40
  %v157 = vunpack.c.h.b16 %v40
  %v158 = vunpack.c.l.b16 %v41
  %v159 = vunpack.c.h.b16 %v41
  %v160 = vunpack.c.l.b16 %v42
  %v161 = vunpack.c.h.b16 %v42
  %v162 = vunpack.c.l.b16 %v43
  %v163 = vunpack.c.h.b16 %v43
  %v164 = vunpack.c.l.b16 %v44
  %v165 = vunpack.c.h.b16 %v44
  %v166 = vunpack.c.l.b16 %v45
  %v167 = vunpack.c.h.b16 %v45
  %v168 = vunpack.c.l.b16 %v46
  %v169 = vunpack.c.h.b16 %v46
  %v170 = vunpack.c.l.b16 %v47
  %v171 = vunpack.c.h.b16 %v47
  %v172 = vunpack.c.l.b16 %v48
  %v173 = vunpack.c.h.b16 %v48
  %v174 = vunpack.c.l.b16 %v49
  %v175 = vunpack.c.h.b16 %v49
  %v176 = vunpack.c.l.b16 %v50
  %v177 = vunpack.c.h.b16 %v50
  %v178 = vunpack.c.l.b16 %v51
  %v179 = vunpack.c.h.b16 %v51
  %v180 = vunpack.c.l.b16 %v52
  %v181 = vunpack.c.h.b16 %v52
  %v182 = vpack.c.b16 %v114, %v110
  %v183 = vpack.c.b16 %v115, %v111
  %v184 = vpack.c.b16 %v116, %v112
  %v185 = vpack.c.b16 %v117, %v113
  %v186 = vpack.c.b16 %v122, %v118
  %v187 = vpack.c.b16 %v123, %v119
  %v188 = vpack.c.b16 %v124, %v120
  %v189 = vpack.c.b16 %v125, %v121
  %v190 = vpack.c.b16 %v130, %v126
  %v191 = vpack.c.b16 %v131, %v127
  %v192 = vpack.c.b16 %v132, %v128
  %v193 = vpack.c.b16 %v133, %v129
  %v194 = vpack.c.b16 %v138, %v134
  %v195 = vpack.c.b16 %v139, %v135
  %v196 = vpack.c.b16 %v140, %v136
  %v197 = vpack.c.b16 %v141, %v137
  %v198 = vpack.c.b16 %v146, %v142
  %v199 = vpack.c.b16 %v147, %v143
  %v200 = vpack.c.b16 %v148, %v144
  %v201 = vpack.c.b16 %v149, %v145
  %v202 = vpack.c.b16 %v154, %v150
  %v203 = vpack.c.b16 %v155, %v151
  %v204 = vpack.c.b16 %v156, %v152
  %v205 = vpack.c.b16 %v157, %v153
  %v206 = vpack.c.b16 %v162, %v158
  %v207 = vpack.c.b16 %v163, %v159
  %v208 = vpack.c.b16 %v164, %v160
  %v209 = vpack.c.b16 %v165, %v161
  %v210 = vpack.c.b16 %v170, %v166
  %v211 = vpack.c.b16 %v171, %v167
  %v212 = vpack.c.b16 %v172, %v168
  %v213 = vpack.c.b16 %v173, %v169
  %v214 = vpack.c.b16 %v178, %v174
  %v215 = vpack.c.b16 %v179, %v175
  %v216 = vpack.c.b16 %v180, %v176
  %v217 = vpack.c.b16 %v181, %v177
  %vm254 = vcmask 130048
  %v256 = vsel %vm254, %v72, 0
  %258 = vmatprep.subr.bf16.mxu0 %v183
  %259 = vmatpush1.bf16.msra.mxu0 %v182
  %260 = vmatprep.subr.bf16.mxu0 %v187
  %261 = vmatpush1.bf16.msra.mxu0 %v186
  %262 = vmatprep.subr.bf16.mxu0 %v191
  %263 = vmatpush1.bf16.msra.mxu0 %v190
  %264 = vmatprep.subr.bf16.mxu0 %v195
  %265 = vmatpush1.bf16.msra.mxu0 %v194
  %266 = vmatprep.subr.bf16.mxu0 %v199
  %267 = vmatpush1.bf16.msra.mxu0 %v198
  %268 = vmatprep.subr.bf16.mxu0 %v203
  %269 = vmatpush1.bf16.msra.mxu0 %v202
  %270 = vmatprep.subr.bf16.mxu0 %v207
  %271 = vmatpush1.bf16.msra.mxu0 %v206
  %272 = vmatprep.subr.bf16.mxu0 %v211
  %273 = vmatpush1.bf16.msra.mxu0 %v210
  %274 = vmatprep.subr.bf16.mxu0 %v215
  %275 = vmatpush1.bf16.msra.mxu0 %v214
  %276 = vmatprep.subr.bf16.mxu0 0
  %277 = vmatpush1.bf16.msra.mxu0 0
  %278 = vmatprep.subr.bf16.mxu0 0
  %279 = vmatpush1.bf16.msra.mxu0 0
  %280 = vmatprep.subr.bf16.mxu0 0
  %281 = vmatpush1.bf16.msra.mxu0 0
  %282 = vmatprep.subr.bf16.mxu0 0
  %283 = vmatpush1.bf16.msra.mxu0 0
  %284 = vmatprep.subr.bf16.mxu0 0
  %285 = vmatpush1.bf16.msra.mxu0 0
  %286 = vmatprep.subr.bf16.mxu0 0
  %287 = vmatpush1.bf16.msra.mxu0 0
  %288 = vmatprep.subr.bf16.mxu0 0
  %289 = vmatpush1.bf16.msra.mxu0 0
  %290 = vmatprep.mubr.bf16.mxu0 %v256
  %291 = vmatmul.mubr.bf16.gmra.mrb[0].mxu0 %v71
  %v292 = vpop.f32.mrb[0].mxu0
  %v293 = vadd.f32 %v58, %v292
  %v294 = vpop.f32.mrb[0].mxu0
  %v295 = vadd.f32 %v58, %v294
  %v296 = vpop.f32.mrb[0].mxu0
  %v297 = vadd.f32 %v63, %v296
  %v298 = vpop.f32.mrb[0].mxu0
  %v299 = vadd.f32 %v63, %v298
  %300 = vdwg.mxu0
  %301 = vmatprep.subr.bf16.mxu0 %v185
  %302 = vmatpush1.bf16.msra.mxu0 %v184
  %303 = vmatprep.subr.bf16.mxu0 %v189
  %304 = vmatpush1.bf16.msra.mxu0 %v188
  %305 = vmatprep.subr.bf16.mxu0 %v193
  %306 = vmatpush1.bf16.msra.mxu0 %v192
  %307 = vmatprep.subr.bf16.mxu0 %v197
  %308 = vmatpush1.bf16.msra.mxu0 %v196
  %309 = vmatprep.subr.bf16.mxu0 %v201
  %310 = vmatpush1.bf16.msra.mxu0 %v200
  %311 = vmatprep.subr.bf16.mxu0 %v205
  %312 = vmatpush1.bf16.msra.mxu0 %v204
  %313 = vmatprep.subr.bf16.mxu0 %v209
  %314 = vmatpush1.bf16.msra.mxu0 %v208
  %315 = vmatprep.subr.bf16.mxu0 %v213
  %316 = vmatpush1.bf16.msra.mxu0 %v212
  %317 = vmatprep.subr.bf16.mxu0 %v217
  %318 = vmatpush1.bf16.msra.mxu0 %v216
  %319 = vmatprep.subr.bf16.mxu0 0
  %320 = vmatpush1.bf16.msra.mxu0 0
  %321 = vmatprep.subr.bf16.mxu0 0
  %322 = vmatpush1.bf16.msra.mxu0 0
  %323 = vmatprep.subr.bf16.mxu0 0
  %324 = vmatpush1.bf16.msra.mxu0 0
  %325 = vmatprep.subr.bf16.mxu0 0
  %326 = vmatpush1.bf16.msra.mxu0 0
  %327 = vmatprep.subr.bf16.mxu0 0
  %328 = vmatpush1.bf16.msra.mxu0 0
  %329 = vmatprep.subr.bf16.mxu0 0
  %330 = vmatpush1.bf16.msra.mxu0 0
  %331 = vmatprep.subr.bf16.mxu0 0
  %332 = vmatpush1.bf16.msra.mxu0 0
  %333 = vmatprep.mubr.bf16.mxu0 %v256
  %334 = vmatmul.mubr.bf16.gmra.mrb[0].mxu0 %v71
  %v335 = vpop.f32.mrb[0].mxu0
  %v336 = vadd.f32 %v58, %v335
  %v337 = vpop.f32.mrb[0].mxu0
  %v338 = vadd.f32 %v58, %v337
  %v339 = vpop.f32.mrb[0].mxu0
  %v340 = vadd.f32 %v63, %v339
  %v341 = vpop.f32.mrb[0].mxu0
  %v342 = vadd.f32 %v63, %v341
  %343 = vdwg.mxu0
  %v344 = vmax.f32 %v293, 0.0
  %v345 = vmax.f32 %v295, 0.0
  %v346 = vmax.f32 %v336, 0.0
  %v347 = vmax.f32 %v338, 0.0
  %v348 = vmax.f32 %v297, 0.0
  %v349 = vmax.f32 %v299, 0.0
  %v350 = vmax.f32 %v340, 0.0
  %v351 = vmax.f32 %v342, 0.0
  %352 = vst [vmem:[%s3] sm:$0xff] %v344
  %353 = vst [vmem:[%s3 + $0x8] sm:$0xff] %v345
  %354 = vst [vmem:[%s3 + $0x10] sm:$0xff] %v346
  %355 = vst [vmem:[%s3 + $0x18] sm:$0xff] %v347
  %356 = vst [vmem:[%s3 + $0x20] sm:$0xff] %v348
  %357 = vst [vmem:[%s3 + $0x28] sm:$0xff] %v349
  %358 = vst [vmem:[%s3 + $0x30] sm:$0xff] %v350
  %359 = vst [vmem:[%s3 + $0x38] sm:$0xff] %v351
  // Predicated region
  $region14: #{sor_forward.4} parent=0 // pred_check
    _
  $region15: #{sor_forward.4} parent=0 // pred_check_branch
    %361 = sbr.rel (0) target = $region17
  $region16: #{sor_forward.4} parent=0 // pred_region
    _
  $region17: #{sor_forward.4} parent=0 // pred_fallthru
    _
  // Predicated region
  $region18: #{sor_forward.4} parent=0 // pred_check
    _
  $region19: #{sor_forward.4} parent=0 // pred_check_branch
    %363 = sbr.rel (0) target = $region21
  $region20: #{sor_forward.4} parent=0 // pred_region
    _
  $region21: #{sor_forward.4} parent=0 // pred_fallthru
    _

// kernel: sor_forward.5
$region0: #{sor_forward.5}
  #allocation0 [shape = 'u32[]', space=smem, size = 0x4, offset = 0x4, fixed_abs, tag = 'smem constant byte address 0x4 - core index']
  #allocation1 [shape = 'u32[144,128]{1,0:T(1,128)}', space=vmem, size = 0x12000, scoped, tag = 'internal scratch']
  %s0 = inlined_call_operand.vmem [shape: f32[8,1024], index: 0, kind: input, shape index: {}]
  %s1 = inlined_call_operand.vmem [shape: f32[8,32], index: 1, kind: input, shape index: {}]
  %s2 = inlined_call_operand.vmem [shape: f32[1024,64], index: 2, kind: input, shape index: {}]
  %s3 = inlined_call_operand.vmem [shape: f32[1,64], index: 3, kind: input, shape index: {}]
  %s4 = inlined_call_operand.vmem [shape: f32[64,32], index: 4, kind: input, shape index: {}]
  %s5 = inlined_call_operand.vmem [shape: f32[1,32], index: 5, kind: input, shape index: {}]
  %s6 = inlined_call_operand.vmem [shape: f32[2,4,32,8], index: 6, kind: input, shape index: {}]
  %s7 = inlined_call_operand.vmem [shape: f32[2,4,1,8], index: 7, kind: input, shape index: {}]
  %s8 = inlined_call_operand.vmem [shape: f32[2,4,32,8], index: 8, kind: input, shape index: {}]
  %s9 = inlined_call_operand.vmem [shape: f32[2,4,1,8], index: 9, kind: input, shape index: {}]
  %s10 = inlined_call_operand.vmem [shape: f32[2,4,32,8], index: 10, kind: input, shape index: {}]
  %s11 = inlined_call_operand.vmem [shape: f32[2,4,1,8], index: 11, kind: input, shape index: {}]
  %s12 = inlined_call_operand.vmem [shape: f32[2,4,8,32], index: 12, kind: input, shape index: {}]
  %s13 = inlined_call_operand.vmem [shape: f32[2,1,32], index: 13, kind: input, shape index: {}]
  %s14 = inlined_call_operand.vmem [shape: f32[2,32,128], index: 14, kind: input, shape index: {}]
  %s15 = inlined_call_operand.vmem [shape: f32[2,1,128], index: 15, kind: input, shape index: {}]
  %s16 = inlined_call_operand.vmem [shape: f32[2,128,32], index: 16, kind: input, shape index: {}]
  %s17 = inlined_call_operand.vmem [shape: f32[2,1,32], index: 17, kind: input, shape index: {}]
  %s18 = inlined_call_operand.vmem [shape: f32[2,1,32], index: 18, kind: input, shape index: {}]
  %s19 = inlined_call_operand.vmem [shape: f32[2,1,32], index: 19, kind: input, shape index: {}]
  %s20 = inlined_call_operand.vmem [shape: f32[2,1,32], index: 20, kind: input, shape index: {}]
  %s21 = inlined_call_operand.vmem [shape: f32[2,1,32], index: 21, kind: input, shape index: {}]
  %s22 = inlined_call_operand.vmem [shape: f32[32,8], index: 22, kind: input, shape index: {}]
  %s23 = inlined_call_operand.vmem [shape: f32[1,8], index: 23, kind: input, shape index: {}]
  %s24 = inlined_call_operand.hbm [shape: f32[8,8], index: 24, kind: output, shape index: {}]
  %s25 = sld [smem:[#allocation0]]
  $region106: #{sor_forward.5} parent=0
    _
  %s27 = ssub.s32 1, %s25
  %s28 = scalar_select 0, %s27, %s25
  $region1: #{sor_forward.5} parent=0
    #allocation2 [shape = 'u8[4096]{0}', space=vmem, size = 0x1000, scoped, tag = 'output window, operand 0, single buffered']
    #allocation3 [shape = 's32[1]{0}', space=sflag, size = 0x4, scoped, tag = 'scoped memory for sor_forward.5']
    %29 = vsyncpa [#allocation3], 0
    // Predicated region
    $region2: #{sor_forward.5} parent=1 // pred_check
      _
    $region3: #{sor_forward.5} parent=1 // pred_check_branch
      %31 = sbr.rel (0) target = $region5
    $region4: #{sor_forward.5} parent=1 // pred_region
      _
    $region5: #{sor_forward.5} parent=1 // pred_fallthru
      _
    // Predicated region
    $region6: #{sor_forward.5} parent=1 // pred_check
      _
    $region7: #{sor_forward.5} parent=1 // pred_check_branch
      %33 = sbr.rel (0) target = $region9
    $region8: #{sor_forward.5} parent=1 // pred_region
      _
    $region9: #{sor_forward.5} parent=1 // pred_fallthru
      _
    // Predicated region
    $region10: #{sor_forward.5} parent=1 // pred_check
      _
    $region11: #{sor_forward.5} parent=1 // pred_check_branch
      %35 = sbr.rel (0) target = $region13
    $region12: #{sor_forward.5} parent=1 // pred_region
      _
    $region13: #{sor_forward.5} parent=1 // pred_fallthru
      _
    // Predicated region
    $region14: #{sor_forward.5} parent=1 // pred_check
      _
    $region15: #{sor_forward.5} parent=1 // pred_check_branch
      %37 = sbr.rel (0) target = $region17
    $region16: #{sor_forward.5} parent=1 // pred_region
      _
    $region17: #{sor_forward.5} parent=1 // pred_fallthru
      _
    // Predicated region
    $region18: #{sor_forward.5} parent=1 // pred_check
      _
    $region19: #{sor_forward.5} parent=1 // pred_check_branch
      %39 = sbr.rel (0) target = $region21
    $region20: #{sor_forward.5} parent=1 // pred_region
      _
    $region21: #{sor_forward.5} parent=1 // pred_fallthru
      _
    // Predicated region
    $region22: #{sor_forward.5} parent=1 // pred_check
      _
    $region23: #{sor_forward.5} parent=1 // pred_check_branch
      %41 = sbr.rel (0) target = $region25
    $region24: #{sor_forward.5} parent=1 // pred_region
      _
    $region25: #{sor_forward.5} parent=1 // pred_fallthru
      _
    // Predicated region
    $region26: #{sor_forward.5} parent=1 // pred_check
      _
    $region27: #{sor_forward.5} parent=1 // pred_check_branch
      %43 = sbr.rel (0) target = $region29
    $region28: #{sor_forward.5} parent=1 // pred_region
      _
    $region29: #{sor_forward.5} parent=1 // pred_fallthru
      _
    // Predicated region
    $region30: #{sor_forward.5} parent=1 // pred_check
      _
    $region31: #{sor_forward.5} parent=1 // pred_check_branch
      %45 = sbr.rel (0) target = $region33
    $region32: #{sor_forward.5} parent=1 // pred_region
      _
    $region33: #{sor_forward.5} parent=1 // pred_fallthru
      _
    // Predicated region
    $region34: #{sor_forward.5} parent=1 // pred_check
      _
    $region35: #{sor_forward.5} parent=1 // pred_check_branch
      %47 = sbr.rel (0) target = $region37
    $region36: #{sor_forward.5} parent=1 // pred_region
      _
    $region37: #{sor_forward.5} parent=1 // pred_fallthru
      _
    // Predicated region
    $region38: #{sor_forward.5} parent=1 // pred_check
      _
    $region39: #{sor_forward.5} parent=1 // pred_check_branch
      %49 = sbr.rel (0) target = $region41
    $region40: #{sor_forward.5} parent=1 // pred_region
      _
    $region41: #{sor_forward.5} parent=1 // pred_fallthru
      _
    // Predicated region
    $region42: #{sor_forward.5} parent=1 // pred_check
      _
    $region43: #{sor_forward.5} parent=1 // pred_check_branch
      %51 = sbr.rel (0) target = $region45
    $region44: #{sor_forward.5} parent=1 // pred_region
      _
    $region45: #{sor_forward.5} parent=1 // pred_fallthru
      _
    // Predicated region
    $region46: #{sor_forward.5} parent=1 // pred_check
      _
    $region47: #{sor_forward.5} parent=1 // pred_check_branch
      %53 = sbr.rel (0) target = $region49
    $region48: #{sor_forward.5} parent=1 // pred_region
      _
    $region49: #{sor_forward.5} parent=1 // pred_fallthru
      _
    // Predicated region
    $region50: #{sor_forward.5} parent=1 // pred_check
      _
    $region51: #{sor_forward.5} parent=1 // pred_check_branch
      %55 = sbr.rel (0) target = $region53
    $region52: #{sor_forward.5} parent=1 // pred_region
      _
    $region53: #{sor_forward.5} parent=1 // pred_fallthru
      _
    // Predicated region
    $region54: #{sor_forward.5} parent=1 // pred_check
      _
    $region55: #{sor_forward.5} parent=1 // pred_check_branch
      %57 = sbr.rel (0) target = $region57
    $region56: #{sor_forward.5} parent=1 // pred_region
      _
    $region57: #{sor_forward.5} parent=1 // pred_fallthru
      _
    // Predicated region
    $region58: #{sor_forward.5} parent=1 // pred_check
      _
    $region59: #{sor_forward.5} parent=1 // pred_check_branch
      %59 = sbr.rel (0) target = $region61
    $region60: #{sor_forward.5} parent=1 // pred_region
      _
    $region61: #{sor_forward.5} parent=1 // pred_fallthru
      _
    // Predicated region
    $region62: #{sor_forward.5} parent=1 // pred_check
      _
    $region63: #{sor_forward.5} parent=1 // pred_check_branch
      %61 = sbr.rel (0) target = $region65
    $region64: #{sor_forward.5} parent=1 // pred_region
      _
    $region65: #{sor_forward.5} parent=1 // pred_fallthru
      _
    // Predicated region
    $region66: #{sor_forward.5} parent=1 // pred_check
      _
    $region67: #{sor_forward.5} parent=1 // pred_check_branch
      %63 = sbr.rel (0) target = $region69
    $region68: #{sor_forward.5} parent=1 // pred_region
      _
    $region69: #{sor_forward.5} parent=1 // pred_fallthru
      _
    // Predicated region
    $region70: #{sor_forward.5} parent=1 // pred_check
      _
    $region71: #{sor_forward.5} parent=1 // pred_check_branch
      %65 = sbr.rel (0) target = $region73
    $region72: #{sor_forward.5} parent=1 // pred_region
      _
    $region73: #{sor_forward.5} parent=1 // pred_fallthru
      _
    // Predicated region
    $region74: #{sor_forward.5} parent=1 // pred_check
      _
    $region75: #{sor_forward.5} parent=1 // pred_check_branch
      %67 = sbr.rel (0) target = $region77
    $region76: #{sor_forward.5} parent=1 // pred_region
      _
    $region77: #{sor_forward.5} parent=1 // pred_fallthru
      _
    // Predicated region
    $region78: #{sor_forward.5} parent=1 // pred_check
      _
    $region79: #{sor_forward.5} parent=1 // pred_check_branch
      %69 = sbr.rel (0) target = $region81
    $region80: #{sor_forward.5} parent=1 // pred_region
      _
    $region81: #{sor_forward.5} parent=1 // pred_fallthru
      _
    // Predicated region
    $region82: #{sor_forward.5} parent=1 // pred_check
      _
    $region83: #{sor_forward.5} parent=1 // pred_check_branch
      %71 = sbr.rel (0) target = $region85
    $region84: #{sor_forward.5} parent=1 // pred_region
      _
    $region85: #{sor_forward.5} parent=1 // pred_fallthru
      _
    // Predicated region
    $region86: #{sor_forward.5} parent=1 // pred_check
      _
    $region87: #{sor_forward.5} parent=1 // pred_check_branch
      %73 = sbr.rel (0) target = $region89
    $region88: #{sor_forward.5} parent=1 // pred_region
      _
    $region89: #{sor_forward.5} parent=1 // pred_fallthru
      _
    // Predicated region
    $region90: #{sor_forward.5} parent=1 // pred_check
      _
    $region91: #{sor_forward.5} parent=1 // pred_check_branch
      %75 = sbr.rel (0) target = $region93
    $region92: #{sor_forward.5} parent=1 // pred_region
      _
    $region93: #{sor_forward.5} parent=1 // pred_fallthru
      _
    // Predicated region
    $region94: #{sor_forward.5} parent=1 // pred_check
      _
    $region95: #{sor_forward.5} parent=1 // pred_check_branch
      %77 = sbr.rel (0) target = $region97
    $region96: #{sor_forward.5} parent=1 // pred_region
      _
    $region97: #{sor_forward.5} parent=1 // pred_fallthru
      _
    %v78 = vld [vmem:[%s0] sm:$0xff]
    %v79 = vld [vmem:[%s0 + $0x8] sm:$0xff]
    %v80 = vld [vmem:[%s0 + $0x10] sm:$0xff]
    %v81 = vld [vmem:[%s0 + $0x18] sm:$0xff]
    %v82 = vld [vmem:[%s0 + $0x20] sm:$0xff]
    %v83 = vld [vmem:[%s0 + $0x28] sm:$0xff]
    %v84 = vld [vmem:[%s0 + $0x30] sm:$0xff]
    %v85 = vld [vmem:[%s0 + $0x38] sm:$0xff]
    %v86 = vld [vmem:[%s2] sm:$0xff]
    %v87 = vld [vmem:[%s2 + $0x8] sm:$0xff]
    %v88 = vld [vmem:[%s2 + $0x10] sm:$0xff]
    %v89 = vld [vmem:[%s2 + $0x18] sm:$0xff]
    %v90 = vld [vmem:[%s2 + $0x20] sm:$0xff]
    %v91 = vld [vmem:[%s2 + $0x28] sm:$0xff]
    %v92 = vld [vmem:[%s2 + $0x30] sm:$0xff]
    %v93 = vld [vmem:[%s2 + $0x38] sm:$0xff]
    %v94 = vld [vmem:[%s2 + $0x40] sm:$0xff]
    %v95 = vld [vmem:[%s2 + $0x48] sm:$0xff]
    %v96 = vld [vmem:[%s2 + $0x50] sm:$0xff]
    %v97 = vld [vmem:[%s2 + $0x58] sm:$0xff]
    %v98 = vld [vmem:[%s2 + $0x60] sm:$0xff]
    %v99 = vld [vmem:[%s2 + $0x68] sm:$0xff]
    %v100 = vld [vmem:[%s2 + $0x70] sm:$0xff]
    %v101 = vld [vmem:[%s2 + $0x78] sm:$0xff]
    %v102 = vld [vmem:[%s2 + $0x80] sm:$0xff]
    %v103 = vld [vmem:[%s2 + $0x88] sm:$0xff]
    %v104 = vld [vmem:[%s2 + $0x90] sm:$0xff]
    %v105 = vld [vmem:[%s2 + $0x98] sm:$0xff]
    %v106 = vld [vmem:[%s2 + $0xa0] sm:$0xff]
    %v107 = vld [vmem:[%s2 + $0xa8] sm:$0xff]
    %v108 = vld [vmem:[%s2 + $0xb0] sm:$0xff]
    %v109 = vld [vmem:[%s2 + $0xb8] sm:$0xff]
    %v110 = vld [vmem:[%s2 + $0xc0] sm:$0xff]
    %v111 = vld [vmem:[%s2 + $0xc8] sm:$0xff]
    %v112 = vld [vmem:[%s2 + $0xd0] sm:$0xff]
    %v113 = vld [vmem:[%s2 + $0xd8] sm:$0xff]
    %v114 = vld [vmem:[%s2 + $0xe0] sm:$0xff]
    %v115 = vld [vmem:[%s2 + $0xe8] sm:$0xff]
    %v116 = vld [vmem:[%s2 + $0xf0] sm:$0xff]
    %v117 = vld [vmem:[%s2 + $0xf8] sm:$0xff]
    %v118 = vld [vmem:[%s2 + $0x100] sm:$0xff]
    %v119 = vld [vmem:[%s2 + $0x108] sm:$0xff]
    %v120 = vld [vmem:[%s2 + $0x110] sm:$0xff]
    %v121 = vld [vmem:[%s2 + $0x118] sm:$0xff]
    %v122 = vld [vmem:[%s2 + $0x120] sm:$0xff]
    %v123 = vld [vmem:[%s2 + $0x128] sm:$0xff]
    %v124 = vld [vmem:[%s2 + $0x130] sm:$0xff]
    %v125 = vld [vmem:[%s2 + $0x138] sm:$0xff]
    %v126 = vld [vmem:[%s2 + $0x140] sm:$0xff]
    %v127 = vld [vmem:[%s2 + $0x148] sm:$0xff]
    %v128 = vld [vmem:[%s2 + $0x150] sm:$0xff]
    %v129 = vld [vmem:[%s2 + $0x158] sm:$0xff]
    %v130 = vld [vmem:[%s2 + $0x160] sm:$0xff]
    %v131 = vld [vmem:[%s2 + $0x168] sm:$0xff]
    %v132 = vld [vmem:[%s2 + $0x170] sm:$0xff]
    %v133 = vld [vmem:[%s2 + $0x178] sm:$0xff]
    %v134 = vld [vmem:[%s2 + $0x180] sm:$0xff]
    %v135 = vld [vmem:[%s2 + $0x188] sm:$0xff]
    %v136 = vld [vmem:[%s2 + $0x190] sm:$0xff]
    %v137 = vld [vmem:[%s2 + $0x198] sm:$0xff]
    %v138 = vld [vmem:[%s2 + $0x1a0] sm:$0xff]
    %v139 = vld [vmem:[%s2 + $0x1a8] sm:$0xff]
    %v140 = vld [vmem:[%s2 + $0x1b0] sm:$0xff]
    %v141 = vld [vmem:[%s2 + $0x1b8] sm:$0xff]
    %v142 = vld [vmem:[%s2 + $0x1c0] sm:$0xff]
    %v143 = vld [vmem:[%s2 + $0x1c8] sm:$0xff]
    %v144 = vld [vmem:[%s2 + $0x1d0] sm:$0xff]
    %v145 = vld [vmem:[%s2 + $0x1d8] sm:$0xff]
    %v146 = vld [vmem:[%s2 + $0x1e0] sm:$0xff]
    %v147 = vld [vmem:[%s2 + $0x1e8] sm:$0xff]
    %v148 = vld [vmem:[%s2 + $0x1f0] sm:$0xff]
    %v149 = vld [vmem:[%s2 + $0x1f8] sm:$0xff]
    %v150 = vld [vmem:[%s2 + $0x200] sm:$0xff]
    %v151 = vld [vmem:[%s2 + $0x208] sm:$0xff]
    %v152 = vld [vmem:[%s2 + $0x210] sm:$0xff]
    %v153 = vld [vmem:[%s2 + $0x218] sm:$0xff]
    %v154 = vld [vmem:[%s2 + $0x220] sm:$0xff]
    %v155 = vld [vmem:[%s2 + $0x228] sm:$0xff]
    %v156 = vld [vmem:[%s2 + $0x230] sm:$0xff]
    %v157 = vld [vmem:[%s2 + $0x238] sm:$0xff]
    %v158 = vld [vmem:[%s2 + $0x240] sm:$0xff]
    %v159 = vld [vmem:[%s2 + $0x248] sm:$0xff]
    %v160 = vld [vmem:[%s2 + $0x250] sm:$0xff]
    %v161 = vld [vmem:[%s2 + $0x258] sm:$0xff]
    %v162 = vld [vmem:[%s2 + $0x260] sm:$0xff]
    %v163 = vld [vmem:[%s2 + $0x268] sm:$0xff]
    %v164 = vld [vmem:[%s2 + $0x270] sm:$0xff]
    %v165 = vld [vmem:[%s2 + $0x278] sm:$0xff]
    %v166 = vld [vmem:[%s2 + $0x280] sm:$0xff]
    %v167 = vld [vmem:[%s2 + $0x288] sm:$0xff]
    %v168 = vld [vmem:[%s2 + $0x290] sm:$0xff]
    %v169 = vld [vmem:[%s2 + $0x298] sm:$0xff]
    %v170 = vld [vmem:[%s2 + $0x2a0] sm:$0xff]
    %v171 = vld [vmem:[%s2 + $0x2a8] sm:$0xff]
    %v172 = vld [vmem:[%s2 + $0x2b0] sm:$0xff]
    %v173 = vld [vmem:[%s2 + $0x2b8] sm:$0xff]
    %v174 = vld [vmem:[%s2 + $0x2c0] sm:$0xff]
    %v175 = vld [vmem:[%s2 + $0x2c8] sm:$0xff]
    %v176 = vld [vmem:[%s2 + $0x2d0] sm:$0xff]
    %v177 = vld [vmem:[%s2 + $0x2d8] sm:$0xff]
    %v178 = vld [vmem:[%s2 + $0x2e0] sm:$0xff]
    %v179 = vld [vmem:[%s2 + $0x2e8] sm:$0xff]
    %v180 = vld [vmem:[%s2 + $0x2f0] sm:$0xff]
    %v181 = vld [vmem:[%s2 + $0x2f8] sm:$0xff]
    %v182 = vld [vmem:[%s2 + $0x300] sm:$0xff]
    %v183 = vld [vmem:[%s2 + $0x308] sm:$0xff]
    %v184 = vld [vmem:[%s2 + $0x310] sm:$0xff]
    %v185 = vld [vmem:[%s2 + $0x318] sm:$0xff]
    %v186 = vld [vmem:[%s2 + $0x320] sm:$0xff]
    %v187 = vld [vmem:[%s2 + $0x328] sm:$0xff]
    %v188 = vld [vmem:[%s2 + $0x330] sm:$0xff]
    %v189 = vld [vmem:[%s2 + $0x338] sm:$0xff]
    %v190 = vld [vmem:[%s2 + $0x340] sm:$0xff]
    %v191 = vld [vmem:[%s2 + $0x348] sm:$0xff]
    %v192 = vld [vmem:[%s2 + $0x350] sm:$0xff]
    %v193 = vld [vmem:[%s2 + $0x358] sm:$0xff]
    %v194 = vld [vmem:[%s2 + $0x360] sm:$0xff]
    %v195 = vld [vmem:[%s2 + $0x368] sm:$0xff]
    %v196 = vld [vmem:[%s2 + $0x370] sm:$0xff]
    %v197 = vld [vmem:[%s2 + $0x378] sm:$0xff]
    %v198 = vld [vmem:[%s2 + $0x380] sm:$0xff]
    %v199 = vld [vmem:[%s2 + $0x388] sm:$0xff]
    %v200 = vld [vmem:[%s2 + $0x390] sm:$0xff]
    %v201 = vld [vmem:[%s2 + $0x398] sm:$0xff]
    %v202 = vld [vmem:[%s2 + $0x3a0] sm:$0xff]
    %v203 = vld [vmem:[%s2 + $0x3a8] sm:$0xff]
    %v204 = vld [vmem:[%s2 + $0x3b0] sm:$0xff]
    %v205 = vld [vmem:[%s2 + $0x3b8] sm:$0xff]
    %v206 = vld [vmem:[%s2 + $0x3c0] sm:$0xff]
    %v207 = vld [vmem:[%s2 + $0x3c8] sm:$0xff]
    %v208 = vld [vmem:[%s2 + $0x3d0] sm:$0xff]
    %v209 = vld [vmem:[%s2 + $0x3d8] sm:$0xff]
    %v210 = vld [vmem:[%s2 + $0x3e0] sm:$0xff]
    %v211 = vld [vmem:[%s2 + $0x3e8] sm:$0xff]
    %v212 = vld [vmem:[%s2 + $0x3f0] sm:$0xff]
    %v213 = vld [vmem:[%s2 + $0x3f8] sm:$0xff]
    %v214 = vld [vmem:[%s3] sm:$0x1]
    %v216 = vlaneseq
    %v217 = vshrl.u32 %v216, 7
    %v218 = vsub.s32 0, %v217
    %v219 = vrot.slane %v214, %v218
    %221 = vmatprep.subr.mxu0 0.0
    %222 = vmatpush1.msra.mxu0 %v86
    %223 = vmatprep.subr.mxu0 0.0
    %224 = vmatpush1.msra.mxu0 %v87
    %225 = vmatprep.subr.mxu0 0.0
    %226 = vmatpush1.msra.mxu0 %v88
    %227 = vmatprep.subr.mxu0 0.0
    %228 = vmatpush1.msra.mxu0 %v89
    %229 = vmatprep.subr.mxu0 0.0
    %230 = vmatpush1.msra.mxu0 %v90
    %231 = vmatprep.subr.mxu0 0.0
    %232 = vmatpush1.msra.mxu0 %v91
    %233 = vmatprep.subr.mxu0 0.0
    %234 = vmatpush1.msra.mxu0 %v92
    %235 = vmatprep.subr.mxu0 0.0
    %236 = vmatpush1.msra.mxu0 %v93
    %237 = vmatprep.subr.mxu0 0.0
    %238 = vmatpush1.msra.mxu0 %v94
    %239 = vmatprep.subr.mxu0 0.0
    %240 = vmatpush1.msra.mxu0 %v95
    %241 = vmatprep.subr.mxu0 0.0
    %242 = vmatpush1.msra.mxu0 %v96
    %243 = vmatprep.subr.mxu0 0.0
    %244 = vmatpush1.msra.mxu0 %v97
    %245 = vmatprep.subr.mxu0 0.0
    %246 = vmatpush1.msra.mxu0 %v98
    %247 = vmatprep.subr.mxu0 0.0
    %248 = vmatpush1.msra.mxu0 %v99
    %249 = vmatprep.subr.mxu0 0.0
    %250 = vmatpush1.msra.mxu0 %v100
    %251 = vmatprep.subr.mxu0 0.0
    %252 = vmatpush1.msra.mxu0 %v101
    %253 = vmatprep.subr.mxu0 0.0
    %254 = vmatpush1.msra.mxu0 %v102
    %255 = vmatprep.subr.mxu0 0.0
    %256 = vmatpush1.msra.mxu0 %v103
    %257 = vmatprep.subr.mxu0 0.0
    %258 = vmatpush1.msra.mxu0 %v104
    %259 = vmatprep.subr.mxu0 0.0
    %260 = vmatpush1.msra.mxu0 %v105
    %261 = vmatprep.subr.mxu0 0.0
    %262 = vmatpush1.msra.mxu0 %v106
    %263 = vmatprep.subr.mxu0 0.0
    %264 = vmatpush1.msra.mxu0 %v107
    %265 = vmatprep.subr.mxu0 0.0
    %266 = vmatpush1.msra.mxu0 %v108
    %267 = vmatprep.subr.mxu0 0.0
    %268 = vmatpush1.msra.mxu0 %v109
    %269 = vmatprep.subr.mxu0 0.0
    %270 = vmatpush1.msra.mxu0 %v110
    %271 = vmatprep.subr.mxu0 0.0
    %272 = vmatpush1.msra.mxu0 %v111
    %273 = vmatprep.subr.mxu0 0.0
    %274 = vmatpush1.msra.mxu0 %v112
    %275 = vmatprep.subr.mxu0 0.0
    %276 = vmatpush1.msra.mxu0 %v113
    %277 = vmatprep.subr.mxu0 0.0
    %278 = vmatpush1.msra.mxu0 %v114
    %279 = vmatprep.subr.mxu0 0.0
    %280 = vmatpush1.msra.mxu0 %v115
    %281 = vmatprep.subr.mxu0 0.0
    %282 = vmatpush1.msra.mxu0 %v116
    %283 = vmatprep.subr.mxu0 0.0
    %284 = vmatpush1.msra.mxu0 %v117
    %285 = vmatprep.mubr.f32.mxu0 %v79
    %286 = vmatmul.mubr.f32.gmra.mrb[0].mxu0 %v78
    %v287 = vpop.f32.mrb[0].mxu0
    %v288 = vadd.f32 %v219, %v287
    %v289 = vpop.f32.mrb[0].mxu0
    %290 = vdwg.mxu0
    %291 = vmatprep.subr.mxu0 0.0
    %292 = vmatpush1.msra.mxu0 %v118
    %293 = vmatprep.subr.mxu0 0.0
    %294 = vmatpush1.msra.mxu0 %v119
    %295 = vmatprep.subr.mxu0 0.0
    %296 = vmatpush1.msra.mxu0 %v120
    %297 = vmatprep.subr.mxu0 0.0
    %298 = vmatpush1.msra.mxu0 %v121
    %299 = vmatprep.subr.mxu0 0.0
    %300 = vmatpush1.msra.mxu0 %v122
    %301 = vmatprep.subr.mxu0 0.0
    %302 = vmatpush1.msra.mxu0 %v123
    %303 = vmatprep.subr.mxu0 0.0
    %304 = vmatpush1.msra.mxu0 %v124
    %305 = vmatprep.subr.mxu0 0.0
    %306 = vmatpush1.msra.mxu0 %v125
    %307 = vmatprep.subr.mxu0 0.0
    %308 = vmatpush1.msra.mxu0 %v126
    %309 = vmatprep.subr.mxu0 0.0
    %310 = vmatpush1.msra.mxu0 %v127
    %311 = vmatprep.subr.mxu0 0.0
    %312 = vmatpush1.msra.mxu0 %v128
    %313 = vmatprep.subr.mxu0 0.0
    %314 = vmatpush1.msra.mxu0 %v129
    %315 = vmatprep.subr.mxu0 0.0
    %316 = vmatpush1.msra.mxu0 %v130
    %317 = vmatprep.subr.mxu0 0.0
    %318 = vmatpush1.msra.mxu0 %v131
    %319 = vmatprep.subr.mxu0 0.0
    %320 = vmatpush1.msra.mxu0 %v132
    %321 = vmatprep.subr.mxu0 0.0
    %322 = vmatpush1.msra.mxu0 %v133
    %323 = vmatprep.subr.mxu0 0.0
    %324 = vmatpush1.msra.mxu0 %v134
    %325 = vmatprep.subr.mxu0 0.0
    %326 = vmatpush1.msra.mxu0 %v135
    %327 = vmatprep.subr.mxu0 0.0
    %328 = vmatpush1.msra.mxu0 %v136
    %329 = vmatprep.subr.mxu0 0.0
    %330 = vmatpush1.msra.mxu0 %v137
    %331 = vmatprep.subr.mxu0 0.0
    %332 = vmatpush1.msra.mxu0 %v138
    %333 = vmatprep.subr.mxu0 0.0
    %334 = vmatpush1.msra.mxu0 %v139
    %335 = vmatprep.subr.mxu0 0.0
    %336 = vmatpush1.msra.mxu0 %v140
    %337 = vmatprep.subr.mxu0 0.0
    %338 = vmatpush1.msra.mxu0 %v141
    %339 = vmatprep.subr.mxu0 0.0
    %340 = vmatpush1.msra.mxu0 %v142
    %341 = vmatprep.subr.mxu0 0.0
    %342 = vmatpush1.msra.mxu0 %v143
    %343 = vmatprep.subr.mxu0 0.0
    %344 = vmatpush1.msra.mxu0 %v144
    %345 = vmatprep.subr.mxu0 0.0
    %346 = vmatpush1.msra.mxu0 %v145
    %347 = vmatprep.subr.mxu0 0.0
    %348 = vmatpush1.msra.mxu0 %v146
    %349 = vmatprep.subr.mxu0 0.0
    %350 = vmatpush1.msra.mxu0 %v147
    %351 = vmatprep.subr.mxu0 0.0
    %352 = vmatpush1.msra.mxu0 %v148
    %353 = vmatprep.subr.mxu0 0.0
    %354 = vmatpush1.msra.mxu0 %v149
    %355 = vmatprep.mubr.f32.mxu0 %v81
    %356 = vmatmul.mubr.f32.gmra.mrb[0].mxu0 %v80
    %v357 = vpop.f32.mrb[0].mxu0
    %v358 = vadd.f32 %v288, %v357
    %v359 = vpop.f32.mrb[0].mxu0
    %360 = vdwg.mxu0
    %361 = vmatprep.subr.mxu0 0.0
    %362 = vmatpush1.msra.mxu0 %v150
    %363 = vmatprep.subr.mxu0 0.0
    %364 = vmatpush1.msra.mxu0 %v151
    %365 = vmatprep.subr.mxu0 0.0
    %366 = vmatpush1.msra.mxu0 %v152
    %367 = vmatprep.subr.mxu0 0.0
    %368 = vmatpush1.msra.mxu0 %v153
    %369 = vmatprep.subr.mxu0 0.0
    %370 = vmatpush1.msra.mxu0 %v154
    %371 = vmatprep.subr.mxu0 0.0
    %372 = vmatpush1.msra.mxu0 %v155
    %373 = vmatprep.subr.mxu0 0.0
    %374 = vmatpush1.msra.mxu0 %v156
    %375 = vmatprep.subr.mxu0 0.0
    %376 = vmatpush1.msra.mxu0 %v157
    %377 = vmatprep.subr.mxu0 0.0
    %378 = vmatpush1.msra.mxu0 %v158
    %379 = vmatprep.subr.mxu0 0.0
    %380 = vmatpush1.msra.mxu0 %v159
    %381 = vmatprep.subr.mxu0 0.0
    %382 = vmatpush1.msra.mxu0 %v160
    %383 = vmatprep.subr.mxu0 0.0
    %384 = vmatpush1.msra.mxu0 %v161
    %385 = vmatprep.subr.mxu0 0.0
    %386 = vmatpush1.msra.mxu0 %v162
    %387 = vmatprep.subr.mxu0 0.0
    %388 = vmatpush1.msra.mxu0 %v163
    %389 = vmatprep.subr.mxu0 0.0
    %390 = vmatpush1.msra.mxu0 %v164
    %391 = vmatprep.subr.mxu0 0.0
    %392 = vmatpush1.msra.mxu0 %v165
    %393 = vmatprep.subr.mxu0 0.0
    %394 = vmatpush1.msra.mxu0 %v166
    %395 = vmatprep.subr.mxu0 0.0
    %396 = vmatpush1.msra.mxu0 %v167
    %397 = vmatprep.subr.mxu0 0.0
    %398 = vmatpush1.msra.mxu0 %v168
    %399 = vmatprep.subr.mxu0 0.0
    %400 = vmatpush1.msra.mxu0 %v169
    %401 = vmatprep.subr.mxu0 0.0
    %402 = vmatpush1.msra.mxu0 %v170
    %403 = vmatprep.subr.mxu0 0.0
    %404 = vmatpush1.msra.mxu0 %v171
    %405 = vmatprep.subr.mxu0 0.0
    %406 = vmatpush1.msra.mxu0 %v172
    %407 = vmatprep.subr.mxu0 0.0
    %408 = vmatpush1.msra.mxu0 %v173
    %409 = vmatprep.subr.mxu0 0.0
    %410 = vmatpush1.msra.mxu0 %v174
    %411 = vmatprep.subr.mxu0 0.0
    %412 = vmatpush1.msra.mxu0 %v175
    %413 = vmatprep.subr.mxu0 0.0
    %414 = vmatpush1.msra.mxu0 %v176
    %415 = vmatprep.subr.mxu0 0.0
    %416 = vmatpush1.msra.mxu0 %v177
    %417 = vmatprep.subr.mxu0 0.0
    %418 = vmatpush1.msra.mxu0 %v178
    %419 = vmatprep.subr.mxu0 0.0
    %420 = vmatpush1.msra.mxu0 %v179
    %421 = vmatprep.subr.mxu0 0.0
    %422 = vmatpush1.msra.mxu0 %v180
    %423 = vmatprep.subr.mxu0 0.0
    %424 = vmatpush1.msra.mxu0 %v181
    %425 = vmatprep.mubr.f32.mxu0 %v83
    %426 = vmatmul.mubr.f32.gmra.mrb[0].mxu0 %v82
    %v427 = vpop.f32.mrb[0].mxu0
    %v428 = vadd.f32 %v358, %v427
    %v429 = vpop.f32.mrb[0].mxu0
    %430 = vdwg.mxu0
    %431 = vmatprep.subr.mxu0 0.0
    %432 = vmatpush1.msra.mxu0 %v182
    %433 = vmatprep.subr.mxu0 0.0
    %434 = vmatpush1.msra.mxu0 %v183
    %435 = vmatprep.subr.mxu0 0.0
    %436 = vmatpush1.msra.mxu0 %v184
    %437 = vmatprep.subr.mxu0 0.0
    %438 = vmatpush1.msra.mxu0 %v185
    %439 = vmatprep.subr.mxu0 0.0
    %440 = vmatpush1.msra.mxu0 %v186
    %441 = vmatprep.subr.mxu0 0.0
    %442 = vmatpush1.msra.mxu0 %v187
    %443 = vmatprep.subr.mxu0 0.0
    %444 = vmatpush1.msra.mxu0 %v188
    %445 = vmatprep.subr.mxu0 0.0
    %446 = vmatpush1.msra.mxu0 %v189
    %447 = vmatprep.subr.mxu0 0.0
    %448 = vmatpush1.msra.mxu0 %v190
    %449 = vmatprep.subr.mxu0 0.0
    %450 = vmatpush1.msra.mxu0 %v191
    %451 = vmatprep.subr.mxu0 0.0
    %452 = vmatpush1.msra.mxu0 %v192
    %453 = vmatprep.subr.mxu0 0.0
    %454 = vmatpush1.msra.mxu0 %v193
    %455 = vmatprep.subr.mxu0 0.0
    %456 = vmatpush1.msra.mxu0 %v194
    %457 = vmatprep.subr.mxu0 0.0
    %458 = vmatpush1.msra.mxu0 %v195
    %459 = vmatprep.subr.mxu0 0.0
    %460 = vmatpush1.msra.mxu0 %v196
    %461 = vmatprep.subr.mxu0 0.0
    %462 = vmatpush1.msra.mxu0 %v197
    %463 = vmatprep.subr.mxu0 0.0
    %464 = vmatpush1.msra.mxu0 %v198
    %465 = vmatprep.subr.mxu0 0.0
    %466 = vmatpush1.msra.mxu0 %v199
    %467 = vmatprep.subr.mxu0 0.0
    %468 = vmatpush1.msra.mxu0 %v200
    %469 = vmatprep.subr.mxu0 0.0
    %470 = vmatpush1.msra.mxu0 %v201
    %471 = vmatprep.subr.mxu0 0.0
    %472 = vmatpush1.msra.mxu0 %v202
    %473 = vmatprep.subr.mxu0 0.0
    %474 = vmatpush1.msra.mxu0 %v203
    %475 = vmatprep.subr.mxu0 0.0
    %476 = vmatpush1.msra.mxu0 %v204
    %477 = vmatprep.subr.mxu0 0.0
    %478 = vmatpush1.msra.mxu0 %v205
    %479 = vmatprep.subr.mxu0 0.0
    %480 = vmatpush1.msra.mxu0 %v206
    %481 = vmatprep.subr.mxu0 0.0
    %482 = vmatpush1.msra.mxu0 %v207
    %483 = vmatprep.subr.mxu0 0.0
    %484 = vmatpush1.msra.mxu0 %v208
    %485 = vmatprep.subr.mxu0 0.0
    %486 = vmatpush1.msra.mxu0 %v209
    %487 = vmatprep.subr.mxu0 0.0
    %488 = vmatpush1.msra.mxu0 %v210
    %489 = vmatprep.subr.mxu0 0.0
    %490 = vmatpush1.msra.mxu0 %v211
    %491 = vmatprep.subr.mxu0 0.0
    %492 = vmatpush1.msra.mxu0 %v212
    %493 = vmatprep.subr.mxu0 0.0
    %494 = vmatpush1.msra.mxu0 %v213
    %495 = vmatprep.mubr.f32.mxu0 %v85
    %496 = vmatmul.mubr.f32.gmra.mrb[0].mxu0 %v84
    %v497 = vpop.f32.mrb[0].mxu0
    %v498 = vadd.f32 %v428, %v497
    %v499 = vpop.f32.mrb[0].mxu0
    %500 = vdwg.mxu0
    %v501 = vmax.f32 %v498, 0.0
    %v502 = vld [vmem:[%s4] sm:$0xff]
    %v503 = vld [vmem:[%s4 + $0x8] sm:$0xff]
    %v504 = vld [vmem:[%s4 + $0x10] sm:$0xff]
    %v505 = vld [vmem:[%s4 + $0x18] sm:$0xff]
    %v506 = vld [vmem:[%s4 + $0x20] sm:$0xff]
    %v507 = vld [vmem:[%s4 + $0x28] sm:$0xff]
    %v508 = vld [vmem:[%s4 + $0x30] sm:$0xff]
    %v509 = vld [vmem:[%s4 + $0x38] sm:$0xff]
    %v510 = vld [vmem:[%s5] sm:$0x1]
    %v512 = vlaneseq
    %v513 = vshrl.u32 %v512, 7
    %v514 = vsub.s32 0, %v513
    %v515 = vrot.slane %v510, %v514
    %vm517 = vcmask 523264
    %v519 = vsel %vm517, %v501, 0
    %521 = vmatprep.subr.mxu0 0.0
    %522 = vmatpush1.msra.mxu0 %v502
    %523 = vmatprep.subr.mxu0 0.0
    %524 = vmatpush1.msra.mxu0 %v503
    %525 = vmatprep.subr.mxu0 0.0
    %526 = vmatpush1.msra.mxu0 %v504
    %527 = vmatprep.subr.mxu0 0.0
    %528 = vmatpush1.msra.mxu0 %v505
    %529 = vmatprep.subr.mxu0 0.0
    %530 = vmatpush1.msra.mxu0 %v506
    %531 = vmatprep.subr.mxu0 0.0
    %532 = vmatpush1.msra.mxu0 %v507
    %533 = vmatprep.subr.mxu0 0.0
    %534 = vmatpush1.msra.mxu0 %v508
    %535 = vmatprep.subr.mxu0 0.0
    %536 = vmatpush1.msra.mxu0 %v509
    %537 = vmatprep.subr.mxu0 0.0
    %538 = vmatpush1.msra.mxu0 0.0
    %539 = vmatprep.subr.mxu0 0.0
    %540 = vmatpush1.msra.mxu0 0.0
    %541 = vmatprep.subr.mxu0 0.0
    %542 = vmatpush1.msra.mxu0 0.0
    %543 = vmatprep.subr.mxu0 0.0
    %544 = vmatpush1.msra.mxu0 0.0
    %545 = vmatprep.subr.mxu0 0.0
    %546 = vmatpush1.msra.mxu0 0.0
    %547 = vmatprep.subr.mxu0 0.0
    %548 = vmatpush1.msra.mxu0 0.0
    %549 = vmatprep.subr.mxu0 0.0
    %550 = vmatpush1.msra.mxu0 0.0
    %551 = vmatprep.subr.mxu0 0.0
    %552 = vmatpush1.msra.mxu0 0.0
    %553 = vmatprep.subr.mxu0 0.0
    %554 = vmatpush1.msra.mxu0 0.0
    %555 = vmatprep.subr.mxu0 0.0
    %556 = vmatpush1.msra.mxu0 0.0
    %557 = vmatprep.subr.mxu0 0.0
    %558 = vmatpush1.msra.mxu0 0.0
    %559 = vmatprep.subr.mxu0 0.0
    %560 = vmatpush1.msra.mxu0 0.0
    %561 = vmatprep.subr.mxu0 0.0
    %562 = vmatpush1.msra.mxu0 0.0
    %563 = vmatprep.subr.mxu0 0.0
    %564 = vmatpush1.msra.mxu0 0.0
    %565 = vmatprep.subr.mxu0 0.0
    %566 = vmatpush1.msra.mxu0 0.0
    %567 = vmatprep.subr.mxu0 0.0
    %568 = vmatpush1.msra.mxu0 0.0
    %569 = vmatprep.subr.mxu0 0.0
    %570 = vmatpush1.msra.mxu0 0.0
    %571 = vmatprep.subr.mxu0 0.0
    %572 = vmatpush1.msra.mxu0 0.0
    %573 = vmatprep.subr.mxu0 0.0
    %574 = vmatpush1.msra.mxu0 0.0
    %575 = vmatprep.subr.mxu0 0.0
    %576 = vmatpush1.msra.mxu0 0.0
    %577 = vmatprep.subr.mxu0 0.0
    %578 = vmatpush1.msra.mxu0 0.0
    %579 = vmatprep.subr.mxu0 0.0
    %580 = vmatpush1.msra.mxu0 0.0
    %581 = vmatprep.subr.mxu0 0.0
    %582 = vmatpush1.msra.mxu0 0.0
    %583 = vmatprep.subr.mxu0 0.0
    %584 = vmatpush1.msra.mxu0 0.0
    %585 = vmatprep.mubr.f32.mxu0 0.0
    %586 = vmatmul.mubr.f32.gmra.mrb[0].mxu0 %v519
    %v587 = vpop.f32.mrb[0].mxu0
    %v588 = vadd.f32 %v515, %v587
    %v589 = vpop.f32.mrb[0].mxu0
    %590 = vdwg.mxu0
    %v591 = vmax.f32 %v588, 0.0
    %v592 = vld [vmem:[%s1] sm:$0xff]
    %v593 = vadd.f32 %v591, %v592
    %v594 = vld [vmem:[%s13] sm:$0x1]
    %v595 = vld [vmem:[%s6] sm:$0xff]
    %v596 = vld [vmem:[%s6 + $0x8] sm:$0xff]
    %v597 = vld [vmem:[%s6 + $0x10] sm:$0xff]
    %v598 = vld [vmem:[%s6 + $0x18] sm:$0xff]
    %v599 = vld [vmem:[%s7] sm:$0x1]
    %v601 = vlaneseq
    %v602 = vshrl.u32 %v601, 7
    %v603 = vsub.s32 0, %v602
    %v604 = vrot.slane %v599, %v603
    %vm606 = vcmask 261120
    %v608 = vsel %vm606, %v593, 0
    %610 = vmatprep.subr.mxu0 0.0
    %611 = vmatpush1.msra.mxu0 %v595
    %612 = vmatprep.subr.mxu0 0.0
    %613 = vmatpush1.msra.mxu0 %v596
    %614 = vmatprep.subr.mxu0 0.0
    %615 = vmatpush1.msra.mxu0 %v597
    %616 = vmatprep.subr.mxu0 0.0
    %617 = vmatpush1.msra.mxu0 %v598
    %618 = vmatprep.subr.mxu0 0.0
    %619 = vmatpush1.msra.mxu0 0.0
    %620 = vmatprep.subr.mxu0 0.0
    %621 = vmatpush1.msra.mxu0 0.0
    %622 = vmatprep.subr.mxu0 0.0
    %623 = vmatpush1.msra.mxu0 0.0
    %624 = vmatprep.subr.mxu0 0.0
    %625 = vmatpush1.msra.mxu0 0.0
    %626 = vmatprep.subr.mxu0 0.0
    %627 = vmatpush1.msra.mxu0 0.0
    %628 = vmatprep.subr.mxu0 0.0
    %629 = vmatpush1.msra.mxu0 0.0
    %630 = vmatprep.subr.mxu0 0.0
    %631 = vmatpush1.msra.mxu0 0.0
    %632 = vmatprep.subr.mxu0 0.0
    %633 = vmatpush1.msra.mxu0 0.0
    %634 = vmatprep.subr.mxu0 0.0
    %635 = vmatpush1.msra.mxu0 0.0
    %636 = vmatprep.subr.mxu0 0.0
    %637 = vmatpush1.msra.mxu0 0.0
    %638 = vmatprep.subr.mxu0 0.0
    %639 = vmatpush1.msra.mxu0 0.0
    %640 = vmatprep.subr.mxu0 0.0
    %641 = vmatpush1.msra.mxu0 0.0
    %642 = vmatprep.subr.mxu0 0.0
    %643 = vmatpush1.msra.mxu0 0.0
    %644 = vmatprep.subr.mxu0 0.0
    %645 = vmatpush1.msra.mxu0 0.0
    %646 = vmatprep.subr.mxu0 0.0
    %647 = vmatpush1.msra.mxu0 0.0
    %648 = vmatprep.subr.mxu0 0.0
    %649 = vmatpush1.msra.mxu0 0.0
    %650 = vmatprep.subr.mxu0 0.0
    %651 = vmatpush1.msra.mxu0 0.0
    %652 = vmatprep.subr.mxu0 0.0
    %653 = vmatpush1.msra.mxu0 0.0
    %654 = vmatprep.subr.mxu0 0.0
    %655 = vmatpush1.msra.mxu0 0.0
    %656 = vmatprep.subr.mxu0 0.0
    %657 = vmatpush1.msra.mxu0 0.0
    %658 = vmatprep.subr.mxu0 0.0
    %659 = vmatpush1.msra.mxu0 0.0
    %660 = vmatprep.subr.mxu0 0.0
    %661 = vmatpush1.msra.mxu0 0.0
    %662 = vmatprep.subr.mxu0 0.0
    %663 = vmatpush1.msra.mxu0 0.0
    %664 = vmatprep.subr.mxu0 0.0
    %665 = vmatpush1.msra.mxu0 0.0
    %666 = vmatprep.subr.mxu0 0.0
    %667 = vmatpush1.msra.mxu0 0.0
    %668 = vmatprep.subr.mxu0 0.0
    %669 = vmatpush1.msra.mxu0 0.0
    %670 = vmatprep.subr.mxu0 0.0
    %671 = vmatpush1.msra.mxu0 0.0
    %672 = vmatprep.subr.mxu0 0.0
    %673 = vmatpush1.msra.mxu0 0.0
    %674 = vmatprep.mubr.f32.mxu0 0.0
    %675 = vmatmul.mubr.f32.gmra.mrb[0].mxu0 %v608
    %v676 = vpop.f32.mrb[0].mxu0
    %v677 = vadd.f32 %v604, %v676
    %v678 = vpop.f32.mrb[0].mxu0
    %679 = vdwg.mxu0
    %v680 = vld [vmem:[%s8] sm:$0xff]
    %v681 = vld [vmem:[%s8 + $0x8] sm:$0xff]
    %v682 = vld [vmem:[%s8 + $0x10] sm:$0xff]
    %v683 = vld [vmem:[%s8 + $0x18] sm:$0xff]
    %v684 = vld [vmem:[%s9] sm:$0x1]
    %v686 = vlaneseq
    %v687 = vshrl.u32 %v686, 7
    %v688 = vsub.s32 0, %v687
    %v689 = vrot.slane %v684, %v688
    %691 = vmatprep.subr.mxu0 0.0
    %692 = vmatpush1.msra.mxu0 %v680
    %693 = vmatprep.subr.mxu0 0.0
    %694 = vmatpush1.msra.mxu0 %v681
    %695 = vmatprep.subr.mxu0 0.0
    %696 = vmatpush1.msra.mxu0 %v682
    %697 = vmatprep.subr.mxu0 0.0
    %698 = vmatpush1.msra.mxu0 %v683
    %699 = vmatprep.subr.mxu0 0.0
    %700 = vmatpush1.msra.mxu0 0.0
    %701 = vmatprep.subr.mxu0 0.0
    %702 = vmatpush1.msra.mxu0 0.0
    %703 = vmatprep.subr.mxu0 0.0
    %704 = vmatpush1.msra.mxu0 0.0
    %705 = vmatprep.subr.mxu0 0.0
    %706 = vmatpush1.msra.mxu0 0.0
    %707 = vmatprep.subr.mxu0 0.0
    %708 = vmatpush1.msra.mxu0 0.0
    %709 = vmatprep.subr.mxu0 0.0
    %710 = vmatpush1.msra.mxu0 0.0
    %711 = vmatprep.subr.mxu0 0.0
    %712 = vmatpush1.msra.mxu0 0.0
    %713 = vmatprep.subr.mxu0 0.0
    %714 = vmatpush1.msra.mxu0 0.0
    %715 = vmatprep.subr.mxu0 0.0
    %716 = vmatpush1.msra.mxu0 0.0
    %717 = vmatprep.subr.mxu0 0.0
    %718 = vmatpush1.msra.mxu0 0.0
    %719 = vmatprep.subr.mxu0 0.0
    %720 = vmatpush1.msra.mxu0 0.0
    %721 = vmatprep.subr.mxu0 0.0
    %722 = vmatpush1.msra.mxu0 0.0
    %723 = vmatprep.subr.mxu0 0.0
    %724 = vmatpush1.msra.mxu0 0.0
    %725 = vmatprep.subr.mxu0 0.0
    %726 = vmatpush1.msra.mxu0 0.0
    %727 = vmatprep.subr.mxu0 0.0
    %728 = vmatpush1.msra.mxu0 0.0
    %729 = vmatprep.subr.mxu0 0.0
    %730 = vmatpush1.msra.mxu0 0.0
    %731 = vmatprep.subr.mxu0 0.0
    %732 = vmatpush1.msra.mxu0 0.0
    %733 = vmatprep.subr.mxu0 0.0
    %734 = vmatpush1.msra.mxu0 0.0
    %735 = vmatprep.subr.mxu0 0.0
    %736 = vmatpush1.msra.mxu0 0.0
    %737 = vmatprep.subr.mxu0 0.0
    %738 = vmatpush1.msra.mxu0 0.0
    %739 = vmatprep.subr.mxu0 0.0
    %740 = vmatpush1.msra.mxu0 0.0
    %741 = vmatprep.subr.mxu0 0.0
    %742 = vmatpush1.msra.mxu0 0.0
    %743 = vmatprep.subr.mxu0 0.0
    %744 = vmatpush1.msra.mxu0 0.0
    %745 = vmatprep.subr.mxu0 0.0
    %746 = vmatpush1.msra.mxu0 0.0
    %747 = vmatprep.subr.mxu0 0.0
    %748 = vmatpush1.msra.mxu0 0.0
    %749 = vmatprep.subr.mxu0 0.0
    %750 = vmatpush1.msra.mxu0 0.0
    %751 = vmatprep.subr.mxu0 0.0
    %752 = vmatpush1.msra.mxu0 0.0
    %753 = vmatprep.subr.mxu0 0.0
    %754 = vmatpush1.msra.mxu0 0.0
    %755 = vmatprep.mubr.f32.mxu0 0.0
    %756 = vmatmul.mubr.f32.gmra.mrb[0].mxu0 %v608
    %v757 = vpop.f32.mrb[0].mxu0
    %v758 = vadd.f32 %v689, %v757
    %v759 = vpop.f32.mrb[0].mxu0
    %760 = vdwg.mxu0
    %v761 = vld [vmem:[%s10] sm:$0xff]
    %v762 = vld [vmem:[%s10 + $0x8] sm:$0xff]
    %v763 = vld [vmem:[%s10 + $0x10] sm:$0xff]
    %v764 = vld [vmem:[%s10 + $0x18] sm:$0xff]
    %v765 = vld [vmem:[%s11] sm:$0x1]
    %v767 = vlaneseq
    %v768 = vshrl.u32 %v767, 7
    %v769 = vsub.s32 0, %v768
    %v770 = vrot.slane %v765, %v769
    %772 = vmatprep.subr.mxu0 0.0
    %773 = vmatpush1.msra.mxu0 %v761
    %774 = vmatprep.subr.mxu0 0.0
    %775 = vmatpush1.msra.mxu0 %v762
    %776 = vmatprep.subr.mxu0 0.0
    %777 = vmatpush1.msra.mxu0 %v763
    %778 = vmatprep.subr.mxu0 0.0
    %779 = vmatpush1.msra.mxu0 %v764
    %780 = vmatprep.subr.mxu0 0.0
    %781 = vmatpush1.msra.mxu0 0.0
    %782 = vmatprep.subr.mxu0 0.0
    %783 = vmatpush1.msra.mxu0 0.0
    %784 = vmatprep.subr.mxu0 0.0
    %785 = vmatpush1.msra.mxu0 0.0
    %786 = vmatprep.subr.mxu0 0.0
    %787 = vmatpush1.msra.mxu0 0.0
    %788 = vmatprep.subr.mxu0 0.0
    %789 = vmatpush1.msra.mxu0 0.0
    %790 = vmatprep.subr.mxu0 0.0
    %791 = vmatpush1.msra.mxu0 0.0
    %792 = vmatprep.subr.mxu0 0.0
    %793 = vmatpush1.msra.mxu0 0.0
    %794 = vmatprep.subr.mxu0 0.0
    %795 = vmatpush1.msra.mxu0 0.0
    %796 = vmatprep.subr.mxu0 0.0
    %797 = vmatpush1.msra.mxu0 0.0
    %798 = vmatprep.subr.mxu0 0.0
    %799 = vmatpush1.msra.mxu0 0.0
    %800 = vmatprep.subr.mxu0 0.0
    %801 = vmatpush1.msra.mxu0 0.0
    %802 = vmatprep.subr.mxu0 0.0
    %803 = vmatpush1.msra.mxu0 0.0
    %804 = vmatprep.subr.mxu0 0.0
    %805 = vmatpush1.msra.mxu0 0.0
    %806 = vmatprep.subr.mxu0 0.0
    %807 = vmatpush1.msra.mxu0 0.0
    %808 = vmatprep.subr.mxu0 0.0
    %809 = vmatpush1.msra.mxu0 0.0
    %810 = vmatprep.subr.mxu0 0.0
    %811 = vmatpush1.msra.mxu0 0.0
    %812 = vmatprep.subr.mxu0 0.0
    %813 = vmatpush1.msra.mxu0 0.0
    %814 = vmatprep.subr.mxu0 0.0
    %815 = vmatpush1.msra.mxu0 0.0
    %816 = vmatprep.subr.mxu0 0.0
    %817 = vmatpush1.msra.mxu0 0.0
    %818 = vmatprep.subr.mxu0 0.0
    %819 = vmatpush1.msra.mxu0 0.0
    %820 = vmatprep.subr.mxu0 0.0
    %821 = vmatpush1.msra.mxu0 0.0
    %822 = vmatprep.subr.mxu0 0.0
    %823 = vmatpush1.msra.mxu0 0.0
    %824 = vmatprep.subr.mxu0 0.0
    %825 = vmatpush1.msra.mxu0 0.0
    %826 = vmatprep.subr.mxu0 0.0
    %827 = vmatpush1.msra.mxu0 0.0
    %828 = vmatprep.subr.mxu0 0.0
    %829 = vmatpush1.msra.mxu0 0.0
    %830 = vmatprep.subr.mxu0 0.0
    %831 = vmatpush1.msra.mxu0 0.0
    %832 = vmatprep.subr.mxu0 0.0
    %833 = vmatpush1.msra.mxu0 0.0
    %834 = vmatprep.subr.mxu0 0.0
    %835 = vmatpush1.msra.mxu0 0.0
    %836 = vmatprep.mubr.f32.mxu0 0.0
    %837 = vmatmul.mubr.f32.gmra.mrb[0].mxu0 %v608
    %v838 = vpop.f32.mrb[0].mxu0
    %v839 = vadd.f32 %v770, %v838
    %v840 = vpop.f32.mrb[0].mxu0
    %841 = vdwg.mxu0
    %vm842 = vcmask 64512
    %v844 = vsel %vm842, %v677, 0
    %v847 = vsel %vm842, %v758, 0
    %849 = vmatprep.subr.mxu0 0.0
    %850 = vmatpush1.xpose.msra.mxu0 %v847
    %851 = vmatprep.subr.mxu0 0.0
    %852 = vmatpush1.xpose.msra.mxu0 0.0
    %853 = vmatprep.subr.mxu0 0.0
    %854 = vmatpush1.xpose.msra.mxu0 0.0
    %855 = vmatprep.subr.mxu0 0.0
    %856 = vmatpush1.xpose.msra.mxu0 0.0
    %857 = vmatprep.subr.mxu0 0.0
    %858 = vmatpush1.xpose.msra.mxu0 0.0
    %859 = vmatprep.subr.mxu0 0.0
    %860 = vmatpush1.xpose.msra.mxu0 0.0
    %861 = vmatprep.subr.mxu0 0.0
    %862 = vmatpush1.xpose.msra.mxu0 0.0
    %863 = vmatprep.subr.mxu0 0.0
    %864 = vmatpush1.xpose.msra.mxu0 0.0
    %865 = vmatprep.subr.mxu0 0.0
    %866 = vmatpush1.xpose.msra.mxu0 0.0
    %867 = vmatprep.subr.mxu0 0.0
    %868 = vmatpush1.xpose.msra.mxu0 0.0
    %869 = vmatprep.subr.mxu0 0.0
    %870 = vmatpush1.xpose.msra.mxu0 0.0
    %871 = vmatprep.subr.mxu0 0.0
    %872 = vmatpush1.xpose.msra.mxu0 0.0
    %873 = vmatprep.subr.mxu0 0.0
    %874 = vmatpush1.xpose.msra.mxu0 0.0
    %875 = vmatprep.subr.mxu0 0.0
    %876 = vmatpush1.xpose.msra.mxu0 0.0
    %877 = vmatprep.subr.mxu0 0.0
    %878 = vmatpush1.xpose.msra.mxu0 0.0
    %879 = vmatprep.subr.mxu0 0.0
    %880 = vmatpush1.xpose.msra.mxu0 0.0
    %881 = vmatprep.subr.mxu0 0.0
    %882 = vmatpush1.xpose.msra.mxu0 0.0
    %883 = vmatprep.subr.mxu0 0.0
    %884 = vmatpush1.xpose.msra.mxu0 0.0
    %885 = vmatprep.subr.mxu0 0.0
    %886 = vmatpush1.xpose.msra.mxu0 0.0
    %887 = vmatprep.subr.mxu0 0.0
    %888 = vmatpush1.xpose.msra.mxu0 0.0
    %889 = vmatprep.subr.mxu0 0.0
    %890 = vmatpush1.xpose.msra.mxu0 0.0
    %891 = vmatprep.subr.mxu0 0.0
    %892 = vmatpush1.xpose.msra.mxu0 0.0
    %893 = vmatprep.subr.mxu0 0.0
    %894 = vmatpush1.xpose.msra.mxu0 0.0
    %895 = vmatprep.subr.mxu0 0.0
    %896 = vmatpush1.xpose.msra.mxu0 0.0
    %897 = vmatprep.subr.mxu0 0.0
    %898 = vmatpush1.xpose.msra.mxu0 0.0
    %899 = vmatprep.subr.mxu0 0.0
    %900 = vmatpush1.xpose.msra.mxu0 0.0
    %901 = vmatprep.subr.mxu0 0.0
    %902 = vmatpush1.xpose.msra.mxu0 0.0
    %903 = vmatprep.subr.mxu0 0.0
    %904 = vmatpush1.xpose.msra.mxu0 0.0
    %905 = vmatprep.subr.mxu0 0.0
    %906 = vmatpush1.xpose.msra.mxu0 0.0
    %907 = vmatprep.subr.mxu0 0.0
    %908 = vmatpush1.xpose.msra.mxu0 0.0
    %909 = vmatprep.subr.mxu0 0.0
    %910 = vmatpush1.xpose.msra.mxu0 0.0
    %911 = vmatprep.subr.mxu0 0.0
    %912 = vmatpush1.xpose.msra.mxu0 0.0
    %913 = vmatprep.mubr.f32.mxu0 0.0
    %914 = vmatmul.mubr.f32.gmra.mrb[0].mxu0 %v844
    %v915 = vpop.f32.mrb[0].mxu0
    %v916 = vadd.f32 0.0, %v915
    %v917 = vpop.f32.mrb[0].mxu0
    %918 = vdwg.mxu0
    %v919 = vmul.f32 %v916, 0.35355338
    %v920 = vsel %vm842, %v919, -inf
    %921 = vmax.xlane.f32.xlu0 %v920
    %v922 = vpop.xlane.xlu0 %921
    %v923 = vsub.f32 %v919, %v922
    %v924 = vmul.f32 %v923, 1.442695
    %v925 = vpow.pop %v924
    %v926 = vsel %vm842, %v925, 0.0
    %927 = vadd.xlane.f32.xlu0 %v926
    %v928 = vpop.xlane.xlu0 %927
    %v929 = vrcp.pop %v928
    %v930 = vmul.f32 %v925, %v929
    %v932 = vsel %vm842, %v930, 0
    %934 = vmatprep.subr.mxu0 0.0
    %935 = vmatpush1.msra.mxu0 %v839
    %936 = vmatprep.subr.mxu0 0.0
    %937 = vmatpush1.msra.mxu0 0.0
    %938 = vmatprep.subr.mxu0 0.0
    %939 = vmatpush1.msra.mxu0 0.0
    %940 = vmatprep.subr.mxu0 0.0
    %941 = vmatpush1.msra.mxu0 0.0
    %942 = vmatprep.subr.mxu0 0.0
    %943 = vmatpush1.msra.mxu0 0.0
    %944 = vmatprep.subr.mxu0 0.0
    %945 = vmatpush1.msra.mxu0 0.0
    %946 = vmatprep.subr.mxu0 0.0
    %947 = vmatpush1.msra.mxu0 0.0
    %948 = vmatprep.subr.mxu0 0.0
    %949 = vmatpush1.msra.mxu0 0.0
    %950 = vmatprep.subr.mxu0 0.0
    %951 = vmatpush1.msra.mxu0 0.0
    %952 = vmatprep.subr.mxu0 0.0
    %953 = vmatpush1.msra.mxu0 0.0
    %954 = vmatprep.subr.mxu0 0.0
    %955 = vmatpush1.msra.mxu0 0.0
    %956 = vmatprep.subr.mxu0 0.0
    %957 = vmatpush1.msra.mxu0 0.0
    %958 = vmatprep.subr.mxu0 0.0
    %959 = vmatpush1.msra.mxu0 0.0
    %960 = vmatprep.subr.mxu0 0.0
    %961 = vmatpush1.msra.mxu0 0.0
    %962 = vmatprep.subr.mxu0 0.0
    %963 = vmatpush1.msra.mxu0 0.0
    %964 = vmatprep.subr.mxu0 0.0
    %965 = vmatpush1.msra.mxu0 0.0
    %966 = vmatprep.subr.mxu0 0.0
    %967 = vmatpush1.msra.mxu0 0.0
    %968 = vmatprep.subr.mxu0 0.0
    %969 = vmatpush1.msra.mxu0 0.0
    %970 = vmatprep.subr.mxu0 0.0
    %971 = vmatpush1.msra.mxu0 0.0
    %972 = vmatprep.subr.mxu0 0.0
    %973 = vmatpush1.msra.mxu0 0.0
    %974 = vmatprep.subr.mxu0 0.0
    %975 = vmatpush1.msra.mxu0 0.0
    %976 = vmatprep.subr.mxu0 0.0
    %977 = vmatpush1.msra.mxu0 0.0
    %978 = vmatprep.subr.mxu0 0.0
    %979 = vmatpush1.msra.mxu0 0.0
    %980 = vmatprep.subr.mxu0 0.0
    %981 = vmatpush1.msra.mxu0 0.0
    %982 = vmatprep.subr.mxu0 0.0
    %983 = vmatpush1.msra.mxu0 0.0
    %984 = vmatprep.subr.mxu0 0.0
    %985 = vmatpush1.msra.mxu0 0.0
    %986 = vmatprep.subr.mxu0 0.0
    %987 = vmatpush1.msra.mxu0 0.0
    %988 = vmatprep.subr.mxu0 0.0
    %989 = vmatpush1.msra.mxu0 0.0
    %990 = vmatprep.subr.mxu0 0.0
    %991 = vmatpush1.msra.mxu0 0.0
    %992 = vmatprep.subr.mxu0 0.0
    %993 = vmatpush1.msra.mxu0 0.0
    %994 = vmatprep.subr.mxu0 0.0
    %995 = vmatpush1.msra.mxu0 0.0
    %996 = vmatprep.subr.mxu0 0.0
    %997 = vmatpush1.msra.mxu0 0.0
    %998 = vmatprep.mubr.f32.mxu0 0.0
    %999 = vmatmul.mubr.f32.gmra.mrb[0].mxu0 %v932
    %v1000 = vpop.f32.mrb[0].mxu0
    %v1001 = vadd.f32 0.0, %v1000
    %v1002 = vpop.f32.mrb[0].mxu0
    %1003 = vdwg.mxu0
    %v1004 = vld [vmem:[%s12] sm:$0xff]
    %v1006 = vsel %vm842, %v1001, 0
    %1008 = vmatprep.subr.mxu0 0.0
    %1009 = vmatpush1.msra.mxu0 %v1004
    %1010 = vmatprep.subr.mxu0 0.0
    %1011 = vmatpush1.msra.mxu0 0.0
    %1012 = vmatprep.subr.mxu0 0.0
    %1013 = vmatpush1.msra.mxu0 0.0
    %1014 = vmatprep.subr.mxu0 0.0
    %1015 = vmatpush1.msra.mxu0 0.0
    %1016 = vmatprep.subr.mxu0 0.0
    %1017 = vmatpush1.msra.mxu0 0.0
    %1018 = vmatprep.subr.mxu0 0.0
    %1019 = vmatpush1.msra.mxu0 0.0
    %1020 = vmatprep.subr.mxu0 0.0
    %1021 = vmatpush1.msra.mxu0 0.0
    %1022 = vmatprep.subr.mxu0 0.0
    %1023 = vmatpush1.msra.mxu0 0.0
    %1024 = vmatprep.subr.mxu0 0.0
    %1025 = vmatpush1.msra.mxu0 0.0
    %1026 = vmatprep.subr.mxu0 0.0
    %1027 = vmatpush1.msra.mxu0 0.0
    %1028 = vmatprep.subr.mxu0 0.0
    %1029 = vmatpush1.msra.mxu0 0.0
    %1030 = vmatprep.subr.mxu0 0.0
    %1031 = vmatpush1.msra.mxu0 0.0
    %1032 = vmatprep.subr.mxu0 0.0
    %1033 = vmatpush1.msra.mxu0 0.0
    %1034 = vmatprep.subr.mxu0 0.0
    %1035 = vmatpush1.msra.mxu0 0.0
    %1036 = vmatprep.subr.mxu0 0.0
    %1037 = vmatpush1.msra.mxu0 0.0
    %1038 = vmatprep.subr.mxu0 0.0
    %1039 = vmatpush1.msra.mxu0 0.0
    %1040 = vmatprep.subr.mxu0 0.0
    %1041 = vmatpush1.msra.mxu0 0.0
    %1042 = vmatprep.subr.mxu0 0.0
    %1043 = vmatpush1.msra.mxu0 0.0
    %1044 = vmatprep.subr.mxu0 0.0
    %1045 = vmatpush1.msra.mxu0 0.0
    %1046 = vmatprep.subr.mxu0 0.0
    %1047 = vmatpush1.msra.mxu0 0.0
    %1048 = vmatprep.subr.mxu0 0.0
    %1049 = vmatpush1.msra.mxu0 0.0
    %1050 = vmatprep.subr.mxu0 0.0
    %1051 = vmatpush1.msra.mxu0 0.0
    %1052 = vmatprep.subr.mxu0 0.0
    %1053 = vmatpush1.msra.mxu0 0.0
    %1054 = vmatprep.subr.mxu0 0.0
    %1055 = vmatpush1.msra.mxu0 0.0
    %1056 = vmatprep.subr.mxu0 0.0
    %1057 = vmatpush1.msra.mxu0 0.0
    %1058 = vmatprep.subr.mxu0 0.0
    %1059 = vmatpush1.msra.mxu0 0.0
    %1060 = vmatprep.subr.mxu0 0.0
    %1061 = vmatpush1.msra.mxu0 0.0
    %1062 = vmatprep.subr.mxu0 0.0
    %1063 = vmatpush1.msra.mxu0 0.0
    %1064 = vmatprep.subr.mxu0 0.0
    %1065 = vmatpush1.msra.mxu0 0.0
    %1066 = vmatprep.subr.mxu0 0.0
    %1067 = vmatpush1.msra.mxu0 0.0
    %1068 = vmatprep.subr.mxu0 0.0
    %1069 = vmatpush1.msra.mxu0 0.0
    %1070 = vmatprep.subr.mxu0 0.0
    %1071 = vmatpush1.msra.mxu0 0.0
    %1072 = vmatprep.mubr.f32.mxu0 0.0
    %1073 = vmatmul.mubr.f32.gmra.mrb[0].mxu0 %v1006
    %v1074 = vpop.f32.mrb[0].mxu0
    %v1075 = vadd.f32 0.0, %v1074
    %v1076 = vpop.f32.mrb[0].mxu0
    %1077 = vdwg.mxu0
    %v1079 = vlaneseq
    %v1080 = vshrl.u32 %v1079, 7
    %v1081 = vsub.s32 0, %v1080
    %v1082 = vrot.slane %v594, %v1081
    %v1084 = vadd.f32 %v1082, %v1075
    %s1085 = scalar_lea.vmem %s6, 32
    %v1086 = vld [vmem:[%s1085] sm:$0xff]
    %v1087 = vld [vmem:[%s1085 + $0x8] sm:$0xff]
    %v1088 = vld [vmem:[%s1085 + $0x10] sm:$0xff]
    %v1089 = vld [vmem:[%s1085 + $0x18] sm:$0xff]
    %s1090 = scalar_lea.vmem %s7, 1
    %v1091 = vld [vmem:[%s1090] sm:$0x1]
    %v1093 = vlaneseq
    %v1094 = vshrl.u32 %v1093, 7
    %v1095 = vsub.s32 0, %v1094
    %v1096 = vrot.slane %v1091, %v1095
    %1098 = vmatprep.subr.mxu0 0.0
    %1099 = vmatpush1.msra.mxu0 %v1086
    %1100 = vmatprep.subr.mxu0 0.0
    %1101 = vmatpush1.msra.mxu0 %v1087
    %1102 = vmatprep.subr.mxu0 0.0
    %1103 = vmatpush1.msra.mxu0 %v1088
    %1104 = vmatprep.subr.mxu0 0.0
    %1105 = vmatpush1.msra.mxu0 %v1089
    %1106 = vmatprep.subr.mxu0 0.0
    %1107 = vmatpush1.msra.mxu0 0.0
    %1108 = vmatprep.subr.mxu0 0.0
    %1109 = vmatpush1.msra.mxu0 0.0
    %1110 = vmatprep.subr.mxu0 0.0
    %1111 = vmatpush1.msra.mxu0 0.0
    %1112 = vmatprep.subr.mxu0 0.0
    %1113 = vmatpush1.msra.mxu0 0.0
    %1114 = vmatprep.subr.mxu0 0.0
    %1115 = vmatpush1.msra.mxu0 0.0
    %1116 = vmatprep.subr.mxu0 0.0
    %1117 = vmatpush1.msra.mxu0 0.0
    %1118 = vmatprep.subr.mxu0 0.0
    %1119 = vmatpush1.msra.mxu0 0.0
    %1120 = vmatprep.subr.mxu0 0.0
    %1121 = vmatpush1.msra.mxu0 0.0
    %1122 = vmatprep.subr.mxu0 0.0
    %1123 = vmatpush1.msra.mxu0 0.0
    %1124 = vmatprep.subr.mxu0 0.0
    %1125 = vmatpush1.msra.mxu0 0.0
    %1126 = vmatprep.subr.mxu0 0.0
    %1127 = vmatpush1.msra.mxu0 0.0
    %1128 = vmatprep.subr.mxu0 0.0
    %1129 = vmatpush1.msra.mxu0 0.0
    %1130 = vmatprep.subr.mxu0 0.0
    %1131 = vmatpush1.msra.mxu0 0.0
    %1132 = vmatprep.subr.mxu0 0.0
    %1133 = vmatpush1.msra.mxu0 0.0
    %1134 = vmatprep.subr.mxu0 0.0
    %1135 = vmatpush1.msra.mxu0 0.0
    %1136 = vmatprep.subr.mxu0 0.0
    %1137 = vmatpush1.msra.mxu0 0.0
    %1138 = vmatprep.subr.mxu0 0.0
    %1139 = vmatpush1.msra.mxu0 0.0
    %1140 = vmatprep.subr.mxu0 0.0
    %1141 = vmatpush1.msra.mxu0 0.0
    %1142 = vmatprep.subr.mxu0 0.0
    %1143 = vmatpush1.msra.mxu0 0.0
    %1144 = vmatprep.subr.mxu0 0.0
    %1145 = vmatpush1.msra.mxu0 0.0
    %1146 = vmatprep.subr.mxu0 0.0
    %1147 = vmatpush1.msra.mxu0 0.0
    %1148 = vmatprep.subr.mxu0 0.0
    %1149 = vmatpush1.msra.mxu0 0.0
    %1150 = vmatprep.subr.mxu0 0.0
    %1151 = vmatpush1.msra.mxu0 0.0
    %1152 = vmatprep.subr.mxu0 0.0
    %1153 = vmatpush1.msra.mxu0 0.0
    %1154 = vmatprep.subr.mxu0 0.0
    %1155 = vmatpush1.msra.mxu0 0.0
    %1156 = vmatprep.subr.mxu0 0.0
    %1157 = vmatpush1.msra.mxu0 0.0
    %1158 = vmatprep.subr.mxu0 0.0
    %1159 = vmatpush1.msra.mxu0 0.0
    %1160 = vmatprep.subr.mxu0 0.0
    %1161 = vmatpush1.msra.mxu0 0.0
    %1162 = vmatprep.mubr.f32.mxu0 0.0
    %1163 = vmatmul.mubr.f32.gmra.mrb[0].mxu0 %v608
    %v1164 = vpop.f32.mrb[0].mxu0
    %v1165 = vadd.f32 %v1096, %v1164
    %v1166 = vpop.f32.mrb[0].mxu0
    %1167 = vdwg.mxu0
    %s1168 = scalar_lea.vmem %s8, 32
    %v1169 = vld [vmem:[%s1168] sm:$0xff]
    %v1170 = vld [vmem:[%s1168 + $0x8] sm:$0xff]
    %v1171 = vld [vmem:[%s1168 + $0x10] sm:$0xff]
    %v1172 = vld [vmem:[%s1168 + $0x18] sm:$0xff]
    %s1173 = scalar_lea.vmem %s9, 1
    %v1174 = vld [vmem:[%s1173] sm:$0x1]
    %v1176 = vlaneseq
    %v1177 = vshrl.u32 %v1176, 7
    %v1178 = vsub.s32 0, %v1177
    %v1179 = vrot.slane %v1174, %v1178
    %1181 = vmatprep.subr.mxu0 0.0
    %1182 = vmatpush1.msra.mxu0 %v1169
    %1183 = vmatprep.subr.mxu0 0.0
    %1184 = vmatpush1.msra.mxu0 %v1170
    %1185 = vmatprep.subr.mxu0 0.0
    %1186 = vmatpush1.msra.mxu0 %v1171
    %1187 = vmatprep.subr.mxu0 0.0
    %1188 = vmatpush1.msra.mxu0 %v1172
    %1189 = vmatprep.subr.mxu0 0.0
    %1190 = vmatpush1.msra.mxu0 0.0
    %1191 = vmatprep.subr.mxu0 0.0
    %1192 = vmatpush1.msra.mxu0 0.0
    %1193 = vmatprep.subr.mxu0 0.0
    %1194 = vmatpush1.msra.mxu0 0.0
    %1195 = vmatprep.subr.mxu0 0.0
    %1196 = vmatpush1.msra.mxu0 0.0
    %1197 = vmatprep.subr.mxu0 0.0
    %1198 = vmatpush1.msra.mxu0 0.0
    %1199 = vmatprep.subr.mxu0 0.0
    %1200 = vmatpush1.msra.mxu0 0.0
    %1201 = vmatprep.subr.mxu0 0.0
    %1202 = vmatpush1.msra.mxu0 0.0
    %1203 = vmatprep.subr.mxu0 0.0
    %1204 = vmatpush1.msra.mxu0 0.0
    %1205 = vmatprep.subr.mxu0 0.0
    %1206 = vmatpush1.msra.mxu0 0.0
    %1207 = vmatprep.subr.mxu0 0.0
    %1208 = vmatpush1.msra.mxu0 0.0
    %1209 = vmatprep.subr.mxu0 0.0
    %1210 = vmatpush1.msra.mxu0 0.0
    %1211 = vmatprep.subr.mxu0 0.0
    %1212 = vmatpush1.msra.mxu0 0.0
    %1213 = vmatprep.subr.mxu0 0.0
    %1214 = vmatpush1.msra.mxu0 0.0
    %1215 = vmatprep.subr.mxu0 0.0
    %1216 = vmatpush1.msra.mxu0 0.0
    %1217 = vmatprep.subr.mxu0 0.0
    %1218 = vmatpush1.msra.mxu0 0.0
    %1219 = vmatprep.subr.mxu0 0.0
    %1220 = vmatpush1.msra.mxu0 0.0
    %1221 = vmatprep.subr.mxu0 0.0
    %1222 = vmatpush1.msra.mxu0 0.0
    %1223 = vmatprep.subr.mxu0 0.0
    %1224 = vmatpush1.msra.mxu0 0.0
    %1225 = vmatprep.subr.mxu0 0.0
    %1226 = vmatpush1.msra.mxu0 0.0
    %1227 = vmatprep.subr.mxu0 0.0
    %1228 = vmatpush1.msra.mxu0 0.0
    %1229 = vmatprep.subr.mxu0 0.0
    %1230 = vmatpush1.msra.mxu0 0.0
    %1231 = vmatprep.subr.mxu0 0.0
    %1232 = vmatpush1.msra.mxu0 0.0
    %1233 = vmatprep.subr.mxu0 0.0
    %1234 = vmatpush1.msra.mxu0 0.0
    %1235 = vmatprep.subr.mxu0 0.0
    %1236 = vmatpush1.msra.mxu0 0.0
    %1237 = vmatprep.subr.mxu0 0.0
    %1238 = vmatpush1.msra.mxu0 0.0
    %1239 = vmatprep.subr.mxu0 0.0
    %1240 = vmatpush1.msra.mxu0 0.0
    %1241 = vmatprep.subr.mxu0 0.0
    %1242 = vmatpush1.msra.mxu0 0.0
    %1243 = vmatprep.subr.mxu0 0.0
    %1244 = vmatpush1.msra.mxu0 0.0
    %1245 = vmatprep.mubr.f32.mxu0 0.0
    %1246 = vmatmul.mubr.f32.gmra.mrb[0].mxu0 %v608
    %v1247 = vpop.f32.mrb[0].mxu0
    %v1248 = vadd.f32 %v1179, %v1247
    %v1249 = vpop.f32.mrb[0].mxu0
    %1250 = vdwg.mxu0
    %s1251 = scalar_lea.vmem %s10, 32
    %v1252 = vld [vmem:[%s1251] sm:$0xff]
    %v1253 = vld [vmem:[%s1251 + $0x8] sm:$0xff]
    %v1254 = vld [vmem:[%s1251 + $0x10] sm:$0xff]
    %v1255 = vld [vmem:[%s1251 + $0x18] sm:$0xff]
    %s1256 = scalar_lea.vmem %s11, 1
    %v1257 = vld [vmem:[%s1256] sm:$0x1]
    %v1259 = vlaneseq
    %v1260 = vshrl.u32 %v1259, 7
    %v1261 = vsub.s32 0, %v1260
    %v1262 = vrot.slane %v1257, %v1261
    %1264 = vmatprep.subr.mxu0 0.0
    %1265 = vmatpush1.msra.mxu0 %v1252
    %1266 = vmatprep.subr.mxu0 0.0
    %1267 = vmatpush1.msra.mxu0 %v1253
    %1268 = vmatprep.subr.mxu0 0.0
    %1269 = vmatpush1.msra.mxu0 %v1254
    %1270 = vmatprep.subr.mxu0 0.0
    %1271 = vmatpush1.msra.mxu0 %v1255
    %1272 = vmatprep.subr.mxu0 0.0
    %1273 = vmatpush1.msra.mxu0 0.0
    %1274 = vmatprep.subr.mxu0 0.0
    %1275 = vmatpush1.msra.mxu0 0.0
    %1276 = vmatprep.subr.mxu0 0.0
    %1277 = vmatpush1.msra.mxu0 0.0
    %1278 = vmatprep.subr.mxu0 0.0
    %1279 = vmatpush1.msra.mxu0 0.0
    %1280 = vmatprep.subr.mxu0 0.0
    %1281 = vmatpush1.msra.mxu0 0.0
    %1282 = vmatprep.subr.mxu0 0.0
    %1283 = vmatpush1.msra.mxu0 0.0
    %1284 = vmatprep.subr.mxu0 0.0
    %1285 = vmatpush1.msra.mxu0 0.0
    %1286 = vmatprep.subr.mxu0 0.0
    %1287 = vmatpush1.msra.mxu0 0.0
    %1288 = vmatprep.subr.mxu0 0.0
    %1289 = vmatpush1.msra.mxu0 0.0
    %1290 = vmatprep.subr.mxu0 0.0
    %1291 = vmatpush1.msra.mxu0 0.0
    %1292 = vmatprep.subr.mxu0 0.0
    %1293 = vmatpush1.msra.mxu0 0.0
    %1294 = vmatprep.subr.mxu0 0.0
    %1295 = vmatpush1.msra.mxu0 0.0
    %1296 = vmatprep.subr.mxu0 0.0
    %1297 = vmatpush1.msra.mxu0 0.0
    %1298 = vmatprep.subr.mxu0 0.0
    %1299 = vmatpush1.msra.mxu0 0.0
    %1300 = vmatprep.subr.mxu0 0.0
    %1301 = vmatpush1.msra.mxu0 0.0
    %1302 = vmatprep.subr.mxu0 0.0
    %1303 = vmatpush1.msra.mxu0 0.0
    %1304 = vmatprep.subr.mxu0 0.0
    %1305 = vmatpush1.msra.mxu0 0.0
    %1306 = vmatprep.subr.mxu0 0.0
    %1307 = vmatpush1.msra.mxu0 0.0
    %1308 = vmatprep.subr.mxu0 0.0
    %1309 = vmatpush1.msra.mxu0 0.0
    %1310 = vmatprep.subr.mxu0 0.0
    %1311 = vmatpush1.msra.mxu0 0.0
    %1312 = vmatprep.subr.mxu0 0.0
    %1313 = vmatpush1.msra.mxu0 0.0
    %1314 = vmatprep.subr.mxu0 0.0
    %1315 = vmatpush1.msra.mxu0 0.0
    %1316 = vmatprep.subr.mxu0 0.0
    %1317 = vmatpush1.msra.mxu0 0.0
    %1318 = vmatprep.subr.mxu0 0.0
    %1319 = vmatpush1.msra.mxu0 0.0
    %1320 = vmatprep.subr.mxu0 0.0
    %1321 = vmatpush1.msra.mxu0 0.0
    %1322 = vmatprep.subr.mxu0 0.0
    %1323 = vmatpush1.msra.mxu0 0.0
    %1324 = vmatprep.subr.mxu0 0.0
    %1325 = vmatpush1.msra.mxu0 0.0
    %1326 = vmatprep.subr.mxu0 0.0
    %1327 = vmatpush1.msra.mxu0 0.0
    %1328 = vmatprep.mubr.f32.mxu0 0.0
    %1329 = vmatmul.mubr.f32.gmra.mrb[0].mxu0 %v608
    %v1330 = vpop.f32.mrb[0].mxu0
    %v1331 = vadd.f32 %v1262, %v1330
    %v1332 = vpop.f32.mrb[0].mxu0
    %1333 = vdwg.mxu0
    %v1335 = vsel %vm842, %v1165, 0
    %v1338 = vsel %vm842, %v1248, 0
    %1340 = vmatprep.subr.mxu0 0.0
    %1341 = vmatpush1.xpose.msra.mxu0 %v1338
    %1342 = vmatprep.subr.mxu0 0.0
    %1343 = vmatpush1.xpose.msra.mxu0 0.0
    %1344 = vmatprep.subr.mxu0 0.0
    %1345 = vmatpush1.xpose.msra.mxu0 0.0
    %1346 = vmatprep.subr.mxu0 0.0
    %1347 = vmatpush1.xpose.msra.mxu0 0.0
    %1348 = vmatprep.subr.mxu0 0.0
    %1349 = vmatpush1.xpose.msra.mxu0 0.0
    %1350 = vmatprep.subr.mxu0 0.0
    %1351 = vmatpush1.xpose.msra.mxu0 0.0
    %1352 = vmatprep.subr.mxu0 0.0
    %1353 = vmatpush1.xpose.msra.mxu0 0.0
    %1354 = vmatprep.subr.mxu0 0.0
    %1355 = vmatpush1.xpose.msra.mxu0 0.0
    %1356 = vmatprep.subr.mxu0 0.0
    %1357 = vmatpush1.xpose.msra.mxu0 0.0
    %1358 = vmatprep.subr.mxu0 0.0
    %1359 = vmatpush1.xpose.msra.mxu0 0.0
    %1360 = vmatprep.subr.mxu0 0.0
    %1361 = vmatpush1.xpose.msra.mxu0 0.0
    %1362 = vmatprep.subr.mxu0 0.0
    %1363 = vmatpush1.xpose.msra.mxu0 0.0
    %1364 = vmatprep.subr.mxu0 0.0
    %1365 = vmatpush1.xpose.msra.mxu0 0.0
    %1366 = vmatprep.subr.mxu0 0.0
    %1367 = vmatpush1.xpose.msra.mxu0 0.0
    %1368 = vmatprep.subr.mxu0 0.0
    %1369 = vmatpush1.xpose.msra.mxu0 0.0
    %1370 = vmatprep.subr.mxu0 0.0
    %1371 = vmatpush1.xpose.msra.mxu0 0.0
    %1372 = vmatprep.subr.mxu0 0.0
    %1373 = vmatpush1.xpose.msra.mxu0 0.0
    %1374 = vmatprep.subr.mxu0 0.0
    %1375 = vmatpush1.xpose.msra.mxu0 0.0
    %1376 = vmatprep.subr.mxu0 0.0
    %1377 = vmatpush1.xpose.msra.mxu0 0.0
    %1378 = vmatprep.subr.mxu0 0.0
    %1379 = vmatpush1.xpose.msra.mxu0 0.0
    %1380 = vmatprep.subr.mxu0 0.0
    %1381 = vmatpush1.xpose.msra.mxu0 0.0
    %1382 = vmatprep.subr.mxu0 0.0
    %1383 = vmatpush1.xpose.msra.mxu0 0.0
    %1384 = vmatprep.subr.mxu0 0.0
    %1385 = vmatpush1.xpose.msra.mxu0 0.0
    %1386 = vmatprep.subr.mxu0 0.0
    %1387 = vmatpush1.xpose.msra.mxu0 0.0
    %1388 = vmatprep.subr.mxu0 0.0
    %1389 = vmatpush1.xpose.msra.mxu0 0.0
    %1390 = vmatprep.subr.mxu0 0.0
    %1391 = vmatpush1.xpose.msra.mxu0 0.0
    %1392 = vmatprep.subr.mxu0 0.0
    %1393 = vmatpush1.xpose.msra.mxu0 0.0
    %1394 = vmatprep.subr.mxu0 0.0
    %1395 = vmatpush1.xpose.msra.mxu0 0.0
    %1396 = vmatprep.subr.mxu0 0.0
    %1397 = vmatpush1.xpose.msra.mxu0 0.0
    %1398 = vmatprep.subr.mxu0 0.0
    %1399 = vmatpush1.xpose.msra.mxu0 0.0
    %1400 = vmatprep.subr.mxu0 0.0
    %1401 = vmatpush1.xpose.msra.mxu0 0.0
    %1402 = vmatprep.subr.mxu0 0.0
    %1403 = vmatpush1.xpose.msra.mxu0 0.0
    %1404 = vmatprep.mubr.f32.mxu0 0.0
    %1405 = vmatmul.mubr.f32.gmra.mrb[0].mxu0 %v1335
    %v1406 = vpop.f32.mrb[0].mxu0
    %v1407 = vadd.f32 0.0, %v1406
    %v1408 = vpop.f32.mrb[0].mxu0
    %1409 = vdwg.mxu0
    %v1410 = vmul.f32 %v1407, 0.35355338
    %v1411 = vsel %vm842, %v1410, -inf
    %1412 = vmax.xlane.f32.xlu0 %v1411
    %v1413 = vpop.xlane.xlu0 %1412
    %v1414 = vsub.f32 %v1410, %v1413
    %v1415 = vmul.f32 %v1414, 1.442695
    %v1416 = vpow.pop %v1415
    %v1417 = vsel %vm842, %v1416, 0.0
    %1418 = vadd.xlane.f32.xlu0 %v1417
    %v1419 = vpop.xlane.xlu0 %1418
    %v1420 = vrcp.pop %v1419
    %v1421 = vmul.f32 %v1416, %v1420
    %v1423 = vsel %vm842, %v1421, 0
    %1425 = vmatprep.subr.mxu0 0.0
    %1426 = vmatpush1.msra.mxu0 %v1331
    %1427 = vmatprep.subr.mxu0 0.0
    %1428 = vmatpush1.msra.mxu0 0.0
    %1429 = vmatprep.subr.mxu0 0.0
    %1430 = vmatpush1.msra.mxu0 0.0
    %1431 = vmatprep.subr.mxu0 0.0
    %1432 = vmatpush1.msra.mxu0 0.0
    %1433 = vmatprep.subr.mxu0 0.0
    %1434 = vmatpush1.msra.mxu0 0.0
    %1435 = vmatprep.subr.mxu0 0.0
    %1436 = vmatpush1.msra.mxu0 0.0
    %1437 = vmatprep.subr.mxu0 0.0
    %1438 = vmatpush1.msra.mxu0 0.0
    %1439 = vmatprep.subr.mxu0 0.0
    %1440 = vmatpush1.msra.mxu0 0.0
    %1441 = vmatprep.subr.mxu0 0.0
    %1442 = vmatpush1.msra.mxu0 0.0
    %1443 = vmatprep.subr.mxu0 0.0
    %1444 = vmatpush1.msra.mxu0 0.0
    %1445 = vmatprep.subr.mxu0 0.0
    %1446 = vmatpush1.msra.mxu0 0.0
    %1447 = vmatprep.subr.mxu0 0.0
    %1448 = vmatpush1.msra.mxu0 0.0
    %1449 = vmatprep.subr.mxu0 0.0
    %1450 = vmatpush1.msra.mxu0 0.0
    %1451 = vmatprep.subr.mxu0 0.0
    %1452 = vmatpush1.msra.mxu0 0.0
    %1453 = vmatprep.subr.mxu0 0.0
    %1454 = vmatpush1.msra.mxu0 0.0
    %1455 = vmatprep.subr.mxu0 0.0
    %1456 = vmatpush1.msra.mxu0 0.0
    %1457 = vmatprep.subr.mxu0 0.0
    %1458 = vmatpush1.msra.mxu0 0.0
    %1459 = vmatprep.subr.mxu0 0.0
    %1460 = vmatpush1.msra.mxu0 0.0
    %1461 = vmatprep.subr.mxu0 0.0
    %1462 = vmatpush1.msra.mxu0 0.0
    %1463 = vmatprep.subr.mxu0 0.0
    %1464 = vmatpush1.msra.mxu0 0.0
    %1465 = vmatprep.subr.mxu0 0.0
    %1466 = vmatpush1.msra.mxu0 0.0
    %1467 = vmatprep.subr.mxu0 0.0
    %1468 = vmatpush1.msra.mxu0 0.0
    %1469 = vmatprep.subr.mxu0 0.0
    %1470 = vmatpush1.msra.mxu0 0.0
    %1471 = vmatprep.subr.mxu0 0.0
    %1472 = vmatpush1.msra.mxu0 0.0
    %1473 = vmatprep.subr.mxu0 0.0
    %1474 = vmatpush1.msra.mxu0 0.0
    %1475 = vmatprep.subr.mxu0 0.0
    %1476 = vmatpush1.msra.mxu0 0.0
    %1477 = vmatprep.subr.mxu0 0.0
    %1478 = vmatpush1.msra.mxu0 0.0
    %1479 = vmatprep.subr.mxu0 0.0
    %1480 = vmatpush1.msra.mxu0 0.0
    %1481 = vmatprep.subr.mxu0 0.0
    %1482 = vmatpush1.msra.mxu0 0.0
    %1483 = vmatprep.subr.mxu0 0.0
    %1484 = vmatpush1.msra.mxu0 0.0
    %1485 = vmatprep.subr.mxu0 0.0
    %1486 = vmatpush1.msra.mxu0 0.0
    %1487 = vmatprep.subr.mxu0 0.0
    %1488 = vmatpush1.msra.mxu0 0.0
    %1489 = vmatprep.mubr.f32.mxu0 0.0
    %1490 = vmatmul.mubr.f32.gmra.mrb[0].mxu0 %v1423
    %v1491 = vpop.f32.mrb[0].mxu0
    %v1492 = vadd.f32 0.0, %v1491
    %v1493 = vpop.f32.mrb[0].mxu0
    %1494 = vdwg.mxu0
    %s1495 = scalar_lea.vmem %s12, 8
    %v1496 = vld [vmem:[%s1495] sm:$0xff]
    %v1498 = vsel %vm842, %v1492, 0
    %1500 = vmatprep.subr.mxu0 0.0
    %1501 = vmatpush1.msra.mxu0 %v1496
    %1502 = vmatprep.subr.mxu0 0.0
    %1503 = vmatpush1.msra.mxu0 0.0
    %1504 = vmatprep.subr.mxu0 0.0
    %1505 = vmatpush1.msra.mxu0 0.0
    %1506 = vmatprep.subr.mxu0 0.0
    %1507 = vmatpush1.msra.mxu0 0.0
    %1508 = vmatprep.subr.mxu0 0.0
    %1509 = vmatpush1.msra.mxu0 0.0
    %1510 = vmatprep.subr.mxu0 0.0
    %1511 = vmatpush1.msra.mxu0 0.0
    %1512 = vmatprep.subr.mxu0 0.0
    %1513 = vmatpush1.msra.mxu0 0.0
    %1514 = vmatprep.subr.mxu0 0.0
    %1515 = vmatpush1.msra.mxu0 0.0
    %1516 = vmatprep.subr.mxu0 0.0
    %1517 = vmatpush1.msra.mxu0 0.0
    %1518 = vmatprep.subr.mxu0 0.0
    %1519 = vmatpush1.msra.mxu0 0.0
    %1520 = vmatprep.subr.mxu0 0.0
    %1521 = vmatpush1.msra.mxu0 0.0
    %1522 = vmatprep.subr.mxu0 0.0
    %1523 = vmatpush1.msra.mxu0 0.0
    %1524 = vmatprep.subr.mxu0 0.0
    %1525 = vmatpush1.msra.mxu0 0.0
    %1526 = vmatprep.subr.mxu0 0.0
    %1527 = vmatpush1.msra.mxu0 0.0
    %1528 = vmatprep.subr.mxu0 0.0
    %1529 = vmatpush1.msra.mxu0 0.0
    %1530 = vmatprep.subr.mxu0 0.0
    %1531 = vmatpush1.msra.mxu0 0.0
    %1532 = vmatprep.subr.mxu0 0.0
    %1533 = vmatpush1.msra.mxu0 0.0
    %1534 = vmatprep.subr.mxu0 0.0
    %1535 = vmatpush1.msra.mxu0 0.0
    %1536 = vmatprep.subr.mxu0 0.0
    %1537 = vmatpush1.msra.mxu0 0.0
    %1538 = vmatprep.subr.mxu0 0.0
    %1539 = vmatpush1.msra.mxu0 0.0
    %1540 = vmatprep.subr.mxu0 0.0
    %1541 = vmatpush1.msra.mxu0 0.0
    %1542 = vmatprep.subr.mxu0 0.0
    %1543 = vmatpush1.msra.mxu0 0.0
    %1544 = vmatprep.subr.mxu0 0.0
    %1545 = vmatpush1.msra.mxu0 0.0
    %1546 = vmatprep.subr.mxu0 0.0
    %1547 = vmatpush1.msra.mxu0 0.0
    %1548 = vmatprep.subr.mxu0 0.0
    %1549 = vmatpush1.msra.mxu0 0.0
    %1550 = vmatprep.subr.mxu0 0.0
    %1551 = vmatpush1.msra.mxu0 0.0
    %1552 = vmatprep.subr.mxu0 0.0
    %1553 = vmatpush1.msra.mxu0 0.0
    %1554 = vmatprep.subr.mxu0 0.0
    %1555 = vmatpush1.msra.mxu0 0.0
    %1556 = vmatprep.subr.mxu0 0.0
    %1557 = vmatpush1.msra.mxu0 0.0
    %1558 = vmatprep.subr.mxu0 0.0
    %1559 = vmatpush1.msra.mxu0 0.0
    %1560 = vmatprep.subr.mxu0 0.0
    %1561 = vmatpush1.msra.mxu0 0.0
    %1562 = vmatprep.subr.mxu0 0.0
    %1563 = vmatpush1.msra.mxu0 0.0
    %1564 = vmatprep.mubr.f32.mxu0 0.0
    %1565 = vmatmul.mubr.f32.gmra.mrb[0].mxu0 %v1498
    %v1566 = vpop.f32.mrb[0].mxu0
    %v1567 = vadd.f32 0.0, %v1566
    %v1568 = vpop.f32.mrb[0].mxu0
    %1569 = vdwg.mxu0
    %v1570 = vadd.f32 %v1084, %v1567
    %s1571 = scalar_lea.vmem %s6, 64
    %v1572 = vld [vmem:[%s1571] sm:$0xff]
    %v1573 = vld [vmem:[%s1571 + $0x8] sm:$0xff]
    %v1574 = vld [vmem:[%s1571 + $0x10] sm:$0xff]
    %v1575 = vld [vmem:[%s1571 + $0x18] sm:$0xff]
    %s1576 = scalar_lea.vmem %s7, 2
    %v1577 = vld [vmem:[%s1576] sm:$0x1]
    %v1579 = vlaneseq
    %v1580 = vshrl.u32 %v1579, 7
    %v1581 = vsub.s32 0, %v1580
    %v1582 = vrot.slane %v1577, %v1581
    %1584 = vmatprep.subr.mxu0 0.0
    %1585 = vmatpush1.msra.mxu0 %v1572
    %1586 = vmatprep.subr.mxu0 0.0
    %1587 = vmatpush1.msra.mxu0 %v1573
    %1588 = vmatprep.subr.mxu0 0.0
    %1589 = vmatpush1.msra.mxu0 %v1574
    %1590 = vmatprep.subr.mxu0 0.0
    %1591 = vmatpush1.msra.mxu0 %v1575
    %1592 = vmatprep.subr.mxu0 0.0
    %1593 = vmatpush1.msra.mxu0 0.0
    %1594 = vmatprep.subr.mxu0 0.0
    %1595 = vmatpush1.msra.mxu0 0.0
    %1596 = vmatprep.subr.mxu0 0.0
    %1597 = vmatpush1.msra.mxu0 0.0
    %1598 = vmatprep.subr.mxu0 0.0
    %1599 = vmatpush1.msra.mxu0 0.0
    %1600 = vmatprep.subr.mxu0 0.0
    %1601 = vmatpush1.msra.mxu0 0.0
    %1602 = vmatprep.subr.mxu0 0.0
    %1603 = vmatpush1.msra.mxu0 0.0
    %1604 = vmatprep.subr.mxu0 0.0
    %1605 = vmatpush1.msra.mxu0 0.0
    %1606 = vmatprep.subr.mxu0 0.0
    %1607 = vmatpush1.msra.mxu0 0.0
    %1608 = vmatprep.subr.mxu0 0.0
    %1609 = vmatpush1.msra.mxu0 0.0
    %1610 = vmatprep.subr.mxu0 0.0
    %1611 = vmatpush1.msra.mxu0 0.0
    %1612 = vmatprep.subr.mxu0 0.0
    %1613 = vmatpush1.msra.mxu0 0.0
    %1614 = vmatprep.subr.mxu0 0.0
    %1615 = vmatpush1.msra.mxu0 0.0
    %1616 = vmatprep.subr.mxu0 0.0
    %1617 = vmatpush1.msra.mxu0 0.0
    %1618 = vmatprep.subr.mxu0 0.0
    %1619 = vmatpush1.msra.mxu0 0.0
    %1620 = vmatprep.subr.mxu0 0.0
    %1621 = vmatpush1.msra.mxu0 0.0
    %1622 = vmatprep.subr.mxu0 0.0
    %1623 = vmatpush1.msra.mxu0 0.0
    %1624 = vmatprep.subr.mxu0 0.0
    %1625 = vmatpush1.msra.mxu0 0.0
    %1626 = vmatprep.subr.mxu0 0.0
    %1627 = vmatpush1.msra.mxu0 0.0
    %1628 = vmatprep.subr.mxu0 0.0
    %1629 = vmatpush1.msra.mxu0 0.0
    %1630 = vmatprep.subr.mxu0 0.0
    %1631 = vmatpush1.msra.mxu0 0.0
    %1632 = vmatprep.subr.mxu0 0.0
    %1633 = vmatpush1.msra.mxu0 0.0
    %1634 = vmatprep.subr.mxu0 0.0
    %1635 = vmatpush1.msra.mxu0 0.0
    %1636 = vmatprep.subr.mxu0 0.0
    %1637 = vmatpush1.msra.mxu0 0.0
    %1638 = vmatprep.subr.mxu0 0.0
    %1639 = vmatpush1.msra.mxu0 0.0
    %1640 = vmatprep.subr.mxu0 0.0
    %1641 = vmatpush1.msra.mxu0 0.0
    %1642 = vmatprep.subr.mxu0 0.0
    %1643 = vmatpush1.msra.mxu0 0.0
    %1644 = vmatprep.subr.mxu0 0.0
    %1645 = vmatpush1.msra.mxu0 0.0
    %1646 = vmatprep.subr.mxu0 0.0
    %1647 = vmatpush1.msra.mxu0 0.0
    %1648 = vmatprep.mubr.f32.mxu0 0.0
    %1649 = vmatmul.mubr.f32.gmra.mrb[0].mxu0 %v608
    %v1650 = vpop.f32.mrb[0].mxu0
    %v1651 = vadd.f32 %v1582, %v1650
    %v1652 = vpop.f32.mrb[0].mxu0
    %1653 = vdwg.mxu0
    %s1654 = scalar_lea.vmem %s8, 64
    %v1655 = vld [vmem:[%s1654] sm:$0xff]
    %v1656 = vld [vmem:[%s1654 + $0x8] sm:$0xff]
    %v1657 = vld [vmem:[%s1654 + $0x10] sm:$0xff]
    %v1658 = vld [vmem:[%s1654 + $0x18] sm:$0xff]
    %s1659 = scalar_lea.vmem %s9, 2
    %v1660 = vld [vmem:[%s1659] sm:$0x1]
    %v1662 = vlaneseq
    %v1663 = vshrl.u32 %v1662, 7
    %v1664 = vsub.s32 0, %v1663
    %v1665 = vrot.slane %v1660, %v1664
    %1667 = vmatprep.subr.mxu0 0.0
    %1668 = vmatpush1.msra.mxu0 %v1655
    %1669 = vmatprep.subr.mxu0 0.0
    %1670 = vmatpush1.msra.mxu0 %v1656
    %1671 = vmatprep.subr.mxu0 0.0
    %1672 = vmatpush1.msra.mxu0 %v1657
    %1673 = vmatprep.subr.mxu0 0.0
    %1674 = vmatpush1.msra.mxu0 %v1658
    %1675 = vmatprep.subr.mxu0 0.0
    %1676 = vmatpush1.msra.mxu0 0.0
    %1677 = vmatprep.subr.mxu0 0.0
    %1678 = vmatpush1.msra.mxu0 0.0
    %1679 = vmatprep.subr.mxu0 0.0
    %1680 = vmatpush1.msra.mxu0 0.0
    %1681 = vmatprep.subr.mxu0 0.0
    %1682 = vmatpush1.msra.mxu0 0.0
    %1683 = vmatprep.subr.mxu0 0.0
    %1684 = vmatpush1.msra.mxu0 0.0
    %1685 = vmatprep.subr.mxu0 0.0
    %1686 = vmatpush1.msra.mxu0 0.0
    %1687 = vmatprep.subr.mxu0 0.0
    %1688 = vmatpush1.msra.mxu0 0.0
    %1689 = vmatprep.subr.mxu0 0.0
    %1690 = vmatpush1.msra.mxu0 0.0
    %1691 = vmatprep.subr.mxu0 0.0
    %1692 = vmatpush1.msra.mxu0 0.0
    %1693 = vmatprep.subr.mxu0 0.0
    %1694 = vmatpush1.msra.mxu0 0.0
    %1695 = vmatprep.subr.mxu0 0.0
    %1696 = vmatpush1.msra.mxu0 0.0
    %1697 = vmatprep.subr.mxu0 0.0
    %1698 = vmatpush1.msra.mxu0 0.0
    %1699 = vmatprep.subr.mxu0 0.0
    %1700 = vmatpush1.msra.mxu0 0.0
    %1701 = vmatprep.subr.mxu0 0.0
    %1702 = vmatpush1.msra.mxu0 0.0
    %1703 = vmatprep.subr.mxu0 0.0
    %1704 = vmatpush1.msra.mxu0 0.0
    %1705 = vmatprep.subr.mxu0 0.0
    %1706 = vmatpush1.msra.mxu0 0.0
    %1707 = vmatprep.subr.mxu0 0.0
    %1708 = vmatpush1.msra.mxu0 0.0
    %1709 = vmatprep.subr.mxu0 0.0
    %1710 = vmatpush1.msra.mxu0 0.0
    %1711 = vmatprep.subr.mxu0 0.0
    %1712 = vmatpush1.msra.mxu0 0.0
    %1713 = vmatprep.subr.mxu0 0.0
    %1714 = vmatpush1.msra.mxu0 0.0
    %1715 = vmatprep.subr.mxu0 0.0
    %1716 = vmatpush1.msra.mxu0 0.0
    %1717 = vmatprep.subr.mxu0 0.0
    %1718 = vmatpush1.msra.mxu0 0.0
    %1719 = vmatprep.subr.mxu0 0.0
    %1720 = vmatpush1.msra.mxu0 0.0
    %1721 = vmatprep.subr.mxu0 0.0
    %1722 = vmatpush1.msra.mxu0 0.0
    %1723 = vmatprep.subr.mxu0 0.0
    %1724 = vmatpush1.msra.mxu0 0.0
    %1725 = vmatprep.subr.mxu0 0.0
    %1726 = vmatpush1.msra.mxu0 0.0
    %1727 = vmatprep.subr.mxu0 0.0
    %1728 = vmatpush1.msra.mxu0 0.0
    %1729 = vmatprep.subr.mxu0 0.0
    %1730 = vmatpush1.msra.mxu0 0.0
    %1731 = vmatprep.mubr.f32.mxu0 0.0
    %1732 = vmatmul.mubr.f32.gmra.mrb[0].mxu0 %v608
    %v1733 = vpop.f32.mrb[0].mxu0
    %v1734 = vadd.f32 %v1665, %v1733
    %v1735 = vpop.f32.mrb[0].mxu0
    %1736 = vdwg.mxu0
    %s1737 = scalar_lea.vmem %s10, 64
    %v1738 = vld [vmem:[%s1737] sm:$0xff]
    %v1739 = vld [vmem:[%s1737 + $0x8] sm:$0xff]
    %v1740 = vld [vmem:[%s1737 + $0x10] sm:$0xff]
    %v1741 = vld [vmem:[%s1737 + $0x18] sm:$0xff]
    %s1742 = scalar_lea.vmem %s11, 2
    %v1743 = vld [vmem:[%s1742] sm:$0x1]
    %v1745 = vlaneseq
    %v1746 = vshrl.u32 %v1745, 7
    %v1747 = vsub.s32 0, %v1746
    %v1748 = vrot.slane %v1743, %v1747
    %1750 = vmatprep.subr.mxu0 0.0
    %1751 = vmatpush1.msra.mxu0 %v1738
    %1752 = vmatprep.subr.mxu0 0.0
    %1753 = vmatpush1.msra.mxu0 %v1739
    %1754 = vmatprep.subr.mxu0 0.0
    %1755 = vmatpush1.msra.mxu0 %v1740
    %1756 = vmatprep.subr.mxu0 0.0
    %1757 = vmatpush1.msra.mxu0 %v1741
    %1758 = vmatprep.subr.mxu0 0.0
    %1759 = vmatpush1.msra.mxu0 0.0
    %1760 = vmatprep.subr.mxu0 0.0
    %1761 = vmatpush1.msra.mxu0 0.0
    %1762 = vmatprep.subr.mxu0 0.0
    %1763 = vmatpush1.msra.mxu0 0.0
    %1764 = vmatprep.subr.mxu0 0.0
    %1765 = vmatpush1.msra.mxu0 0.0
    %1766 = vmatprep.subr.mxu0 0.0
    %1767 = vmatpush1.msra.mxu0 0.0
    %1768 = vmatprep.subr.mxu0 0.0
    %1769 = vmatpush1.msra.mxu0 0.0
    %1770 = vmatprep.subr.mxu0 0.0
    %1771 = vmatpush1.msra.mxu0 0.0
    %1772 = vmatprep.subr.mxu0 0.0
    %1773 = vmatpush1.msra.mxu0 0.0
    %1774 = vmatprep.subr.mxu0 0.0
    %1775 = vmatpush1.msra.mxu0 0.0
    %1776 = vmatprep.subr.mxu0 0.0
    %1777 = vmatpush1.msra.mxu0 0.0
    %1778 = vmatprep.subr.mxu0 0.0
    %1779 = vmatpush1.msra.mxu0 0.0
    %1780 = vmatprep.subr.mxu0 0.0
    %1781 = vmatpush1.msra.mxu0 0.0
    %1782 = vmatprep.subr.mxu0 0.0
    %1783 = vmatpush1.msra.mxu0 0.0
    %1784 = vmatprep.subr.mxu0 0.0
    %1785 = vmatpush1.msra.mxu0 0.0
    %1786 = vmatprep.subr.mxu0 0.0
    %1787 = vmatpush1.msra.mxu0 0.0
    %1788 = vmatprep.subr.mxu0 0.0
    %1789 = vmatpush1.msra.mxu0 0.0
    %1790 = vmatprep.subr.mxu0 0.0
    %1791 = vmatpush1.msra.mxu0 0.0
    %1792 = vmatprep.subr.mxu0 0.0
    %1793 = vmatpush1.msra.mxu0 0.0
    %1794 = vmatprep.subr.mxu0 0.0
    %1795 = vmatpush1.msra.mxu0 0.0
    %1796 = vmatprep.subr.mxu0 0.0
    %1797 = vmatpush1.msra.mxu0 0.0
    %1798 = vmatprep.subr.mxu0 0.0
    %1799 = vmatpush1.msra.mxu0 0.0
    %1800 = vmatprep.subr.mxu0 0.0
    %1801 = vmatpush1.msra.mxu0 0.0
    %1802 = vmatprep.subr.mxu0 0.0
    %1803 = vmatpush1.msra.mxu0 0.0
    %1804 = vmatprep.subr.mxu0 0.0
    %1805 = vmatpush1.msra.mxu0 0.0
    %1806 = vmatprep.subr.mxu0 0.0
    %1807 = vmatpush1.msra.mxu0 0.0
    %1808 = vmatprep.subr.mxu0 0.0
    %1809 = vmatpush1.msra.mxu0 0.0
    %1810 = vmatprep.subr.mxu0 0.0
    %1811 = vmatpush1.msra.mxu0 0.0
    %1812 = vmatprep.subr.mxu0 0.0
    %1813 = vmatpush1.msra.mxu0 0.0
    %1814 = vmatprep.mubr.f32.mxu0 0.0
    %1815 = vmatmul.mubr.f32.gmra.mrb[0].mxu0 %v608
    %v1816 = vpop.f32.mrb[0].mxu0
    %v1817 = vadd.f32 %v1748, %v1816
    %v1818 = vpop.f32.mrb[0].mxu0
    %1819 = vdwg.mxu0
    %v1821 = vsel %vm842, %v1651, 0
    %v1824 = vsel %vm842, %v1734, 0
    %1826 = vmatprep.subr.mxu0 0.0
    %1827 = vmatpush1.xpose.msra.mxu0 %v1824
    %1828 = vmatprep.subr.mxu0 0.0
    %1829 = vmatpush1.xpose.msra.mxu0 0.0
    %1830 = vmatprep.subr.mxu0 0.0
    %1831 = vmatpush1.xpose.msra.mxu0 0.0
    %1832 = vmatprep.subr.mxu0 0.0
    %1833 = vmatpush1.xpose.msra.mxu0 0.0
    %1834 = vmatprep.subr.mxu0 0.0
    %1835 = vmatpush1.xpose.msra.mxu0 0.0
    %1836 = vmatprep.subr.mxu0 0.0
    %1837 = vmatpush1.xpose.msra.mxu0 0.0
    %1838 = vmatprep.subr.mxu0 0.0
    %1839 = vmatpush1.xpose.msra.mxu0 0.0
    %1840 = vmatprep.subr.mxu0 0.0
    %1841 = vmatpush1.xpose.msra.mxu0 0.0
    %1842 = vmatprep.subr.mxu0 0.0
    %1843 = vmatpush1.xpose.msra.mxu0 0.0
    %1844 = vmatprep.subr.mxu0 0.0
    %1845 = vmatpush1.xpose.msra.mxu0 0.0
    %1846 = vmatprep.subr.mxu0 0.0
    %1847 = vmatpush1.xpose.msra.mxu0 0.0
    %1848 = vmatprep.subr.mxu0 0.0
    %1849 = vmatpush1.xpose.msra.mxu0 0.0
    %1850 = vmatprep.subr.mxu0 0.0
    %1851 = vmatpush1.xpose.msra.mxu0 0.0
    %1852 = vmatprep.subr.mxu0 0.0
    %1853 = vmatpush1.xpose.msra.mxu0 0.0
    %1854 = vmatprep.subr.mxu0 0.0
    %1855 = vmatpush1.xpose.msra.mxu0 0.0
    %1856 = vmatprep.subr.mxu0 0.0
    %1857 = vmatpush1.xpose.msra.mxu0 0.0
    %1858 = vmatprep.subr.mxu0 0.0
    %1859 = vmatpush1.xpose.msra.mxu0 0.0
    %1860 = vmatprep.subr.mxu0 0.0
    %1861 = vmatpush1.xpose.msra.mxu0 0.0
    %1862 = vmatprep.subr.mxu0 0.0
    %1863 = vmatpush1.xpose.msra.mxu0 0.0
    %1864 = vmatprep.subr.mxu0 0.0
    %1865 = vmatpush1.xpose.msra.mxu0 0.0
    %1866 = vmatprep.subr.mxu0 0.0
    %1867 = vmatpush1.xpose.msra.mxu0 0.0
    %1868 = vmatprep.subr.mxu0 0.0
    %1869 = vmatpush1.xpose.msra.mxu0 0.0
    %1870 = vmatprep.subr.mxu0 0.0
    %1871 = vmatpush1.xpose.msra.mxu0 0.0
    %1872 = vmatprep.subr.mxu0 0.0
    %1873 = vmatpush1.xpose.msra.mxu0 0.0
    %1874 = vmatprep.subr.mxu0 0.0
    %1875 = vmatpush1.xpose.msra.mxu0 0.0
    %1876 = vmatprep.subr.mxu0 0.0
    %1877 = vmatpush1.xpose.msra.mxu0 0.0
    %1878 = vmatprep.subr.mxu0 0.0
    %1879 = vmatpush1.xpose.msra.mxu0 0.0
    %1880 = vmatprep.subr.mxu0 0.0
    %1881 = vmatpush1.xpose.msra.mxu0 0.0
    %1882 = vmatprep.subr.mxu0 0.0
    %1883 = vmatpush1.xpose.msra.mxu0 0.0
    %1884 = vmatprep.subr.mxu0 0.0
    %1885 = vmatpush1.xpose.msra.mxu0 0.0
    %1886 = vmatprep.subr.mxu0 0.0
    %1887 = vmatpush1.xpose.msra.mxu0 0.0
    %1888 = vmatprep.subr.mxu0 0.0
    %1889 = vmatpush1.xpose.msra.mxu0 0.0
    %1890 = vmatprep.mubr.f32.mxu0 0.0
    %1891 = vmatmul.mubr.f32.gmra.mrb[0].mxu0 %v1821
    %v1892 = vpop.f32.mrb[0].mxu0
    %v1893 = vadd.f32 0.0, %v1892
    %v1894 = vpop.f32.mrb[0].mxu0
    %1895 = vdwg.mxu0
    %v1896 = vmul.f32 %v1893, 0.35355338
    %v1897 = vsel %vm842, %v1896, -inf
    %1898 = vmax.xlane.f32.xlu0 %v1897
    %v1899 = vpop.xlane.xlu0 %1898
    %v1900 = vsub.f32 %v1896, %v1899
    %v1901 = vmul.f32 %v1900, 1.442695
    %v1902 = vpow.pop %v1901
    %v1903 = vsel %vm842, %v1902, 0.0
    %1904 = vadd.xlane.f32.xlu0 %v1903
    %v1905 = vpop.xlane.xlu0 %1904
    %v1906 = vrcp.pop %v1905
    %v1907 = vmul.f32 %v1902, %v1906
    %v1909 = vsel %vm842, %v1907, 0
    %1911 = vmatprep.subr.mxu0 0.0
    %1912 = vmatpush1.msra.mxu0 %v1817
    %1913 = vmatprep.subr.mxu0 0.0
    %1914 = vmatpush1.msra.mxu0 0.0
    %1915 = vmatprep.subr.mxu0 0.0
    %1916 = vmatpush1.msra.mxu0 0.0
    %1917 = vmatprep.subr.mxu0 0.0
    %1918 = vmatpush1.msra.mxu0 0.0
    %1919 = vmatprep.subr.mxu0 0.0
    %1920 = vmatpush1.msra.mxu0 0.0
    %1921 = vmatprep.subr.mxu0 0.0
    %1922 = vmatpush1.msra.mxu0 0.0
    %1923 = vmatprep.subr.mxu0 0.0
    %1924 = vmatpush1.msra.mxu0 0.0
    %1925 = vmatprep.subr.mxu0 0.0
    %1926 = vmatpush1.msra.mxu0 0.0
    %1927 = vmatprep.subr.mxu0 0.0
    %1928 = vmatpush1.msra.mxu0 0.0
    %1929 = vmatprep.subr.mxu0 0.0
    %1930 = vmatpush1.msra.mxu0 0.0
    %1931 = vmatprep.subr.mxu0 0.0
    %1932 = vmatpush1.msra.mxu0 0.0
    %1933 = vmatprep.subr.mxu0 0.0
    %1934 = vmatpush1.msra.mxu0 0.0
    %1935 = vmatprep.subr.mxu0 0.0
    %1936 = vmatpush1.msra.mxu0 0.0
    %1937 = vmatprep.subr.mxu0 0.0
    %1938 = vmatpush1.msra.mxu0 0.0
    %1939 = vmatprep.subr.mxu0 0.0
    %1940 = vmatpush1.msra.mxu0 0.0
    %1941 = vmatprep.subr.mxu0 0.0
    %1942 = vmatpush1.msra.mxu0 0.0
    %1943 = vmatprep.subr.mxu0 0.0
    %1944 = vmatpush1.msra.mxu0 0.0
    %1945 = vmatprep.subr.mxu0 0.0
    %1946 = vmatpush1.msra.mxu0 0.0
    %1947 = vmatprep.subr.mxu0 0.0
    %1948 = vmatpush1.msra.mxu0 0.0
    %1949 = vmatprep.subr.mxu0 0.0
    %1950 = vmatpush1.msra.mxu0 0.0
    %1951 = vmatprep.subr.mxu0 0.0
    %1952 = vmatpush1.msra.mxu0 0.0
    %1953 = vmatprep.subr.mxu0 0.0
    %1954 = vmatpush1.msra.mxu0 0.0
    %1955 = vmatprep.subr.mxu0 0.0
    %1956 = vmatpush1.msra.mxu0 0.0
    %1957 = vmatprep.subr.mxu0 0.0
    %1958 = vmatpush1.msra.mxu0 0.0
    %1959 = vmatprep.subr.mxu0 0.0
    %1960 = vmatpush1.msra.mxu0 0.0
    %1961 = vmatprep.subr.mxu0 0.0
    %1962 = vmatpush1.msra.mxu0 0.0
    %1963 = vmatprep.subr.mxu0 0.0
    %1964 = vmatpush1.msra.mxu0 0.0
    %1965 = vmatprep.subr.mxu0 0.0
    %1966 = vmatpush1.msra.mxu0 0.0
    %1967 = vmatprep.subr.mxu0 0.0
    %1968 = vmatpush1.msra.mxu0 0.0
    %1969 = vmatprep.subr.mxu0 0.0
    %1970 = vmatpush1.msra.mxu0 0.0
    %1971 = vmatprep.subr.mxu0 0.0
    %1972 = vmatpush1.msra.mxu0 0.0
    %1973 = vmatprep.subr.mxu0 0.0
    %1974 = vmatpush1.msra.mxu0 0.0
    %1975 = vmatprep.mubr.f32.mxu0 0.0
    %1976 = vmatmul.mubr.f32.gmra.mrb[0].mxu0 %v1909
    %v1977 = vpop.f32.mrb[0].mxu0
    %v1978 = vadd.f32 0.0, %v1977
    %v1979 = vpop.f32.mrb[0].mxu0
    %1980 = vdwg.mxu0
    %s1981 = scalar_lea.vmem %s12, 16
    %v1982 = vld [vmem:[%s1981] sm:$0xff]
    %v1984 = vsel %vm842, %v1978, 0
    %1986 = vmatprep.subr.mxu0 0.0
    %1987 = vmatpush1.msra.mxu0 %v1982
    %1988 = vmatprep.subr.mxu0 0.0
    %1989 = vmatpush1.msra.mxu0 0.0
    %1990 = vmatprep.subr.mxu0 0.0
    %1991 = vmatpush1.msra.mxu0 0.0
    %1992 = vmatprep.subr.mxu0 0.0
    %1993 = vmatpush1.msra.mxu0 0.0
    %1994 = vmatprep.subr.mxu0 0.0
    %1995 = vmatpush1.msra.mxu0 0.0
    %1996 = vmatprep.subr.mxu0 0.0
    %1997 = vmatpush1.msra.mxu0 0.0
    %1998 = vmatprep.subr.mxu0 0.0
    %1999 = vmatpush1.msra.mxu0 0.0
    %2000 = vmatprep.subr.mxu0 0.0
    %2001 = vmatpush1.msra.mxu0 0.0
    %2002 = vmatprep.subr.mxu0 0.0
    %2003 = vmatpush1.msra.mxu0 0.0
    %2004 = vmatprep.subr.mxu0 0.0
    %2005 = vmatpush1.msra.mxu0 0.0
    %2006 = vmatprep.subr.mxu0 0.0
    %2007 = vmatpush1.msra.mxu0 0.0
    %2008 = vmatprep.subr.mxu0 0.0
    %2009 = vmatpush1.msra.mxu0 0.0
    %2010 = vmatprep.subr.mxu0 0.0
    %2011 = vmatpush1.msra.mxu0 0.0
    %2012 = vmatprep.subr.mxu0 0.0
    %2013 = vmatpush1.msra.mxu0 0.0
    %2014 = vmatprep.subr.mxu0 0.0
    %2015 = vmatpush1.msra.mxu0 0.0
    %2016 = vmatprep.subr.mxu0 0.0
    %2017 = vmatpush1.msra.mxu0 0.0
    %2018 = vmatprep.subr.mxu0 0.0
    %2019 = vmatpush1.msra.mxu0 0.0
    %2020 = vmatprep.subr.mxu0 0.0
    %2021 = vmatpush1.msra.mxu0 0.0
    %2022 = vmatprep.subr.mxu0 0.0
    %2023 = vmatpush1.msra.mxu0 0.0
    %2024 = vmatprep.subr.mxu0 0.0
    %2025 = vmatpush1.msra.mxu0 0.0
    %2026 = vmatprep.subr.mxu0 0.0
    %2027 = vmatpush1.msra.mxu0 0.0
    %2028 = vmatprep.subr.mxu0 0.0
    %2029 = vmatpush1.msra.mxu0 0.0
    %2030 = vmatprep.subr.mxu0 0.0
    %2031 = vmatpush1.msra.mxu0 0.0
    %2032 = vmatprep.subr.mxu0 0.0
    %2033 = vmatpush1.msra.mxu0 0.0
    %2034 = vmatprep.subr.mxu0 0.0
    %2035 = vmatpush1.msra.mxu0 0.0
    %2036 = vmatprep.subr.mxu0 0.0
    %2037 = vmatpush1.msra.mxu0 0.0
    %2038 = vmatprep.subr.mxu0 0.0
    %2039 = vmatpush1.msra.mxu0 0.0
    %2040 = vmatprep.subr.mxu0 0.0
    %2041 = vmatpush1.msra.mxu0 0.0
    %2042 = vmatprep.subr.mxu0 0.0
    %2043 = vmatpush1.msra.mxu0 0.0
    %2044 = vmatprep.subr.mxu0 0.0
    %2045 = vmatpush1.msra.mxu0 0.0
    %2046 = vmatprep.subr.mxu0 0.0
    %2047 = vmatpush1.msra.mxu0 0.0
    %2048 = vmatprep.subr.mxu0 0.0
    %2049 = vmatpush1.msra.mxu0 0.0
    %2050 = vmatprep.mubr.f32.mxu0 0.0
    %2051 = vmatmul.mubr.f32.gmra.mrb[0].mxu0 %v1984
    %v2052 = vpop.f32.mrb[0].mxu0
    %v2053 = vadd.f32 0.0, %v2052
    %v2054 = vpop.f32.mrb[0].mxu0
    %2055 = vdwg.mxu0
    %v2056 = vadd.f32 %v1570, %v2053
    %s2057 = scalar_lea.vmem %s6, 96
    %v2058 = vld [vmem:[%s2057] sm:$0xff]
    %v2059 = vld [vmem:[%s2057 + $0x8] sm:$0xff]
    %v2060 = vld [vmem:[%s2057 + $0x10] sm:$0xff]
    %v2061 = vld [vmem:[%s2057 + $0x18] sm:$0xff]
    %s2062 = scalar_lea.vmem %s7, 3
    %v2063 = vld [vmem:[%s2062] sm:$0x1]
    %v2065 = vlaneseq
    %v2066 = vshrl.u32 %v2065, 7
    %v2067 = vsub.s32 0, %v2066
    %v2068 = vrot.slane %v2063, %v2067
    %2070 = vmatprep.subr.mxu0 0.0
    %2071 = vmatpush1.msra.mxu0 %v2058
    %2072 = vmatprep.subr.mxu0 0.0
    %2073 = vmatpush1.msra.mxu0 %v2059
    %2074 = vmatprep.subr.mxu0 0.0
    %2075 = vmatpush1.msra.mxu0 %v2060
    %2076 = vmatprep.subr.mxu0 0.0
    %2077 = vmatpush1.msra.mxu0 %v2061
    %2078 = vmatprep.subr.mxu0 0.0
    %2079 = vmatpush1.msra.mxu0 0.0
    %2080 = vmatprep.subr.mxu0 0.0
    %2081 = vmatpush1.msra.mxu0 0.0
    %2082 = vmatprep.subr.mxu0 0.0
    %2083 = vmatpush1.msra.mxu0 0.0
    %2084 = vmatprep.subr.mxu0 0.0
    %2085 = vmatpush1.msra.mxu0 0.0
    %2086 = vmatprep.subr.mxu0 0.0
    %2087 = vmatpush1.msra.mxu0 0.0
    %2088 = vmatprep.subr.mxu0 0.0
    %2089 = vmatpush1.msra.mxu0 0.0
    %2090 = vmatprep.subr.mxu0 0.0
    %2091 = vmatpush1.msra.mxu0 0.0
    %2092 = vmatprep.subr.mxu0 0.0
    %2093 = vmatpush1.msra.mxu0 0.0
    %2094 = vmatprep.subr.mxu0 0.0
    %2095 = vmatpush1.msra.mxu0 0.0
    %2096 = vmatprep.subr.mxu0 0.0
    %2097 = vmatpush1.msra.mxu0 0.0
    %2098 = vmatprep.subr.mxu0 0.0
    %2099 = vmatpush1.msra.mxu0 0.0
    %2100 = vmatprep.subr.mxu0 0.0
    %2101 = vmatpush1.msra.mxu0 0.0
    %2102 = vmatprep.subr.mxu0 0.0
    %2103 = vmatpush1.msra.mxu0 0.0
    %2104 = vmatprep.subr.mxu0 0.0
    %2105 = vmatpush1.msra.mxu0 0.0
    %2106 = vmatprep.subr.mxu0 0.0
    %2107 = vmatpush1.msra.mxu0 0.0
    %2108 = vmatprep.subr.mxu0 0.0
    %2109 = vmatpush1.msra.mxu0 0.0
    %2110 = vmatprep.subr.mxu0 0.0
    %2111 = vmatpush1.msra.mxu0 0.0
    %2112 = vmatprep.subr.mxu0 0.0
    %2113 = vmatpush1.msra.mxu0 0.0
    %2114 = vmatprep.subr.mxu0 0.0
    %2115 = vmatpush1.msra.mxu0 0.0
    %2116 = vmatprep.subr.mxu0 0.0
    %2117 = vmatpush1.msra.mxu0 0.0
    %2118 = vmatprep.subr.mxu0 0.0
    %2119 = vmatpush1.msra.mxu0 0.0
    %2120 = vmatprep.subr.mxu0 0.0
    %2121 = vmatpush1.msra.mxu0 0.0
    %2122 = vmatprep.subr.mxu0 0.0
    %2123 = vmatpush1.msra.mxu0 0.0
    %2124 = vmatprep.subr.mxu0 0.0
    %2125 = vmatpush1.msra.mxu0 0.0
    %2126 = vmatprep.subr.mxu0 0.0
    %2127 = vmatpush1.msra.mxu0 0.0
    %2128 = vmatprep.subr.mxu0 0.0
    %2129 = vmatpush1.msra.mxu0 0.0
    %2130 = vmatprep.subr.mxu0 0.0
    %2131 = vmatpush1.msra.mxu0 0.0
    %2132 = vmatprep.subr.mxu0 0.0
    %2133 = vmatpush1.msra.mxu0 0.0
    %2134 = vmatprep.mubr.f32.mxu0 0.0
    %2135 = vmatmul.mubr.f32.gmra.mrb[0].mxu0 %v608
    %v2136 = vpop.f32.mrb[0].mxu0
    %v2137 = vadd.f32 %v2068, %v2136
    %v2138 = vpop.f32.mrb[0].mxu0
    %2139 = vdwg.mxu0
    %s2140 = scalar_lea.vmem %s8, 96
    %v2141 = vld [vmem:[%s2140] sm:$0xff]
    %v2142 = vld [vmem:[%s2140 + $0x8] sm:$0xff]
    %v2143 = vld [vmem:[%s2140 + $0x10] sm:$0xff]
    %v2144 = vld [vmem:[%s2140 + $0x18] sm:$0xff]
    %s2145 = scalar_lea.vmem %s9, 3
    %v2146 = vld [vmem:[%s2145] sm:$0x1]
    %v2148 = vlaneseq
    %v2149 = vshrl.u32 %v2148, 7
    %v2150 = vsub.s32 0, %v2149
    %v2151 = vrot.slane %v2146, %v2150
    %2153 = vmatprep.subr.mxu0 0.0
    %2154 = vmatpush1.msra.mxu0 %v2141
    %2155 = vmatprep.subr.mxu0 0.0
    %2156 = vmatpush1.msra.mxu0 %v2142
    %2157 = vmatprep.subr.mxu0 0.0
    %2158 = vmatpush1.msra.mxu0 %v2143
    %2159 = vmatprep.subr.mxu0 0.0
    %2160 = vmatpush1.msra.mxu0 %v2144
    %2161 = vmatprep.subr.mxu0 0.0
    %2162 = vmatpush1.msra.mxu0 0.0
    %2163 = vmatprep.subr.mxu0 0.0
    %2164 = vmatpush1.msra.mxu0 0.0
    %2165 = vmatprep.subr.mxu0 0.0
    %2166 = vmatpush1.msra.mxu0 0.0
    %2167 = vmatprep.subr.mxu0 0.0
    %2168 = vmatpush1.msra.mxu0 0.0
    %2169 = vmatprep.subr.mxu0 0.0
    %2170 = vmatpush1.msra.mxu0 0.0
    %2171 = vmatprep.subr.mxu0 0.0
    %2172 = vmatpush1.msra.mxu0 0.0
    %2173 = vmatprep.subr.mxu0 0.0
    %2174 = vmatpush1.msra.mxu0 0.0
    %2175 = vmatprep.subr.mxu0 0.0
    %2176 = vmatpush1.msra.mxu0 0.0
    %2177 = vmatprep.subr.mxu0 0.0
    %2178 = vmatpush1.msra.mxu0 0.0
    %2179 = vmatprep.subr.mxu0 0.0
    %2180 = vmatpush1.msra.mxu0 0.0
    %2181 = vmatprep.subr.mxu0 0.0
    %2182 = vmatpush1.msra.mxu0 0.0
    %2183 = vmatprep.subr.mxu0 0.0
    %2184 = vmatpush1.msra.mxu0 0.0
    %2185 = vmatprep.subr.mxu0 0.0
    %2186 = vmatpush1.msra.mxu0 0.0
    %2187 = vmatprep.subr.mxu0 0.0
    %2188 = vmatpush1.msra.mxu0 0.0
    %2189 = vmatprep.subr.mxu0 0.0
    %2190 = vmatpush1.msra.mxu0 0.0
    %2191 = vmatprep.subr.mxu0 0.0
    %2192 = vmatpush1.msra.mxu0 0.0
    %2193 = vmatprep.subr.mxu0 0.0
    %2194 = vmatpush1.msra.mxu0 0.0
    %2195 = vmatprep.subr.mxu0 0.0
    %2196 = vmatpush1.msra.mxu0 0.0
    %2197 = vmatprep.subr.mxu0 0.0
    %2198 = vmatpush1.msra.mxu0 0.0
    %2199 = vmatprep.subr.mxu0 0.0
    %2200 = vmatpush1.msra.mxu0 0.0
    %2201 = vmatprep.subr.mxu0 0.0
    %2202 = vmatpush1.msra.mxu0 0.0
    %2203 = vmatprep.subr.mxu0 0.0
    %2204 = vmatpush1.msra.mxu0 0.0
    %2205 = vmatprep.subr.mxu0 0.0
    %2206 = vmatpush1.msra.mxu0 0.0
    %2207 = vmatprep.subr.mxu0 0.0
    %2208 = vmatpush1.msra.mxu0 0.0
    %2209 = vmatprep.subr.mxu0 0.0
    %2210 = vmatpush1.msra.mxu0 0.0
    %2211 = vmatprep.subr.mxu0 0.0
    %2212 = vmatpush1.msra.mxu0 0.0
    %2213 = vmatprep.subr.mxu0 0.0
    %2214 = vmatpush1.msra.mxu0 0.0
    %2215 = vmatprep.subr.mxu0 0.0
    %2216 = vmatpush1.msra.mxu0 0.0
    %2217 = vmatprep.mubr.f32.mxu0 0.0
    %2218 = vmatmul.mubr.f32.gmra.mrb[0].mxu0 %v608
    %v2219 = vpop.f32.mrb[0].mxu0
    %v2220 = vadd.f32 %v2151, %v2219
    %v2221 = vpop.f32.mrb[0].mxu0
    %2222 = vdwg.mxu0
    %s2223 = scalar_lea.vmem %s10, 96
    %v2224 = vld [vmem:[%s2223] sm:$0xff]
    %v2225 = vld [vmem:[%s2223 + $0x8] sm:$0xff]
    %v2226 = vld [vmem:[%s2223 + $0x10] sm:$0xff]
    %v2227 = vld [vmem:[%s2223 + $0x18] sm:$0xff]
    %s2228 = scalar_lea.vmem %s11, 3
    %v2229 = vld [vmem:[%s2228] sm:$0x1]
    %v2231 = vlaneseq
    %v2232 = vshrl.u32 %v2231, 7
    %v2233 = vsub.s32 0, %v2232
    %v2234 = vrot.slane %v2229, %v2233
    %2236 = vmatprep.subr.mxu0 0.0
    %2237 = vmatpush1.msra.mxu0 %v2224
    %2238 = vmatprep.subr.mxu0 0.0
    %2239 = vmatpush1.msra.mxu0 %v2225
    %2240 = vmatprep.subr.mxu0 0.0
    %2241 = vmatpush1.msra.mxu0 %v2226
    %2242 = vmatprep.subr.mxu0 0.0
    %2243 = vmatpush1.msra.mxu0 %v2227
    %2244 = vmatprep.subr.mxu0 0.0
    %2245 = vmatpush1.msra.mxu0 0.0
    %2246 = vmatprep.subr.mxu0 0.0
    %2247 = vmatpush1.msra.mxu0 0.0
    %2248 = vmatprep.subr.mxu0 0.0
    %2249 = vmatpush1.msra.mxu0 0.0
    %2250 = vmatprep.subr.mxu0 0.0
    %2251 = vmatpush1.msra.mxu0 0.0
    %2252 = vmatprep.subr.mxu0 0.0
    %2253 = vmatpush1.msra.mxu0 0.0
    %2254 = vmatprep.subr.mxu0 0.0
    %2255 = vmatpush1.msra.mxu0 0.0
    %2256 = vmatprep.subr.mxu0 0.0
    %2257 = vmatpush1.msra.mxu0 0.0
    %2258 = vmatprep.subr.mxu0 0.0
    %2259 = vmatpush1.msra.mxu0 0.0
    %2260 = vmatprep.subr.mxu0 0.0
    %2261 = vmatpush1.msra.mxu0 0.0
    %2262 = vmatprep.subr.mxu0 0.0
    %2263 = vmatpush1.msra.mxu0 0.0
    %2264 = vmatprep.subr.mxu0 0.0
    %2265 = vmatpush1.msra.mxu0 0.0
    %2266 = vmatprep.subr.mxu0 0.0
    %2267 = vmatpush1.msra.mxu0 0.0
    %2268 = vmatprep.subr.mxu0 0.0
    %2269 = vmatpush1.msra.mxu0 0.0
    %2270 = vmatprep.subr.mxu0 0.0
    %2271 = vmatpush1.msra.mxu0 0.0
    %2272 = vmatprep.subr.mxu0 0.0
    %2273 = vmatpush1.msra.mxu0 0.0
    %2274 = vmatprep.subr.mxu0 0.0
    %2275 = vmatpush1.msra.mxu0 0.0
    %2276 = vmatprep.subr.mxu0 0.0
    %2277 = vmatpush1.msra.mxu0 0.0
    %2278 = vmatprep.subr.mxu0 0.0
    %2279 = vmatpush1.msra.mxu0 0.0
    %2280 = vmatprep.subr.mxu0 0.0
    %2281 = vmatpush1.msra.mxu0 0.0
    %2282 = vmatprep.subr.mxu0 0.0
    %2283 = vmatpush1.msra.mxu0 0.0
    %2284 = vmatprep.subr.mxu0 0.0
    %2285 = vmatpush1.msra.mxu0 0.0
    %2286 = vmatprep.subr.mxu0 0.0
    %2287 = vmatpush1.msra.mxu0 0.0
    %2288 = vmatprep.subr.mxu0 0.0
    %2289 = vmatpush1.msra.mxu0 0.0
    %2290 = vmatprep.subr.mxu0 0.0
    %2291 = vmatpush1.msra.mxu0 0.0
    %2292 = vmatprep.subr.mxu0 0.0
    %2293 = vmatpush1.msra.mxu0 0.0
    %2294 = vmatprep.subr.mxu0 0.0
    %2295 = vmatpush1.msra.mxu0 0.0
    %2296 = vmatprep.subr.mxu0 0.0
    %2297 = vmatpush1.msra.mxu0 0.0
    %2298 = vmatprep.subr.mxu0 0.0
    %2299 = vmatpush1.msra.mxu0 0.0
    %2300 = vmatprep.mubr.f32.mxu0 0.0
    %2301 = vmatmul.mubr.f32.gmra.mrb[0].mxu0 %v608
    %v2302 = vpop.f32.mrb[0].mxu0
    %v2303 = vadd.f32 %v2234, %v2302
    %v2304 = vpop.f32.mrb[0].mxu0
    %2305 = vdwg.mxu0
    %v2307 = vsel %vm842, %v2137, 0
    %v2310 = vsel %vm842, %v2220, 0
    %2312 = vmatprep.subr.mxu0 0.0
    %2313 = vmatpush1.xpose.msra.mxu0 %v2310
    %2314 = vmatprep.subr.mxu0 0.0
    %2315 = vmatpush1.xpose.msra.mxu0 0.0
    %2316 = vmatprep.subr.mxu0 0.0
    %2317 = vmatpush1.xpose.msra.mxu0 0.0
    %2318 = vmatprep.subr.mxu0 0.0
    %2319 = vmatpush1.xpose.msra.mxu0 0.0
    %2320 = vmatprep.subr.mxu0 0.0
    %2321 = vmatpush1.xpose.msra.mxu0 0.0
    %2322 = vmatprep.subr.mxu0 0.0
    %2323 = vmatpush1.xpose.msra.mxu0 0.0
    %2324 = vmatprep.subr.mxu0 0.0
    %2325 = vmatpush1.xpose.msra.mxu0 0.0
    %2326 = vmatprep.subr.mxu0 0.0
    %2327 = vmatpush1.xpose.msra.mxu0 0.0
    %2328 = vmatprep.subr.mxu0 0.0
    %2329 = vmatpush1.xpose.msra.mxu0 0.0
    %2330 = vmatprep.subr.mxu0 0.0
    %2331 = vmatpush1.xpose.msra.mxu0 0.0
    %2332 = vmatprep.subr.mxu0 0.0
    %2333 = vmatpush1.xpose.msra.mxu0 0.0
    %2334 = vmatprep.subr.mxu0 0.0
    %2335 = vmatpush1.xpose.msra.mxu0 0.0
    %2336 = vmatprep.subr.mxu0 0.0
    %2337 = vmatpush1.xpose.msra.mxu0 0.0
    %2338 = vmatprep.subr.mxu0 0.0
    %2339 = vmatpush1.xpose.msra.mxu0 0.0
    %2340 = vmatprep.subr.mxu0 0.0
    %2341 = vmatpush1.xpose.msra.mxu0 0.0
    %2342 = vmatprep.subr.mxu0 0.0
    %2343 = vmatpush1.xpose.msra.mxu0 0.0
    %2344 = vmatprep.subr.mxu0 0.0
    %2345 = vmatpush1.xpose.msra.mxu0 0.0
    %2346 = vmatprep.subr.mxu0 0.0
    %2347 = vmatpush1.xpose.msra.mxu0 0.0
    %2348 = vmatprep.subr.mxu0 0.0
    %2349 = vmatpush1.xpose.msra.mxu0 0.0
    %2350 = vmatprep.subr.mxu0 0.0
    %2351 = vmatpush1.xpose.msra.mxu0 0.0
    %2352 = vmatprep.subr.mxu0 0.0
    %2353 = vmatpush1.xpose.msra.mxu0 0.0
    %2354 = vmatprep.subr.mxu0 0.0
    %2355 = vmatpush1.xpose.msra.mxu0 0.0
    %2356 = vmatprep.subr.mxu0 0.0
    %2357 = vmatpush1.xpose.msra.mxu0 0.0
    %2358 = vmatprep.subr.mxu0 0.0
    %2359 = vmatpush1.xpose.msra.mxu0 0.0
    %2360 = vmatprep.subr.mxu0 0.0
    %2361 = vmatpush1.xpose.msra.mxu0 0.0
    %2362 = vmatprep.subr.mxu0 0.0
    %2363 = vmatpush1.xpose.msra.mxu0 0.0
    %2364 = vmatprep.subr.mxu0 0.0
    %2365 = vmatpush1.xpose.msra.mxu0 0.0
    %2366 = vmatprep.subr.mxu0 0.0
    %2367 = vmatpush1.xpose.msra.mxu0 0.0
    %2368 = vmatprep.subr.mxu0 0.0
    %2369 = vmatpush1.xpose.msra.mxu0 0.0
    %2370 = vmatprep.subr.mxu0 0.0
    %2371 = vmatpush1.xpose.msra.mxu0 0.0
    %2372 = vmatprep.subr.mxu0 0.0
    %2373 = vmatpush1.xpose.msra.mxu0 0.0
    %2374 = vmatprep.subr.mxu0 0.0
    %2375 = vmatpush1.xpose.msra.mxu0 0.0
    %2376 = vmatprep.mubr.f32.mxu0 0.0
    %2377 = vmatmul.mubr.f32.gmra.mrb[0].mxu0 %v2307
    %v2378 = vpop.f32.mrb[0].mxu0
    %v2379 = vadd.f32 0.0, %v2378
    %v2380 = vpop.f32.mrb[0].mxu0
    %2381 = vdwg.mxu0
    %v2382 = vmul.f32 %v2379, 0.35355338
    %v2383 = vsel %vm842, %v2382, -inf
    %2384 = vmax.xlane.f32.xlu0 %v2383
    %v2385 = vpop.xlane.xlu0 %2384
    %v2386 = vsub.f32 %v2382, %v2385
    %v2387 = vmul.f32 %v2386, 1.442695
    %v2388 = vpow.pop %v2387
    %v2389 = vsel %vm842, %v2388, 0.0
    %2390 = vadd.xlane.f32.xlu0 %v2389
    %v2391 = vpop.xlane.xlu0 %2390
    %v2392 = vrcp.pop %v2391
    %v2393 = vmul.f32 %v2388, %v2392
    %v2395 = vsel %vm842, %v2393, 0
    %2397 = vmatprep.subr.mxu0 0.0
    %2398 = vmatpush1.msra.mxu0 %v2303
    %2399 = vmatprep.subr.mxu0 0.0
    %2400 = vmatpush1.msra.mxu0 0.0
    %2401 = vmatprep.subr.mxu0 0.0
    %2402 = vmatpush1.msra.mxu0 0.0
    %2403 = vmatprep.subr.mxu0 0.0
    %2404 = vmatpush1.msra.mxu0 0.0
    %2405 = vmatprep.subr.mxu0 0.0
    %2406 = vmatpush1.msra.mxu0 0.0
    %2407 = vmatprep.subr.mxu0 0.0
    %2408 = vmatpush1.msra.mxu0 0.0
    %2409 = vmatprep.subr.mxu0 0.0
    %2410 = vmatpush1.msra.mxu0 0.0
    %2411 = vmatprep.subr.mxu0 0.0
    %2412 = vmatpush1.msra.mxu0 0.0
    %2413 = vmatprep.subr.mxu0 0.0
    %2414 = vmatpush1.msra.mxu0 0.0
    %2415 = vmatprep.subr.mxu0 0.0
    %2416 = vmatpush1.msra.mxu0 0.0
    %2417 = vmatprep.subr.mxu0 0.0
    %2418 = vmatpush1.msra.mxu0 0.0
    %2419 = vmatprep.subr.mxu0 0.0
    %2420 = vmatpush1.msra.mxu0 0.0
    %2421 = vmatprep.subr.mxu0 0.0
    %2422 = vmatpush1.msra.mxu0 0.0
    %2423 = vmatprep.subr.mxu0 0.0
    %2424 = vmatpush1.msra.mxu0 0.0
    %2425 = vmatprep.subr.mxu0 0.0
    %2426 = vmatpush1.msra.mxu0 0.0
    %2427 = vmatprep.subr.mxu0 0.0
    %2428 = vmatpush1.msra.mxu0 0.0
    %2429 = vmatprep.subr.mxu0 0.0
    %2430 = vmatpush1.msra.mxu0 0.0
    %2431 = vmatprep.subr.mxu0 0.0
    %2432 = vmatpush1.msra.mxu0 0.0
    %2433 = vmatprep.subr.mxu0 0.0
    %2434 = vmatpush1.msra.mxu0 0.0
    %2435 = vmatprep.subr.mxu0 0.0
    %2436 = vmatpush1.msra.mxu0 0.0
    %2437 = vmatprep.subr.mxu0 0.0
    %2438 = vmatpush1.msra.mxu0 0.0
    %2439 = vmatprep.subr.mxu0 0.0
    %2440 = vmatpush1.msra.mxu0 0.0
    %2441 = vmatprep.subr.mxu0 0.0
    %2442 = vmatpush1.msra.mxu0 0.0
    %2443 = vmatprep.subr.mxu0 0.0
    %2444 = vmatpush1.msra.mxu0 0.0
    %2445 = vmatprep.subr.mxu0 0.0
    %2446 = vmatpush1.msra.mxu0 0.0
    %2447 = vmatprep.subr.mxu0 0.0
    %2448 = vmatpush1.msra.mxu0 0.0
    %2449 = vmatprep.subr.mxu0 0.0
    %2450 = vmatpush1.msra.mxu0 0.0
    %2451 = vmatprep.subr.mxu0 0.0
    %2452 = vmatpush1.msra.mxu0 0.0
    %2453 = vmatprep.subr.mxu0 0.0
    %2454 = vmatpush1.msra.mxu0 0.0
    %2455 = vmatprep.subr.mxu0 0.0
    %2456 = vmatpush1.msra.mxu0 0.0
    %2457 = vmatprep.subr.mxu0 0.0
    %2458 = vmatpush1.msra.mxu0 0.0
    %2459 = vmatprep.subr.mxu0 0.0
    %2460 = vmatpush1.msra.mxu0 0.0
    %2461 = vmatprep.mubr.f32.mxu0 0.0
    %2462 = vmatmul.mubr.f32.gmra.mrb[0].mxu0 %v2395
    %v2463 = vpop.f32.mrb[0].mxu0
    %v2464 = vadd.f32 0.0, %v2463
    %v2465 = vpop.f32.mrb[0].mxu0
    %2466 = vdwg.mxu0
    %s2467 = scalar_lea.vmem %s12, 24
    %v2468 = vld [vmem:[%s2467] sm:$0xff]
    %v2470 = vsel %vm842, %v2464, 0
    %2472 = vmatprep.subr.mxu0 0.0
    %2473 = vmatpush1.msra.mxu0 %v2468
    %2474 = vmatprep.subr.mxu0 0.0
    %2475 = vmatpush1.msra.mxu0 0.0
    %2476 = vmatprep.subr.mxu0 0.0
    %2477 = vmatpush1.msra.mxu0 0.0
    %2478 = vmatprep.subr.mxu0 0.0
    %2479 = vmatpush1.msra.mxu0 0.0
    %2480 = vmatprep.subr.mxu0 0.0
    %2481 = vmatpush1.msra.mxu0 0.0
    %2482 = vmatprep.subr.mxu0 0.0
    %2483 = vmatpush1.msra.mxu0 0.0
    %2484 = vmatprep.subr.mxu0 0.0
    %2485 = vmatpush1.msra.mxu0 0.0
    %2486 = vmatprep.subr.mxu0 0.0
    %2487 = vmatpush1.msra.mxu0 0.0
    %2488 = vmatprep.subr.mxu0 0.0
    %2489 = vmatpush1.msra.mxu0 0.0
    %2490 = vmatprep.subr.mxu0 0.0
    %2491 = vmatpush1.msra.mxu0 0.0
    %2492 = vmatprep.subr.mxu0 0.0
    %2493 = vmatpush1.msra.mxu0 0.0
    %2494 = vmatprep.subr.mxu0 0.0
    %2495 = vmatpush1.msra.mxu0 0.0
    %2496 = vmatprep.subr.mxu0 0.0
    %2497 = vmatpush1.msra.mxu0 0.0
    %2498 = vmatprep.subr.mxu0 0.0
    %2499 = vmatpush1.msra.mxu0 0.0
    %2500 = vmatprep.subr.mxu0 0.0
    %2501 = vmatpush1.msra.mxu0 0.0
    %2502 = vmatprep.subr.mxu0 0.0
    %2503 = vmatpush1.msra.mxu0 0.0
    %2504 = vmatprep.subr.mxu0 0.0
    %2505 = vmatpush1.msra.mxu0 0.0
    %2506 = vmatprep.subr.mxu0 0.0
    %2507 = vmatpush1.msra.mxu0 0.0
    %2508 = vmatprep.subr.mxu0 0.0
    %2509 = vmatpush1.msra.mxu0 0.0
    %2510 = vmatprep.subr.mxu0 0.0
    %2511 = vmatpush1.msra.mxu0 0.0
    %2512 = vmatprep.subr.mxu0 0.0
    %2513 = vmatpush1.msra.mxu0 0.0
    %2514 = vmatprep.subr.mxu0 0.0
    %2515 = vmatpush1.msra.mxu0 0.0
    %2516 = vmatprep.subr.mxu0 0.0
    %2517 = vmatpush1.msra.mxu0 0.0
    %2518 = vmatprep.subr.mxu0 0.0
    %2519 = vmatpush1.msra.mxu0 0.0
    %2520 = vmatprep.subr.mxu0 0.0
    %2521 = vmatpush1.msra.mxu0 0.0
    %2522 = vmatprep.subr.mxu0 0.0
    %2523 = vmatpush1.msra.mxu0 0.0
    %2524 = vmatprep.subr.mxu0 0.0
    %2525 = vmatpush1.msra.mxu0 0.0
    %2526 = vmatprep.subr.mxu0 0.0
    %2527 = vmatpush1.msra.mxu0 0.0
    %2528 = vmatprep.subr.mxu0 0.0
    %2529 = vmatpush1.msra.mxu0 0.0
    %2530 = vmatprep.subr.mxu0 0.0
    %2531 = vmatpush1.msra.mxu0 0.0
    %2532 = vmatprep.subr.mxu0 0.0
    %2533 = vmatpush1.msra.mxu0 0.0
    %2534 = vmatprep.subr.mxu0 0.0
    %2535 = vmatpush1.msra.mxu0 0.0
    %2536 = vmatprep.mubr.f32.mxu0 0.0
    %2537 = vmatmul.mubr.f32.gmra.mrb[0].mxu0 %v2470
    %v2538 = vpop.f32.mrb[0].mxu0
    %v2539 = vadd.f32 0.0, %v2538
    %v2540 = vpop.f32.mrb[0].mxu0
    %2541 = vdwg.mxu0
    %v2542 = vadd.f32 %v2056, %v2539
    %v2543 = vadd.f32 %v593, %v2542
    %v2544 = vld [vmem:[%s18] sm:$0x1]
    %v2545 = vld [vmem:[%s19] sm:$0x1]
    %v2546 = vsel %vm606, %v2543, 0.0
    %2547 = vadd.xlane.f32.xlu0 %v2546
    %v2548 = vpop.xlane.xlu0 %2547
    %v2549 = vrcp.pop 32.0
    %v2550 = vmul.f32 %v2548, %v2549
    %v2551 = vsub.f32 %v2543, %v2550
    %v2552 = vmul.f32 %v2551, %v2551
    %v2553 = vsel %vm606, %v2552, 0.0
    %2554 = vadd.xlane.f32.xlu0 %v2553
    %v2555 = vpop.xlane.xlu0 %2554
    %v2556 = vmul.f32 %v2555, %v2549
    %v2557 = vadd.f32 %v2556, 1e-05
    %v2558 = vrsqrt.pop %v2557
    %v2559 = vmul.f32 %v2551, %v2558
    %v2561 = vlaneseq
    %v2562 = vshrl.u32 %v2561, 7
    %v2563 = vsub.s32 0, %v2562
    %v2564 = vrot.slane %v2544, %v2563
    %v2566 = vmul.f32 %v2559, %v2564
    %v2568 = vlaneseq
    %v2569 = vshrl.u32 %v2568, 7
    %v2570 = vsub.s32 0, %v2569
    %v2571 = vrot.slane %v2545, %v2570
    %v2573 = vadd.f32 %v2566, %v2571
    %v2574 = vld [vmem:[%s14] sm:$0xff]
    %v2575 = vld [vmem:[%s14 + $0x8] sm:$0xff]
    %v2576 = vld [vmem:[%s14 + $0x10] sm:$0xff]
    %v2577 = vld [vmem:[%s14 + $0x18] sm:$0xff]
    %v2578 = vld [vmem:[%s15] sm:$0x1]
    %v2580 = vlaneseq
    %v2581 = vshrl.u32 %v2580, 7
    %v2582 = vsub.s32 0, %v2581
    %v2583 = vrot.slane %v2578, %v2582
    %v2586 = vsel %vm606, %v2573, 0
    %2588 = vmatprep.subr.mxu0 0.0
    %2589 = vmatpush1.msra.mxu0 %v2574
    %2590 = vmatprep.subr.mxu0 0.0
    %2591 = vmatpush1.msra.mxu0 %v2575
    %2592 = vmatprep.subr.mxu0 0.0
    %2593 = vmatpush1.msra.mxu0 %v2576
    %2594 = vmatprep.subr.mxu0 0.0
    %2595 = vmatpush1.msra.mxu0 %v2577
    %2596 = vmatprep.subr.mxu0 0.0
    %2597 = vmatpush1.msra.mxu0 0.0
    %2598 = vmatprep.subr.mxu0 0.0
    %2599 = vmatpush1.msra.mxu0 0.0
    %2600 = vmatprep.subr.mxu0 0.0
    %2601 = vmatpush1.msra.mxu0 0.0
    %2602 = vmatprep.subr.mxu0 0.0
    %2603 = vmatpush1.msra.mxu0 0.0
    %2604 = vmatprep.subr.mxu0 0.0
    %2605 = vmatpush1.msra.mxu0 0.0
    %2606 = vmatprep.subr.mxu0 0.0
    %2607 = vmatpush1.msra.mxu0 0.0
    %2608 = vmatprep.subr.mxu0 0.0
    %2609 = vmatpush1.msra.mxu0 0.0
    %2610 = vmatprep.subr.mxu0 0.0
    %2611 = vmatpush1.msra.mxu0 0.0
    %2612 = vmatprep.subr.mxu0 0.0
    %2613 = vmatpush1.msra.mxu0 0.0
    %2614 = vmatprep.subr.mxu0 0.0
    %2615 = vmatpush1.msra.mxu0 0.0
    %2616 = vmatprep.subr.mxu0 0.0
    %2617 = vmatpush1.msra.mxu0 0.0
    %2618 = vmatprep.subr.mxu0 0.0
    %2619 = vmatpush1.msra.mxu0 0.0
    %2620 = vmatprep.subr.mxu0 0.0
    %2621 = vmatpush1.msra.mxu0 0.0
    %2622 = vmatprep.subr.mxu0 0.0
    %2623 = vmatpush1.msra.mxu0 0.0
    %2624 = vmatprep.subr.mxu0 0.0
    %2625 = vmatpush1.msra.mxu0 0.0
    %2626 = vmatprep.subr.mxu0 0.0
    %2627 = vmatpush1.msra.mxu0 0.0
    %2628 = vmatprep.subr.mxu0 0.0
    %2629 = vmatpush1.msra.mxu0 0.0
    %2630 = vmatprep.subr.mxu0 0.0
    %2631 = vmatpush1.msra.mxu0 0.0
    %2632 = vmatprep.subr.mxu0 0.0
    %2633 = vmatpush1.msra.mxu0 0.0
    %2634 = vmatprep.subr.mxu0 0.0
    %2635 = vmatpush1.msra.mxu0 0.0
    %2636 = vmatprep.subr.mxu0 0.0
    %2637 = vmatpush1.msra.mxu0 0.0
    %2638 = vmatprep.subr.mxu0 0.0
    %2639 = vmatpush1.msra.mxu0 0.0
    %2640 = vmatprep.subr.mxu0 0.0
    %2641 = vmatpush1.msra.mxu0 0.0
    %2642 = vmatprep.subr.mxu0 0.0
    %2643 = vmatpush1.msra.mxu0 0.0
    %2644 = vmatprep.subr.mxu0 0.0
    %2645 = vmatpush1.msra.mxu0 0.0
    %2646 = vmatprep.subr.mxu0 0.0
    %2647 = vmatpush1.msra.mxu0 0.0
    %2648 = vmatprep.subr.mxu0 0.0
    %2649 = vmatpush1.msra.mxu0 0.0
    %2650 = vmatprep.subr.mxu0 0.0
    %2651 = vmatpush1.msra.mxu0 0.0
    %2652 = vmatprep.mubr.f32.mxu0 0.0
    %2653 = vmatmul.mubr.f32.gmra.mrb[0].mxu0 %v2586
    %v2654 = vpop.f32.mrb[0].mxu0
    %v2655 = vadd.f32 %v2583, %v2654
    %v2656 = vpop.f32.mrb[0].mxu0
    %2657 = vdwg.mxu0
    %v2658 = vmax.f32 %v2655, 0.0
    %v2659 = vld [vmem:[%s16] sm:$0xff]
    %v2660 = vld [vmem:[%s16 + $0x8] sm:$0xff]
    %v2661 = vld [vmem:[%s16 + $0x10] sm:$0xff]
    %v2662 = vld [vmem:[%s16 + $0x18] sm:$0xff]
    %v2663 = vld [vmem:[%s16 + $0x20] sm:$0xff]
    %v2664 = vld [vmem:[%s16 + $0x28] sm:$0xff]
    %v2665 = vld [vmem:[%s16 + $0x30] sm:$0xff]
    %v2666 = vld [vmem:[%s16 + $0x38] sm:$0xff]
    %v2667 = vld [vmem:[%s16 + $0x40] sm:$0xff]
    %v2668 = vld [vmem:[%s16 + $0x48] sm:$0xff]
    %v2669 = vld [vmem:[%s16 + $0x50] sm:$0xff]
    %v2670 = vld [vmem:[%s16 + $0x58] sm:$0xff]
    %v2671 = vld [vmem:[%s16 + $0x60] sm:$0xff]
    %v2672 = vld [vmem:[%s16 + $0x68] sm:$0xff]
    %v2673 = vld [vmem:[%s16 + $0x70] sm:$0xff]
    %v2674 = vld [vmem:[%s16 + $0x78] sm:$0xff]
    %v2675 = vld [vmem:[%s17] sm:$0x1]
    %v2677 = vlaneseq
    %v2678 = vshrl.u32 %v2677, 7
    %v2679 = vsub.s32 0, %v2678
    %v2680 = vrot.slane %v2675, %v2679
    %2682 = vmatprep.subr.mxu0 0.0
    %2683 = vmatpush1.msra.mxu0 %v2659
    %2684 = vmatprep.subr.mxu0 0.0
    %2685 = vmatpush1.msra.mxu0 %v2660
    %2686 = vmatprep.subr.mxu0 0.0
    %2687 = vmatpush1.msra.mxu0 %v2661
    %2688 = vmatprep.subr.mxu0 0.0
    %2689 = vmatpush1.msra.mxu0 %v2662
    %2690 = vmatprep.subr.mxu0 0.0
    %2691 = vmatpush1.msra.mxu0 %v2663
    %2692 = vmatprep.subr.mxu0 0.0
    %2693 = vmatpush1.msra.mxu0 %v2664
    %2694 = vmatprep.subr.mxu0 0.0
    %2695 = vmatpush1.msra.mxu0 %v2665
    %2696 = vmatprep.subr.mxu0 0.0
    %2697 = vmatpush1.msra.mxu0 %v2666
    %2698 = vmatprep.subr.mxu0 0.0
    %2699 = vmatpush1.msra.mxu0 %v2667
    %2700 = vmatprep.subr.mxu0 0.0
    %2701 = vmatpush1.msra.mxu0 %v2668
    %2702 = vmatprep.subr.mxu0 0.0
    %2703 = vmatpush1.msra.mxu0 %v2669
    %2704 = vmatprep.subr.mxu0 0.0
    %2705 = vmatpush1.msra.mxu0 %v2670
    %2706 = vmatprep.subr.mxu0 0.0
    %2707 = vmatpush1.msra.mxu0 %v2671
    %2708 = vmatprep.subr.mxu0 0.0
    %2709 = vmatpush1.msra.mxu0 %v2672
    %2710 = vmatprep.subr.mxu0 0.0
    %2711 = vmatpush1.msra.mxu0 %v2673
    %2712 = vmatprep.subr.mxu0 0.0
    %2713 = vmatpush1.msra.mxu0 %v2674
    %2714 = vmatprep.subr.mxu0 0.0
    %2715 = vmatpush1.msra.mxu0 0.0
    %2716 = vmatprep.subr.mxu0 0.0
    %2717 = vmatpush1.msra.mxu0 0.0
    %2718 = vmatprep.subr.mxu0 0.0
    %2719 = vmatpush1.msra.mxu0 0.0
    %2720 = vmatprep.subr.mxu0 0.0
    %2721 = vmatpush1.msra.mxu0 0.0
    %2722 = vmatprep.subr.mxu0 0.0
    %2723 = vmatpush1.msra.mxu0 0.0
    %2724 = vmatprep.subr.mxu0 0.0
    %2725 = vmatpush1.msra.mxu0 0.0
    %2726 = vmatprep.subr.mxu0 0.0
    %2727 = vmatpush1.msra.mxu0 0.0
    %2728 = vmatprep.subr.mxu0 0.0
    %2729 = vmatpush1.msra.mxu0 0.0
    %2730 = vmatprep.subr.mxu0 0.0
    %2731 = vmatpush1.msra.mxu0 0.0
    %2732 = vmatprep.subr.mxu0 0.0
    %2733 = vmatpush1.msra.mxu0 0.0
    %2734 = vmatprep.subr.mxu0 0.0
    %2735 = vmatpush1.msra.mxu0 0.0
    %2736 = vmatprep.subr.mxu0 0.0
    %2737 = vmatpush1.msra.mxu0 0.0
    %2738 = vmatprep.subr.mxu0 0.0
    %2739 = vmatpush1.msra.mxu0 0.0
    %2740 = vmatprep.subr.mxu0 0.0
    %2741 = vmatpush1.msra.mxu0 0.0
    %2742 = vmatprep.subr.mxu0 0.0
    %2743 = vmatpush1.msra.mxu0 0.0
    %2744 = vmatprep.subr.mxu0 0.0
    %2745 = vmatpush1.msra.mxu0 0.0
    %2746 = vmatprep.mubr.f32.mxu0 0.0
    %2747 = vmatmul.mubr.f32.gmra.mrb[0].mxu0 %v2658
    %v2748 = vpop.f32.mrb[0].mxu0
    %v2749 = vadd.f32 %v2680, %v2748
    %v2750 = vpop.f32.mrb[0].mxu0
    %2751 = vdwg.mxu0
    %v2752 = vadd.f32 %v2573, %v2749
    %v2753 = vld [vmem:[%s20] sm:$0x1]
    %v2754 = vld [vmem:[%s21] sm:$0x1]
    %v2755 = vsel %vm606, %v2752, 0.0
    %2756 = vadd.xlane.f32.xlu0 %v2755
    %v2757 = vpop.xlane.xlu0 %2756
    %v2758 = vmul.f32 %v2757, %v2549
    %v2759 = vsub.f32 %v2752, %v2758
    %v2760 = vmul.f32 %v2759, %v2759
    %v2761 = vsel %vm606, %v2760, 0.0
    %2762 = vadd.xlane.f32.xlu0 %v2761
    %v2763 = vpop.xlane.xlu0 %2762
    %v2764 = vmul.f32 %v2763, %v2549
    %v2765 = vadd.f32 %v2764, 1e-05
    %v2766 = vrsqrt.pop %v2765
    %v2767 = vmul.f32 %v2759, %v2766
    %v2769 = vlaneseq
    %v2770 = vshrl.u32 %v2769, 7
    %v2771 = vsub.s32 0, %v2770
    %v2772 = vrot.slane %v2753, %v2771
    %v2774 = vmul.f32 %v2767, %v2772
    %v2776 = vlaneseq
    %v2777 = vshrl.u32 %v2776, 7
    %v2778 = vsub.s32 0, %v2777
    %v2779 = vrot.slane %v2754, %v2778
    %v2781 = vadd.f32 %v2774, %v2779
    %s2782 = scalar_lea.vmem %s13, 1
    %v2783 = vld [vmem:[%s2782] sm:$0x1]
    %s2784 = scalar_lea.vmem %s6, 128
    %v2785 = vld [vmem:[%s2784] sm:$0xff]
    %v2786 = vld [vmem:[%s2784 + $0x8] sm:$0xff]
    %v2787 = vld [vmem:[%s2784 + $0x10] sm:$0xff]
    %v2788 = vld [vmem:[%s2784 + $0x18] sm:$0xff]
    %s2789 = scalar_lea.vmem %s7, 4
    %v2790 = vld [vmem:[%s2789] sm:$0x1]
    %v2792 = vlaneseq
    %v2793 = vshrl.u32 %v2792, 7
    %v2794 = vsub.s32 0, %v2793
    %v2795 = vrot.slane %v2790, %v2794
    %v2798 = vsel %vm606, %v2781, 0
    %2800 = vmatprep.subr.mxu0 0.0
    %2801 = vmatpush1.msra.mxu0 %v2785
    %2802 = vmatprep.subr.mxu0 0.0
    %2803 = vmatpush1.msra.mxu0 %v2786
    %2804 = vmatprep.subr.mxu0 0.0
    %2805 = vmatpush1.msra.mxu0 %v2787
    %2806 = vmatprep.subr.mxu0 0.0
    %2807 = vmatpush1.msra.mxu0 %v2788
    %2808 = vmatprep.subr.mxu0 0.0
    %2809 = vmatpush1.msra.mxu0 0.0
    %2810 = vmatprep.subr.mxu0 0.0
    %2811 = vmatpush1.msra.mxu0 0.0
    %2812 = vmatprep.subr.mxu0 0.0
    %2813 = vmatpush1.msra.mxu0 0.0
    %2814 = vmatprep.subr.mxu0 0.0
    %2815 = vmatpush1.msra.mxu0 0.0
    %2816 = vmatprep.subr.mxu0 0.0
    %2817 = vmatpush1.msra.mxu0 0.0
    %2818 = vmatprep.subr.mxu0 0.0
    %2819 = vmatpush1.msra.mxu0 0.0
    %2820 = vmatprep.subr.mxu0 0.0
    %2821 = vmatpush1.msra.mxu0 0.0
    %2822 = vmatprep.subr.mxu0 0.0
    %2823 = vmatpush1.msra.mxu0 0.0
    %2824 = vmatprep.subr.mxu0 0.0
    %2825 = vmatpush1.msra.mxu0 0.0
    %2826 = vmatprep.subr.mxu0 0.0
    %2827 = vmatpush1.msra.mxu0 0.0
    %2828 = vmatprep.subr.mxu0 0.0
    %2829 = vmatpush1.msra.mxu0 0.0
    %2830 = vmatprep.subr.mxu0 0.0
    %2831 = vmatpush1.msra.mxu0 0.0
    %2832 = vmatprep.subr.mxu0 0.0
    %2833 = vmatpush1.msra.mxu0 0.0
    %2834 = vmatprep.subr.mxu0 0.0
    %2835 = vmatpush1.msra.mxu0 0.0
    %2836 = vmatprep.subr.mxu0 0.0
    %2837 = vmatpush1.msra.mxu0 0.0
    %2838 = vmatprep.subr.mxu0 0.0
    %2839 = vmatpush1.msra.mxu0 0.0
    %2840 = vmatprep.subr.mxu0 0.0
    %2841 = vmatpush1.msra.mxu0 0.0
    %2842 = vmatprep.subr.mxu0 0.0
    %2843 = vmatpush1.msra.mxu0 0.0
    %2844 = vmatprep.subr.mxu0 0.0
    %2845 = vmatpush1.msra.mxu0 0.0
    %2846 = vmatprep.subr.mxu0 0.0
    %2847 = vmatpush1.msra.mxu0 0.0
    %2848 = vmatprep.subr.mxu0 0.0
    %2849 = vmatpush1.msra.mxu0 0.0
    %2850 = vmatprep.subr.mxu0 0.0
    %2851 = vmatpush1.msra.mxu0 0.0
    %2852 = vmatprep.subr.mxu0 0.0
    %2853 = vmatpush1.msra.mxu0 0.0
    %2854 = vmatprep.subr.mxu0 0.0
    %2855 = vmatpush1.msra.mxu0 0.0
    %2856 = vmatprep.subr.mxu0 0.0
    %2857 = vmatpush1.msra.mxu0 0.0
    %2858 = vmatprep.subr.mxu0 0.0
    %2859 = vmatpush1.msra.mxu0 0.0
    %2860 = vmatprep.subr.mxu0 0.0
    %2861 = vmatpush1.msra.mxu0 0.0
    %2862 = vmatprep.subr.mxu0 0.0
    %2863 = vmatpush1.msra.mxu0 0.0
    %2864 = vmatprep.mubr.f32.mxu0 0.0
    %2865 = vmatmul.mubr.f32.gmra.mrb[0].mxu0 %v2798
    %v2866 = vpop.f32.mrb[0].mxu0
    %v2867 = vadd.f32 %v2795, %v2866
    %v2868 = vpop.f32.mrb[0].mxu0
    %2869 = vdwg.mxu0
    %s2870 = scalar_lea.vmem %s8, 128
    %v2871 = vld [vmem:[%s2870] sm:$0xff]
    %v2872 = vld [vmem:[%s2870 + $0x8] sm:$0xff]
    %v2873 = vld [vmem:[%s2870 + $0x10] sm:$0xff]
    %v2874 = vld [vmem:[%s2870 + $0x18] sm:$0xff]
    %s2875 = scalar_lea.vmem %s9, 4
    %v2876 = vld [vmem:[%s2875] sm:$0x1]
    %v2878 = vlaneseq
    %v2879 = vshrl.u32 %v2878, 7
    %v2880 = vsub.s32 0, %v2879
    %v2881 = vrot.slane %v2876, %v2880
    %2883 = vmatprep.subr.mxu0 0.0
    %2884 = vmatpush1.msra.mxu0 %v2871
    %2885 = vmatprep.subr.mxu0 0.0
    %2886 = vmatpush1.msra.mxu0 %v2872
    %2887 = vmatprep.subr.mxu0 0.0
    %2888 = vmatpush1.msra.mxu0 %v2873
    %2889 = vmatprep.subr.mxu0 0.0
    %2890 = vmatpush1.msra.mxu0 %v2874
    %2891 = vmatprep.subr.mxu0 0.0
    %2892 = vmatpush1.msra.mxu0 0.0
    %2893 = vmatprep.subr.mxu0 0.0
    %2894 = vmatpush1.msra.mxu0 0.0
    %2895 = vmatprep.subr.mxu0 0.0
    %2896 = vmatpush1.msra.mxu0 0.0
    %2897 = vmatprep.subr.mxu0 0.0
    %2898 = vmatpush1.msra.mxu0 0.0
    %2899 = vmatprep.subr.mxu0 0.0
    %2900 = vmatpush1.msra.mxu0 0.0
    %2901 = vmatprep.subr.mxu0 0.0
    %2902 = vmatpush1.msra.mxu0 0.0
    %2903 = vmatprep.subr.mxu0 0.0
    %2904 = vmatpush1.msra.mxu0 0.0
    %2905 = vmatprep.subr.mxu0 0.0
    %2906 = vmatpush1.msra.mxu0 0.0
    %2907 = vmatprep.subr.mxu0 0.0
    %2908 = vmatpush1.msra.mxu0 0.0
    %2909 = vmatprep.subr.mxu0 0.0
    %2910 = vmatpush1.msra.mxu0 0.0
    %2911 = vmatprep.subr.mxu0 0.0
    %2912 = vmatpush1.msra.mxu0 0.0
    %2913 = vmatprep.subr.mxu0 0.0
    %2914 = vmatpush1.msra.mxu0 0.0
    %2915 = vmatprep.subr.mxu0 0.0
    %2916 = vmatpush1.msra.mxu0 0.0
    %2917 = vmatprep.subr.mxu0 0.0
    %2918 = vmatpush1.msra.mxu0 0.0
    %2919 = vmatprep.subr.mxu0 0.0
    %2920 = vmatpush1.msra.mxu0 0.0
    %2921 = vmatprep.subr.mxu0 0.0
    %2922 = vmatpush1.msra.mxu0 0.0
    %2923 = vmatprep.subr.mxu0 0.0
    %2924 = vmatpush1.msra.mxu0 0.0
    %2925 = vmatprep.subr.mxu0 0.0
    %2926 = vmatpush1.msra.mxu0 0.0
    %2927 = vmatprep.subr.mxu0 0.0
    %2928 = vmatpush1.msra.mxu0 0.0
    %2929 = vmatprep.subr.mxu0 0.0
    %2930 = vmatpush1.msra.mxu0 0.0
    %2931 = vmatprep.subr.mxu0 0.0
    %2932 = vmatpush1.msra.mxu0 0.0
    %2933 = vmatprep.subr.mxu0 0.0
    %2934 = vmatpush1.msra.mxu0 0.0
    %2935 = vmatprep.subr.mxu0 0.0
    %2936 = vmatpush1.msra.mxu0 0.0
    %2937 = vmatprep.subr.mxu0 0.0
    %2938 = vmatpush1.msra.mxu0 0.0
    %2939 = vmatprep.subr.mxu0 0.0
    %2940 = vmatpush1.msra.mxu0 0.0
    %2941 = vmatprep.subr.mxu0 0.0
    %2942 = vmatpush1.msra.mxu0 0.0
    %2943 = vmatprep.subr.mxu0 0.0
    %2944 = vmatpush1.msra.mxu0 0.0
    %2945 = vmatprep.subr.mxu0 0.0
    %2946 = vmatpush1.msra.mxu0 0.0
    %2947 = vmatprep.mubr.f32.mxu0 0.0
    %2948 = vmatmul.mubr.f32.gmra.mrb[0].mxu0 %v2798
    %v2949 = vpop.f32.mrb[0].mxu0
    %v2950 = vadd.f32 %v2881, %v2949
    %v2951 = vpop.f32.mrb[0].mxu0
    %2952 = vdwg.mxu0
    %s2953 = scalar_lea.vmem %s10, 128
    %v2954 = vld [vmem:[%s2953] sm:$0xff]
    %v2955 = vld [vmem:[%s2953 + $0x8] sm:$0xff]
    %v2956 = vld [vmem:[%s2953 + $0x10] sm:$0xff]
    %v2957 = vld [vmem:[%s2953 + $0x18] sm:$0xff]
    %s2958 = scalar_lea.vmem %s11, 4
    %v2959 = vld [vmem:[%s2958] sm:$0x1]
    %v2961 = vlaneseq
    %v2962 = vshrl.u32 %v2961, 7
    %v2963 = vsub.s32 0, %v2962
    %v2964 = vrot.slane %v2959, %v2963
    %2966 = vmatprep.subr.mxu0 0.0
    %2967 = vmatpush1.msra.mxu0 %v2954
    %2968 = vmatprep.subr.mxu0 0.0
    %2969 = vmatpush1.msra.mxu0 %v2955
    %2970 = vmatprep.subr.mxu0 0.0
    %2971 = vmatpush1.msra.mxu0 %v2956
    %2972 = vmatprep.subr.mxu0 0.0
    %2973 = vmatpush1.msra.mxu0 %v2957
    %2974 = vmatprep.subr.mxu0 0.0
    %2975 = vmatpush1.msra.mxu0 0.0
    %2976 = vmatprep.subr.mxu0 0.0
    %2977 = vmatpush1.msra.mxu0 0.0
    %2978 = vmatprep.subr.mxu0 0.0
    %2979 = vmatpush1.msra.mxu0 0.0
    %2980 = vmatprep.subr.mxu0 0.0
    %2981 = vmatpush1.msra.mxu0 0.0
    %2982 = vmatprep.subr.mxu0 0.0
    %2983 = vmatpush1.msra.mxu0 0.0
    %2984 = vmatprep.subr.mxu0 0.0
    %2985 = vmatpush1.msra.mxu0 0.0
    %2986 = vmatprep.subr.mxu0 0.0
    %2987 = vmatpush1.msra.mxu0 0.0
    %2988 = vmatprep.subr.mxu0 0.0
    %2989 = vmatpush1.msra.mxu0 0.0
    %2990 = vmatprep.subr.mxu0 0.0
    %2991 = vmatpush1.msra.mxu0 0.0
    %2992 = vmatprep.subr.mxu0 0.0
    %2993 = vmatpush1.msra.mxu0 0.0
    %2994 = vmatprep.subr.mxu0 0.0
    %2995 = vmatpush1.msra.mxu0 0.0
    %2996 = vmatprep.subr.mxu0 0.0
    %2997 = vmatpush1.msra.mxu0 0.0
    %2998 = vmatprep.subr.mxu0 0.0
    %2999 = vmatpush1.msra.mxu0 0.0
    %3000 = vmatprep.subr.mxu0 0.0
    %3001 = vmatpush1.msra.mxu0 0.0
    %3002 = vmatprep.subr.mxu0 0.0
    %3003 = vmatpush1.msra.mxu0 0.0
    %3004 = vmatprep.subr.mxu0 0.0
    %3005 = vmatpush1.msra.mxu0 0.0
    %3006 = vmatprep.subr.mxu0 0.0
    %3007 = vmatpush1.msra.mxu0 0.0
    %3008 = vmatprep.subr.mxu0 0.0
    %3009 = vmatpush1.msra.mxu0 0.0
    %3010 = vmatprep.subr.mxu0 0.0
    %3011 = vmatpush1.msra.mxu0 0.0
    %3012 = vmatprep.subr.mxu0 0.0
    %3013 = vmatpush1.msra.mxu0 0.0
    %3014 = vmatprep.subr.mxu0 0.0
    %3015 = vmatpush1.msra.mxu0 0.0
    %3016 = vmatprep.subr.mxu0 0.0
    %3017 = vmatpush1.msra.mxu0 0.0
    %3018 = vmatprep.subr.mxu0 0.0
    %3019 = vmatpush1.msra.mxu0 0.0
    %3020 = vmatprep.subr.mxu0 0.0
    %3021 = vmatpush1.msra.mxu0 0.0
    %3022 = vmatprep.subr.mxu0 0.0
    %3023 = vmatpush1.msra.mxu0 0.0
    %3024 = vmatprep.subr.mxu0 0.0
    %3025 = vmatpush1.msra.mxu0 0.0
    %3026 = vmatprep.subr.mxu0 0.0
    %3027 = vmatpush1.msra.mxu0 0.0
    %3028 = vmatprep.subr.mxu0 0.0
    %3029 = vmatpush1.msra.mxu0 0.0
    %3030 = vmatprep.mubr.f32.mxu0 0.0
    %3031 = vmatmul.mubr.f32.gmra.mrb[0].mxu0 %v2798
    %v3032 = vpop.f32.mrb[0].mxu0
    %v3033 = vadd.f32 %v2964, %v3032
    %v3034 = vpop.f32.mrb[0].mxu0
    %3035 = vdwg.mxu0
    %v3037 = vsel %vm842, %v2867, 0
    %v3040 = vsel %vm842, %v2950, 0
    %3042 = vmatprep.subr.mxu0 0.0
    %3043 = vmatpush1.xpose.msra.mxu0 %v3040
    %3044 = vmatprep.subr.mxu0 0.0
    %3045 = vmatpush1.xpose.msra.mxu0 0.0
    %3046 = vmatprep.subr.mxu0 0.0
    %3047 = vmatpush1.xpose.msra.mxu0 0.0
    %3048 = vmatprep.subr.mxu0 0.0
    %3049 = vmatpush1.xpose.msra.mxu0 0.0
    %3050 = vmatprep.subr.mxu0 0.0
    %3051 = vmatpush1.xpose.msra.mxu0 0.0
    %3052 = vmatprep.subr.mxu0 0.0
    %3053 = vmatpush1.xpose.msra.mxu0 0.0
    %3054 = vmatprep.subr.mxu0 0.0
    %3055 = vmatpush1.xpose.msra.mxu0 0.0
    %3056 = vmatprep.subr.mxu0 0.0
    %3057 = vmatpush1.xpose.msra.mxu0 0.0
    %3058 = vmatprep.subr.mxu0 0.0
    %3059 = vmatpush1.xpose.msra.mxu0 0.0
    %3060 = vmatprep.subr.mxu0 0.0
    %3061 = vmatpush1.xpose.msra.mxu0 0.0
    %3062 = vmatprep.subr.mxu0 0.0
    %3063 = vmatpush1.xpose.msra.mxu0 0.0
    %3064 = vmatprep.subr.mxu0 0.0
    %3065 = vmatpush1.xpose.msra.mxu0 0.0
    %3066 = vmatprep.subr.mxu0 0.0
    %3067 = vmatpush1.xpose.msra.mxu0 0.0
    %3068 = vmatprep.subr.mxu0 0.0
    %3069 = vmatpush1.xpose.msra.mxu0 0.0
    %3070 = vmatprep.subr.mxu0 0.0
    %3071 = vmatpush1.xpose.msra.mxu0 0.0
    %3072 = vmatprep.subr.mxu0 0.0
    %3073 = vmatpush1.xpose.msra.mxu0 0.0
    %3074 = vmatprep.subr.mxu0 0.0
    %3075 = vmatpush1.xpose.msra.mxu0 0.0
    %3076 = vmatprep.subr.mxu0 0.0
    %3077 = vmatpush1.xpose.msra.mxu0 0.0
    %3078 = vmatprep.subr.mxu0 0.0
    %3079 = vmatpush1.xpose.msra.mxu0 0.0
    %3080 = vmatprep.subr.mxu0 0.0
    %3081 = vmatpush1.xpose.msra.mxu0 0.0
    %3082 = vmatprep.subr.mxu0 0.0
    %3083 = vmatpush1.xpose.msra.mxu0 0.0
    %3084 = vmatprep.subr.mxu0 0.0
    %3085 = vmatpush1.xpose.msra.mxu0 0.0
    %3086 = vmatprep.subr.mxu0 0.0
    %3087 = vmatpush1.xpose.msra.mxu0 0.0
    %3088 = vmatprep.subr.mxu0 0.0
    %3089 = vmatpush1.xpose.msra.mxu0 0.0
    %3090 = vmatprep.subr.mxu0 0.0
    %3091 = vmatpush1.xpose.msra.mxu0 0.0
    %3092 = vmatprep.subr.mxu0 0.0
    %3093 = vmatpush1.xpose.msra.mxu0 0.0
    %3094 = vmatprep.subr.mxu0 0.0
    %3095 = vmatpush1.xpose.msra.mxu0 0.0
    %3096 = vmatprep.subr.mxu0 0.0
    %3097 = vmatpush1.xpose.msra.mxu0 0.0
    %3098 = vmatprep.subr.mxu0 0.0
    %3099 = vmatpush1.xpose.msra.mxu0 0.0
    %3100 = vmatprep.subr.mxu0 0.0
    %3101 = vmatpush1.xpose.msra.mxu0 0.0
    %3102 = vmatprep.subr.mxu0 0.0
    %3103 = vmatpush1.xpose.msra.mxu0 0.0
    %3104 = vmatprep.subr.mxu0 0.0
    %3105 = vmatpush1.xpose.msra.mxu0 0.0
    %3106 = vmatprep.mubr.f32.mxu0 0.0
    %3107 = vmatmul.mubr.f32.gmra.mrb[0].mxu0 %v3037
    %v3108 = vpop.f32.mrb[0].mxu0
    %v3109 = vadd.f32 0.0, %v3108
    %v3110 = vpop.f32.mrb[0].mxu0
    %3111 = vdwg.mxu0
    %v3112 = vmul.f32 %v3109, 0.35355338
    %v3113 = vsel %vm842, %v3112, -inf
    %3114 = vmax.xlane.f32.xlu0 %v3113
    %v3115 = vpop.xlane.xlu0 %3114
    %v3116 = vsub.f32 %v3112, %v3115
    %v3117 = vmul.f32 %v3116, 1.442695
    %v3118 = vpow.pop %v3117
    %v3119 = vsel %vm842, %v3118, 0.0
    %3120 = vadd.xlane.f32.xlu0 %v3119
    %v3121 = vpop.xlane.xlu0 %3120
    %v3122 = vrcp.pop %v3121
    %v3123 = vmul.f32 %v3118, %v3122
    %v3125 = vsel %vm842, %v3123, 0
    %3127 = vmatprep.subr.mxu0 0.0
    %3128 = vmatpush1.msra.mxu0 %v3033
    %3129 = vmatprep.subr.mxu0 0.0
    %3130 = vmatpush1.msra.mxu0 0.0
    %3131 = vmatprep.subr.mxu0 0.0
    %3132 = vmatpush1.msra.mxu0 0.0
    %3133 = vmatprep.subr.mxu0 0.0
    %3134 = vmatpush1.msra.mxu0 0.0
    %3135 = vmatprep.subr.mxu0 0.0
    %3136 = vmatpush1.msra.mxu0 0.0
    %3137 = vmatprep.subr.mxu0 0.0
    %3138 = vmatpush1.msra.mxu0 0.0
    %3139 = vmatprep.subr.mxu0 0.0
    %3140 = vmatpush1.msra.mxu0 0.0
    %3141 = vmatprep.subr.mxu0 0.0
    %3142 = vmatpush1.msra.mxu0 0.0
    %3143 = vmatprep.subr.mxu0 0.0
    %3144 = vmatpush1.msra.mxu0 0.0
    %3145 = vmatprep.subr.mxu0 0.0
    %3146 = vmatpush1.msra.mxu0 0.0
    %3147 = vmatprep.subr.mxu0 0.0
    %3148 = vmatpush1.msra.mxu0 0.0
    %3149 = vmatprep.subr.mxu0 0.0
    %3150 = vmatpush1.msra.mxu0 0.0
    %3151 = vmatprep.subr.mxu0 0.0
    %3152 = vmatpush1.msra.mxu0 0.0
    %3153 = vmatprep.subr.mxu0 0.0
    %3154 = vmatpush1.msra.mxu0 0.0
    %3155 = vmatprep.subr.mxu0 0.0
    %3156 = vmatpush1.msra.mxu0 0.0
    %3157 = vmatprep.subr.mxu0 0.0
    %3158 = vmatpush1.msra.mxu0 0.0
    %3159 = vmatprep.subr.mxu0 0.0
    %3160 = vmatpush1.msra.mxu0 0.0
    %3161 = vmatprep.subr.mxu0 0.0
    %3162 = vmatpush1.msra.mxu0 0.0
    %3163 = vmatprep.subr.mxu0 0.0
    %3164 = vmatpush1.msra.mxu0 0.0
    %3165 = vmatprep.subr.mxu0 0.0
    %3166 = vmatpush1.msra.mxu0 0.0
    %3167 = vmatprep.subr.mxu0 0.0
    %3168 = vmatpush1.msra.mxu0 0.0
    %3169 = vmatprep.subr.mxu0 0.0
    %3170 = vmatpush1.msra.mxu0 0.0
    %3171 = vmatprep.subr.mxu0 0.0
    %3172 = vmatpush1.msra.mxu0 0.0
    %3173 = vmatprep.subr.mxu0 0.0
    %3174 = vmatpush1.msra.mxu0 0.0
    %3175 = vmatprep.subr.mxu0 0.0
    %3176 = vmatpush1.msra.mxu0 0.0
    %3177 = vmatprep.subr.mxu0 0.0
    %3178 = vmatpush1.msra.mxu0 0.0
    %3179 = vmatprep.subr.mxu0 0.0
    %3180 = vmatpush1.msra.mxu0 0.0
    %3181 = vmatprep.subr.mxu0 0.0
    %3182 = vmatpush1.msra.mxu0 0.0
    %3183 = vmatprep.subr.mxu0 0.0
    %3184 = vmatpush1.msra.mxu0 0.0
    %3185 = vmatprep.subr.mxu0 0.0
    %3186 = vmatpush1.msra.mxu0 0.0
    %3187 = vmatprep.subr.mxu0 0.0
    %3188 = vmatpush1.msra.mxu0 0.0
    %3189 = vmatprep.subr.mxu0 0.0
    %3190 = vmatpush1.msra.mxu0 0.0
    %3191 = vmatprep.mubr.f32.mxu0 0.0
    %3192 = vmatmul.mubr.f32.gmra.mrb[0].mxu0 %v3125
    %v3193 = vpop.f32.mrb[0].mxu0
    %v3194 = vadd.f32 0.0, %v3193
    %v3195 = vpop.f32.mrb[0].mxu0
    %3196 = vdwg.mxu0
    %s3197 = scalar_lea.vmem %s12, 32
    %v3198 = vld [vmem:[%s3197] sm:$0xff]
    %v3200 = vsel %vm842, %v3194, 0
    %3202 = vmatprep.subr.mxu0 0.0
    %3203 = vmatpush1.msra.mxu0 %v3198
    %3204 = vmatprep.subr.mxu0 0.0
    %3205 = vmatpush1.msra.mxu0 0.0
    %3206 = vmatprep.subr.mxu0 0.0
    %3207 = vmatpush1.msra.mxu0 0.0
    %3208 = vmatprep.subr.mxu0 0.0
    %3209 = vmatpush1.msra.mxu0 0.0
    %3210 = vmatprep.subr.mxu0 0.0
    %3211 = vmatpush1.msra.mxu0 0.0
    %3212 = vmatprep.subr.mxu0 0.0
    %3213 = vmatpush1.msra.mxu0 0.0
    %3214 = vmatprep.subr.mxu0 0.0
    %3215 = vmatpush1.msra.mxu0 0.0
    %3216 = vmatprep.subr.mxu0 0.0
    %3217 = vmatpush1.msra.mxu0 0.0
    %3218 = vmatprep.subr.mxu0 0.0
    %3219 = vmatpush1.msra.mxu0 0.0
    %3220 = vmatprep.subr.mxu0 0.0
    %3221 = vmatpush1.msra.mxu0 0.0
    %3222 = vmatprep.subr.mxu0 0.0
    %3223 = vmatpush1.msra.mxu0 0.0
    %3224 = vmatprep.subr.mxu0 0.0
    %3225 = vmatpush1.msra.mxu0 0.0
    %3226 = vmatprep.subr.mxu0 0.0
    %3227 = vmatpush1.msra.mxu0 0.0
    %3228 = vmatprep.subr.mxu0 0.0
    %3229 = vmatpush1.msra.mxu0 0.0
    %3230 = vmatprep.subr.mxu0 0.0
    %3231 = vmatpush1.msra.mxu0 0.0
    %3232 = vmatprep.subr.mxu0 0.0
    %3233 = vmatpush1.msra.mxu0 0.0
    %3234 = vmatprep.subr.mxu0 0.0
    %3235 = vmatpush1.msra.mxu0 0.0
    %3236 = vmatprep.subr.mxu0 0.0
    %3237 = vmatpush1.msra.mxu0 0.0
    %3238 = vmatprep.subr.mxu0 0.0
    %3239 = vmatpush1.msra.mxu0 0.0
    %3240 = vmatprep.subr.mxu0 0.0
    %3241 = vmatpush1.msra.mxu0 0.0
    %3242 = vmatprep.subr.mxu0 0.0
    %3243 = vmatpush1.msra.mxu0 0.0
    %3244 = vmatprep.subr.mxu0 0.0
    %3245 = vmatpush1.msra.mxu0 0.0
    %3246 = vmatprep.subr.mxu0 0.0
    %3247 = vmatpush1.msra.mxu0 0.0
    %3248 = vmatprep.subr.mxu0 0.0
    %3249 = vmatpush1.msra.mxu0 0.0
    %3250 = vmatprep.subr.mxu0 0.0
    %3251 = vmatpush1.msra.mxu0 0.0
    %3252 = vmatprep.subr.mxu0 0.0
    %3253 = vmatpush1.msra.mxu0 0.0
    %3254 = vmatprep.subr.mxu0 0.0
    %3255 = vmatpush1.msra.mxu0 0.0
    %3256 = vmatprep.subr.mxu0 0.0
    %3257 = vmatpush1.msra.mxu0 0.0
    %3258 = vmatprep.subr.mxu0 0.0
    %3259 = vmatpush1.msra.mxu0 0.0
    %3260 = vmatprep.subr.mxu0 0.0
    %3261 = vmatpush1.msra.mxu0 0.0
    %3262 = vmatprep.subr.mxu0 0.0
    %3263 = vmatpush1.msra.mxu0 0.0
    %3264 = vmatprep.subr.mxu0 0.0
    %3265 = vmatpush1.msra.mxu0 0.0
    %3266 = vmatprep.mubr.f32.mxu0 0.0
    %3267 = vmatmul.mubr.f32.gmra.mrb[0].mxu0 %v3200
    %v3268 = vpop.f32.mrb[0].mxu0
    %v3269 = vadd.f32 0.0, %v3268
    %v3270 = vpop.f32.mrb[0].mxu0
    %3271 = vdwg.mxu0
    %v3273 = vlaneseq
    %v3274 = vshrl.u32 %v3273, 7
    %v3275 = vsub.s32 0, %v3274
    %v3276 = vrot.slane %v2783, %v3275
    %v3278 = vadd.f32 %v3276, %v3269
    %s3279 = scalar_lea.vmem %s6, 160
    %v3280 = vld [vmem:[%s3279] sm:$0xff]
    %v3281 = vld [vmem:[%s3279 + $0x8] sm:$0xff]
    %v3282 = vld [vmem:[%s3279 + $0x10] sm:$0xff]
    %v3283 = vld [vmem:[%s3279 + $0x18] sm:$0xff]
    %s3284 = scalar_lea.vmem %s7, 5
    %v3285 = vld [vmem:[%s3284] sm:$0x1]
    %v3287 = vlaneseq
    %v3288 = vshrl.u32 %v3287, 7
    %v3289 = vsub.s32 0, %v3288
    %v3290 = vrot.slane %v3285, %v3289
    %3292 = vmatprep.subr.mxu0 0.0
    %3293 = vmatpush1.msra.mxu0 %v3280
    %3294 = vmatprep.subr.mxu0 0.0
    %3295 = vmatpush1.msra.mxu0 %v3281
    %3296 = vmatprep.subr.mxu0 0.0
    %3297 = vmatpush1.msra.mxu0 %v3282
    %3298 = vmatprep.subr.mxu0 0.0
    %3299 = vmatpush1.msra.mxu0 %v3283
    %3300 = vmatprep.subr.mxu0 0.0
    %3301 = vmatpush1.msra.mxu0 0.0
    %3302 = vmatprep.subr.mxu0 0.0
    %3303 = vmatpush1.msra.mxu0 0.0
    %3304 = vmatprep.subr.mxu0 0.0
    %3305 = vmatpush1.msra.mxu0 0.0
    %3306 = vmatprep.subr.mxu0 0.0
    %3307 = vmatpush1.msra.mxu0 0.0
    %3308 = vmatprep.subr.mxu0 0.0
    %3309 = vmatpush1.msra.mxu0 0.0
    %3310 = vmatprep.subr.mxu0 0.0
    %3311 = vmatpush1.msra.mxu0 0.0
    %3312 = vmatprep.subr.mxu0 0.0
    %3313 = vmatpush1.msra.mxu0 0.0
    %3314 = vmatprep.subr.mxu0 0.0
    %3315 = vmatpush1.msra.mxu0 0.0
    %3316 = vmatprep.subr.mxu0 0.0
    %3317 = vmatpush1.msra.mxu0 0.0
    %3318 = vmatprep.subr.mxu0 0.0
    %3319 = vmatpush1.msra.mxu0 0.0
    %3320 = vmatprep.subr.mxu0 0.0
    %3321 = vmatpush1.msra.mxu0 0.0
    %3322 = vmatprep.subr.mxu0 0.0
    %3323 = vmatpush1.msra.mxu0 0.0
    %3324 = vmatprep.subr.mxu0 0.0
    %3325 = vmatpush1.msra.mxu0 0.0
    %3326 = vmatprep.subr.mxu0 0.0
    %3327 = vmatpush1.msra.mxu0 0.0
    %3328 = vmatprep.subr.mxu0 0.0
    %3329 = vmatpush1.msra.mxu0 0.0
    %3330 = vmatprep.subr.mxu0 0.0
    %3331 = vmatpush1.msra.mxu0 0.0
    %3332 = vmatprep.subr.mxu0 0.0
    %3333 = vmatpush1.msra.mxu0 0.0
    %3334 = vmatprep.subr.mxu0 0.0
    %3335 = vmatpush1.msra.mxu0 0.0
    %3336 = vmatprep.subr.mxu0 0.0
    %3337 = vmatpush1.msra.mxu0 0.0
    %3338 = vmatprep.subr.mxu0 0.0
    %3339 = vmatpush1.msra.mxu0 0.0
    %3340 = vmatprep.subr.mxu0 0.0
    %3341 = vmatpush1.msra.mxu0 0.0
    %3342 = vmatprep.subr.mxu0 0.0
    %3343 = vmatpush1.msra.mxu0 0.0
    %3344 = vmatprep.subr.mxu0 0.0
    %3345 = vmatpush1.msra.mxu0 0.0
    %3346 = vmatprep.subr.mxu0 0.0
    %3347 = vmatpush1.msra.mxu0 0.0
    %3348 = vmatprep.subr.mxu0 0.0
    %3349 = vmatpush1.msra.mxu0 0.0
    %3350 = vmatprep.subr.mxu0 0.0
    %3351 = vmatpush1.msra.mxu0 0.0
    %3352 = vmatprep.subr.mxu0 0.0
    %3353 = vmatpush1.msra.mxu0 0.0
    %3354 = vmatprep.subr.mxu0 0.0
    %3355 = vmatpush1.msra.mxu0 0.0
    %3356 = vmatprep.mubr.f32.mxu0 0.0
    %3357 = vmatmul.mubr.f32.gmra.mrb[0].mxu0 %v2798
    %v3358 = vpop.f32.mrb[0].mxu0
    %v3359 = vadd.f32 %v3290, %v3358
    %v3360 = vpop.f32.mrb[0].mxu0
    %3361 = vdwg.mxu0
    %s3362 = scalar_lea.vmem %s8, 160
    %v3363 = vld [vmem:[%s3362] sm:$0xff]
    %v3364 = vld [vmem:[%s3362 + $0x8] sm:$0xff]
    %v3365 = vld [vmem:[%s3362 + $0x10] sm:$0xff]
    %v3366 = vld [vmem:[%s3362 + $0x18] sm:$0xff]
    %s3367 = scalar_lea.vmem %s9, 5
    %v3368 = vld [vmem:[%s3367] sm:$0x1]
    %v3370 = vlaneseq
    %v3371 = vshrl.u32 %v3370, 7
    %v3372 = vsub.s32 0, %v3371
    %v3373 = vrot.slane %v3368, %v3372
    %3375 = vmatprep.subr.mxu0 0.0
    %3376 = vmatpush1.msra.mxu0 %v3363
    %3377 = vmatprep.subr.mxu0 0.0
    %3378 = vmatpush1.msra.mxu0 %v3364
    %3379 = vmatprep.subr.mxu0 0.0
    %3380 = vmatpush1.msra.mxu0 %v3365
    %3381 = vmatprep.subr.mxu0 0.0
    %3382 = vmatpush1.msra.mxu0 %v3366
    %3383 = vmatprep.subr.mxu0 0.0
    %3384 = vmatpush1.msra.mxu0 0.0
    %3385 = vmatprep.subr.mxu0 0.0
    %3386 = vmatpush1.msra.mxu0 0.0
    %3387 = vmatprep.subr.mxu0 0.0
    %3388 = vmatpush1.msra.mxu0 0.0
    %3389 = vmatprep.subr.mxu0 0.0
    %3390 = vmatpush1.msra.mxu0 0.0
    %3391 = vmatprep.subr.mxu0 0.0
    %3392 = vmatpush1.msra.mxu0 0.0
    %3393 = vmatprep.subr.mxu0 0.0
    %3394 = vmatpush1.msra.mxu0 0.0
    %3395 = vmatprep.subr.mxu0 0.0
    %3396 = vmatpush1.msra.mxu0 0.0
    %3397 = vmatprep.subr.mxu0 0.0
    %3398 = vmatpush1.msra.mxu0 0.0
    %3399 = vmatprep.subr.mxu0 0.0
    %3400 = vmatpush1.msra.mxu0 0.0
    %3401 = vmatprep.subr.mxu0 0.0
    %3402 = vmatpush1.msra.mxu0 0.0
    %3403 = vmatprep.subr.mxu0 0.0
    %3404 = vmatpush1.msra.mxu0 0.0
    %3405 = vmatprep.subr.mxu0 0.0
    %3406 = vmatpush1.msra.mxu0 0.0
    %3407 = vmatprep.subr.mxu0 0.0
    %3408 = vmatpush1.msra.mxu0 0.0
    %3409 = vmatprep.subr.mxu0 0.0
    %3410 = vmatpush1.msra.mxu0 0.0
    %3411 = vmatprep.subr.mxu0 0.0
    %3412 = vmatpush1.msra.mxu0 0.0
    %3413 = vmatprep.subr.mxu0 0.0
    %3414 = vmatpush1.msra.mxu0 0.0
    %3415 = vmatprep.subr.mxu0 0.0
    %3416 = vmatpush1.msra.mxu0 0.0
    %3417 = vmatprep.subr.mxu0 0.0
    %3418 = vmatpush1.msra.mxu0 0.0
    %3419 = vmatprep.subr.mxu0 0.0
    %3420 = vmatpush1.msra.mxu0 0.0
    %3421 = vmatprep.subr.mxu0 0.0
    %3422 = vmatpush1.msra.mxu0 0.0
    %3423 = vmatprep.subr.mxu0 0.0
    %3424 = vmatpush1.msra.mxu0 0.0
    %3425 = vmatprep.subr.mxu0 0.0
    %3426 = vmatpush1.msra.mxu0 0.0
    %3427 = vmatprep.subr.mxu0 0.0
    %3428 = vmatpush1.msra.mxu0 0.0
    %3429 = vmatprep.subr.mxu0 0.0
    %3430 = vmatpush1.msra.mxu0 0.0
    %3431 = vmatprep.subr.mxu0 0.0
    %3432 = vmatpush1.msra.mxu0 0.0
    %3433 = vmatprep.subr.mxu0 0.0
    %3434 = vmatpush1.msra.mxu0 0.0
    %3435 = vmatprep.subr.mxu0 0.0
    %3436 = vmatpush1.msra.mxu0 0.0
    %3437 = vmatprep.subr.mxu0 0.0
    %3438 = vmatpush1.msra.mxu0 0.0
    %3439 = vmatprep.mubr.f32.mxu0 0.0
    %3440 = vmatmul.mubr.f32.gmra.mrb[0].mxu0 %v2798
    %v3441 = vpop.f32.mrb[0].mxu0
    %v3442 = vadd.f32 %v3373, %v3441
    %v3443 = vpop.f32.mrb[0].mxu0
    %3444 = vdwg.mxu0
    %s3445 = scalar_lea.vmem %s10, 160
    %v3446 = vld [vmem:[%s3445] sm:$0xff]
    %v3447 = vld [vmem:[%s3445 + $0x8] sm:$0xff]
    %v3448 = vld [vmem:[%s3445 + $0x10] sm:$0xff]
    %v3449 = vld [vmem:[%s3445 + $0x18] sm:$0xff]
    %s3450 = scalar_lea.vmem %s11, 5
    %v3451 = vld [vmem:[%s3450] sm:$0x1]
    %v3453 = vlaneseq
    %v3454 = vshrl.u32 %v3453, 7
    %v3455 = vsub.s32 0, %v3454
    %v3456 = vrot.slane %v3451, %v3455
    %3458 = vmatprep.subr.mxu0 0.0
    %3459 = vmatpush1.msra.mxu0 %v3446
    %3460 = vmatprep.subr.mxu0 0.0
    %3461 = vmatpush1.msra.mxu0 %v3447
    %3462 = vmatprep.subr.mxu0 0.0
    %3463 = vmatpush1.msra.mxu0 %v3448
    %3464 = vmatprep.subr.mxu0 0.0
    %3465 = vmatpush1.msra.mxu0 %v3449
    %3466 = vmatprep.subr.mxu0 0.0
    %3467 = vmatpush1.msra.mxu0 0.0
    %3468 = vmatprep.subr.mxu0 0.0
    %3469 = vmatpush1.msra.mxu0 0.0
    %3470 = vmatprep.subr.mxu0 0.0
    %3471 = vmatpush1.msra.mxu0 0.0
    %3472 = vmatprep.subr.mxu0 0.0
    %3473 = vmatpush1.msra.mxu0 0.0
    %3474 = vmatprep.subr.mxu0 0.0
    %3475 = vmatpush1.msra.mxu0 0.0
    %3476 = vmatprep.subr.mxu0 0.0
    %3477 = vmatpush1.msra.mxu0 0.0
    %3478 = vmatprep.subr.mxu0 0.0
    %3479 = vmatpush1.msra.mxu0 0.0
    %3480 = vmatprep.subr.mxu0 0.0
    %3481 = vmatpush1.msra.mxu0 0.0
    %3482 = vmatprep.subr.mxu0 0.0
    %3483 = vmatpush1.msra.mxu0 0.0
    %3484 = vmatprep.subr.mxu0 0.0
    %3485 = vmatpush1.msra.mxu0 0.0
    %3486 = vmatprep.subr.mxu0 0.0
    %3487 = vmatpush1.msra.mxu0 0.0
    %3488 = vmatprep.subr.mxu0 0.0
    %3489 = vmatpush1.msra.mxu0 0.0
    %3490 = vmatprep.subr.mxu0 0.0
    %3491 = vmatpush1.msra.mxu0 0.0
    %3492 = vmatprep.subr.mxu0 0.0
    %3493 = vmatpush1.msra.mxu0 0.0
    %3494 = vmatprep.subr.mxu0 0.0
    %3495 = vmatpush1.msra.mxu0 0.0
    %3496 = vmatprep.subr.mxu0 0.0
    %3497 = vmatpush1.msra.mxu0 0.0
    %3498 = vmatprep.subr.mxu0 0.0
    %3499 = vmatpush1.msra.mxu0 0.0
    %3500 = vmatprep.subr.mxu0 0.0
    %3501 = vmatpush1.msra.mxu0 0.0
    %3502 = vmatprep.subr.mxu0 0.0
    %3503 = vmatpush1.msra.mxu0 0.0
    %3504 = vmatprep.subr.mxu0 0.0
    %3505 = vmatpush1.msra.mxu0 0.0
    %3506 = vmatprep.subr.mxu0 0.0
    %3507 = vmatpush1.msra.mxu0 0.0
    %3508 = vmatprep.subr.mxu0 0.0
    %3509 = vmatpush1.msra.mxu0 0.0
    %3510 = vmatprep.subr.mxu0 0.0
    %3511 = vmatpush1.msra.mxu0 0.0
    %3512 = vmatprep.subr.mxu0 0.0
    %3513 = vmatpush1.msra.mxu0 0.0
    %3514 = vmatprep.subr.mxu0 0.0
    %3515 = vmatpush1.msra.mxu0 0.0
    %3516 = vmatprep.subr.mxu0 0.0
    %3517 = vmatpush1.msra.mxu0 0.0
    %3518 = vmatprep.subr.mxu0 0.0
    %3519 = vmatpush1.msra.mxu0 0.0
    %3520 = vmatprep.subr.mxu0 0.0
    %3521 = vmatpush1.msra.mxu0 0.0
    %3522 = vmatprep.mubr.f32.mxu0 0.0
    %3523 = vmatmul.mubr.f32.gmra.mrb[0].mxu0 %v2798
    %v3524 = vpop.f32.mrb[0].mxu0
    %v3525 = vadd.f32 %v3456, %v3524
    %v3526 = vpop.f32.mrb[0].mxu0
    %3527 = vdwg.mxu0
    %v3529 = vsel %vm842, %v3359, 0
    %v3532 = vsel %vm842, %v3442, 0
    %3534 = vmatprep.subr.mxu0 0.0
    %3535 = vmatpush1.xpose.msra.mxu0 %v3532
    %3536 = vmatprep.subr.mxu0 0.0
    %3537 = vmatpush1.xpose.msra.mxu0 0.0
    %3538 = vmatprep.subr.mxu0 0.0
    %3539 = vmatpush1.xpose.msra.mxu0 0.0
    %3540 = vmatprep.subr.mxu0 0.0
    %3541 = vmatpush1.xpose.msra.mxu0 0.0
    %3542 = vmatprep.subr.mxu0 0.0
    %3543 = vmatpush1.xpose.msra.mxu0 0.0
    %3544 = vmatprep.subr.mxu0 0.0
    %3545 = vmatpush1.xpose.msra.mxu0 0.0
    %3546 = vmatprep.subr.mxu0 0.0
    %3547 = vmatpush1.xpose.msra.mxu0 0.0
    %3548 = vmatprep.subr.mxu0 0.0
    %3549 = vmatpush1.xpose.msra.mxu0 0.0
    %3550 = vmatprep.subr.mxu0 0.0
    %3551 = vmatpush1.xpose.msra.mxu0 0.0
    %3552 = vmatprep.subr.mxu0 0.0
    %3553 = vmatpush1.xpose.msra.mxu0 0.0
    %3554 = vmatprep.subr.mxu0 0.0
    %3555 = vmatpush1.xpose.msra.mxu0 0.0
    %3556 = vmatprep.subr.mxu0 0.0
    %3557 = vmatpush1.xpose.msra.mxu0 0.0
    %3558 = vmatprep.subr.mxu0 0.0
    %3559 = vmatpush1.xpose.msra.mxu0 0.0
    %3560 = vmatprep.subr.mxu0 0.0
    %3561 = vmatpush1.xpose.msra.mxu0 0.0
    %3562 = vmatprep.subr.mxu0 0.0
    %3563 = vmatpush1.xpose.msra.mxu0 0.0
    %3564 = vmatprep.subr.mxu0 0.0
    %3565 = vmatpush1.xpose.msra.mxu0 0.0
    %3566 = vmatprep.subr.mxu0 0.0
    %3567 = vmatpush1.xpose.msra.mxu0 0.0
    %3568 = vmatprep.subr.mxu0 0.0
    %3569 = vmatpush1.xpose.msra.mxu0 0.0
    %3570 = vmatprep.subr.mxu0 0.0
    %3571 = vmatpush1.xpose.msra.mxu0 0.0
    %3572 = vmatprep.subr.mxu0 0.0
    %3573 = vmatpush1.xpose.msra.mxu0 0.0
    %3574 = vmatprep.subr.mxu0 0.0
    %3575 = vmatpush1.xpose.msra.mxu0 0.0
    %3576 = vmatprep.subr.mxu0 0.0
    %3577 = vmatpush1.xpose.msra.mxu0 0.0
    %3578 = vmatprep.subr.mxu0 0.0
    %3579 = vmatpush1.xpose.msra.mxu0 0.0
    %3580 = vmatprep.subr.mxu0 0.0
    %3581 = vmatpush1.xpose.msra.mxu0 0.0
    %3582 = vmatprep.subr.mxu0 0.0
    %3583 = vmatpush1.xpose.msra.mxu0 0.0
    %3584 = vmatprep.subr.mxu0 0.0
    %3585 = vmatpush1.xpose.msra.mxu0 0.0
    %3586 = vmatprep.subr.mxu0 0.0
    %3587 = vmatpush1.xpose.msra.mxu0 0.0
    %3588 = vmatprep.subr.mxu0 0.0
    %3589 = vmatpush1.xpose.msra.mxu0 0.0
    %3590 = vmatprep.subr.mxu0 0.0
    %3591 = vmatpush1.xpose.msra.mxu0 0.0
    %3592 = vmatprep.subr.mxu0 0.0
    %3593 = vmatpush1.xpose.msra.mxu0 0.0
    %3594 = vmatprep.subr.mxu0 0.0
    %3595 = vmatpush1.xpose.msra.mxu0 0.0
    %3596 = vmatprep.subr.mxu0 0.0
    %3597 = vmatpush1.xpose.msra.mxu0 0.0
    %3598 = vmatprep.mubr.f32.mxu0 0.0
    %3599 = vmatmul.mubr.f32.gmra.mrb[0].mxu0 %v3529
    %v3600 = vpop.f32.mrb[0].mxu0
    %v3601 = vadd.f32 0.0, %v3600
    %v3602 = vpop.f32.mrb[0].mxu0
    %3603 = vdwg.mxu0
    %v3604 = vmul.f32 %v3601, 0.35355338
    %v3605 = vsel %vm842, %v3604, -inf
    %3606 = vmax.xlane.f32.xlu0 %v3605
    %v3607 = vpop.xlane.xlu0 %3606
    %v3608 = vsub.f32 %v3604, %v3607
    %v3609 = vmul.f32 %v3608, 1.442695
    %v3610 = vpow.pop %v3609
    %v3611 = vsel %vm842, %v3610, 0.0
    %3612 = vadd.xlane.f32.xlu0 %v3611
    %v3613 = vpop.xlane.xlu0 %3612
    %v3614 = vrcp.pop %v3613
    %v3615 = vmul.f32 %v3610, %v3614
    %v3617 = vsel %vm842, %v3615, 0
    %3619 = vmatprep.subr.mxu0 0.0
    %3620 = vmatpush1.msra.mxu0 %v3525
    %3621 = vmatprep.subr.mxu0 0.0
    %3622 = vmatpush1.msra.mxu0 0.0
    %3623 = vmatprep.subr.mxu0 0.0
    %3624 = vmatpush1.msra.mxu0 0.0
    %3625 = vmatprep.subr.mxu0 0.0
    %3626 = vmatpush1.msra.mxu0 0.0
    %3627 = vmatprep.subr.mxu0 0.0
    %3628 = vmatpush1.msra.mxu0 0.0
    %3629 = vmatprep.subr.mxu0 0.0
    %3630 = vmatpush1.msra.mxu0 0.0
    %3631 = vmatprep.subr.mxu0 0.0
    %3632 = vmatpush1.msra.mxu0 0.0
    %3633 = vmatprep.subr.mxu0 0.0
    %3634 = vmatpush1.msra.mxu0 0.0
    %3635 = vmatprep.subr.mxu0 0.0
    %3636 = vmatpush1.msra.mxu0 0.0
    %3637 = vmatprep.subr.mxu0 0.0
    %3638 = vmatpush1.msra.mxu0 0.0
    %3639 = vmatprep.subr.mxu0 0.0
    %3640 = vmatpush1.msra.mxu0 0.0
    %3641 = vmatprep.subr.mxu0 0.0
    %3642 = vmatpush1.msra.mxu0 0.0
    %3643 = vmatprep.subr.mxu0 0.0
    %3644 = vmatpush1.msra.mxu0 0.0
    %3645 = vmatprep.subr.mxu0 0.0
    %3646 = vmatpush1.msra.mxu0 0.0
    %3647 = vmatprep.subr.mxu0 0.0
    %3648 = vmatpush1.msra.mxu0 0.0
    %3649 = vmatprep.subr.mxu0 0.0
    %3650 = vmatpush1.msra.mxu0 0.0
    %3651 = vmatprep.subr.mxu0 0.0
    %3652 = vmatpush1.msra.mxu0 0.0
    %3653 = vmatprep.subr.mxu0 0.0
    %3654 = vmatpush1.msra.mxu0 0.0
    %3655 = vmatprep.subr.mxu0 0.0
    %3656 = vmatpush1.msra.mxu0 0.0
    %3657 = vmatprep.subr.mxu0 0.0
    %3658 = vmatpush1.msra.mxu0 0.0
    %3659 = vmatprep.subr.mxu0 0.0
    %3660 = vmatpush1.msra.mxu0 0.0
    %3661 = vmatprep.subr.mxu0 0.0
    %3662 = vmatpush1.msra.mxu0 0.0
    %3663 = vmatprep.subr.mxu0 0.0
    %3664 = vmatpush1.msra.mxu0 0.0
    %3665 = vmatprep.subr.mxu0 0.0
    %3666 = vmatpush1.msra.mxu0 0.0
    %3667 = vmatprep.subr.mxu0 0.0
    %3668 = vmatpush1.msra.mxu0 0.0
    %3669 = vmatprep.subr.mxu0 0.0
    %3670 = vmatpush1.msra.mxu0 0.0
    %3671 = vmatprep.subr.mxu0 0.0
    %3672 = vmatpush1.msra.mxu0 0.0
    %3673 = vmatprep.subr.mxu0 0.0
    %3674 = vmatpush1.msra.mxu0 0.0
    %3675 = vmatprep.subr.mxu0 0.0
    %3676 = vmatpush1.msra.mxu0 0.0
    %3677 = vmatprep.subr.mxu0 0.0
    %3678 = vmatpush1.msra.mxu0 0.0
    %3679 = vmatprep.subr.mxu0 0.0
    %3680 = vmatpush1.msra.mxu0 0.0
    %3681 = vmatprep.subr.mxu0 0.0
    %3682 = vmatpush1.msra.mxu0 0.0
    %3683 = vmatprep.mubr.f32.mxu0 0.0
    %3684 = vmatmul.mubr.f32.gmra.mrb[0].mxu0 %v3617
    %v3685 = vpop.f32.mrb[0].mxu0
    %v3686 = vadd.f32 0.0, %v3685
    %v3687 = vpop.f32.mrb[0].mxu0
    %3688 = vdwg.mxu0
    %s3689 = scalar_lea.vmem %s12, 40
    %v3690 = vld [vmem:[%s3689] sm:$0xff]
    %v3692 = vsel %vm842, %v3686, 0
    %3694 = vmatprep.subr.mxu0 0.0
    %3695 = vmatpush1.msra.mxu0 %v3690
    %3696 = vmatprep.subr.mxu0 0.0
    %3697 = vmatpush1.msra.mxu0 0.0
    %3698 = vmatprep.subr.mxu0 0.0
    %3699 = vmatpush1.msra.mxu0 0.0
    %3700 = vmatprep.subr.mxu0 0.0
    %3701 = vmatpush1.msra.mxu0 0.0
    %3702 = vmatprep.subr.mxu0 0.0
    %3703 = vmatpush1.msra.mxu0 0.0
    %3704 = vmatprep.subr.mxu0 0.0
    %3705 = vmatpush1.msra.mxu0 0.0
    %3706 = vmatprep.subr.mxu0 0.0
    %3707 = vmatpush1.msra.mxu0 0.0
    %3708 = vmatprep.subr.mxu0 0.0
    %3709 = vmatpush1.msra.mxu0 0.0
    %3710 = vmatprep.subr.mxu0 0.0
    %3711 = vmatpush1.msra.mxu0 0.0
    %3712 = vmatprep.subr.mxu0 0.0
    %3713 = vmatpush1.msra.mxu0 0.0
    %3714 = vmatprep.subr.mxu0 0.0
    %3715 = vmatpush1.msra.mxu0 0.0
    %3716 = vmatprep.subr.mxu0 0.0
    %3717 = vmatpush1.msra.mxu0 0.0
    %3718 = vmatprep.subr.mxu0 0.0
    %3719 = vmatpush1.msra.mxu0 0.0
    %3720 = vmatprep.subr.mxu0 0.0
    %3721 = vmatpush1.msra.mxu0 0.0
    %3722 = vmatprep.subr.mxu0 0.0
    %3723 = vmatpush1.msra.mxu0 0.0
    %3724 = vmatprep.subr.mxu0 0.0
    %3725 = vmatpush1.msra.mxu0 0.0
    %3726 = vmatprep.subr.mxu0 0.0
    %3727 = vmatpush1.msra.mxu0 0.0
    %3728 = vmatprep.subr.mxu0 0.0
    %3729 = vmatpush1.msra.mxu0 0.0
    %3730 = vmatprep.subr.mxu0 0.0
    %3731 = vmatpush1.msra.mxu0 0.0
    %3732 = vmatprep.subr.mxu0 0.0
    %3733 = vmatpush1.msra.mxu0 0.0
    %3734 = vmatprep.subr.mxu0 0.0
    %3735 = vmatpush1.msra.mxu0 0.0
    %3736 = vmatprep.subr.mxu0 0.0
    %3737 = vmatpush1.msra.mxu0 0.0
    %3738 = vmatprep.subr.mxu0 0.0
    %3739 = vmatpush1.msra.mxu0 0.0
    %3740 = vmatprep.subr.mxu0 0.0
    %3741 = vmatpush1.msra.mxu0 0.0
    %3742 = vmatprep.subr.mxu0 0.0
    %3743 = vmatpush1.msra.mxu0 0.0
    %3744 = vmatprep.subr.mxu0 0.0
    %3745 = vmatpush1.msra.mxu0 0.0
    %3746 = vmatprep.subr.mxu0 0.0
    %3747 = vmatpush1.msra.mxu0 0.0
    %3748 = vmatprep.subr.mxu0 0.0
    %3749 = vmatpush1.msra.mxu0 0.0
    %3750 = vmatprep.subr.mxu0 0.0
    %3751 = vmatpush1.msra.mxu0 0.0
    %3752 = vmatprep.subr.mxu0 0.0
    %3753 = vmatpush1.msra.mxu0 0.0
    %3754 = vmatprep.subr.mxu0 0.0
    %3755 = vmatpush1.msra.mxu0 0.0
    %3756 = vmatprep.subr.mxu0 0.0
    %3757 = vmatpush1.msra.mxu0 0.0
    %3758 = vmatprep.mubr.f32.mxu0 0.0
    %3759 = vmatmul.mubr.f32.gmra.mrb[0].mxu0 %v3692
    %v3760 = vpop.f32.mrb[0].mxu0
    %v3761 = vadd.f32 0.0, %v3760
    %v3762 = vpop.f32.mrb[0].mxu0
    %3763 = vdwg.mxu0
    %v3764 = vadd.f32 %v3278, %v3761
    %s3765 = scalar_lea.vmem %s6, 192
    %v3766 = vld [vmem:[%s3765] sm:$0xff]
    %v3767 = vld [vmem:[%s3765 + $0x8] sm:$0xff]
    %v3768 = vld [vmem:[%s3765 + $0x10] sm:$0xff]
    %v3769 = vld [vmem:[%s3765 + $0x18] sm:$0xff]
    %s3770 = scalar_lea.vmem %s7, 6
    %v3771 = vld [vmem:[%s3770] sm:$0x1]
    %v3773 = vlaneseq
    %v3774 = vshrl.u32 %v3773, 7
    %v3775 = vsub.s32 0, %v3774
    %v3776 = vrot.slane %v3771, %v3775
    %3778 = vmatprep.subr.mxu0 0.0
    %3779 = vmatpush1.msra.mxu0 %v3766
    %3780 = vmatprep.subr.mxu0 0.0
    %3781 = vmatpush1.msra.mxu0 %v3767
    %3782 = vmatprep.subr.mxu0 0.0
    %3783 = vmatpush1.msra.mxu0 %v3768
    %3784 = vmatprep.subr.mxu0 0.0
    %3785 = vmatpush1.msra.mxu0 %v3769
    %3786 = vmatprep.subr.mxu0 0.0
    %3787 = vmatpush1.msra.mxu0 0.0
    %3788 = vmatprep.subr.mxu0 0.0
    %3789 = vmatpush1.msra.mxu0 0.0
    %3790 = vmatprep.subr.mxu0 0.0
    %3791 = vmatpush1.msra.mxu0 0.0
    %3792 = vmatprep.subr.mxu0 0.0
    %3793 = vmatpush1.msra.mxu0 0.0
    %3794 = vmatprep.subr.mxu0 0.0
    %3795 = vmatpush1.msra.mxu0 0.0
    %3796 = vmatprep.subr.mxu0 0.0
    %3797 = vmatpush1.msra.mxu0 0.0
    %3798 = vmatprep.subr.mxu0 0.0
    %3799 = vmatpush1.msra.mxu0 0.0
    %3800 = vmatprep.subr.mxu0 0.0
    %3801 = vmatpush1.msra.mxu0 0.0
    %3802 = vmatprep.subr.mxu0 0.0
    %3803 = vmatpush1.msra.mxu0 0.0
    %3804 = vmatprep.subr.mxu0 0.0
    %3805 = vmatpush1.msra.mxu0 0.0
    %3806 = vmatprep.subr.mxu0 0.0
    %3807 = vmatpush1.msra.mxu0 0.0
    %3808 = vmatprep.subr.mxu0 0.0
    %3809 = vmatpush1.msra.mxu0 0.0
    %3810 = vmatprep.subr.mxu0 0.0
    %3811 = vmatpush1.msra.mxu0 0.0
    %3812 = vmatprep.subr.mxu0 0.0
    %3813 = vmatpush1.msra.mxu0 0.0
    %3814 = vmatprep.subr.mxu0 0.0
    %3815 = vmatpush1.msra.mxu0 0.0
    %3816 = vmatprep.subr.mxu0 0.0
    %3817 = vmatpush1.msra.mxu0 0.0
    %3818 = vmatprep.subr.mxu0 0.0
    %3819 = vmatpush1.msra.mxu0 0.0
    %3820 = vmatprep.subr.mxu0 0.0
    %3821 = vmatpush1.msra.mxu0 0.0
    %3822 = vmatprep.subr.mxu0 0.0
    %3823 = vmatpush1.msra.mxu0 0.0
    %3824 = vmatprep.subr.mxu0 0.0
    %3825 = vmatpush1.msra.mxu0 0.0
    %3826 = vmatprep.subr.mxu0 0.0
    %3827 = vmatpush1.msra.mxu0 0.0
    %3828 = vmatprep.subr.mxu0 0.0
    %3829 = vmatpush1.msra.mxu0 0.0
    %3830 = vmatprep.subr.mxu0 0.0
    %3831 = vmatpush1.msra.mxu0 0.0
    %3832 = vmatprep.subr.mxu0 0.0
    %3833 = vmatpush1.msra.mxu0 0.0
    %3834 = vmatprep.subr.mxu0 0.0
    %3835 = vmatpush1.msra.mxu0 0.0
    %3836 = vmatprep.subr.mxu0 0.0
    %3837 = vmatpush1.msra.mxu0 0.0
    %3838 = vmatprep.subr.mxu0 0.0
    %3839 = vmatpush1.msra.mxu0 0.0
    %3840 = vmatprep.subr.mxu0 0.0
    %3841 = vmatpush1.msra.mxu0 0.0
    %3842 = vmatprep.mubr.f32.mxu0 0.0
    %3843 = vmatmul.mubr.f32.gmra.mrb[0].mxu0 %v2798
    %v3844 = vpop.f32.mrb[0].mxu0
    %v3845 = vadd.f32 %v3776, %v3844
    %v3846 = vpop.f32.mrb[0].mxu0
    %3847 = vdwg.mxu0
    %s3848 = scalar_lea.vmem %s8, 192
    %v3849 = vld [vmem:[%s3848] sm:$0xff]
    %v3850 = vld [vmem:[%s3848 + $0x8] sm:$0xff]
    %v3851 = vld [vmem:[%s3848 + $0x10] sm:$0xff]
    %v3852 = vld [vmem:[%s3848 + $0x18] sm:$0xff]
    %s3853 = scalar_lea.vmem %s9, 6
    %v3854 = vld [vmem:[%s3853] sm:$0x1]
    %v3856 = vlaneseq
    %v3857 = vshrl.u32 %v3856, 7
    %v3858 = vsub.s32 0, %v3857
    %v3859 = vrot.slane %v3854, %v3858
    %3861 = vmatprep.subr.mxu0 0.0
    %3862 = vmatpush1.msra.mxu0 %v3849
    %3863 = vmatprep.subr.mxu0 0.0
    %3864 = vmatpush1.msra.mxu0 %v3850
    %3865 = vmatprep.subr.mxu0 0.0
    %3866 = vmatpush1.msra.mxu0 %v3851
    %3867 = vmatprep.subr.mxu0 0.0
    %3868 = vmatpush1.msra.mxu0 %v3852
    %3869 = vmatprep.subr.mxu0 0.0
    %3870 = vmatpush1.msra.mxu0 0.0
    %3871 = vmatprep.subr.mxu0 0.0
    %3872 = vmatpush1.msra.mxu0 0.0
    %3873 = vmatprep.subr.mxu0 0.0
    %3874 = vmatpush1.msra.mxu0 0.0
    %3875 = vmatprep.subr.mxu0 0.0
    %3876 = vmatpush1.msra.mxu0 0.0
    %3877 = vmatprep.subr.mxu0 0.0
    %3878 = vmatpush1.msra.mxu0 0.0
    %3879 = vmatprep.subr.mxu0 0.0
    %3880 = vmatpush1.msra.mxu0 0.0
    %3881 = vmatprep.subr.mxu0 0.0
    %3882 = vmatpush1.msra.mxu0 0.0
    %3883 = vmatprep.subr.mxu0 0.0
    %3884 = vmatpush1.msra.mxu0 0.0
    %3885 = vmatprep.subr.mxu0 0.0
    %3886 = vmatpush1.msra.mxu0 0.0
    %3887 = vmatprep.subr.mxu0 0.0
    %3888 = vmatpush1.msra.mxu0 0.0
    %3889 = vmatprep.subr.mxu0 0.0
    %3890 = vmatpush1.msra.mxu0 0.0
    %3891 = vmatprep.subr.mxu0 0.0
    %3892 = vmatpush1.msra.mxu0 0.0
    %3893 = vmatprep.subr.mxu0 0.0
    %3894 = vmatpush1.msra.mxu0 0.0
    %3895 = vmatprep.subr.mxu0 0.0
    %3896 = vmatpush1.msra.mxu0 0.0
    %3897 = vmatprep.subr.mxu0 0.0
    %3898 = vmatpush1.msra.mxu0 0.0
    %3899 = vmatprep.subr.mxu0 0.0
    %3900 = vmatpush1.msra.mxu0 0.0
    %3901 = vmatprep.subr.mxu0 0.0
    %3902 = vmatpush1.msra.mxu0 0.0
    %3903 = vmatprep.subr.mxu0 0.0
    %3904 = vmatpush1.msra.mxu0 0.0
    %3905 = vmatprep.subr.mxu0 0.0
    %3906 = vmatpush1.msra.mxu0 0.0
    %3907 = vmatprep.subr.mxu0 0.0
    %3908 = vmatpush1.msra.mxu0 0.0
    %3909 = vmatprep.subr.mxu0 0.0
    %3910 = vmatpush1.msra.mxu0 0.0
    %3911 = vmatprep.subr.mxu0 0.0
    %3912 = vmatpush1.msra.mxu0 0.0
    %3913 = vmatprep.subr.mxu0 0.0
    %3914 = vmatpush1.msra.mxu0 0.0
    %3915 = vmatprep.subr.mxu0 0.0
    %3916 = vmatpush1.msra.mxu0 0.0
    %3917 = vmatprep.subr.mxu0 0.0
    %3918 = vmatpush1.msra.mxu0 0.0
    %3919 = vmatprep.subr.mxu0 0.0
    %3920 = vmatpush1.msra.mxu0 0.0
    %3921 = vmatprep.subr.mxu0 0.0
    %3922 = vmatpush1.msra.mxu0 0.0
    %3923 = vmatprep.subr.mxu0 0.0
    %3924 = vmatpush1.msra.mxu0 0.0
    %3925 = vmatprep.mubr.f32.mxu0 0.0
    %3926 = vmatmul.mubr.f32.gmra.mrb[0].mxu0 %v2798
    %v3927 = vpop.f32.mrb[0].mxu0
    %v3928 = vadd.f32 %v3859, %v3927
    %v3929 = vpop.f32.mrb[0].mxu0
    %3930 = vdwg.mxu0
    %s3931 = scalar_lea.vmem %s10, 192
    %v3932 = vld [vmem:[%s3931] sm:$0xff]
    %v3933 = vld [vmem:[%s3931 + $0x8] sm:$0xff]
    %v3934 = vld [vmem:[%s3931 + $0x10] sm:$0xff]
    %v3935 = vld [vmem:[%s3931 + $0x18] sm:$0xff]
    %s3936 = scalar_lea.vmem %s11, 6
    %v3937 = vld [vmem:[%s3936] sm:$0x1]
    %v3939 = vlaneseq
    %v3940 = vshrl.u32 %v3939, 7
    %v3941 = vsub.s32 0, %v3940
    %v3942 = vrot.slane %v3937, %v3941
    %3944 = vmatprep.subr.mxu0 0.0
    %3945 = vmatpush1.msra.mxu0 %v3932
    %3946 = vmatprep.subr.mxu0 0.0
    %3947 = vmatpush1.msra.mxu0 %v3933
    %3948 = vmatprep.subr.mxu0 0.0
    %3949 = vmatpush1.msra.mxu0 %v3934
    %3950 = vmatprep.subr.mxu0 0.0
    %3951 = vmatpush1.msra.mxu0 %v3935
    %3952 = vmatprep.subr.mxu0 0.0
    %3953 = vmatpush1.msra.mxu0 0.0
    %3954 = vmatprep.subr.mxu0 0.0
    %3955 = vmatpush1.msra.mxu0 0.0
    %3956 = vmatprep.subr.mxu0 0.0
    %3957 = vmatpush1.msra.mxu0 0.0
    %3958 = vmatprep.subr.mxu0 0.0
    %3959 = vmatpush1.msra.mxu0 0.0
    %3960 = vmatprep.subr.mxu0 0.0
    %3961 = vmatpush1.msra.mxu0 0.0
    %3962 = vmatprep.subr.mxu0 0.0
    %3963 = vmatpush1.msra.mxu0 0.0
    %3964 = vmatprep.subr.mxu0 0.0
    %3965 = vmatpush1.msra.mxu0 0.0
    %3966 = vmatprep.subr.mxu0 0.0
    %3967 = vmatpush1.msra.mxu0 0.0
    %3968 = vmatprep.subr.mxu0 0.0
    %3969 = vmatpush1.msra.mxu0 0.0
    %3970 = vmatprep.subr.mxu0 0.0
    %3971 = vmatpush1.msra.mxu0 0.0
    %3972 = vmatprep.subr.mxu0 0.0
    %3973 = vmatpush1.msra.mxu0 0.0
    %3974 = vmatprep.subr.mxu0 0.0
    %3975 = vmatpush1.msra.mxu0 0.0
    %3976 = vmatprep.subr.mxu0 0.0
    %3977 = vmatpush1.msra.mxu0 0.0
    %3978 = vmatprep.subr.mxu0 0.0
    %3979 = vmatpush1.msra.mxu0 0.0
    %3980 = vmatprep.subr.mxu0 0.0
    %3981 = vmatpush1.msra.mxu0 0.0
    %3982 = vmatprep.subr.mxu0 0.0
    %3983 = vmatpush1.msra.mxu0 0.0
    %3984 = vmatprep.subr.mxu0 0.0
    %3985 = vmatpush1.msra.mxu0 0.0
    %3986 = vmatprep.subr.mxu0 0.0
    %3987 = vmatpush1.msra.mxu0 0.0
    %3988 = vmatprep.subr.mxu0 0.0
    %3989 = vmatpush1.msra.mxu0 0.0
    %3990 = vmatprep.subr.mxu0 0.0
    %3991 = vmatpush1.msra.mxu0 0.0
    %3992 = vmatprep.subr.mxu0 0.0
    %3993 = vmatpush1.msra.mxu0 0.0
    %3994 = vmatprep.subr.mxu0 0.0
    %3995 = vmatpush1.msra.mxu0 0.0
    %3996 = vmatprep.subr.mxu0 0.0
    %3997 = vmatpush1.msra.mxu0 0.0
    %3998 = vmatprep.subr.mxu0 0.0
    %3999 = vmatpush1.msra.mxu0 0.0
    %4000 = vmatprep.subr.mxu0 0.0
    %4001 = vmatpush1.msra.mxu0 0.0
    %4002 = vmatprep.subr.mxu0 0.0
    %4003 = vmatpush1.msra.mxu0 0.0
    %4004 = vmatprep.subr.mxu0 0.0
    %4005 = vmatpush1.msra.mxu0 0.0
    %4006 = vmatprep.subr.mxu0 0.0
    %4007 = vmatpush1.msra.mxu0 0.0
    %4008 = vmatprep.mubr.f32.mxu0 0.0
    %4009 = vmatmul.mubr.f32.gmra.mrb[0].mxu0 %v2798
    %v4010 = vpop.f32.mrb[0].mxu0
    %v4011 = vadd.f32 %v3942, %v4010
    %v4012 = vpop.f32.mrb[0].mxu0
    %4013 = vdwg.mxu0
    %v4015 = vsel %vm842, %v3845, 0
    %v4018 = vsel %vm842, %v3928, 0
    %4020 = vmatprep.subr.mxu0 0.0
    %4021 = vmatpush1.xpose.msra.mxu0 %v4018
    %4022 = vmatprep.subr.mxu0 0.0
    %4023 = vmatpush1.xpose.msra.mxu0 0.0
    %4024 = vmatprep.subr.mxu0 0.0
    %4025 = vmatpush1.xpose.msra.mxu0 0.0
    %4026 = vmatprep.subr.mxu0 0.0
    %4027 = vmatpush1.xpose.msra.mxu0 0.0
    %4028 = vmatprep.subr.mxu0 0.0
    %4029 = vmatpush1.xpose.msra.mxu0 0.0
    %4030 = vmatprep.subr.mxu0 0.0
    %4031 = vmatpush1.xpose.msra.mxu0 0.0
    %4032 = vmatprep.subr.mxu0 0.0
    %4033 = vmatpush1.xpose.msra.mxu0 0.0
    %4034 = vmatprep.subr.mxu0 0.0
    %4035 = vmatpush1.xpose.msra.mxu0 0.0
    %4036 = vmatprep.subr.mxu0 0.0
    %4037 = vmatpush1.xpose.msra.mxu0 0.0
    %4038 = vmatprep.subr.mxu0 0.0
    %4039 = vmatpush1.xpose.msra.mxu0 0.0
    %4040 = vmatprep.subr.mxu0 0.0
    %4041 = vmatpush1.xpose.msra.mxu0 0.0
    %4042 = vmatprep.subr.mxu0 0.0
    %4043 = vmatpush1.xpose.msra.mxu0 0.0
    %4044 = vmatprep.subr.mxu0 0.0
    %4045 = vmatpush1.xpose.msra.mxu0 0.0
    %4046 = vmatprep.subr.mxu0 0.0
    %4047 = vmatpush1.xpose.msra.mxu0 0.0
    %4048 = vmatprep.subr.mxu0 0.0
    %4049 = vmatpush1.xpose.msra.mxu0 0.0
    %4050 = vmatprep.subr.mxu0 0.0
    %4051 = vmatpush1.xpose.msra.mxu0 0.0
    %4052 = vmatprep.subr.mxu0 0.0
    %4053 = vmatpush1.xpose.msra.mxu0 0.0
    %4054 = vmatprep.subr.mxu0 0.0
    %4055 = vmatpush1.xpose.msra.mxu0 0.0
    %4056 = vmatprep.subr.mxu0 0.0
    %4057 = vmatpush1.xpose.msra.mxu0 0.0
    %4058 = vmatprep.subr.mxu0 0.0
    %4059 = vmatpush1.xpose.msra.mxu0 0.0
    %4060 = vmatprep.subr.mxu0 0.0
    %4061 = vmatpush1.xpose.msra.mxu0 0.0
    %4062 = vmatprep.subr.mxu0 0.0
    %4063 = vmatpush1.xpose.msra.mxu0 0.0
    %4064 = vmatprep.subr.mxu0 0.0
    %4065 = vmatpush1.xpose.msra.mxu0 0.0
    %4066 = vmatprep.subr.mxu0 0.0
    %4067 = vmatpush1.xpose.msra.mxu0 0.0
    %4068 = vmatprep.subr.mxu0 0.0
    %4069 = vmatpush1.xpose.msra.mxu0 0.0
    %4070 = vmatprep.subr.mxu0 0.0
    %4071 = vmatpush1.xpose.msra.mxu0 0.0
    %4072 = vmatprep.subr.mxu0 0.0
    %4073 = vmatpush1.xpose.msra.mxu0 0.0
    %4074 = vmatprep.subr.mxu0 0.0
    %4075 = vmatpush1.xpose.msra.mxu0 0.0
    %4076 = vmatprep.subr.mxu0 0.0
    %4077 = vmatpush1.xpose.msra.mxu0 0.0
    %4078 = vmatprep.subr.mxu0 0.0
    %4079 = vmatpush1.xpose.msra.mxu0 0.0
    %4080 = vmatprep.subr.mxu0 0.0
    %4081 = vmatpush1.xpose.msra.mxu0 0.0
    %4082 = vmatprep.subr.mxu0 0.0
    %4083 = vmatpush1.xpose.msra.mxu0 0.0
    %4084 = vmatprep.mubr.f32.mxu0 0.0
    %4085 = vmatmul.mubr.f32.gmra.mrb[0].mxu0 %v4015
    %v4086 = vpop.f32.mrb[0].mxu0
    %v4087 = vadd.f32 0.0, %v4086
    %v4088 = vpop.f32.mrb[0].mxu0
    %4089 = vdwg.mxu0
    %v4090 = vmul.f32 %v4087, 0.35355338
    %v4091 = vsel %vm842, %v4090, -inf
    %4092 = vmax.xlane.f32.xlu0 %v4091
    %v4093 = vpop.xlane.xlu0 %4092
    %v4094 = vsub.f32 %v4090, %v4093
    %v4095 = vmul.f32 %v4094, 1.442695
    %v4096 = vpow.pop %v4095
    %v4097 = vsel %vm842, %v4096, 0.0
    %4098 = vadd.xlane.f32.xlu0 %v4097
    %v4099 = vpop.xlane.xlu0 %4098
    %v4100 = vrcp.pop %v4099
    %v4101 = vmul.f32 %v4096, %v4100
    %v4103 = vsel %vm842, %v4101, 0
    %4105 = vmatprep.subr.mxu0 0.0
    %4106 = vmatpush1.msra.mxu0 %v4011
    %4107 = vmatprep.subr.mxu0 0.0
    %4108 = vmatpush1.msra.mxu0 0.0
    %4109 = vmatprep.subr.mxu0 0.0
    %4110 = vmatpush1.msra.mxu0 0.0
    %4111 = vmatprep.subr.mxu0 0.0
    %4112 = vmatpush1.msra.mxu0 0.0
    %4113 = vmatprep.subr.mxu0 0.0
    %4114 = vmatpush1.msra.mxu0 0.0
    %4115 = vmatprep.subr.mxu0 0.0
    %4116 = vmatpush1.msra.mxu0 0.0
    %4117 = vmatprep.subr.mxu0 0.0
    %4118 = vmatpush1.msra.mxu0 0.0
    %4119 = vmatprep.subr.mxu0 0.0
    %4120 = vmatpush1.msra.mxu0 0.0
    %4121 = vmatprep.subr.mxu0 0.0
    %4122 = vmatpush1.msra.mxu0 0.0
    %4123 = vmatprep.subr.mxu0 0.0
    %4124 = vmatpush1.msra.mxu0 0.0
    %4125 = vmatprep.subr.mxu0 0.0
    %4126 = vmatpush1.msra.mxu0 0.0
    %4127 = vmatprep.subr.mxu0 0.0
    %4128 = vmatpush1.msra.mxu0 0.0
    %4129 = vmatprep.subr.mxu0 0.0
    %4130 = vmatpush1.msra.mxu0 0.0
    %4131 = vmatprep.subr.mxu0 0.0
    %4132 = vmatpush1.msra.mxu0 0.0
    %4133 = vmatprep.subr.mxu0 0.0
    %4134 = vmatpush1.msra.mxu0 0.0
    %4135 = vmatprep.subr.mxu0 0.0
    %4136 = vmatpush1.msra.mxu0 0.0
    %4137 = vmatprep.subr.mxu0 0.0
    %4138 = vmatpush1.msra.mxu0 0.0
    %4139 = vmatprep.subr.mxu0 0.0
    %4140 = vmatpush1.msra.mxu0 0.0
    %4141 = vmatprep.subr.mxu0 0.0
    %4142 = vmatpush1.msra.mxu0 0.0
    %4143 = vmatprep.subr.mxu0 0.0
    %4144 = vmatpush1.msra.mxu0 0.0
    %4145 = vmatprep.subr.mxu0 0.0
    %4146 = vmatpush1.msra.mxu0 0.0
    %4147 = vmatprep.subr.mxu0 0.0
    %4148 = vmatpush1.msra.mxu0 0.0
    %4149 = vmatprep.subr.mxu0 0.0
    %4150 = vmatpush1.msra.mxu0 0.0
    %4151 = vmatprep.subr.mxu0 0.0
    %4152 = vmatpush1.msra.mxu0 0.0
    %4153 = vmatprep.subr.mxu0 0.0
    %4154 = vmatpush1.msra.mxu0 0.0
    %4155 = vmatprep.subr.mxu0 0.0
    %4156 = vmatpush1.msra.mxu0 0.0
    %4157 = vmatprep.subr.mxu0 0.0
    %4158 = vmatpush1.msra.mxu0 0.0
    %4159 = vmatprep.subr.mxu0 0.0
    %4160 = vmatpush1.msra.mxu0 0.0
    %4161 = vmatprep.subr.mxu0 0.0
    %4162 = vmatpush1.msra.mxu0 0.0
    %4163 = vmatprep.subr.mxu0 0.0
    %4164 = vmatpush1.msra.mxu0 0.0
    %4165 = vmatprep.subr.mxu0 0.0
    %4166 = vmatpush1.msra.mxu0 0.0
    %4167 = vmatprep.subr.mxu0 0.0
    %4168 = vmatpush1.msra.mxu0 0.0
    %4169 = vmatprep.mubr.f32.mxu0 0.0
    %4170 = vmatmul.mubr.f32.gmra.mrb[0].mxu0 %v4103
    %v4171 = vpop.f32.mrb[0].mxu0
    %v4172 = vadd.f32 0.0, %v4171
    %v4173 = vpop.f32.mrb[0].mxu0
    %4174 = vdwg.mxu0
    %s4175 = scalar_lea.vmem %s12, 48
    %v4176 = vld [vmem:[%s4175] sm:$0xff]
    %v4178 = vsel %vm842, %v4172, 0
    %4180 = vmatprep.subr.mxu0 0.0
    %4181 = vmatpush1.msra.mxu0 %v4176
    %4182 = vmatprep.subr.mxu0 0.0
    %4183 = vmatpush1.msra.mxu0 0.0
    %4184 = vmatprep.subr.mxu0 0.0
    %4185 = vmatpush1.msra.mxu0 0.0
    %4186 = vmatprep.subr.mxu0 0.0
    %4187 = vmatpush1.msra.mxu0 0.0
    %4188 = vmatprep.subr.mxu0 0.0
    %4189 = vmatpush1.msra.mxu0 0.0
    %4190 = vmatprep.subr.mxu0 0.0
    %4191 = vmatpush1.msra.mxu0 0.0
    %4192 = vmatprep.subr.mxu0 0.0
    %4193 = vmatpush1.msra.mxu0 0.0
    %4194 = vmatprep.subr.mxu0 0.0
    %4195 = vmatpush1.msra.mxu0 0.0
    %4196 = vmatprep.subr.mxu0 0.0
    %4197 = vmatpush1.msra.mxu0 0.0
    %4198 = vmatprep.subr.mxu0 0.0
    %4199 = vmatpush1.msra.mxu0 0.0
    %4200 = vmatprep.subr.mxu0 0.0
    %4201 = vmatpush1.msra.mxu0 0.0
    %4202 = vmatprep.subr.mxu0 0.0
    %4203 = vmatpush1.msra.mxu0 0.0
    %4204 = vmatprep.subr.mxu0 0.0
    %4205 = vmatpush1.msra.mxu0 0.0
    %4206 = vmatprep.subr.mxu0 0.0
    %4207 = vmatpush1.msra.mxu0 0.0
    %4208 = vmatprep.subr.mxu0 0.0
    %4209 = vmatpush1.msra.mxu0 0.0
    %4210 = vmatprep.subr.mxu0 0.0
    %4211 = vmatpush1.msra.mxu0 0.0
    %4212 = vmatprep.subr.mxu0 0.0
    %4213 = vmatpush1.msra.mxu0 0.0
    %4214 = vmatprep.subr.mxu0 0.0
    %4215 = vmatpush1.msra.mxu0 0.0
    %4216 = vmatprep.subr.mxu0 0.0
    %4217 = vmatpush1.msra.mxu0 0.0
    %4218 = vmatprep.subr.mxu0 0.0
    %4219 = vmatpush1.msra.mxu0 0.0
    %4220 = vmatprep.subr.mxu0 0.0
    %4221 = vmatpush1.msra.mxu0 0.0
    %4222 = vmatprep.subr.mxu0 0.0
    %4223 = vmatpush1.msra.mxu0 0.0
    %4224 = vmatprep.subr.mxu0 0.0
    %4225 = vmatpush1.msra.mxu0 0.0
    %4226 = vmatprep.subr.mxu0 0.0
    %4227 = vmatpush1.msra.mxu0 0.0
    %4228 = vmatprep.subr.mxu0 0.0
    %4229 = vmatpush1.msra.mxu0 0.0
    %4230 = vmatprep.subr.mxu0 0.0
    %4231 = vmatpush1.msra.mxu0 0.0
    %4232 = vmatprep.subr.mxu0 0.0
    %4233 = vmatpush1.msra.mxu0 0.0
    %4234 = vmatprep.subr.mxu0 0.0
    %4235 = vmatpush1.msra.mxu0 0.0
    %4236 = vmatprep.subr.mxu0 0.0
    %4237 = vmatpush1.msra.mxu0 0.0
    %4238 = vmatprep.subr.mxu0 0.0
    %4239 = vmatpush1.msra.mxu0 0.0
    %4240 = vmatprep.subr.mxu0 0.0
    %4241 = vmatpush1.msra.mxu0 0.0
    %4242 = vmatprep.subr.mxu0 0.0
    %4243 = vmatpush1.msra.mxu0 0.0
    %4244 = vmatprep.mubr.f32.mxu0 0.0
    %4245 = vmatmul.mubr.f32.gmra.mrb[0].mxu0 %v4178
    %v4246 = vpop.f32.mrb[0].mxu0
    %v4247 = vadd.f32 0.0, %v4246
    %v4248 = vpop.f32.mrb[0].mxu0
    %4249 = vdwg.mxu0
    %v4250 = vadd.f32 %v3764, %v4247
    %s4251 = scalar_lea.vmem %s6, 224
    %v4252 = vld [vmem:[%s4251] sm:$0xff]
    %v4253 = vld [vmem:[%s4251 + $0x8] sm:$0xff]
    %v4254 = vld [vmem:[%s4251 + $0x10] sm:$0xff]
    %v4255 = vld [vmem:[%s4251 + $0x18] sm:$0xff]
    %s4256 = scalar_lea.vmem %s7, 7
    %v4257 = vld [vmem:[%s4256] sm:$0x1]
    %v4259 = vlaneseq
    %v4260 = vshrl.u32 %v4259, 7
    %v4261 = vsub.s32 0, %v4260
    %v4262 = vrot.slane %v4257, %v4261
    %4264 = vmatprep.subr.mxu0 0.0
    %4265 = vmatpush1.msra.mxu0 %v4252
    %4266 = vmatprep.subr.mxu0 0.0
    %4267 = vmatpush1.msra.mxu0 %v4253
    %4268 = vmatprep.subr.mxu0 0.0
    %4269 = vmatpush1.msra.mxu0 %v4254
    %4270 = vmatprep.subr.mxu0 0.0
    %4271 = vmatpush1.msra.mxu0 %v4255
    %4272 = vmatprep.subr.mxu0 0.0
    %4273 = vmatpush1.msra.mxu0 0.0
    %4274 = vmatprep.subr.mxu0 0.0
    %4275 = vmatpush1.msra.mxu0 0.0
    %4276 = vmatprep.subr.mxu0 0.0
    %4277 = vmatpush1.msra.mxu0 0.0
    %4278 = vmatprep.subr.mxu0 0.0
    %4279 = vmatpush1.msra.mxu0 0.0
    %4280 = vmatprep.subr.mxu0 0.0
    %4281 = vmatpush1.msra.mxu0 0.0
    %4282 = vmatprep.subr.mxu0 0.0
    %4283 = vmatpush1.msra.mxu0 0.0
    %4284 = vmatprep.subr.mxu0 0.0
    %4285 = vmatpush1.msra.mxu0 0.0
    %4286 = vmatprep.subr.mxu0 0.0
    %4287 = vmatpush1.msra.mxu0 0.0
    %4288 = vmatprep.subr.mxu0 0.0
    %4289 = vmatpush1.msra.mxu0 0.0
    %4290 = vmatprep.subr.mxu0 0.0
    %4291 = vmatpush1.msra.mxu0 0.0
    %4292 = vmatprep.subr.mxu0 0.0
    %4293 = vmatpush1.msra.mxu0 0.0
    %4294 = vmatprep.subr.mxu0 0.0
    %4295 = vmatpush1.msra.mxu0 0.0
    %4296 = vmatprep.subr.mxu0 0.0
    %4297 = vmatpush1.msra.mxu0 0.0
    %4298 = vmatprep.subr.mxu0 0.0
    %4299 = vmatpush1.msra.mxu0 0.0
    %4300 = vmatprep.subr.mxu0 0.0
    %4301 = vmatpush1.msra.mxu0 0.0
    %4302 = vmatprep.subr.mxu0 0.0
    %4303 = vmatpush1.msra.mxu0 0.0
    %4304 = vmatprep.subr.mxu0 0.0
    %4305 = vmatpush1.msra.mxu0 0.0
    %4306 = vmatprep.subr.mxu0 0.0
    %4307 = vmatpush1.msra.mxu0 0.0
    %4308 = vmatprep.subr.mxu0 0.0
    %4309 = vmatpush1.msra.mxu0 0.0
    %4310 = vmatprep.subr.mxu0 0.0
    %4311 = vmatpush1.msra.mxu0 0.0
    %4312 = vmatprep.subr.mxu0 0.0
    %4313 = vmatpush1.msra.mxu0 0.0
    %4314 = vmatprep.subr.mxu0 0.0
    %4315 = vmatpush1.msra.mxu0 0.0
    %4316 = vmatprep.subr.mxu0 0.0
    %4317 = vmatpush1.msra.mxu0 0.0
    %4318 = vmatprep.subr.mxu0 0.0
    %4319 = vmatpush1.msra.mxu0 0.0
    %4320 = vmatprep.subr.mxu0 0.0
    %4321 = vmatpush1.msra.mxu0 0.0
    %4322 = vmatprep.subr.mxu0 0.0
    %4323 = vmatpush1.msra.mxu0 0.0
    %4324 = vmatprep.subr.mxu0 0.0
    %4325 = vmatpush1.msra.mxu0 0.0
    %4326 = vmatprep.subr.mxu0 0.0
    %4327 = vmatpush1.msra.mxu0 0.0
    %4328 = vmatprep.mubr.f32.mxu0 0.0
    %4329 = vmatmul.mubr.f32.gmra.mrb[0].mxu0 %v2798
    %v4330 = vpop.f32.mrb[0].mxu0
    %v4331 = vadd.f32 %v4262, %v4330
    %v4332 = vpop.f32.mrb[0].mxu0
    %4333 = vdwg.mxu0
    %s4334 = scalar_lea.vmem %s8, 224
    %v4335 = vld [vmem:[%s4334] sm:$0xff]
    %v4336 = vld [vmem:[%s4334 + $0x8] sm:$0xff]
    %v4337 = vld [vmem:[%s4334 + $0x10] sm:$0xff]
    %v4338 = vld [vmem:[%s4334 + $0x18] sm:$0xff]
    %s4339 = scalar_lea.vmem %s9, 7
    %v4340 = vld [vmem:[%s4339] sm:$0x1]
    %v4342 = vlaneseq
    %v4343 = vshrl.u32 %v4342, 7
    %v4344 = vsub.s32 0, %v4343
    %v4345 = vrot.slane %v4340, %v4344
    %4347 = vmatprep.subr.mxu0 0.0
    %4348 = vmatpush1.msra.mxu0 %v4335
    %4349 = vmatprep.subr.mxu0 0.0
    %4350 = vmatpush1.msra.mxu0 %v4336
    %4351 = vmatprep.subr.mxu0 0.0
    %4352 = vmatpush1.msra.mxu0 %v4337
    %4353 = vmatprep.subr.mxu0 0.0
    %4354 = vmatpush1.msra.mxu0 %v4338
    %4355 = vmatprep.subr.mxu0 0.0
    %4356 = vmatpush1.msra.mxu0 0.0
    %4357 = vmatprep.subr.mxu0 0.0
    %4358 = vmatpush1.msra.mxu0 0.0
    %4359 = vmatprep.subr.mxu0 0.0
    %4360 = vmatpush1.msra.mxu0 0.0
    %4361 = vmatprep.subr.mxu0 0.0
    %4362 = vmatpush1.msra.mxu0 0.0
    %4363 = vmatprep.subr.mxu0 0.0
    %4364 = vmatpush1.msra.mxu0 0.0
    %4365 = vmatprep.subr.mxu0 0.0
    %4366 = vmatpush1.msra.mxu0 0.0
    %4367 = vmatprep.subr.mxu0 0.0
    %4368 = vmatpush1.msra.mxu0 0.0
    %4369 = vmatprep.subr.mxu0 0.0
    %4370 = vmatpush1.msra.mxu0 0.0
    %4371 = vmatprep.subr.mxu0 0.0
    %4372 = vmatpush1.msra.mxu0 0.0
    %4373 = vmatprep.subr.mxu0 0.0
    %4374 = vmatpush1.msra.mxu0 0.0
    %4375 = vmatprep.subr.mxu0 0.0
    %4376 = vmatpush1.msra.mxu0 0.0
    %4377 = vmatprep.subr.mxu0 0.0
    %4378 = vmatpush1.msra.mxu0 0.0
    %4379 = vmatprep.subr.mxu0 0.0
    %4380 = vmatpush1.msra.mxu0 0.0
    %4381 = vmatprep.subr.mxu0 0.0
    %4382 = vmatpush1.msra.mxu0 0.0
    %4383 = vmatprep.subr.mxu0 0.0
    %4384 = vmatpush1.msra.mxu0 0.0
    %4385 = vmatprep.subr.mxu0 0.0
    %4386 = vmatpush1.msra.mxu0 0.0
    %4387 = vmatprep.subr.mxu0 0.0
    %4388 = vmatpush1.msra.mxu0 0.0
    %4389 = vmatprep.subr.mxu0 0.0
    %4390 = vmatpush1.msra.mxu0 0.0
    %4391 = vmatprep.subr.mxu0 0.0
    %4392 = vmatpush1.msra.mxu0 0.0
    %4393 = vmatprep.subr.mxu0 0.0
    %4394 = vmatpush1.msra.mxu0 0.0
    %4395 = vmatprep.subr.mxu0 0.0
    %4396 = vmatpush1.msra.mxu0 0.0
    %4397 = vmatprep.subr.mxu0 0.0
    %4398 = vmatpush1.msra.mxu0 0.0
    %4399 = vmatprep.subr.mxu0 0.0
    %4400 = vmatpush1.msra.mxu0 0.0
    %4401 = vmatprep.subr.mxu0 0.0
    %4402 = vmatpush1.msra.mxu0 0.0
    %4403 = vmatprep.subr.mxu0 0.0
    %4404 = vmatpush1.msra.mxu0 0.0
    %4405 = vmatprep.subr.mxu0 0.0
    %4406 = vmatpush1.msra.mxu0 0.0
    %4407 = vmatprep.subr.mxu0 0.0
    %4408 = vmatpush1.msra.mxu0 0.0
    %4409 = vmatprep.subr.mxu0 0.0
    %4410 = vmatpush1.msra.mxu0 0.0
    %4411 = vmatprep.mubr.f32.mxu0 0.0
    %4412 = vmatmul.mubr.f32.gmra.mrb[0].mxu0 %v2798
    %v4413 = vpop.f32.mrb[0].mxu0
    %v4414 = vadd.f32 %v4345, %v4413
    %v4415 = vpop.f32.mrb[0].mxu0
    %4416 = vdwg.mxu0
    %s4417 = scalar_lea.vmem %s10, 224
    %v4418 = vld [vmem:[%s4417] sm:$0xff]
    %v4419 = vld [vmem:[%s4417 + $0x8] sm:$0xff]
    %v4420 = vld [vmem:[%s4417 + $0x10] sm:$0xff]
    %v4421 = vld [vmem:[%s4417 + $0x18] sm:$0xff]
    %s4422 = scalar_lea.vmem %s11, 7
    %v4423 = vld [vmem:[%s4422] sm:$0x1]
    %v4425 = vlaneseq
    %v4426 = vshrl.u32 %v4425, 7
    %v4427 = vsub.s32 0, %v4426
    %v4428 = vrot.slane %v4423, %v4427
    %4430 = vmatprep.subr.mxu0 0.0
    %4431 = vmatpush1.msra.mxu0 %v4418
    %4432 = vmatprep.subr.mxu0 0.0
    %4433 = vmatpush1.msra.mxu0 %v4419
    %4434 = vmatprep.subr.mxu0 0.0
    %4435 = vmatpush1.msra.mxu0 %v4420
    %4436 = vmatprep.subr.mxu0 0.0
    %4437 = vmatpush1.msra.mxu0 %v4421
    %4438 = vmatprep.subr.mxu0 0.0
    %4439 = vmatpush1.msra.mxu0 0.0
    %4440 = vmatprep.subr.mxu0 0.0
    %4441 = vmatpush1.msra.mxu0 0.0
    %4442 = vmatprep.subr.mxu0 0.0
    %4443 = vmatpush1.msra.mxu0 0.0
    %4444 = vmatprep.subr.mxu0 0.0
    %4445 = vmatpush1.msra.mxu0 0.0
    %4446 = vmatprep.subr.mxu0 0.0
    %4447 = vmatpush1.msra.mxu0 0.0
    %4448 = vmatprep.subr.mxu0 0.0
    %4449 = vmatpush1.msra.mxu0 0.0
    %4450 = vmatprep.subr.mxu0 0.0
    %4451 = vmatpush1.msra.mxu0 0.0
    %4452 = vmatprep.subr.mxu0 0.0
    %4453 = vmatpush1.msra.mxu0 0.0
    %4454 = vmatprep.subr.mxu0 0.0
    %4455 = vmatpush1.msra.mxu0 0.0
    %4456 = vmatprep.subr.mxu0 0.0
    %4457 = vmatpush1.msra.mxu0 0.0
    %4458 = vmatprep.subr.mxu0 0.0
    %4459 = vmatpush1.msra.mxu0 0.0
    %4460 = vmatprep.subr.mxu0 0.0
    %4461 = vmatpush1.msra.mxu0 0.0
    %4462 = vmatprep.subr.mxu0 0.0
    %4463 = vmatpush1.msra.mxu0 0.0
    %4464 = vmatprep.subr.mxu0 0.0
    %4465 = vmatpush1.msra.mxu0 0.0
    %4466 = vmatprep.subr.mxu0 0.0
    %4467 = vmatpush1.msra.mxu0 0.0
    %4468 = vmatprep.subr.mxu0 0.0
    %4469 = vmatpush1.msra.mxu0 0.0
    %4470 = vmatprep.subr.mxu0 0.0
    %4471 = vmatpush1.msra.mxu0 0.0
    %4472 = vmatprep.subr.mxu0 0.0
    %4473 = vmatpush1.msra.mxu0 0.0
    %4474 = vmatprep.subr.mxu0 0.0
    %4475 = vmatpush1.msra.mxu0 0.0
    %4476 = vmatprep.subr.mxu0 0.0
    %4477 = vmatpush1.msra.mxu0 0.0
    %4478 = vmatprep.subr.mxu0 0.0
    %4479 = vmatpush1.msra.mxu0 0.0
    %4480 = vmatprep.subr.mxu0 0.0
    %4481 = vmatpush1.msra.mxu0 0.0
    %4482 = vmatprep.subr.mxu0 0.0
    %4483 = vmatpush1.msra.mxu0 0.0
    %4484 = vmatprep.subr.mxu0 0.0
    %4485 = vmatpush1.msra.mxu0 0.0
    %4486 = vmatprep.subr.mxu0 0.0
    %4487 = vmatpush1.msra.mxu0 0.0
    %4488 = vmatprep.subr.mxu0 0.0
    %4489 = vmatpush1.msra.mxu0 0.0
    %4490 = vmatprep.subr.mxu0 0.0
    %4491 = vmatpush1.msra.mxu0 0.0
    %4492 = vmatprep.subr.mxu0 0.0
    %4493 = vmatpush1.msra.mxu0 0.0
    %4494 = vmatprep.mubr.f32.mxu0 0.0
    %4495 = vmatmul.mubr.f32.gmra.mrb[0].mxu0 %v2798
    %v4496 = vpop.f32.mrb[0].mxu0
    %v4497 = vadd.f32 %v4428, %v4496
    %v4498 = vpop.f32.mrb[0].mxu0
    %4499 = vdwg.mxu0
    %v4501 = vsel %vm842, %v4331, 0
    %v4504 = vsel %vm842, %v4414, 0
    %4506 = vmatprep.subr.mxu0 0.0
    %4507 = vmatpush1.xpose.msra.mxu0 %v4504
    %4508 = vmatprep.subr.mxu0 0.0
    %4509 = vmatpush1.xpose.msra.mxu0 0.0
    %4510 = vmatprep.subr.mxu0 0.0
    %4511 = vmatpush1.xpose.msra.mxu0 0.0
    %4512 = vmatprep.subr.mxu0 0.0
    %4513 = vmatpush1.xpose.msra.mxu0 0.0
    %4514 = vmatprep.subr.mxu0 0.0
    %4515 = vmatpush1.xpose.msra.mxu0 0.0
    %4516 = vmatprep.subr.mxu0 0.0
    %4517 = vmatpush1.xpose.msra.mxu0 0.0
    %4518 = vmatprep.subr.mxu0 0.0
    %4519 = vmatpush1.xpose.msra.mxu0 0.0
    %4520 = vmatprep.subr.mxu0 0.0
    %4521 = vmatpush1.xpose.msra.mxu0 0.0
    %4522 = vmatprep.subr.mxu0 0.0
    %4523 = vmatpush1.xpose.msra.mxu0 0.0
    %4524 = vmatprep.subr.mxu0 0.0
    %4525 = vmatpush1.xpose.msra.mxu0 0.0
    %4526 = vmatprep.subr.mxu0 0.0
    %4527 = vmatpush1.xpose.msra.mxu0 0.0
    %4528 = vmatprep.subr.mxu0 0.0
    %4529 = vmatpush1.xpose.msra.mxu0 0.0
    %4530 = vmatprep.subr.mxu0 0.0
    %4531 = vmatpush1.xpose.msra.mxu0 0.0
    %4532 = vmatprep.subr.mxu0 0.0
    %4533 = vmatpush1.xpose.msra.mxu0 0.0
    %4534 = vmatprep.subr.mxu0 0.0
    %4535 = vmatpush1.xpose.msra.mxu0 0.0
    %4536 = vmatprep.subr.mxu0 0.0
    %4537 = vmatpush1.xpose.msra.mxu0 0.0
    %4538 = vmatprep.subr.mxu0 0.0
    %4539 = vmatpush1.xpose.msra.mxu0 0.0
    %4540 = vmatprep.subr.mxu0 0.0
    %4541 = vmatpush1.xpose.msra.mxu0 0.0
    %4542 = vmatprep.subr.mxu0 0.0
    %4543 = vmatpush1.xpose.msra.mxu0 0.0
    %4544 = vmatprep.subr.mxu0 0.0
    %4545 = vmatpush1.xpose.msra.mxu0 0.0
    %4546 = vmatprep.subr.mxu0 0.0
    %4547 = vmatpush1.xpose.msra.mxu0 0.0
    %4548 = vmatprep.subr.mxu0 0.0
    %4549 = vmatpush1.xpose.msra.mxu0 0.0
    %4550 = vmatprep.subr.mxu0 0.0
    %4551 = vmatpush1.xpose.msra.mxu0 0.0
    %4552 = vmatprep.subr.mxu0 0.0
    %4553 = vmatpush1.xpose.msra.mxu0 0.0
    %4554 = vmatprep.subr.mxu0 0.0
    %4555 = vmatpush1.xpose.msra.mxu0 0.0
    %4556 = vmatprep.subr.mxu0 0.0
    %4557 = vmatpush1.xpose.msra.mxu0 0.0
    %4558 = vmatprep.subr.mxu0 0.0
    %4559 = vmatpush1.xpose.msra.mxu0 0.0
    %4560 = vmatprep.subr.mxu0 0.0
    %4561 = vmatpush1.xpose.msra.mxu0 0.0
    %4562 = vmatprep.subr.mxu0 0.0
    %4563 = vmatpush1.xpose.msra.mxu0 0.0
    %4564 = vmatprep.subr.mxu0 0.0
    %4565 = vmatpush1.xpose.msra.mxu0 0.0
    %4566 = vmatprep.subr.mxu0 0.0
    %4567 = vmatpush1.xpose.msra.mxu0 0.0
    %4568 = vmatprep.subr.mxu0 0.0
    %4569 = vmatpush1.xpose.msra.mxu0 0.0
    %4570 = vmatprep.mubr.f32.mxu0 0.0
    %4571 = vmatmul.mubr.f32.gmra.mrb[0].mxu0 %v4501
    %v4572 = vpop.f32.mrb[0].mxu0
    %v4573 = vadd.f32 0.0, %v4572
    %v4574 = vpop.f32.mrb[0].mxu0
    %4575 = vdwg.mxu0
    %v4576 = vmul.f32 %v4573, 0.35355338
    %v4577 = vsel %vm842, %v4576, -inf
    %4578 = vmax.xlane.f32.xlu0 %v4577
    %v4579 = vpop.xlane.xlu0 %4578
    %v4580 = vsub.f32 %v4576, %v4579
    %v4581 = vmul.f32 %v4580, 1.442695
    %v4582 = vpow.pop %v4581
    %v4583 = vsel %vm842, %v4582, 0.0
    %4584 = vadd.xlane.f32.xlu0 %v4583
    %v4585 = vpop.xlane.xlu0 %4584
    %v4586 = vrcp.pop %v4585
    %v4587 = vmul.f32 %v4582, %v4586
    %v4589 = vsel %vm842, %v4587, 0
    %4591 = vmatprep.subr.mxu0 0.0
    %4592 = vmatpush1.msra.mxu0 %v4497
    %4593 = vmatprep.subr.mxu0 0.0
    %4594 = vmatpush1.msra.mxu0 0.0
    %4595 = vmatprep.subr.mxu0 0.0
    %4596 = vmatpush1.msra.mxu0 0.0
    %4597 = vmatprep.subr.mxu0 0.0
    %4598 = vmatpush1.msra.mxu0 0.0
    %4599 = vmatprep.subr.mxu0 0.0
    %4600 = vmatpush1.msra.mxu0 0.0
    %4601 = vmatprep.subr.mxu0 0.0
    %4602 = vmatpush1.msra.mxu0 0.0
    %4603 = vmatprep.subr.mxu0 0.0
    %4604 = vmatpush1.msra.mxu0 0.0
    %4605 = vmatprep.subr.mxu0 0.0
    %4606 = vmatpush1.msra.mxu0 0.0
    %4607 = vmatprep.subr.mxu0 0.0
    %4608 = vmatpush1.msra.mxu0 0.0
    %4609 = vmatprep.subr.mxu0 0.0
    %4610 = vmatpush1.msra.mxu0 0.0
    %4611 = vmatprep.subr.mxu0 0.0
    %4612 = vmatpush1.msra.mxu0 0.0
    %4613 = vmatprep.subr.mxu0 0.0
    %4614 = vmatpush1.msra.mxu0 0.0
    %4615 = vmatprep.subr.mxu0 0.0
    %4616 = vmatpush1.msra.mxu0 0.0
    %4617 = vmatprep.subr.mxu0 0.0
    %4618 = vmatpush1.msra.mxu0 0.0
    %4619 = vmatprep.subr.mxu0 0.0
    %4620 = vmatpush1.msra.mxu0 0.0
    %4621 = vmatprep.subr.mxu0 0.0
    %4622 = vmatpush1.msra.mxu0 0.0
    %4623 = vmatprep.subr.mxu0 0.0
    %4624 = vmatpush1.msra.mxu0 0.0
    %4625 = vmatprep.subr.mxu0 0.0
    %4626 = vmatpush1.msra.mxu0 0.0
    %4627 = vmatprep.subr.mxu0 0.0
    %4628 = vmatpush1.msra.mxu0 0.0
    %4629 = vmatprep.subr.mxu0 0.0
    %4630 = vmatpush1.msra.mxu0 0.0
    %4631 = vmatprep.subr.mxu0 0.0
    %4632 = vmatpush1.msra.mxu0 0.0
    %4633 = vmatprep.subr.mxu0 0.0
    %4634 = vmatpush1.msra.mxu0 0.0
    %4635 = vmatprep.subr.mxu0 0.0
    %4636 = vmatpush1.msra.mxu0 0.0
    %4637 = vmatprep.subr.mxu0 0.0
    %4638 = vmatpush1.msra.mxu0 0.0
    %4639 = vmatprep.subr.mxu0 0.0
    %4640 = vmatpush1.msra.mxu0 0.0
    %4641 = vmatprep.subr.mxu0 0.0
    %4642 = vmatpush1.msra.mxu0 0.0
    %4643 = vmatprep.subr.mxu0 0.0
    %4644 = vmatpush1.msra.mxu0 0.0
    %4645 = vmatprep.subr.mxu0 0.0
    %4646 = vmatpush1.msra.mxu0 0.0
    %4647 = vmatprep.subr.mxu0 0.0
    %4648 = vmatpush1.msra.mxu0 0.0
    %4649 = vmatprep.subr.mxu0 0.0
    %4650 = vmatpush1.msra.mxu0 0.0
    %4651 = vmatprep.subr.mxu0 0.0
    %4652 = vmatpush1.msra.mxu0 0.0
    %4653 = vmatprep.subr.mxu0 0.0
    %4654 = vmatpush1.msra.mxu0 0.0
    %4655 = vmatprep.mubr.f32.mxu0 0.0
    %4656 = vmatmul.mubr.f32.gmra.mrb[0].mxu0 %v4589
    %v4657 = vpop.f32.mrb[0].mxu0
    %v4658 = vadd.f32 0.0, %v4657
    %v4659 = vpop.f32.mrb[0].mxu0
    %4660 = vdwg.mxu0
    %s4661 = scalar_lea.vmem %s12, 56
    %v4662 = vld [vmem:[%s4661] sm:$0xff]
    %v4664 = vsel %vm842, %v4658, 0
    %4666 = vmatprep.subr.mxu0 0.0
    %4667 = vmatpush1.msra.mxu0 %v4662
    %4668 = vmatprep.subr.mxu0 0.0
    %4669 = vmatpush1.msra.mxu0 0.0
    %4670 = vmatprep.subr.mxu0 0.0
    %4671 = vmatpush1.msra.mxu0 0.0
    %4672 = vmatprep.subr.mxu0 0.0
    %4673 = vmatpush1.msra.mxu0 0.0
    %4674 = vmatprep.subr.mxu0 0.0
    %4675 = vmatpush1.msra.mxu0 0.0
    %4676 = vmatprep.subr.mxu0 0.0
    %4677 = vmatpush1.msra.mxu0 0.0
    %4678 = vmatprep.subr.mxu0 0.0
    %4679 = vmatpush1.msra.mxu0 0.0
    %4680 = vmatprep.subr.mxu0 0.0
    %4681 = vmatpush1.msra.mxu0 0.0
    %4682 = vmatprep.subr.mxu0 0.0
    %4683 = vmatpush1.msra.mxu0 0.0
    %4684 = vmatprep.subr.mxu0 0.0
    %4685 = vmatpush1.msra.mxu0 0.0
    %4686 = vmatprep.subr.mxu0 0.0
    %4687 = vmatpush1.msra.mxu0 0.0
    %4688 = vmatprep.subr.mxu0 0.0
    %4689 = vmatpush1.msra.mxu0 0.0
    %4690 = vmatprep.subr.mxu0 0.0
    %4691 = vmatpush1.msra.mxu0 0.0
    %4692 = vmatprep.subr.mxu0 0.0
    %4693 = vmatpush1.msra.mxu0 0.0
    %4694 = vmatprep.subr.mxu0 0.0
    %4695 = vmatpush1.msra.mxu0 0.0
    %4696 = vmatprep.subr.mxu0 0.0
    %4697 = vmatpush1.msra.mxu0 0.0
    %4698 = vmatprep.subr.mxu0 0.0
    %4699 = vmatpush1.msra.mxu0 0.0
    %4700 = vmatprep.subr.mxu0 0.0
    %4701 = vmatpush1.msra.mxu0 0.0
    %4702 = vmatprep.subr.mxu0 0.0
    %4703 = vmatpush1.msra.mxu0 0.0
    %4704 = vmatprep.subr.mxu0 0.0
    %4705 = vmatpush1.msra.mxu0 0.0
    %4706 = vmatprep.subr.mxu0 0.0
    %4707 = vmatpush1.msra.mxu0 0.0
    %4708 = vmatprep.subr.mxu0 0.0
    %4709 = vmatpush1.msra.mxu0 0.0
    %4710 = vmatprep.subr.mxu0 0.0
    %4711 = vmatpush1.msra.mxu0 0.0
    %4712 = vmatprep.subr.mxu0 0.0
    %4713 = vmatpush1.msra.mxu0 0.0
    %4714 = vmatprep.subr.mxu0 0.0
    %4715 = vmatpush1.msra.mxu0 0.0
    %4716 = vmatprep.subr.mxu0 0.0
    %4717 = vmatpush1.msra.mxu0 0.0
    %4718 = vmatprep.subr.mxu0 0.0
    %4719 = vmatpush1.msra.mxu0 0.0
    %4720 = vmatprep.subr.mxu0 0.0
    %4721 = vmatpush1.msra.mxu0 0.0
    %4722 = vmatprep.subr.mxu0 0.0
    %4723 = vmatpush1.msra.mxu0 0.0
    %4724 = vmatprep.subr.mxu0 0.0
    %4725 = vmatpush1.msra.mxu0 0.0
    %4726 = vmatprep.subr.mxu0 0.0
    %4727 = vmatpush1.msra.mxu0 0.0
    %4728 = vmatprep.subr.mxu0 0.0
    %4729 = vmatpush1.msra.mxu0 0.0
    %4730 = vmatprep.mubr.f32.mxu0 0.0
    %4731 = vmatmul.mubr.f32.gmra.mrb[0].mxu0 %v4664
    %v4732 = vpop.f32.mrb[0].mxu0
    %v4733 = vadd.f32 0.0, %v4732
    %v4734 = vpop.f32.mrb[0].mxu0
    %4735 = vdwg.mxu0
    %v4736 = vadd.f32 %v4250, %v4733
    %v4737 = vadd.f32 %v2781, %v4736
    %s4738 = scalar_lea.vmem %s18, 1
    %v4739 = vld [vmem:[%s4738] sm:$0x1]
    %s4740 = scalar_lea.vmem %s19, 1
    %v4741 = vld [vmem:[%s4740] sm:$0x1]
    %v4742 = vsel %vm606, %v4737, 0.0
    %4743 = vadd.xlane.f32.xlu0 %v4742
    %v4744 = vpop.xlane.xlu0 %4743
    %v4745 = vmul.f32 %v4744, %v2549
    %v4746 = vsub.f32 %v4737, %v4745
    %v4747 = vmul.f32 %v4746, %v4746
    %v4748 = vsel %vm606, %v4747, 0.0
    %4749 = vadd.xlane.f32.xlu0 %v4748
    %v4750 = vpop.xlane.xlu0 %4749
    %v4751 = vmul.f32 %v4750, %v2549
    %v4752 = vadd.f32 %v4751, 1e-05
    %v4753 = vrsqrt.pop %v4752
    %v4754 = vmul.f32 %v4746, %v4753
    %v4756 = vlaneseq
    %v4757 = vshrl.u32 %v4756, 7
    %v4758 = vsub.s32 0, %v4757
    %v4759 = vrot.slane %v4739, %v4758
    %v4761 = vmul.f32 %v4754, %v4759
    %v4763 = vlaneseq
    %v4764 = vshrl.u32 %v4763, 7
    %v4765 = vsub.s32 0, %v4764
    %v4766 = vrot.slane %v4741, %v4765
    %v4768 = vadd.f32 %v4761, %v4766
    %s4769 = scalar_lea.vmem %s14, 32
    %v4770 = vld [vmem:[%s4769] sm:$0xff]
    %v4771 = vld [vmem:[%s4769 + $0x8] sm:$0xff]
    %v4772 = vld [vmem:[%s4769 + $0x10] sm:$0xff]
    %v4773 = vld [vmem:[%s4769 + $0x18] sm:$0xff]
    %s4774 = scalar_lea.vmem %s15, 1
    %v4775 = vld [vmem:[%s4774] sm:$0x1]
    %v4777 = vlaneseq
    %v4778 = vshrl.u32 %v4777, 7
    %v4779 = vsub.s32 0, %v4778
    %v4780 = vrot.slane %v4775, %v4779
    %v4783 = vsel %vm606, %v4768, 0
    %4785 = vmatprep.subr.mxu0 0.0
    %4786 = vmatpush1.msra.mxu0 %v4770
    %4787 = vmatprep.subr.mxu0 0.0
    %4788 = vmatpush1.msra.mxu0 %v4771
    %4789 = vmatprep.subr.mxu0 0.0
    %4790 = vmatpush1.msra.mxu0 %v4772
    %4791 = vmatprep.subr.mxu0 0.0
    %4792 = vmatpush1.msra.mxu0 %v4773
    %4793 = vmatprep.subr.mxu0 0.0
    %4794 = vmatpush1.msra.mxu0 0.0
    %4795 = vmatprep.subr.mxu0 0.0
    %4796 = vmatpush1.msra.mxu0 0.0
    %4797 = vmatprep.subr.mxu0 0.0
    %4798 = vmatpush1.msra.mxu0 0.0
    %4799 = vmatprep.subr.mxu0 0.0
    %4800 = vmatpush1.msra.mxu0 0.0
    %4801 = vmatprep.subr.mxu0 0.0
    %4802 = vmatpush1.msra.mxu0 0.0
    %4803 = vmatprep.subr.mxu0 0.0
    %4804 = vmatpush1.msra.mxu0 0.0
    %4805 = vmatprep.subr.mxu0 0.0
    %4806 = vmatpush1.msra.mxu0 0.0
    %4807 = vmatprep.subr.mxu0 0.0
    %4808 = vmatpush1.msra.mxu0 0.0
    %4809 = vmatprep.subr.mxu0 0.0
    %4810 = vmatpush1.msra.mxu0 0.0
    %4811 = vmatprep.subr.mxu0 0.0
    %4812 = vmatpush1.msra.mxu0 0.0
    %4813 = vmatprep.subr.mxu0 0.0
    %4814 = vmatpush1.msra.mxu0 0.0
    %4815 = vmatprep.subr.mxu0 0.0
    %4816 = vmatpush1.msra.mxu0 0.0
    %4817 = vmatprep.subr.mxu0 0.0
    %4818 = vmatpush1.msra.mxu0 0.0
    %4819 = vmatprep.subr.mxu0 0.0
    %4820 = vmatpush1.msra.mxu0 0.0
    %4821 = vmatprep.subr.mxu0 0.0
    %4822 = vmatpush1.msra.mxu0 0.0
    %4823 = vmatprep.subr.mxu0 0.0
    %4824 = vmatpush1.msra.mxu0 0.0
    %4825 = vmatprep.subr.mxu0 0.0
    %4826 = vmatpush1.msra.mxu0 0.0
    %4827 = vmatprep.subr.mxu0 0.0
    %4828 = vmatpush1.msra.mxu0 0.0
    %4829 = vmatprep.subr.mxu0 0.0
    %4830 = vmatpush1.msra.mxu0 0.0
    %4831 = vmatprep.subr.mxu0 0.0
    %4832 = vmatpush1.msra.mxu0 0.0
    %4833 = vmatprep.subr.mxu0 0.0
    %4834 = vmatpush1.msra.mxu0 0.0
    %4835 = vmatprep.subr.mxu0 0.0
    %4836 = vmatpush1.msra.mxu0 0.0
    %4837 = vmatprep.subr.mxu0 0.0
    %4838 = vmatpush1.msra.mxu0 0.0
    %4839 = vmatprep.subr.mxu0 0.0
    %4840 = vmatpush1.msra.mxu0 0.0
    %4841 = vmatprep.subr.mxu0 0.0
    %4842 = vmatpush1.msra.mxu0 0.0
    %4843 = vmatprep.subr.mxu0 0.0
    %4844 = vmatpush1.msra.mxu0 0.0
    %4845 = vmatprep.subr.mxu0 0.0
    %4846 = vmatpush1.msra.mxu0 0.0
    %4847 = vmatprep.subr.mxu0 0.0
    %4848 = vmatpush1.msra.mxu0 0.0
    %4849 = vmatprep.mubr.f32.mxu0 0.0
    %4850 = vmatmul.mubr.f32.gmra.mrb[0].mxu0 %v4783
    %v4851 = vpop.f32.mrb[0].mxu0
    %v4852 = vadd.f32 %v4780, %v4851
    %v4853 = vpop.f32.mrb[0].mxu0
    %4854 = vdwg.mxu0
    %v4855 = vmax.f32 %v4852, 0.0
    %s4856 = scalar_lea.vmem %s16, 128
    %v4857 = vld [vmem:[%s4856] sm:$0xff]
    %v4858 = vld [vmem:[%s4856 + $0x8] sm:$0xff]
    %v4859 = vld [vmem:[%s4856 + $0x10] sm:$0xff]
    %v4860 = vld [vmem:[%s4856 + $0x18] sm:$0xff]
    %v4861 = vld [vmem:[%s4856 + $0x20] sm:$0xff]
    %v4862 = vld [vmem:[%s4856 + $0x28] sm:$0xff]
    %v4863 = vld [vmem:[%s4856 + $0x30] sm:$0xff]
    %v4864 = vld [vmem:[%s4856 + $0x38] sm:$0xff]
    %v4865 = vld [vmem:[%s4856 + $0x40] sm:$0xff]
    %v4866 = vld [vmem:[%s4856 + $0x48] sm:$0xff]
    %v4867 = vld [vmem:[%s4856 + $0x50] sm:$0xff]
    %v4868 = vld [vmem:[%s4856 + $0x58] sm:$0xff]
    %v4869 = vld [vmem:[%s4856 + $0x60] sm:$0xff]
    %v4870 = vld [vmem:[%s4856 + $0x68] sm:$0xff]
    %v4871 = vld [vmem:[%s4856 + $0x70] sm:$0xff]
    %v4872 = vld [vmem:[%s4856 + $0x78] sm:$0xff]
    %s4873 = scalar_lea.vmem %s17, 1
    %v4874 = vld [vmem:[%s4873] sm:$0x1]
    %v4876 = vlaneseq
    %v4877 = vshrl.u32 %v4876, 7
    %v4878 = vsub.s32 0, %v4877
    %v4879 = vrot.slane %v4874, %v4878
    %4881 = vmatprep.subr.mxu0 0.0
    %4882 = vmatpush1.msra.mxu0 %v4857
    %4883 = vmatprep.subr.mxu0 0.0
    %4884 = vmatpush1.msra.mxu0 %v4858
    %4885 = vmatprep.subr.mxu0 0.0
    %4886 = vmatpush1.msra.mxu0 %v4859
    %4887 = vmatprep.subr.mxu0 0.0
    %4888 = vmatpush1.msra.mxu0 %v4860
    %4889 = vmatprep.subr.mxu0 0.0
    %4890 = vmatpush1.msra.mxu0 %v4861
    %4891 = vmatprep.subr.mxu0 0.0
    %4892 = vmatpush1.msra.mxu0 %v4862
    %4893 = vmatprep.subr.mxu0 0.0
    %4894 = vmatpush1.msra.mxu0 %v4863
    %4895 = vmatprep.subr.mxu0 0.0
    %4896 = vmatpush1.msra.mxu0 %v4864
    %4897 = vmatprep.subr.mxu0 0.0
    %4898 = vmatpush1.msra.mxu0 %v4865
    %4899 = vmatprep.subr.mxu0 0.0
    %4900 = vmatpush1.msra.mxu0 %v4866
    %4901 = vmatprep.subr.mxu0 0.0
    %4902 = vmatpush1.msra.mxu0 %v4867
    %4903 = vmatprep.subr.mxu0 0.0
    %4904 = vmatpush1.msra.mxu0 %v4868
    %4905 = vmatprep.subr.mxu0 0.0
    %4906 = vmatpush1.msra.mxu0 %v4869
    %4907 = vmatprep.subr.mxu0 0.0
    %4908 = vmatpush1.msra.mxu0 %v4870
    %4909 = vmatprep.subr.mxu0 0.0
    %4910 = vmatpush1.msra.mxu0 %v4871
    %4911 = vmatprep.subr.mxu0 0.0
    %4912 = vmatpush1.msra.mxu0 %v4872
    %4913 = vmatprep.subr.mxu0 0.0
    %4914 = vmatpush1.msra.mxu0 0.0
    %4915 = vmatprep.subr.mxu0 0.0
    %4916 = vmatpush1.msra.mxu0 0.0
    %4917 = vmatprep.subr.mxu0 0.0
    %4918 = vmatpush1.msra.mxu0 0.0
    %4919 = vmatprep.subr.mxu0 0.0
    %4920 = vmatpush1.msra.mxu0 0.0
    %4921 = vmatprep.subr.mxu0 0.0
    %4922 = vmatpush1.msra.mxu0 0.0
    %4923 = vmatprep.subr.mxu0 0.0
    %4924 = vmatpush1.msra.mxu0 0.0
    %4925 = vmatprep.subr.mxu0 0.0
    %4926 = vmatpush1.msra.mxu0 0.0
    %4927 = vmatprep.subr.mxu0 0.0
    %4928 = vmatpush1.msra.mxu0 0.0
    %4929 = vmatprep.subr.mxu0 0.0
    %4930 = vmatpush1.msra.mxu0 0.0
    %4931 = vmatprep.subr.mxu0 0.0
    %4932 = vmatpush1.msra.mxu0 0.0
    %4933 = vmatprep.subr.mxu0 0.0
    %4934 = vmatpush1.msra.mxu0 0.0
    %4935 = vmatprep.subr.mxu0 0.0
    %4936 = vmatpush1.msra.mxu0 0.0
    %4937 = vmatprep.subr.mxu0 0.0
    %4938 = vmatpush1.msra.mxu0 0.0
    %4939 = vmatprep.subr.mxu0 0.0
    %4940 = vmatpush1.msra.mxu0 0.0
    %4941 = vmatprep.subr.mxu0 0.0
    %4942 = vmatpush1.msra.mxu0 0.0
    %4943 = vmatprep.subr.mxu0 0.0
    %4944 = vmatpush1.msra.mxu0 0.0
    %4945 = vmatprep.mubr.f32.mxu0 0.0
    %4946 = vmatmul.mubr.f32.gmra.mrb[0].mxu0 %v4855
    %v4947 = vpop.f32.mrb[0].mxu0
    %v4948 = vadd.f32 %v4879, %v4947
    %v4949 = vpop.f32.mrb[0].mxu0
    %4950 = vdwg.mxu0
    %v4951 = vadd.f32 %v4768, %v4948
    %s4952 = scalar_lea.vmem %s20, 1
    %v4953 = vld [vmem:[%s4952] sm:$0x1]
    %s4954 = scalar_lea.vmem %s21, 1
    %v4955 = vld [vmem:[%s4954] sm:$0x1]
    %v4956 = vsel %vm606, %v4951, 0.0
    %4957 = vadd.xlane.f32.xlu0 %v4956
    %v4958 = vpop.xlane.xlu0 %4957
    %v4959 = vmul.f32 %v4958, %v2549
    %v4960 = vsub.f32 %v4951, %v4959
    %v4961 = vmul.f32 %v4960, %v4960
    %v4962 = vsel %vm606, %v4961, 0.0
    %4963 = vadd.xlane.f32.xlu0 %v4962
    %v4964 = vpop.xlane.xlu0 %4963
    %v4965 = vmul.f32 %v4964, %v2549
    %v4966 = vadd.f32 %v4965, 1e-05
    %v4967 = vrsqrt.pop %v4966
    %v4968 = vmul.f32 %v4960, %v4967
    %v4970 = vlaneseq
    %v4971 = vshrl.u32 %v4970, 7
    %v4972 = vsub.s32 0, %v4971
    %v4973 = vrot.slane %v4953, %v4972
    %v4975 = vmul.f32 %v4968, %v4973
    %v4977 = vlaneseq
    %v4978 = vshrl.u32 %v4977, 7
    %v4979 = vsub.s32 0, %v4978
    %v4980 = vrot.slane %v4955, %v4979
    %v4982 = vadd.f32 %v4975, %v4980
    %v4983 = vld [vmem:[%s22] sm:$0xff]
    %v4984 = vld [vmem:[%s22 + $0x8] sm:$0xff]
    %v4985 = vld [vmem:[%s22 + $0x10] sm:$0xff]
    %v4986 = vld [vmem:[%s22 + $0x18] sm:$0xff]
    %v4987 = vld [vmem:[%s23] sm:$0x1]
    %v4989 = vlaneseq
    %v4990 = vshrl.u32 %v4989, 7
    %v4991 = vsub.s32 0, %v4990
    %v4992 = vrot.slane %v4987, %v4991
    %v4995 = vsel %vm606, %v4982, 0
    %4997 = vmatprep.subr.mxu0 0.0
    %4998 = vmatpush1.msra.mxu0 %v4983
    %4999 = vmatprep.subr.mxu0 0.0
    %5000 = vmatpush1.msra.mxu0 %v4984
    %5001 = vmatprep.subr.mxu0 0.0
    %5002 = vmatpush1.msra.mxu0 %v4985
    %5003 = vmatprep.subr.mxu0 0.0
    %5004 = vmatpush1.msra.mxu0 %v4986
    %5005 = vmatprep.subr.mxu0 0.0
    %5006 = vmatpush1.msra.mxu0 0.0
    %5007 = vmatprep.subr.mxu0 0.0
    %5008 = vmatpush1.msra.mxu0 0.0
    %5009 = vmatprep.subr.mxu0 0.0
    %5010 = vmatpush1.msra.mxu0 0.0
    %5011 = vmatprep.subr.mxu0 0.0
    %5012 = vmatpush1.msra.mxu0 0.0
    %5013 = vmatprep.subr.mxu0 0.0
    %5014 = vmatpush1.msra.mxu0 0.0
    %5015 = vmatprep.subr.mxu0 0.0
    %5016 = vmatpush1.msra.mxu0 0.0
    %5017 = vmatprep.subr.mxu0 0.0
    %5018 = vmatpush1.msra.mxu0 0.0
    %5019 = vmatprep.subr.mxu0 0.0
    %5020 = vmatpush1.msra.mxu0 0.0
    %5021 = vmatprep.subr.mxu0 0.0
    %5022 = vmatpush1.msra.mxu0 0.0
    %5023 = vmatprep.subr.mxu0 0.0
    %5024 = vmatpush1.msra.mxu0 0.0
    %5025 = vmatprep.subr.mxu0 0.0
    %5026 = vmatpush1.msra.mxu0 0.0
    %5027 = vmatprep.subr.mxu0 0.0
    %5028 = vmatpush1.msra.mxu0 0.0
    %5029 = vmatprep.subr.mxu0 0.0
    %5030 = vmatpush1.msra.mxu0 0.0
    %5031 = vmatprep.subr.mxu0 0.0
    %5032 = vmatpush1.msra.mxu0 0.0
    %5033 = vmatprep.subr.mxu0 0.0
    %5034 = vmatpush1.msra.mxu0 0.0
    %5035 = vmatprep.subr.mxu0 0.0
    %5036 = vmatpush1.msra.mxu0 0.0
    %5037 = vmatprep.subr.mxu0 0.0
    %5038 = vmatpush1.msra.mxu0 0.0
    %5039 = vmatprep.subr.mxu0 0.0
    %5040 = vmatpush1.msra.mxu0 0.0
    %5041 = vmatprep.subr.mxu0 0.0
    %5042 = vmatpush1.msra.mxu0 0.0
    %5043 = vmatprep.subr.mxu0 0.0
    %5044 = vmatpush1.msra.mxu0 0.0
    %5045 = vmatprep.subr.mxu0 0.0
    %5046 = vmatpush1.msra.mxu0 0.0
    %5047 = vmatprep.subr.mxu0 0.0
    %5048 = vmatpush1.msra.mxu0 0.0
    %5049 = vmatprep.subr.mxu0 0.0
    %5050 = vmatpush1.msra.mxu0 0.0
    %5051 = vmatprep.subr.mxu0 0.0
    %5052 = vmatpush1.msra.mxu0 0.0
    %5053 = vmatprep.subr.mxu0 0.0
    %5054 = vmatpush1.msra.mxu0 0.0
    %5055 = vmatprep.subr.mxu0 0.0
    %5056 = vmatpush1.msra.mxu0 0.0
    %5057 = vmatprep.subr.mxu0 0.0
    %5058 = vmatpush1.msra.mxu0 0.0
    %5059 = vmatprep.subr.mxu0 0.0
    %5060 = vmatpush1.msra.mxu0 0.0
    %5061 = vmatprep.mubr.f32.mxu0 0.0
    %5062 = vmatmul.mubr.f32.gmra.mrb[0].mxu0 %v4995
    %v5063 = vpop.f32.mrb[0].mxu0
    %v5064 = vadd.f32 %v4992, %v5063
    %v5065 = vpop.f32.mrb[0].mxu0
    %5066 = vdwg.mxu0
    %5067 = vst.msk [vmem:[#allocation2] sm:$0xff] %vm842, %v5064
    // Predicated region
    $region98: #{sor_forward.5} parent=1 // pred_check
      _
    $region99: #{sor_forward.5} parent=1 // pred_check_branch
      %5069 = sbr.rel (0) target = $region101
    $region100: #{sor_forward.5} parent=1 // pred_region
      %s5071 = ssub.s32 128, 128
      %5072 = vsyncadd [#allocation3], %s5071
      %s5074 = sshll.u32 [#allocation2], 4
      %s5075 = int_to_ptr.vmem [resolvable:$true] %s5074
      %5077 = dma.vmem_to_hbm [thread:$0]  %s5075, 128, %s24, [#allocation3]
    $region101: #{sor_forward.5} parent=1 // pred_fallthru
      _
    // Predicated region
    $region102: #{sor_forward.5} parent=1 // pred_check
      _
    $region103: #{sor_forward.5} parent=1 // pred_check_branch
      %5079 = sbr.rel (0) target = $region105
    $region104: #{sor_forward.5} parent=1 // pred_region
      %5080 = dma.done [#allocation3], 128
    $region105: #{sor_forward.5} parent=1 // pred_fallthru
      _
    %5081 = vsyncpa [#allocation3], 1

</llo_original>
